<compile_context>
chip_gen: v6e
topology: v6e:2x2x1
jax: 0.10.0
libtpu: 0.0.40
codegen_flags: <defaults>
</compile_context>

<pallas_src>
import jax
import jax.numpy as jnp
from jax.experimental import pallas as pl
from jax.experimental.pallas import tpu as pltpu


# ----------------------------------------------------------------------------
# Model dimensions
# ----------------------------------------------------------------------------
EMBEDDING_DIM = 128
HIDDEN_DIMS = [256, 128]
OUTPUT_DIM = 64

# Synthetic feature config (CUSTOMER_CATEGORICAL_FEATURES / _NUMERICAL_FEATURES
# are not provided in the prompt; these stand in for them).
CUSTOMER_CATEGORICAL_FEATURES = {
    "customer_segment": {"num_categories": 40},   # embed_dim = 10
    "region":           {"num_categories": 16},   # embed_dim = 8
    "loyalty_tier":     {"num_categories": 100},  # embed_dim = 25
}
CUSTOMER_NUMERICAL_FEATURES = ["age", "tenure", "spend_30d", "orders_90d", "recency"]


def _round_up(x, m):
    return (x + m - 1) // m * m


def _choose_tile_b(B):
    # Aim for >=2 grid steps (v7x megacore via dimension_semantics=("parallel",)),
    # 256-row granularity to fill the MXU M dim on v6e/v7x (128 suffices on v5e),
    # cap at 1024 rows (VMEM stays tiny; amortizes per-grid-step overhead).
    target = _round_up(max(1, (B + 1) // 2), 256)
    return max(256, min(1024, target))


# ----------------------------------------------------------------------------
# Pallas kernel: fused (gather+concat+Linear) + 3-layer MLP + L2-norm per tile
# ----------------------------------------------------------------------------
def make_customer_tower_kernel(n_categories):
    n_cat = len(n_categories)

    def kernel(idx_ref, num_ref, *refs):
        o_ref = refs[-1]
        table_refs = refs[:n_cat]
        (w0n_ref, b0_ref, w1_ref, b1_ref,
         w2_ref, b2_ref, w3_ref, b3_ref) = refs[n_cat:-1]

        tile_b = idx_ref.shape[0]
        idx = idx_ref[...]                      # (tile_b, n_cat) int32

        # --- Layer 0 (MultiFeatureEmbedding projection), W0 folded into tables:
        #     concat(emb_f..., num) @ W0 == sum_f onehot(idx_f) @ (T_f @ W0_f)
        #                                   + num @ W0_num
        h = jnp.dot(num_ref[...].astype(jnp.bfloat16), w0n_ref[...],
                    preferred_element_type=jnp.float32) + b0_ref[...]
        for f, n_f in enumerate(n_categories):
            onehot = (idx[:, f:f + 1] ==
                      jax.lax.broadcasted_iota(jnp.int32, (tile_b, n_f), 1)
                      ).astype(jnp.bfloat16)
            h = h + jnp.dot(onehot, table_refs[f][...],
                            preferred_element_type=jnp.float32)
        h = jnp.maximum(h, 0.0)

        # --- TowerEncoder MLP (dropout = identity in eval)
        h = jnp.dot(h.astype(jnp.bfloat16), w1_ref[...],
                    preferred_element_type=jnp.float32) + b1_ref[...]
        h = jnp.maximum(h, 0.0)
        h = jnp.dot(h.astype(jnp.bfloat16), w2_ref[...],
                    preferred_element_type=jnp.float32) + b2_ref[...]
        h = jnp.maximum(h, 0.0)
        h = jnp.dot(h.astype(jnp.bfloat16), w3_ref[...],
                    preferred_element_type=jnp.float32) + b3_ref[...]

        # --- nn.functional.normalize(p=2, dim=-1): x / max(||x||_2, 1e-12)
        #     == x * rsqrt(max(sumsq, 1e-24))  (EUP rsqrt, multiply not divide)
        sumsq = jnp.sum(h * h, axis=-1, keepdims=True)
        h = h * jax.lax.rsqrt(jnp.maximum(sumsq, 1e-24))
        o_ref[...] = h.astype(o_ref.dtype)

    return kernel


def customer_tower_pallas(idx, num, prep, tile_b=None, out_dtype=jnp.bfloat16):
    """idx: [B, n_cat] int32 category ids (feature order = prep['feature_names']).
    num: [B, num_dim] f32 numerical features. prep: output of prepare_params()."""
    B = idx.shape[0]
    n_cat = idx.shape[1]
    num_dim = num.shape[1]
    out_dim = prep["w3"].shape[1]

    if tile_b is None:
        tile_b = _choose_tile_b(B)
    Bp = _round_up(max(B, 1), tile_b)
    if Bp != B:
        # Pad rows with category 0 (valid) and zero numericals; sliced off below.
        idx = jnp.pad(idx, ((0, Bp - B), (0, 0)))
        num = jnp.pad(num, ((0, Bp - B), (0, 0)))
    n_tiles = Bp // tile_b

    weights = list(prep["tables"]) + [
        prep["w0_num"], prep["b0"],
        prep["w1"], prep["b1"],
        prep["w2"], prep["b2"],
        prep["w3"], prep["b3"],
    ]
    kernel = make_customer_tower_kernel(prep["n_categories"])

    def run(single_buffer_weights):
        def resident(a):
            # Grid-invariant full-array block: stays in VMEM across all batch tiles.
            nd = a.ndim
            kw = {}
            if single_buffer_weights:
                kw["pipeline_mode"] = pl.Buffered(1)   # no double-buffering needed
            return pl.BlockSpec(a.shape, lambda i, _nd=nd: (0,) * _nd, **kw)

        in_specs = [pl.BlockSpec((tile_b, n_cat), lambda i: (i, 0)),
                    pl.BlockSpec((tile_b, num_dim), lambda i: (i, 0))]
        in_specs += [resident(a) for a in weights]

        return pl.pallas_call(
            kernel,
            out_shape=jax.ShapeDtypeStruct((Bp, out_dim), out_dtype),
            grid=(n_tiles,),
            in_specs=in_specs,
            out_specs=pl.BlockSpec((tile_b, out_dim), lambda i: (i, 0)),
            compiler_params=pltpu.CompilerParams(
                dimension_semantics=("parallel",)),   # megacore batch sharding (v7x)
        )(idx, num, *weights)

    try:
        out = run(True)
    except Exception:
        # pl.Buffered(1) unsupported in this jax version -> default double-buffering
        # of the (tiny, grid-invariant) weight blocks. Purely a VMEM nicety.
        out = run(False)
    return out[:B]


# ----------------------------------------------------------------------------
# One-time parameter preparation (outside the hot path)
# ----------------------------------------------------------------------------
def prepare_params(params, cat_configs):
    """Fold W0 into the embedding tables (f32) and pre-cast MXU operands to bf16."""
    w0 = params["w0"]                                        # (concat_dim, 128) f32
    tables, n_categories, names = [], [], []
    offset = 0
    for name, (n, d) in cat_configs.items():
        t = params["cat_tables"][name]                       # (n, d) f32
        tables.append(jnp.dot(t, w0[offset:offset + d]).astype(jnp.bfloat16))
        n_categories.append(n)
        names.append(name)
        offset += d
    prep = {
        "feature_names": names,
        "n_categories": n_categories,
        "tables": tables,                                    # list of (n_f, 128) bf16
        "w0_num": w0[offset:].astype(jnp.bfloat16),          # (num_dim, 128) bf16
        "b0": params["b0"].astype(jnp.float32),
    }
    for i in (1, 2, 3):
        prep[f"w{i}"] = params[f"w{i}"].astype(jnp.bfloat16)
        prep[f"b{i}"] = params[f"b{i}"].astype(jnp.float32)
    return prep


def customer_tower_forward(categorical_features, numerical_features, prep):
    """Mirrors CustomerTower.forward(categorical_features, numerical_features)."""
    idx = jnp.stack([categorical_features[name].astype(jnp.int32)
                     for name in prep["feature_names"]], axis=-1)
    num = numerical_features.astype(jnp.float32)
    return customer_tower_pallas(idx, num, prep)


# ----------------------------------------------------------------------------
# Parameter construction (deterministic, synthetic)
# ----------------------------------------------------------------------------
def init_params(key):
    cat_configs = {}
    for name, cfg in CUSTOMER_CATEGORICAL_FEATURES.items():
        n = cfg["num_categories"]
        cat_configs[name] = (n, min(32, max(8, n // 4)))

    num_dim = len(CUSTOMER_NUMERICAL_FEATURES)
    concat_dim = sum(d for (_, d) in cat_configs.values()) + num_dim

    keys = jax.random.split(key, 16)
    ki = iter(range(16))

    def dense(k, fan_in, fan_out):
        scale = 1.0 / jnp.sqrt(jnp.float32(fan_in))
        return jax.random.uniform(k, (fan_in, fan_out), jnp.float32, -scale, scale)

    params = {"cat_tables": {}}
    for name, (n, d) in cat_configs.items():
        params["cat_tables"][name] = jax.random.normal(
            keys[next(ki)], (n, d), jnp.float32) * 0.05

    dims = [concat_dim, EMBEDDING_DIM, HIDDEN_DIMS[0], HIDDEN_DIMS[1], OUTPUT_DIM]
    for li in range(4):
        params[f"w{li}"] = dense(keys[next(ki)], dims[li], dims[li + 1])
        params[f"b{li}"] = jnp.zeros((1, dims[li + 1]), jnp.float32) + 0.01 * li

    return params, cat_configs, concat_dim


# ----------------------------------------------------------------------------
# References
# ----------------------------------------------------------------------------
def reference_forward_f32(categorical_features, numerical_features, params):
    """True PyTorch-semantics forward, all f32."""
    parts = [jnp.take(params["cat_tables"][name],
                      categorical_features[name], axis=0)
             for name in CUSTOMER_CATEGORICAL_FEATURES]
    parts.append(numerical_features.astype(jnp.float32))
    h = jnp.concatenate(parts, axis=-1)
    for i in range(4):
        h = jnp.dot(h, params[f"w{i}"],
                    preferred_element_type=jnp.float32) + params[f"b{i}"]
        if i < 3:
            h = jnp.maximum(h, 0.0)
    norm = jnp.sqrt(jnp.sum(h * h, axis=-1, keepdims=True))
    return h / jnp.maximum(norm, 1e-12)


def reference_forward_matched(idx, num, prep):
    """Plain-JAX reference using the exact same folded-table / bf16-MXU recipe."""
    h = jnp.dot(num.astype(jnp.bfloat16), prep["w0_num"],
                preferred_element_type=jnp.float32) + prep["b0"]
    for f, t in enumerate(prep["tables"]):
        h = h + jnp.take(t, idx[:, f], axis=0).astype(jnp.float32)
    h = jnp.maximum(h, 0.0)
    for i in (1, 2, 3):
        h = jnp.dot(h.astype(jnp.bfloat16), prep[f"w{i}"],
                    preferred_element_type=jnp.float32) + prep[f"b{i}"]
        if i < 3:
            h = jnp.maximum(h, 0.0)
    scale = jax.lax.rsqrt(jnp.maximum(jnp.sum(h * h, axis=-1, keepdims=True), 1e-24))
    return (h * scale).astype(jnp.bfloat16)


if __name__ == "__main__":
    key = jax.random.PRNGKey(0)
    pkey, dkey = jax.random.split(key)
    params, cat_configs, concat_dim = init_params(pkey)
    prep = prepare_params(params, cat_configs)   # one-time fold + bf16 precast

    # Small logical batch; non-multiple of the tile to exercise padding + 2 tiles.
    B = 300
    k1, k2, k3, k4 = jax.random.split(dkey, 4)
    categorical_features = {
        "customer_segment": jax.random.randint(k1, (B,), 0, 40),
        "region":           jax.random.randint(k2, (B,), 0, 16),
        "loyalty_tier":     jax.random.randint(k3, (B,), 0, 100),
    }
    numerical_features = jax.random.normal(
        k4, (B, len(CUSTOMER_NUMERICAL_FEATURES)), jnp.float32)

    out = customer_tower_forward(categorical_features, numerical_features, prep)
    out = jax.block_until_ready(out)
    assert out.shape == (B, OUTPUT_DIM), out.shape
    out_f32 = out.astype(jnp.float32)

    # Tight check against the matched-precision (bf16 MXU, f32 accum) reference.
    idx = jnp.stack([categorical_features[n].astype(jnp.int32)
                     for n in prep["feature_names"]], axis=-1)
    ref_m = reference_forward_matched(idx, numerical_features, prep).astype(jnp.float32)
    assert jnp.allclose(out_f32, ref_m, atol=5e-3, rtol=5e-3), float(
        jnp.max(jnp.abs(out_f32 - ref_m)))

    # Fidelity check against the true f32 PyTorch semantics. Looser tolerance is
    # the expected bf16-input / f32-accumulate MXU deviation (few 1e-3 typical).
    ref_f32 = reference_forward_f32(categorical_features, numerical_features, params)
    assert jnp.allclose(out_f32, ref_f32, atol=2e-2, rtol=2e-2), float(
        jnp.max(jnp.abs(out_f32 - ref_f32)))

    # Unit-norm check (bf16 output rounding allowed for).
    assert jnp.allclose(jnp.linalg.norm(out_f32, axis=-1), 1.0, atol=1e-2)

    print("KERNEL_OK")
</pallas_src>

<mosaic_0001>
module attributes {stable_mosaic.version = 11 : i64} {
  func.func @kernel(%arg0: i32, %arg1: memref<256x3xi32, #tpu.memory_space<vmem>>, %arg2: memref<256x5xf32, #tpu.memory_space<vmem>>, %arg3: memref<40x128xbf16, #tpu.memory_space<vmem>>, %arg4: memref<16x128xbf16, #tpu.memory_space<vmem>>, %arg5: memref<100x128xbf16, #tpu.memory_space<vmem>>, %arg6: memref<5x128xbf16, #tpu.memory_space<vmem>>, %arg7: memref<1x128xf32, #tpu.memory_space<vmem>>, %arg8: memref<128x256xbf16, #tpu.memory_space<vmem>>, %arg9: memref<1x256xf32, #tpu.memory_space<vmem>>, %arg10: memref<256x128xbf16, #tpu.memory_space<vmem>>, %arg11: memref<1x128xf32, #tpu.memory_space<vmem>>, %arg12: memref<128x64xbf16, #tpu.memory_space<vmem>>, %arg13: memref<1x64xf32, #tpu.memory_space<vmem>>, %arg14: memref<256x64xbf16, #tpu.memory_space<vmem>>) attributes {dimension_semantics = [#tpu.dimension_semantics<parallel>], iteration_bounds = array<i64: 2>, scalar_prefetch = 0 : i64, scratch_operands = 0 : i64, tpu.core_type = #tpu.core_type<tc>, window_params = [{transform_indices = @transform_0, window_bounds = array<i64: 256, 3>}, {transform_indices = @transform_1, window_bounds = array<i64: 256, 5>}, {pipeline_mode = #tpu.pipeline_mode<synchronous>, transform_indices = @transform_2, window_bounds = array<i64: 40, 128>}, {pipeline_mode = #tpu.pipeline_mode<synchronous>, transform_indices = @transform_3, window_bounds = array<i64: 16, 128>}, {pipeline_mode = #tpu.pipeline_mode<synchronous>, transform_indices = @transform_4, window_bounds = array<i64: 100, 128>}, {pipeline_mode = #tpu.pipeline_mode<synchronous>, transform_indices = @transform_5, window_bounds = array<i64: 5, 128>}, {pipeline_mode = #tpu.pipeline_mode<synchronous>, transform_indices = @transform_6, window_bounds = array<i64: 1, 128>}, {pipeline_mode = #tpu.pipeline_mode<synchronous>, transform_indices = @transform_7, window_bounds = array<i64: 128, 256>}, {pipeline_mode = #tpu.pipeline_mode<synchronous>, transform_indices = @transform_8, window_bounds = array<i64: 1, 256>}, {pipeline_mode = #tpu.pipeline_mode<synchronous>, transform_indices = @transform_9, window_bounds = array<i64: 256, 128>}, {pipeline_mode = #tpu.pipeline_mode<synchronous>, transform_indices = @transform_10, window_bounds = array<i64: 1, 128>}, {pipeline_mode = #tpu.pipeline_mode<synchronous>, transform_indices = @transform_11, window_bounds = array<i64: 128, 64>}, {pipeline_mode = #tpu.pipeline_mode<synchronous>, transform_indices = @transform_12, window_bounds = array<i64: 1, 64>}, {transform_indices = @transform_13, window_bounds = array<i64: 256, 64>}]} {
    %c0 = arith.constant 0 : index
    %c0_0 = arith.constant 0 : index
    %0 = vector.load %arg1[%c0, %c0_0] : memref<256x3xi32, #tpu.memory_space<vmem>>, vector<256x3xi32>
    %c0_1 = arith.constant 0 : index
    %c0_2 = arith.constant 0 : index
    %1 = vector.load %arg2[%c0_1, %c0_2] : memref<256x5xf32, #tpu.memory_space<vmem>>, vector<256x5xf32>
    %2 = arith.truncf %1 : vector<256x5xf32> to vector<256x5xbf16>
    %c0_3 = arith.constant 0 : index
    %c0_4 = arith.constant 0 : index
    %3 = vector.load %arg6[%c0_3, %c0_4] : memref<5x128xbf16, #tpu.memory_space<vmem>>, vector<5x128xbf16>
    %cst = arith.constant dense<0.000000e+00> : vector<256x128xf32>
    %4 = tpu.matmul %2, %3, %cst {dimension_numbers = #tpu.dot_dimension_numbers<[1], [0], [0], [1], [0, 0, 1, 1], [], []>} : vector<256x5xbf16>, vector<5x128xbf16>, vector<256x128xf32> -> vector<256x128xf32>
    %c0_5 = arith.constant 0 : index
    %c0_6 = arith.constant 0 : index
    %5 = vector.load %arg7[%c0_5, %c0_6] : memref<1x128xf32, #tpu.memory_space<vmem>>, vector<1x128xf32>
    %6 = vector.broadcast %5 : vector<1x128xf32> to vector<256x128xf32>
    %7 = arith.addf %4, %6 : vector<256x128xf32>
    %8 = vector.extract_strided_slice %0 {offsets = [0, 0], sizes = [256, 1], strides = [1, 1]} : vector<256x3xi32> to vector<256x1xi32>
    %9 = tpu.iota {dimensions = array<i32: 1>} : vector<256x40xi32>
    %10 = vector.broadcast %8 : vector<256x1xi32> to vector<256x40xi32>
    %11 = arith.cmpi eq, %10, %9 : vector<256x40xi32>
    %12 = arith.extui %11 : vector<256x40xi1> to vector<256x40xi32>
    %13 = arith.sitofp %12 : vector<256x40xi32> to vector<256x40xf32>
    %14 = arith.truncf %13 : vector<256x40xf32> to vector<256x40xbf16>
    %c0_7 = arith.constant 0 : index
    %c0_8 = arith.constant 0 : index
    %15 = vector.load %arg3[%c0_7, %c0_8] : memref<40x128xbf16, #tpu.memory_space<vmem>>, vector<40x128xbf16>
    %cst_9 = arith.constant dense<0.000000e+00> : vector<256x128xf32>
    %16 = tpu.matmul %14, %15, %cst_9 {dimension_numbers = #tpu.dot_dimension_numbers<[1], [0], [0], [1], [0, 0, 1, 1], [], []>} : vector<256x40xbf16>, vector<40x128xbf16>, vector<256x128xf32> -> vector<256x128xf32>
    %17 = arith.addf %7, %16 : vector<256x128xf32>
    %18 = vector.extract_strided_slice %0 {offsets = [0, 1], sizes = [256, 1], strides = [1, 1]} : vector<256x3xi32> to vector<256x1xi32>
    %19 = tpu.iota {dimensions = array<i32: 1>} : vector<256x16xi32>
    %20 = vector.broadcast %18 : vector<256x1xi32> to vector<256x16xi32>
    %21 = arith.cmpi eq, %20, %19 : vector<256x16xi32>
    %22 = arith.extui %21 : vector<256x16xi1> to vector<256x16xi32>
    %23 = arith.sitofp %22 : vector<256x16xi32> to vector<256x16xf32>
    %24 = arith.truncf %23 : vector<256x16xf32> to vector<256x16xbf16>
    %c0_10 = arith.constant 0 : index
    %c0_11 = arith.constant 0 : index
    %25 = vector.load %arg4[%c0_10, %c0_11] : memref<16x128xbf16, #tpu.memory_space<vmem>>, vector<16x128xbf16>
    %cst_12 = arith.constant dense<0.000000e+00> : vector<256x128xf32>
    %26 = tpu.matmul %24, %25, %cst_12 {dimension_numbers = #tpu.dot_dimension_numbers<[1], [0], [0], [1], [0, 0, 1, 1], [], []>} : vector<256x16xbf16>, vector<16x128xbf16>, vector<256x128xf32> -> vector<256x128xf32>
    %27 = arith.addf %17, %26 : vector<256x128xf32>
    %28 = vector.extract_strided_slice %0 {offsets = [0, 2], sizes = [256, 1], strides = [1, 1]} : vector<256x3xi32> to vector<256x1xi32>
    %29 = tpu.iota {dimensions = array<i32: 1>} : vector<256x100xi32>
    %30 = vector.broadcast %28 : vector<256x1xi32> to vector<256x100xi32>
    %31 = arith.cmpi eq, %30, %29 : vector<256x100xi32>
    %32 = arith.extui %31 : vector<256x100xi1> to vector<256x100xi32>
    %33 = arith.sitofp %32 : vector<256x100xi32> to vector<256x100xf32>
    %34 = arith.truncf %33 : vector<256x100xf32> to vector<256x100xbf16>
    %c0_13 = arith.constant 0 : index
    %c0_14 = arith.constant 0 : index
    %35 = vector.load %arg5[%c0_13, %c0_14] : memref<100x128xbf16, #tpu.memory_space<vmem>>, vector<100x128xbf16>
    %cst_15 = arith.constant dense<0.000000e+00> : vector<256x128xf32>
    %36 = tpu.matmul %34, %35, %cst_15 {dimension_numbers = #tpu.dot_dimension_numbers<[1], [0], [0], [1], [0, 0, 1, 1], [], []>} : vector<256x100xbf16>, vector<100x128xbf16>, vector<256x128xf32> -> vector<256x128xf32>
    %37 = arith.addf %27, %36 : vector<256x128xf32>
    %cst_16 = arith.constant 0.000000e+00 : f32
    %38 = vector.broadcast %cst_16 : f32 to vector<256x128xf32>
    %39 = arith.maximumf %37, %38 : vector<256x128xf32>
    %40 = arith.truncf %39 : vector<256x128xf32> to vector<256x128xbf16>
    %c0_17 = arith.constant 0 : index
    %c0_18 = arith.constant 0 : index
    %41 = vector.load %arg8[%c0_17, %c0_18] : memref<128x256xbf16, #tpu.memory_space<vmem>>, vector<128x256xbf16>
    %cst_19 = arith.constant dense<0.000000e+00> : vector<256x256xf32>
    %42 = tpu.matmul %40, %41, %cst_19 {dimension_numbers = #tpu.dot_dimension_numbers<[1], [0], [0], [1], [0, 0, 1, 1], [], []>} : vector<256x128xbf16>, vector<128x256xbf16>, vector<256x256xf32> -> vector<256x256xf32>
    %c0_20 = arith.constant 0 : index
    %c0_21 = arith.constant 0 : index
    %43 = vector.load %arg9[%c0_20, %c0_21] : memref<1x256xf32, #tpu.memory_space<vmem>>, vector<1x256xf32>
    %44 = vector.broadcast %43 : vector<1x256xf32> to vector<256x256xf32>
    %45 = arith.addf %42, %44 : vector<256x256xf32>
    %cst_22 = arith.constant 0.000000e+00 : f32
    %46 = vector.broadcast %cst_22 : f32 to vector<256x256xf32>
    %47 = arith.maximumf %45, %46 : vector<256x256xf32>
    %48 = arith.truncf %47 : vector<256x256xf32> to vector<256x256xbf16>
    %c0_23 = arith.constant 0 : index
    %c0_24 = arith.constant 0 : index
    %49 = vector.load %arg10[%c0_23, %c0_24] : memref<256x128xbf16, #tpu.memory_space<vmem>>, vector<256x128xbf16>
    %cst_25 = arith.constant dense<0.000000e+00> : vector<256x128xf32>
    %50 = tpu.matmul %48, %49, %cst_25 {dimension_numbers = #tpu.dot_dimension_numbers<[1], [0], [0], [1], [0, 0, 1, 1], [], []>} : vector<256x256xbf16>, vector<256x128xbf16>, vector<256x128xf32> -> vector<256x128xf32>
    %c0_26 = arith.constant 0 : index
    %c0_27 = arith.constant 0 : index
    %51 = vector.load %arg11[%c0_26, %c0_27] : memref<1x128xf32, #tpu.memory_space<vmem>>, vector<1x128xf32>
    %52 = vector.broadcast %51 : vector<1x128xf32> to vector<256x128xf32>
    %53 = arith.addf %50, %52 : vector<256x128xf32>
    %cst_28 = arith.constant 0.000000e+00 : f32
    %54 = vector.broadcast %cst_28 : f32 to vector<256x128xf32>
    %55 = arith.maximumf %53, %54 : vector<256x128xf32>
    %56 = arith.truncf %55 : vector<256x128xf32> to vector<256x128xbf16>
    %c0_29 = arith.constant 0 : index
    %c0_30 = arith.constant 0 : index
    %57 = vector.load %arg12[%c0_29, %c0_30] : memref<128x64xbf16, #tpu.memory_space<vmem>>, vector<128x64xbf16>
    %cst_31 = arith.constant dense<0.000000e+00> : vector<256x64xf32>
    %58 = tpu.matmul %56, %57, %cst_31 {dimension_numbers = #tpu.dot_dimension_numbers<[1], [0], [0], [1], [0, 0, 1, 1], [], []>} : vector<256x128xbf16>, vector<128x64xbf16>, vector<256x64xf32> -> vector<256x64xf32>
    %c0_32 = arith.constant 0 : index
    %c0_33 = arith.constant 0 : index
    %59 = vector.load %arg13[%c0_32, %c0_33] : memref<1x64xf32, #tpu.memory_space<vmem>>, vector<1x64xf32>
    %60 = vector.broadcast %59 : vector<1x64xf32> to vector<256x64xf32>
    %61 = arith.addf %58, %60 : vector<256x64xf32>
    %62 = arith.mulf %61, %61 : vector<256x64xf32>
    %cst_34 = arith.constant dense<0.000000e+00> : vector<256xf32>
    %63 = vector.multi_reduction <add>, %62, %cst_34 [1] : vector<256x64xf32> to vector<256xf32>
    %64 = vector.shape_cast %63 : vector<256xf32> to vector<256x1xf32>
    %cst_35 = arith.constant 1.000000e-24 : f32
    %65 = vector.broadcast %cst_35 : f32 to vector<256x1xf32>
    %66 = arith.maximumf %64, %65 : vector<256x1xf32>
    %67 = math.rsqrt %66 : vector<256x1xf32>
    %68 = vector.broadcast %67 : vector<256x1xf32> to vector<256x64xf32>
    %69 = arith.mulf %61, %68 : vector<256x64xf32>
    %70 = arith.truncf %69 : vector<256x64xf32> to vector<256x64xbf16>
    %c0_36 = arith.constant 0 : index
    %c0_37 = arith.constant 0 : index
    %71 = vector.load %arg14[%c0_36, %c0_37] : memref<256x64xbf16, #tpu.memory_space<vmem>>, vector<256x64xbf16>
    tpu.vector_store %arg14[%c0_36, %c0_37], %70 {strides = array<i32>} : memref<256x64xbf16, #tpu.memory_space<vmem>>, vector<256x64xbf16>,
    return
  }
  func.func @transform_0(%arg0: i32) -> (i32, i32) {
    %c0_i32 = arith.constant 0 : i32
    %c0_i32_0 = arith.constant 0 : i32
    return %arg0, %c0_i32 : i32, i32
  }
  func.func @transform_1(%arg0: i32) -> (i32, i32) {
    %c0_i32 = arith.constant 0 : i32
    %c0_i32_0 = arith.constant 0 : i32
    return %arg0, %c0_i32 : i32, i32
  }
  func.func @transform_2(%arg0: i32) -> (i32, i32) {
    %c0_i32 = arith.constant 0 : i32
    %c0_i32_0 = arith.constant 0 : i32
    %c0_i32_1 = arith.constant 0 : i32
    return %c0_i32, %c0_i32_0 : i32, i32
  }
  func.func @transform_3(%arg0: i32) -> (i32, i32) {
    %c0_i32 = arith.constant 0 : i32
    %c0_i32_0 = arith.constant 0 : i32
    %c0_i32_1 = arith.constant 0 : i32
    return %c0_i32, %c0_i32_0 : i32, i32
  }
  func.func @transform_4(%arg0: i32) -> (i32, i32) {
    %c0_i32 = arith.constant 0 : i32
    %c0_i32_0 = arith.constant 0 : i32
    %c0_i32_1 = arith.constant 0 : i32
    return %c0_i32, %c0_i32_0 : i32, i32
  }
  func.func @transform_5(%arg0: i32) -> (i32, i32) {
    %c0_i32 = arith.constant 0 : i32
    %c0_i32_0 = arith.constant 0 : i32
    %c0_i32_1 = arith.constant 0 : i32
    return %c0_i32, %c0_i32_0 : i32, i32
  }
  func.func @transform_6(%arg0: i32) -> (i32, i32) {
    %c0_i32 = arith.constant 0 : i32
    %c0_i32_0 = arith.constant 0 : i32
    %c0_i32_1 = arith.constant 0 : i32
    return %c0_i32, %c0_i32_0 : i32, i32
  }
  func.func @transform_7(%arg0: i32) -> (i32, i32) {
    %c0_i32 = arith.constant 0 : i32
    %c0_i32_0 = arith.constant 0 : i32
    %c0_i32_1 = arith.constant 0 : i32
    return %c0_i32, %c0_i32_0 : i32, i32
  }
  func.func @transform_8(%arg0: i32) -> (i32, i32) {
    %c0_i32 = arith.constant 0 : i32
    %c0_i32_0 = arith.constant 0 : i32
    %c0_i32_1 = arith.constant 0 : i32
    return %c0_i32, %c0_i32_0 : i32, i32
  }
  func.func @transform_9(%arg0: i32) -> (i32, i32) {
    %c0_i32 = arith.constant 0 : i32
    %c0_i32_0 = arith.constant 0 : i32
    %c0_i32_1 = arith.constant 0 : i32
    return %c0_i32, %c0_i32_0 : i32, i32
  }
  func.func @transform_10(%arg0: i32) -> (i32, i32) {
    %c0_i32 = arith.constant 0 : i32
    %c0_i32_0 = arith.constant 0 : i32
    %c0_i32_1 = arith.constant 0 : i32
    return %c0_i32, %c0_i32_0 : i32, i32
  }
  func.func @transform_11(%arg0: i32) -> (i32, i32) {
    %c0_i32 = arith.constant 0 : i32
    %c0_i32_0 = arith.constant 0 : i32
    %c0_i32_1 = arith.constant 0 : i32
    return %c0_i32, %c0_i32_0 : i32, i32
  }
  func.func @transform_12(%arg0: i32) -> (i32, i32) {
    %c0_i32 = arith.constant 0 : i32
    %c0_i32_0 = arith.constant 0 : i32
    %c0_i32_1 = arith.constant 0 : i32
    return %c0_i32, %c0_i32_0 : i32, i32
  }
  func.func @transform_13(%arg0: i32) -> (i32, i32) {
    %c0_i32 = arith.constant 0 : i32
    %c0_i32_0 = arith.constant 0 : i32
    return %arg0, %c0_i32 : i32, i32
  }
}

module attributes {stable_mosaic.version = 11 : i64} {
  func.func @kernel(%arg0: i32, %arg1: memref<256x3xi32, #tpu.memory_space<vmem>>, %arg2: memref<256x5xf32, #tpu.memory_space<vmem>>, %arg3: memref<40x128xbf16, #tpu.memory_space<vmem>>, %arg4: memref<16x128xbf16, #tpu.memory_space<vmem>>, %arg5: memref<100x128xbf16, #tpu.memory_space<vmem>>, %arg6: memref<5x128xbf16, #tpu.memory_space<vmem>>, %arg7: memref<1x128xf32, #tpu.memory_space<vmem>>, %arg8: memref<128x256xbf16, #tpu.memory_space<vmem>>, %arg9: memref<1x256xf32, #tpu.memory_space<vmem>>, %arg10: memref<256x128xbf16, #tpu.memory_space<vmem>>, %arg11: memref<1x128xf32, #tpu.memory_space<vmem>>, %arg12: memref<128x64xbf16, #tpu.memory_space<vmem>>, %arg13: memref<1x64xf32, #tpu.memory_space<vmem>>, %arg14: memref<256x64xbf16, #tpu.memory_space<vmem>>) attributes {dimension_semantics = [#tpu.dimension_semantics<parallel>], iteration_bounds = array<i64: 2>, scalar_prefetch = 0 : i64, scratch_operands = 0 : i64, tpu.core_type = #tpu.core_type<tc>, window_params = [{transform_indices = @transform_0, window_bounds = array<i64: 256, 3>}, {transform_indices = @transform_1, window_bounds = array<i64: 256, 5>}, {pipeline_mode = #tpu.pipeline_mode<synchronous>, transform_indices = @transform_2, window_bounds = array<i64: 40, 128>}, {pipeline_mode = #tpu.pipeline_mode<synchronous>, transform_indices = @transform_3, window_bounds = array<i64: 16, 128>}, {pipeline_mode = #tpu.pipeline_mode<synchronous>, transform_indices = @transform_4, window_bounds = array<i64: 100, 128>}, {pipeline_mode = #tpu.pipeline_mode<synchronous>, transform_indices = @transform_5, window_bounds = array<i64: 5, 128>}, {pipeline_mode = #tpu.pipeline_mode<synchronous>, transform_indices = @transform_6, window_bounds = array<i64: 1, 128>}, {pipeline_mode = #tpu.pipeline_mode<synchronous>, transform_indices = @transform_7, window_bounds = array<i64: 128, 256>}, {pipeline_mode = #tpu.pipeline_mode<synchronous>, transform_indices = @transform_8, window_bounds = array<i64: 1, 256>}, {pipeline_mode = #tpu.pipeline_mode<synchronous>, transform_indices = @transform_9, window_bounds = array<i64: 256, 128>}, {pipeline_mode = #tpu.pipeline_mode<synchronous>, transform_indices = @transform_10, window_bounds = array<i64: 1, 128>}, {pipeline_mode = #tpu.pipeline_mode<synchronous>, transform_indices = @transform_11, window_bounds = array<i64: 128, 64>}, {pipeline_mode = #tpu.pipeline_mode<synchronous>, transform_indices = @transform_12, window_bounds = array<i64: 1, 64>}, {transform_indices = @transform_13, window_bounds = array<i64: 256, 64>}]} {
    %c0 = arith.constant 0 : index
    %c0_0 = arith.constant 0 : index
    %0 = vector.load %arg1[%c0, %c0_0] : memref<256x3xi32, #tpu.memory_space<vmem>>, vector<256x3xi32>
    %c0_1 = arith.constant 0 : index
    %c0_2 = arith.constant 0 : index
    %1 = vector.load %arg2[%c0_1, %c0_2] : memref<256x5xf32, #tpu.memory_space<vmem>>, vector<256x5xf32>
    %2 = arith.truncf %1 : vector<256x5xf32> to vector<256x5xbf16>
    %c0_3 = arith.constant 0 : index
    %c0_4 = arith.constant 0 : index
    %3 = vector.load %arg6[%c0_3, %c0_4] : memref<5x128xbf16, #tpu.memory_space<vmem>>, vector<5x128xbf16>
    %cst = arith.constant dense<0.000000e+00> : vector<256x128xf32>
    %4 = tpu.matmul %2, %3, %cst {dimension_numbers = #tpu.dot_dimension_numbers<[1], [0], [0], [1], [0, 0, 1, 1], [], []>} : vector<256x5xbf16>, vector<5x128xbf16>, vector<256x128xf32> -> vector<256x128xf32>
    %c0_5 = arith.constant 0 : index
    %c0_6 = arith.constant 0 : index
    %5 = vector.load %arg7[%c0_5, %c0_6] : memref<1x128xf32, #tpu.memory_space<vmem>>, vector<1x128xf32>
    %6 = vector.broadcast %5 : vector<1x128xf32> to vector<256x128xf32>
    %7 = arith.addf %4, %6 : vector<256x128xf32>
    %8 = vector.extract_strided_slice %0 {offsets = [0, 0], sizes = [256, 1], strides = [1, 1]} : vector<256x3xi32> to vector<256x1xi32>
    %9 = tpu.iota {dimensions = array<i32: 1>} : vector<256x40xi32>
    %10 = vector.broadcast %8 : vector<256x1xi32> to vector<256x40xi32>
    %11 = arith.cmpi eq, %10, %9 : vector<256x40xi32>
    %12 = arith.extui %11 : vector<256x40xi1> to vector<256x40xi32>
    %13 = arith.sitofp %12 : vector<256x40xi32> to vector<256x40xf32>
    %14 = arith.truncf %13 : vector<256x40xf32> to vector<256x40xbf16>
    %c0_7 = arith.constant 0 : index
    %c0_8 = arith.constant 0 : index
    %15 = vector.load %arg3[%c0_7, %c0_8] : memref<40x128xbf16, #tpu.memory_space<vmem>>, vector<40x128xbf16>
    %cst_9 = arith.constant dense<0.000000e+00> : vector<256x128xf32>
    %16 = tpu.matmul %14, %15, %cst_9 {dimension_numbers = #tpu.dot_dimension_numbers<[1], [0], [0], [1], [0, 0, 1, 1], [], []>} : vector<256x40xbf16>, vector<40x128xbf16>, vector<256x128xf32> -> vector<256x128xf32>
    %17 = arith.addf %7, %16 : vector<256x128xf32>
    %18 = vector.extract_strided_slice %0 {offsets = [0, 1], sizes = [256, 1], strides = [1, 1]} : vector<256x3xi32> to vector<256x1xi32>
    %19 = tpu.iota {dimensions = array<i32: 1>} : vector<256x16xi32>
    %20 = vector.broadcast %18 : vector<256x1xi32> to vector<256x16xi32>
    %21 = arith.cmpi eq, %20, %19 : vector<256x16xi32>
    %22 = arith.extui %21 : vector<256x16xi1> to vector<256x16xi32>
    %23 = arith.sitofp %22 : vector<256x16xi32> to vector<256x16xf32>
    %24 = arith.truncf %23 : vector<256x16xf32> to vector<256x16xbf16>
    %c0_10 = arith.constant 0 : index
    %c0_11 = arith.constant 0 : index
    %25 = vector.load %arg4[%c0_10, %c0_11] : memref<16x128xbf16, #tpu.memory_space<vmem>>, vector<16x128xbf16>
    %cst_12 = arith.constant dense<0.000000e+00> : vector<256x128xf32>
    %26 = tpu.matmul %24, %25, %cst_12 {dimension_numbers = #tpu.dot_dimension_numbers<[1], [0], [0], [1], [0, 0, 1, 1], [], []>} : vector<256x16xbf16>, vector<16x128xbf16>, vector<256x128xf32> -> vector<256x128xf32>
    %27 = arith.addf %17, %26 : vector<256x128xf32>
    %28 = vector.extract_strided_slice %0 {offsets = [0, 2], sizes = [256, 1], strides = [1, 1]} : vector<256x3xi32> to vector<256x1xi32>
    %29 = tpu.iota {dimensions = array<i32: 1>} : vector<256x100xi32>
    %30 = vector.broadcast %28 : vector<256x1xi32> to vector<256x100xi32>
    %31 = arith.cmpi eq, %30, %29 : vector<256x100xi32>
    %32 = arith.extui %31 : vector<256x100xi1> to vector<256x100xi32>
    %33 = arith.sitofp %32 : vector<256x100xi32> to vector<256x100xf32>
    %34 = arith.truncf %33 : vector<256x100xf32> to vector<256x100xbf16>
    %c0_13 = arith.constant 0 : index
    %c0_14 = arith.constant 0 : index
    %35 = vector.load %arg5[%c0_13, %c0_14] : memref<100x128xbf16, #tpu.memory_space<vmem>>, vector<100x128xbf16>
    %cst_15 = arith.constant dense<0.000000e+00> : vector<256x128xf32>
    %36 = tpu.matmul %34, %35, %cst_15 {dimension_numbers = #tpu.dot_dimension_numbers<[1], [0], [0], [1], [0, 0, 1, 1], [], []>} : vector<256x100xbf16>, vector<100x128xbf16>, vector<256x128xf32> -> vector<256x128xf32>
    %37 = arith.addf %27, %36 : vector<256x128xf32>
    %cst_16 = arith.constant 0.000000e+00 : f32
    %38 = vector.broadcast %cst_16 : f32 to vector<256x128xf32>
    %39 = arith.maximumf %37, %38 : vector<256x128xf32>
    %40 = arith.truncf %39 : vector<256x128xf32> to vector<256x128xbf16>
    %c0_17 = arith.constant 0 : index
    %c0_18 = arith.constant 0 : index
    %41 = vector.load %arg8[%c0_17, %c0_18] : memref<128x256xbf16, #tpu.memory_space<vmem>>, vector<128x256xbf16>
    %cst_19 = arith.constant dense<0.000000e+00> : vector<256x256xf32>
    %42 = tpu.matmul %40, %41, %cst_19 {dimension_numbers = #tpu.dot_dimension_numbers<[1], [0], [0], [1], [0, 0, 1, 1], [], []>} : vector<256x128xbf16>, vector<128x256xbf16>, vector<256x256xf32> -> vector<256x256xf32>
    %c0_20 = arith.constant 0 : index
    %c0_21 = arith.constant 0 : index
    %43 = vector.load %arg9[%c0_20, %c0_21] : memref<1x256xf32, #tpu.memory_space<vmem>>, vector<1x256xf32>
    %44 = vector.broadcast %43 : vector<1x256xf32> to vector<256x256xf32>
    %45 = arith.addf %42, %44 : vector<256x256xf32>
    %cst_22 = arith.constant 0.000000e+00 : f32
    %46 = vector.broadcast %cst_22 : f32 to vector<256x256xf32>
    %47 = arith.maximumf %45, %46 : vector<256x256xf32>
    %48 = arith.truncf %47 : vector<256x256xf32> to vector<256x256xbf16>
    %c0_23 = arith.constant 0 : index
    %c0_24 = arith.constant 0 : index
    %49 = vector.load %arg10[%c0_23, %c0_24] : memref<256x128xbf16, #tpu.memory_space<vmem>>, vector<256x128xbf16>
    %cst_25 = arith.constant dense<0.000000e+00> : vector<256x128xf32>
    %50 = tpu.matmul %48, %49, %cst_25 {dimension_numbers = #tpu.dot_dimension_numbers<[1], [0], [0], [1], [0, 0, 1, 1], [], []>} : vector<256x256xbf16>, vector<256x128xbf16>, vector<256x128xf32> -> vector<256x128xf32>
    %c0_26 = arith.constant 0 : index
    %c0_27 = arith.constant 0 : index
    %51 = vector.load %arg11[%c0_26, %c0_27] : memref<1x128xf32, #tpu.memory_space<vmem>>, vector<1x128xf32>
    %52 = vector.broadcast %51 : vector<1x128xf32> to vector<256x128xf32>
    %53 = arith.addf %50, %52 : vector<256x128xf32>
    %cst_28 = arith.constant 0.000000e+00 : f32
    %54 = vector.broadcast %cst_28 : f32 to vector<256x128xf32>
    %55 = arith.maximumf %53, %54 : vector<256x128xf32>
    %56 = arith.truncf %55 : vector<256x128xf32> to vector<256x128xbf16>
    %c0_29 = arith.constant 0 : index
    %c0_30 = arith.constant 0 : index
    %57 = vector.load %arg12[%c0_29, %c0_30] : memref<128x64xbf16, #tpu.memory_space<vmem>>, vector<128x64xbf16>
    %cst_31 = arith.constant dense<0.000000e+00> : vector<256x64xf32>
    %58 = tpu.matmul %56, %57, %cst_31 {dimension_numbers = #tpu.dot_dimension_numbers<[1], [0], [0], [1], [0, 0, 1, 1], [], []>} : vector<256x128xbf16>, vector<128x64xbf16>, vector<256x64xf32> -> vector<256x64xf32>
    %c0_32 = arith.constant 0 : index
    %c0_33 = arith.constant 0 : index
    %59 = vector.load %arg13[%c0_32, %c0_33] : memref<1x64xf32, #tpu.memory_space<vmem>>, vector<1x64xf32>
    %60 = vector.broadcast %59 : vector<1x64xf32> to vector<256x64xf32>
    %61 = arith.addf %58, %60 : vector<256x64xf32>
    %62 = arith.mulf %61, %61 : vector<256x64xf32>
    %cst_34 = arith.constant dense<0.000000e+00> : vector<256xf32>
    %63 = vector.multi_reduction <add>, %62, %cst_34 [1] : vector<256x64xf32> to vector<256xf32>
    %64 = vector.shape_cast %63 : vector<256xf32> to vector<256x1xf32>
    %cst_35 = arith.constant 1.000000e-24 : f32
    %65 = vector.broadcast %cst_35 : f32 to vector<256x1xf32>
    %66 = arith.maximumf %64, %65 : vector<256x1xf32>
    %67 = math.rsqrt %66 : vector<256x1xf32>
    %68 = vector.broadcast %67 : vector<256x1xf32> to vector<256x64xf32>
    %69 = arith.mulf %61, %68 : vector<256x64xf32>
    %70 = arith.truncf %69 : vector<256x64xf32> to vector<256x64xbf16>
    %c0_36 = arith.constant 0 : index
    %c0_37 = arith.constant 0 : index
    %71 = vector.load %arg14[%c0_36, %c0_37] : memref<256x64xbf16, #tpu.memory_space<vmem>>, vector<256x64xbf16>
    tpu.vector_store %arg14[%c0_36, %c0_37], %70 {strides = array<i32>} : memref<256x64xbf16, #tpu.memory_space<vmem>>, vector<256x64xbf16>,
    return
  }
  func.func @transform_0(%arg0: i32) -> (i32, i32) {
    %c0_i32 = arith.constant 0 : i32
    %c0_i32_0 = arith.constant 0 : i32
    return %arg0, %c0_i32 : i32, i32
  }
  func.func @transform_1(%arg0: i32) -> (i32, i32) {
    %c0_i32 = arith.constant 0 : i32
    %c0_i32_0 = arith.constant 0 : i32
    return %arg0, %c0_i32 : i32, i32
  }
  func.func @transform_2(%arg0: i32) -> (i32, i32) {
    %c0_i32 = arith.constant 0 : i32
    %c0_i32_0 = arith.constant 0 : i32
    %c0_i32_1 = arith.constant 0 : i32
    return %c0_i32, %c0_i32_0 : i32, i32
  }
  func.func @transform_3(%arg0: i32) -> (i32, i32) {
    %c0_i32 = arith.constant 0 : i32
    %c0_i32_0 = arith.constant 0 : i32
    %c0_i32_1 = arith.constant 0 : i32
    return %c0_i32, %c0_i32_0 : i32, i32
  }
  func.func @transform_4(%arg0: i32) -> (i32, i32) {
    %c0_i32 = arith.constant 0 : i32
    %c0_i32_0 = arith.constant 0 : i32
    %c0_i32_1 = arith.constant 0 : i32
    return %c0_i32, %c0_i32_0 : i32, i32
  }
  func.func @transform_5(%arg0: i32) -> (i32, i32) {
    %c0_i32 = arith.constant 0 : i32
    %c0_i32_0 = arith.constant 0 : i32
    %c0_i32_1 = arith.constant 0 : i32
    return %c0_i32, %c0_i32_0 : i32, i32
  }
  func.func @transform_6(%arg0: i32) -> (i32, i32) {
    %c0_i32 = arith.constant 0 : i32
    %c0_i32_0 = arith.constant 0 : i32
    %c0_i32_1 = arith.constant 0 : i32
    return %c0_i32, %c0_i32_0 : i32, i32
  }
  func.func @transform_7(%arg0: i32) -> (i32, i32) {
    %c0_i32 = arith.constant 0 : i32
    %c0_i32_0 = arith.constant 0 : i32
    %c0_i32_1 = arith.constant 0 : i32
    return %c0_i32, %c0_i32_0 : i32, i32
  }
  func.func @transform_8(%arg0: i32) -> (i32, i32) {
    %c0_i32 = arith.constant 0 : i32
    %c0_i32_0 = arith.constant 0 : i32
    %c0_i32_1 = arith.constant 0 : i32
    return %c0_i32, %c0_i32_0 : i32, i32
  }
  func.func @transform_9(%arg0: i32) -> (i32, i32) {
    %c0_i32 = arith.constant 0 : i32
    %c0_i32_0 = arith.constant 0 : i32
    %c0_i32_1 = arith.constant 0 : i32
    return %c0_i32, %c0_i32_0 : i32, i32
  }
  func.func @transform_10(%arg0: i32) -> (i32, i32) {
    %c0_i32 = arith.constant 0 : i32
    %c0_i32_0 = arith.constant 0 : i32
    %c0_i32_1 = arith.constant 0 : i32
    return %c0_i32, %c0_i32_0 : i32, i32
  }
  func.func @transform_11(%arg0: i32) -> (i32, i32) {
    %c0_i32 = arith.constant 0 : i32
    %c0_i32_0 = arith.constant 0 : i32
    %c0_i32_1 = arith.constant 0 : i32
    return %c0_i32, %c0_i32_0 : i32, i32
  }
  func.func @transform_12(%arg0: i32) -> (i32, i32) {
    %c0_i32 = arith.constant 0 : i32
    %c0_i32_0 = arith.constant 0 : i32
    %c0_i32_1 = arith.constant 0 : i32
    return %c0_i32, %c0_i32_0 : i32, i32
  }
  func.func @transform_13(%arg0: i32) -> (i32, i32) {
    %c0_i32 = arith.constant 0 : i32
    %c0_i32_0 = arith.constant 0 : i32
    return %arg0, %c0_i32 : i32, i32
  }
}

</mosaic_0001>

<llo_original>
// kernel: tpu_custom_call.1
$region0: #{tpu_custom_call.1}
  #allocation0 [shape = 'u32[]', space=smem, size = 0x4, offset = 0x4, fixed_abs, tag = 'smem constant byte address 0x4 - core index']
  #allocation1 [shape = 'u32[144,128]{1,0:T(1,128)}', space=vmem, size = 0x12000, scoped, tag = 'internal scratch']
  %s0 = inlined_call_operand.vmem [shape: s32[512,3], index: 0, kind: input, shape index: {}]
  %s1 = inlined_call_operand.vmem [shape: f32[512,5], index: 1, kind: input, shape index: {}]
  %s2 = inlined_call_operand.vmem [shape: bf16[40,128], index: 2, kind: input, shape index: {}]
  %s3 = inlined_call_operand.vmem [shape: bf16[16,128], index: 3, kind: input, shape index: {}]
  %s4 = inlined_call_operand.vmem [shape: bf16[100,128], index: 4, kind: input, shape index: {}]
  %s5 = inlined_call_operand.vmem [shape: bf16[5,128], index: 5, kind: input, shape index: {}]
  %s6 = inlined_call_operand.vmem [shape: f32[1,128], index: 6, kind: input, shape index: {}]
  %s7 = inlined_call_operand.vmem [shape: bf16[128,256], index: 7, kind: input, shape index: {}]
  %s8 = inlined_call_operand.vmem [shape: f32[1,256], index: 8, kind: input, shape index: {}]
  %s9 = inlined_call_operand.vmem [shape: bf16[256,128], index: 9, kind: input, shape index: {}]
  %s10 = inlined_call_operand.vmem [shape: f32[1,128], index: 10, kind: input, shape index: {}]
  %s11 = inlined_call_operand.vmem [shape: bf16[128,64], index: 11, kind: input, shape index: {}]
  %s12 = inlined_call_operand.vmem [shape: f32[1,64], index: 12, kind: input, shape index: {}]
  %s13 = inlined_call_operand.vmem [shape: bf16[512,64], index: 13, kind: output, shape index: {}]
  %s14 = sld [smem:[#allocation0]]
  $region85: #{tpu_custom_call.1} parent=0
    _
  %s16 = ssub.s32 1, %s14
  %s17 = scalar_select 0, %s16, %s14
  loop: start=0, step=1, limit=4
  $region2: #{tpu_custom_call.1} parent=0 // loop_pre_header
    _
  $region3: #{tpu_custom_call.1} parent=0 // loop_header
    %s19 = sphi 0, %s23
    %p20 = scmp.ge.s32.totalorder %s19, 4
    %s29 = sphi 0, %s31
    %s32 = sphi 0, %s29
    %s33 = sphi 0, %s32
    %s49 = sphi 0, %s33
    %s55 = sphi 0, %s57
    %s58 = sphi 0, %s55
    %s59 = sphi 0, %s58
    %s75 = sphi 0, %s59
    %s79 = sphi 0, %s79
    %s81 = sphi 0, %s79
    %s82 = sphi 0, %s81
    %s96 = sphi 0, %s82
    %s100 = sphi 0, %s100
    %s102 = sphi 0, %s100
    %s103 = sphi 0, %s102
    %s117 = sphi 0, %s103
    %s121 = sphi 0, %s121
    %s123 = sphi 0, %s121
    %s124 = sphi 0, %s123
    %s138 = sphi 0, %s124
    %s142 = sphi 0, %s142
    %s144 = sphi 0, %s142
    %s145 = sphi 0, %s144
    %s159 = sphi 0, %s145
    %s163 = sphi 0, %s163
    %s165 = sphi 0, %s163
    %s166 = sphi 0, %s165
    %s180 = sphi 0, %s166
    %s184 = sphi 0, %s184
    %s186 = sphi 0, %s184
    %s187 = sphi 0, %s186
    %s201 = sphi 0, %s187
    %s205 = sphi 0, %s205
    %s207 = sphi 0, %s205
    %s208 = sphi 0, %s207
    %s222 = sphi 0, %s208
    %s226 = sphi 0, %s226
    %s228 = sphi 0, %s226
    %s229 = sphi 0, %s228
    %s243 = sphi 0, %s229
    %s247 = sphi 0, %s247
    %s249 = sphi 0, %s247
    %s250 = sphi 0, %s249
    %s264 = sphi 0, %s250
    %s268 = sphi 0, %s268
    %s270 = sphi 0, %s268
    %s271 = sphi 0, %s270
    %s285 = sphi 0, %s271
    %s289 = sphi 0, %s289
    %s291 = sphi 0, %s289
    %s292 = sphi 0, %s291
    %s306 = sphi 0, %s292
    %s312 = sphi 0, %s314
    %s315 = sphi 0, %s312
    %s316 = sphi 0, %s315
    %s332 = sphi 0, %s316
  $region4: #{tpu_custom_call.1} parent=0 // loop_header_branch
    %22 = sbr.rel (%p20) target = $region8
  $region5: #{tpu_custom_call.1} parent=0 // loop_body
    %s24 = ssub.s32 %s19, 1
    %s25 = ssub.s32 %s19, 2
    %s26 = sadd.s32 %s19, 1
    %s27 = ssub.s32 %s19, %s26
    %p28 = scmp.eq.s32.totalorder %s27, 0
    %s30 = sadd.s32 %s29, 1
    %s31 = scalar_select %p28, %s29, %s30
    %p34 = pneg %p28
    %p35 = scmp.eq.s32.totalorder %s19, 1
    %p36 = por %p34, %p35
    %p37 = scmp.ne.s32.totalorder %s29, %s32
    %p38 = scmp.eq.s32.totalorder %s19, 0
    %p39 = por %p37, %p38
    %p40 = scmp.ne.s32.totalorder %s29, %s32
    %p41 = scmp.eq.s32.totalorder %s24, 1
    %p42 = por %p40, %p41
    %p43 = scmp.ne.s32.totalorder %s32, %s33
    %p44 = scmp.eq.s32.totalorder %s24, 0
    %p45 = por %p43, %p44
    %p46 = scmp.ne.s32.totalorder %s32, %s33
    %p47 = scmp.eq.s32.totalorder %s25, 1
    %p48 = por %p46, %p47
    %p50 = scmp.ne.s32.totalorder %s33, %s49
    %p51 = scmp.eq.s32.totalorder %s25, 0
    %p52 = por %p50, %p51
    %s53 = ssub.s32 %s19, %s26
    %p54 = scmp.eq.s32.totalorder %s53, 0
    %s56 = sadd.s32 %s55, 1
    %s57 = scalar_select %p54, %s55, %s56
    %p60 = pneg %p54
    %p61 = scmp.eq.s32.totalorder %s19, 1
    %p62 = por %p60, %p61
    %p63 = scmp.ne.s32.totalorder %s55, %s58
    %p64 = scmp.eq.s32.totalorder %s19, 0
    %p65 = por %p63, %p64
    %p66 = scmp.ne.s32.totalorder %s55, %s58
    %p67 = scmp.eq.s32.totalorder %s24, 1
    %p68 = por %p66, %p67
    %p69 = scmp.ne.s32.totalorder %s58, %s59
    %p70 = scmp.eq.s32.totalorder %s24, 0
    %p71 = por %p69, %p70
    %p72 = scmp.ne.s32.totalorder %s58, %s59
    %p73 = scmp.eq.s32.totalorder %s25, 1
    %p74 = por %p72, %p73
    %p76 = scmp.ne.s32.totalorder %s59, %s75
    %p77 = scmp.eq.s32.totalorder %s25, 0
    %p78 = por %p76, %p77
    %s80 = sadd.s32 %s79, 1
    %p83 = scmp.eq.s32.totalorder %s19, 1
    %p84 = scmp.ne.s32.totalorder %s79, %s81
    %p85 = scmp.eq.s32.totalorder %s19, 0
    %p86 = por %p84, %p85
    %p87 = scmp.ne.s32.totalorder %s79, %s81
    %p88 = scmp.eq.s32.totalorder %s24, 1
    %p89 = por %p87, %p88
    %p90 = scmp.ne.s32.totalorder %s81, %s82
    %p91 = scmp.eq.s32.totalorder %s24, 0
    %p92 = por %p90, %p91
    %p93 = scmp.ne.s32.totalorder %s81, %s82
    %p94 = scmp.eq.s32.totalorder %s25, 1
    %p95 = por %p93, %p94
    %p97 = scmp.ne.s32.totalorder %s82, %s96
    %p98 = scmp.eq.s32.totalorder %s25, 0
    %p99 = por %p97, %p98
    %s101 = sadd.s32 %s100, 1
    %p104 = scmp.eq.s32.totalorder %s19, 1
    %p105 = scmp.ne.s32.totalorder %s100, %s102
    %p106 = scmp.eq.s32.totalorder %s19, 0
    %p107 = por %p105, %p106
    %p108 = scmp.ne.s32.totalorder %s100, %s102
    %p109 = scmp.eq.s32.totalorder %s24, 1
    %p110 = por %p108, %p109
    %p111 = scmp.ne.s32.totalorder %s102, %s103
    %p112 = scmp.eq.s32.totalorder %s24, 0
    %p113 = por %p111, %p112
    %p114 = scmp.ne.s32.totalorder %s102, %s103
    %p115 = scmp.eq.s32.totalorder %s25, 1
    %p116 = por %p114, %p115
    %p118 = scmp.ne.s32.totalorder %s103, %s117
    %p119 = scmp.eq.s32.totalorder %s25, 0
    %p120 = por %p118, %p119
    %s122 = sadd.s32 %s121, 1
    %p125 = scmp.eq.s32.totalorder %s19, 1
    %p126 = scmp.ne.s32.totalorder %s121, %s123
    %p127 = scmp.eq.s32.totalorder %s19, 0
    %p128 = por %p126, %p127
    %p129 = scmp.ne.s32.totalorder %s121, %s123
    %p130 = scmp.eq.s32.totalorder %s24, 1
    %p131 = por %p129, %p130
    %p132 = scmp.ne.s32.totalorder %s123, %s124
    %p133 = scmp.eq.s32.totalorder %s24, 0
    %p134 = por %p132, %p133
    %p135 = scmp.ne.s32.totalorder %s123, %s124
    %p136 = scmp.eq.s32.totalorder %s25, 1
    %p137 = por %p135, %p136
    %p139 = scmp.ne.s32.totalorder %s124, %s138
    %p140 = scmp.eq.s32.totalorder %s25, 0
    %p141 = por %p139, %p140
    %s143 = sadd.s32 %s142, 1
    %p146 = scmp.eq.s32.totalorder %s19, 1
    %p147 = scmp.ne.s32.totalorder %s142, %s144
    %p148 = scmp.eq.s32.totalorder %s19, 0
    %p149 = por %p147, %p148
    %p150 = scmp.ne.s32.totalorder %s142, %s144
    %p151 = scmp.eq.s32.totalorder %s24, 1
    %p152 = por %p150, %p151
    %p153 = scmp.ne.s32.totalorder %s144, %s145
    %p154 = scmp.eq.s32.totalorder %s24, 0
    %p155 = por %p153, %p154
    %p156 = scmp.ne.s32.totalorder %s144, %s145
    %p157 = scmp.eq.s32.totalorder %s25, 1
    %p158 = por %p156, %p157
    %p160 = scmp.ne.s32.totalorder %s145, %s159
    %p161 = scmp.eq.s32.totalorder %s25, 0
    %p162 = por %p160, %p161
    %s164 = sadd.s32 %s163, 1
    %p167 = scmp.eq.s32.totalorder %s19, 1
    %p168 = scmp.ne.s32.totalorder %s163, %s165
    %p169 = scmp.eq.s32.totalorder %s19, 0
    %p170 = por %p168, %p169
    %p171 = scmp.ne.s32.totalorder %s163, %s165
    %p172 = scmp.eq.s32.totalorder %s24, 1
    %p173 = por %p171, %p172
    %p174 = scmp.ne.s32.totalorder %s165, %s166
    %p175 = scmp.eq.s32.totalorder %s24, 0
    %p176 = por %p174, %p175
    %p177 = scmp.ne.s32.totalorder %s165, %s166
    %p178 = scmp.eq.s32.totalorder %s25, 1
    %p179 = por %p177, %p178
    %p181 = scmp.ne.s32.totalorder %s166, %s180
    %p182 = scmp.eq.s32.totalorder %s25, 0
    %p183 = por %p181, %p182
    %s185 = sadd.s32 %s184, 1
    %p188 = scmp.eq.s32.totalorder %s19, 1
    %p189 = scmp.ne.s32.totalorder %s184, %s186
    %p190 = scmp.eq.s32.totalorder %s19, 0
    %p191 = por %p189, %p190
    %p192 = scmp.ne.s32.totalorder %s184, %s186
    %p193 = scmp.eq.s32.totalorder %s24, 1
    %p194 = por %p192, %p193
    %p195 = scmp.ne.s32.totalorder %s186, %s187
    %p196 = scmp.eq.s32.totalorder %s24, 0
    %p197 = por %p195, %p196
    %p198 = scmp.ne.s32.totalorder %s186, %s187
    %p199 = scmp.eq.s32.totalorder %s25, 1
    %p200 = por %p198, %p199
    %p202 = scmp.ne.s32.totalorder %s187, %s201
    %p203 = scmp.eq.s32.totalorder %s25, 0
    %p204 = por %p202, %p203
    %s206 = sadd.s32 %s205, 1
    %p209 = scmp.eq.s32.totalorder %s19, 1
    %p210 = scmp.ne.s32.totalorder %s205, %s207
    %p211 = scmp.eq.s32.totalorder %s19, 0
    %p212 = por %p210, %p211
    %p213 = scmp.ne.s32.totalorder %s205, %s207
    %p214 = scmp.eq.s32.totalorder %s24, 1
    %p215 = por %p213, %p214
    %p216 = scmp.ne.s32.totalorder %s207, %s208
    %p217 = scmp.eq.s32.totalorder %s24, 0
    %p218 = por %p216, %p217
    %p219 = scmp.ne.s32.totalorder %s207, %s208
    %p220 = scmp.eq.s32.totalorder %s25, 1
    %p221 = por %p219, %p220
    %p223 = scmp.ne.s32.totalorder %s208, %s222
    %p224 = scmp.eq.s32.totalorder %s25, 0
    %p225 = por %p223, %p224
    %s227 = sadd.s32 %s226, 1
    %p230 = scmp.eq.s32.totalorder %s19, 1
    %p231 = scmp.ne.s32.totalorder %s226, %s228
    %p232 = scmp.eq.s32.totalorder %s19, 0
    %p233 = por %p231, %p232
    %p234 = scmp.ne.s32.totalorder %s226, %s228
    %p235 = scmp.eq.s32.totalorder %s24, 1
    %p236 = por %p234, %p235
    %p237 = scmp.ne.s32.totalorder %s228, %s229
    %p238 = scmp.eq.s32.totalorder %s24, 0
    %p239 = por %p237, %p238
    %p240 = scmp.ne.s32.totalorder %s228, %s229
    %p241 = scmp.eq.s32.totalorder %s25, 1
    %p242 = por %p240, %p241
    %p244 = scmp.ne.s32.totalorder %s229, %s243
    %p245 = scmp.eq.s32.totalorder %s25, 0
    %p246 = por %p244, %p245
    %s248 = sadd.s32 %s247, 1
    %p251 = scmp.eq.s32.totalorder %s19, 1
    %p252 = scmp.ne.s32.totalorder %s247, %s249
    %p253 = scmp.eq.s32.totalorder %s19, 0
    %p254 = por %p252, %p253
    %p255 = scmp.ne.s32.totalorder %s247, %s249
    %p256 = scmp.eq.s32.totalorder %s24, 1
    %p257 = por %p255, %p256
    %p258 = scmp.ne.s32.totalorder %s249, %s250
    %p259 = scmp.eq.s32.totalorder %s24, 0
    %p260 = por %p258, %p259
    %p261 = scmp.ne.s32.totalorder %s249, %s250
    %p262 = scmp.eq.s32.totalorder %s25, 1
    %p263 = por %p261, %p262
    %p265 = scmp.ne.s32.totalorder %s250, %s264
    %p266 = scmp.eq.s32.totalorder %s25, 0
    %p267 = por %p265, %p266
    %s269 = sadd.s32 %s268, 1
    %p272 = scmp.eq.s32.totalorder %s19, 1
    %p273 = scmp.ne.s32.totalorder %s268, %s270
    %p274 = scmp.eq.s32.totalorder %s19, 0
    %p275 = por %p273, %p274
    %p276 = scmp.ne.s32.totalorder %s268, %s270
    %p277 = scmp.eq.s32.totalorder %s24, 1
    %p278 = por %p276, %p277
    %p279 = scmp.ne.s32.totalorder %s270, %s271
    %p280 = scmp.eq.s32.totalorder %s24, 0
    %p281 = por %p279, %p280
    %p282 = scmp.ne.s32.totalorder %s270, %s271
    %p283 = scmp.eq.s32.totalorder %s25, 1
    %p284 = por %p282, %p283
    %p286 = scmp.ne.s32.totalorder %s271, %s285
    %p287 = scmp.eq.s32.totalorder %s25, 0
    %p288 = por %p286, %p287
    %s290 = sadd.s32 %s289, 1
    %p293 = scmp.eq.s32.totalorder %s19, 1
    %p294 = scmp.ne.s32.totalorder %s289, %s291
    %p295 = scmp.eq.s32.totalorder %s19, 0
    %p296 = por %p294, %p295
    %p297 = scmp.ne.s32.totalorder %s289, %s291
    %p298 = scmp.eq.s32.totalorder %s24, 1
    %p299 = por %p297, %p298
    %p300 = scmp.ne.s32.totalorder %s291, %s292
    %p301 = scmp.eq.s32.totalorder %s24, 0
    %p302 = por %p300, %p301
    %p303 = scmp.ne.s32.totalorder %s291, %s292
    %p304 = scmp.eq.s32.totalorder %s25, 1
    %p305 = por %p303, %p304
    %p307 = scmp.ne.s32.totalorder %s292, %s306
    %p308 = scmp.eq.s32.totalorder %s25, 0
    %p309 = por %p307, %p308
    %s310 = ssub.s32 %s19, %s26
    %p311 = scmp.eq.s32.totalorder %s310, 0
    %s313 = sadd.s32 %s312, 1
    %s314 = scalar_select %p311, %s312, %s313
    %p317 = pneg %p311
    %p318 = scmp.eq.s32.totalorder %s19, 1
    %p319 = por %p317, %p318
    %p320 = scmp.ne.s32.totalorder %s312, %s315
    %p321 = scmp.eq.s32.totalorder %s19, 0
    %p322 = por %p320, %p321
    %p323 = scmp.ne.s32.totalorder %s312, %s315
    %p324 = scmp.eq.s32.totalorder %s24, 1
    %p325 = por %p323, %p324
    %p326 = scmp.ne.s32.totalorder %s315, %s316
    %p327 = scmp.eq.s32.totalorder %s24, 0
    %p328 = por %p326, %p327
    %p329 = scmp.ne.s32.totalorder %s315, %s316
    %p330 = scmp.eq.s32.totalorder %s25, 1
    %p331 = por %p329, %p330
    %p333 = scmp.ne.s32.totalorder %s316, %s332
    %p334 = scmp.eq.s32.totalorder %s25, 0
    %p335 = por %p333, %p334
    %p336 = scmp.le.s32.totalorder 1, %s19
    %p337 = scmp.lt.s32.totalorder %s19, 3
    %p338 = pnand %p336, %p337
    %p339 = pneg %p338
    // Predicated region
    $region9: #{tpu_custom_call.1} parent=5 // pred_check
      _
    $region10: #{tpu_custom_call.1} parent=5 // pred_check_branch
      %341 = sbr.rel (%p338) target = $region12
    $region11: #{tpu_custom_call.1} parent=5 // pred_region
      %s342 = ssub.s32 %s19, 1
      // Predicated region
      $region13: #{tpu_custom_call.1} parent=11 // pred_check
        %p343 = pneg %p92
      $region14: #{tpu_custom_call.1} parent=11 // pred_check_branch
        %345 = sbr.rel (%p343) target = $region16
      $region15: #{tpu_custom_call.1} parent=11 // pred_region
        _
      $region16: #{tpu_custom_call.1} parent=11 // pred_fallthru
        _
      // Predicated region
      $region17: #{tpu_custom_call.1} parent=11 // pred_check
        %p346 = pneg %p113
      $region18: #{tpu_custom_call.1} parent=11 // pred_check_branch
        %348 = sbr.rel (%p346) target = $region20
      $region19: #{tpu_custom_call.1} parent=11 // pred_region
        _
      $region20: #{tpu_custom_call.1} parent=11 // pred_fallthru
        _
      // Predicated region
      $region21: #{tpu_custom_call.1} parent=11 // pred_check
        %p349 = pneg %p134
      $region22: #{tpu_custom_call.1} parent=11 // pred_check_branch
        %351 = sbr.rel (%p349) target = $region24
      $region23: #{tpu_custom_call.1} parent=11 // pred_region
        _
      $region24: #{tpu_custom_call.1} parent=11 // pred_fallthru
        _
      // Predicated region
      $region25: #{tpu_custom_call.1} parent=11 // pred_check
        %p352 = pneg %p155
      $region26: #{tpu_custom_call.1} parent=11 // pred_check_branch
        %354 = sbr.rel (%p352) target = $region28
      $region27: #{tpu_custom_call.1} parent=11 // pred_region
        _
      $region28: #{tpu_custom_call.1} parent=11 // pred_fallthru
        _
      // Predicated region
      $region29: #{tpu_custom_call.1} parent=11 // pred_check
        %p355 = pneg %p176
      $region30: #{tpu_custom_call.1} parent=11 // pred_check_branch
        %357 = sbr.rel (%p355) target = $region32
      $region31: #{tpu_custom_call.1} parent=11 // pred_region
        _
      $region32: #{tpu_custom_call.1} parent=11 // pred_fallthru
        _
      // Predicated region
      $region33: #{tpu_custom_call.1} parent=11 // pred_check
        %p358 = pneg %p197
      $region34: #{tpu_custom_call.1} parent=11 // pred_check_branch
        %360 = sbr.rel (%p358) target = $region36
      $region35: #{tpu_custom_call.1} parent=11 // pred_region
        _
      $region36: #{tpu_custom_call.1} parent=11 // pred_fallthru
        _
      // Predicated region
      $region37: #{tpu_custom_call.1} parent=11 // pred_check
        %p361 = pneg %p218
      $region38: #{tpu_custom_call.1} parent=11 // pred_check_branch
        %363 = sbr.rel (%p361) target = $region40
      $region39: #{tpu_custom_call.1} parent=11 // pred_region
        _
      $region40: #{tpu_custom_call.1} parent=11 // pred_fallthru
        _
      // Predicated region
      $region41: #{tpu_custom_call.1} parent=11 // pred_check
        %p364 = pneg %p239
      $region42: #{tpu_custom_call.1} parent=11 // pred_check_branch
        %366 = sbr.rel (%p364) target = $region44
      $region43: #{tpu_custom_call.1} parent=11 // pred_region
        _
      $region44: #{tpu_custom_call.1} parent=11 // pred_fallthru
        _
      // Predicated region
      $region45: #{tpu_custom_call.1} parent=11 // pred_check
        %p367 = pneg %p260
      $region46: #{tpu_custom_call.1} parent=11 // pred_check_branch
        %369 = sbr.rel (%p367) target = $region48
      $region47: #{tpu_custom_call.1} parent=11 // pred_region
        _
      $region48: #{tpu_custom_call.1} parent=11 // pred_fallthru
        _
      // Predicated region
      $region49: #{tpu_custom_call.1} parent=11 // pred_check
        %p370 = pneg %p281
      $region50: #{tpu_custom_call.1} parent=11 // pred_check_branch
        %372 = sbr.rel (%p370) target = $region52
      $region51: #{tpu_custom_call.1} parent=11 // pred_region
        _
      $region52: #{tpu_custom_call.1} parent=11 // pred_fallthru
        _
      // Predicated region
      $region53: #{tpu_custom_call.1} parent=11 // pred_check
        %p373 = pneg %p302
      $region54: #{tpu_custom_call.1} parent=11 // pred_check_branch
        %375 = sbr.rel (%p373) target = $region56
      $region55: #{tpu_custom_call.1} parent=11 // pred_region
        _
      $region56: #{tpu_custom_call.1} parent=11 // pred_fallthru
        _
    $region12: #{tpu_custom_call.1} parent=5 // pred_fallthru
      _
    %p376 = scmp.lt.s32.totalorder %s19, 2
    // Predicated region
    $region57: #{tpu_custom_call.1} parent=5 // pred_check
      %p377 = pneg %p376
    $region58: #{tpu_custom_call.1} parent=5 // pred_check_branch
      %379 = sbr.rel (%p377) target = $region60
    $region59: #{tpu_custom_call.1} parent=5 // pred_region
      // Predicated region
      $region61: #{tpu_custom_call.1} parent=59 // pred_check
        %p380 = pneg %p39
      $region62: #{tpu_custom_call.1} parent=59 // pred_check_branch
        %382 = sbr.rel (%p380) target = $region64
      $region63: #{tpu_custom_call.1} parent=59 // pred_region
        %s383 = smul.u32 32, %s19
        %p384 = scmp.lt.s32.totalorder %s383, 63
        %s385 = scalar_select %p384, %s383, 63
        %s386 = smul.addr %s385, 8
        %s387 = scalar_lea.vmem %s0, %s386
        %s388 = smul.u32 32, %s19
      $region64: #{tpu_custom_call.1} parent=59 // pred_fallthru
        _
      // Predicated region
      $region65: #{tpu_custom_call.1} parent=59 // pred_check
        %p389 = pneg %p65
      $region66: #{tpu_custom_call.1} parent=59 // pred_check_branch
        %391 = sbr.rel (%p389) target = $region68
      $region67: #{tpu_custom_call.1} parent=59 // pred_region
        %s392 = smul.u32 32, %s19
        %p393 = scmp.lt.s32.totalorder %s392, 63
        %s394 = scalar_select %p393, %s392, 63
        %s395 = smul.addr %s394, 8
        %s396 = scalar_lea.vmem %s1, %s395
        %s397 = smul.u32 32, %s19
      $region68: #{tpu_custom_call.1} parent=59 // pred_fallthru
        _
    $region60: #{tpu_custom_call.1} parent=5 // pred_fallthru
      _
    %p398 = scmp.le.s32.totalorder 1, %s19
    %p399 = scmp.lt.s32.totalorder %s19, 3
    %p400 = pnand %p398, %p399
    %p401 = pneg %p400
    // Predicated region
    $region69: #{tpu_custom_call.1} parent=5 // pred_check
      _
    $region70: #{tpu_custom_call.1} parent=5 // pred_check_branch
      %403 = sbr.rel (%p400) target = $region72
    $region71: #{tpu_custom_call.1} parent=5 // pred_region
      %s404 = ssub.s32 %s19, 1
      %s405 = smul.u32 32, %s24
      %p406 = scmp.lt.s32.totalorder %s405, 63
      %s407 = scalar_select %p406, %s405, 63
      %s408 = smul.addr %s407, 8
      %s409 = scalar_lea.vmem %s0, %s408
      %p410 = pneg %p45
      %p411 = pneg %p42
      %s412 = smul.u32 32, %s24
      %p413 = scmp.lt.s32.totalorder %s412, 63
      %s414 = scalar_select %p413, %s412, 63
      %s415 = smul.addr %s414, 8
      %s416 = scalar_lea.vmem %s1, %s415
      %p417 = pneg %p71
      %p418 = pneg %p68
      %p419 = pneg %p92
      %p420 = pneg %p89
      %p421 = pneg %p113
      %p422 = pneg %p110
      %p423 = pneg %p134
      %p424 = pneg %p131
      %p425 = pneg %p155
      %p426 = pneg %p152
      %p427 = pneg %p176
      %p428 = pneg %p173
      %p429 = pneg %p197
      %p430 = pneg %p194
      %p431 = pneg %p218
      %p432 = pneg %p215
      %p433 = pneg %p239
      %p434 = pneg %p236
      %p435 = pneg %p260
      %p436 = pneg %p257
      %p437 = pneg %p281
      %p438 = pneg %p278
      %p439 = pneg %p302
      %p440 = pneg %p299
      %p441 = pneg %p328
      %p442 = pneg %p325
      %s443 = smul.u32 32, %s24
      %p444 = scmp.lt.s32.totalorder %s443, 63
      %s445 = scalar_select %p444, %s443, 63
      %s446 = smul.addr %s445, 4
      %s447 = scalar_lea.vmem %s13, %s446
      %s448 = smul.u32 32, %s24
      %p449 = scmp.lt.s32.totalorder %s448, 63
      %s450 = scalar_select %p449, %s448, 63
      %s451 = smul.addr %s450, 8
      %s452 = scalar_lea.vmem %s0, %s451
      %s453 = smul.u32 32, %s24
      %s454 = smul.u32 32, %s24
      %p455 = scmp.lt.s32.totalorder %s454, 63
      %s456 = scalar_select %p455, %s454, 63
      %s457 = smul.addr %s456, 8
      %s458 = scalar_lea.vmem %s1, %s457
      %s459 = smul.u32 32, %s24
      %s460 = smul.u32 32, %s24
      %p461 = scmp.lt.s32.totalorder %s460, 63
      %s462 = scalar_select %p461, %s460, 63
      %s463 = smul.addr %s462, 4
      %s464 = scalar_lea.vmem %s13, %s463
      %s465 = smul.u32 32, %s24
      %v467 = vld [vmem:[%s452] sm:$0xff]
      %v468 = vld [vmem:[%s452 + $0x8] sm:$0xff]
      %v469 = vld [vmem:[%s452 + $0x10] sm:$0xff]
      %v470 = vld [vmem:[%s452 + $0x18] sm:$0xff]
      %v471 = vld [vmem:[%s452 + $0x20] sm:$0xff]
      %v472 = vld [vmem:[%s452 + $0x28] sm:$0xff]
      %v473 = vld [vmem:[%s452 + $0x30] sm:$0xff]
      %v474 = vld [vmem:[%s452 + $0x38] sm:$0xff]
      %v475 = vld [vmem:[%s452 + $0x40] sm:$0xff]
      %v476 = vld [vmem:[%s452 + $0x48] sm:$0xff]
      %v477 = vld [vmem:[%s452 + $0x50] sm:$0xff]
      %v478 = vld [vmem:[%s452 + $0x58] sm:$0xff]
      %v479 = vld [vmem:[%s452 + $0x60] sm:$0xff]
      %v480 = vld [vmem:[%s452 + $0x68] sm:$0xff]
      %v481 = vld [vmem:[%s452 + $0x70] sm:$0xff]
      %v482 = vld [vmem:[%s452 + $0x78] sm:$0xff]
      %v483 = vld [vmem:[%s452 + $0x80] sm:$0xff]
      %v484 = vld [vmem:[%s452 + $0x88] sm:$0xff]
      %v485 = vld [vmem:[%s452 + $0x90] sm:$0xff]
      %v486 = vld [vmem:[%s452 + $0x98] sm:$0xff]
      %v487 = vld [vmem:[%s452 + $0xa0] sm:$0xff]
      %v488 = vld [vmem:[%s452 + $0xa8] sm:$0xff]
      %v489 = vld [vmem:[%s452 + $0xb0] sm:$0xff]
      %v490 = vld [vmem:[%s452 + $0xb8] sm:$0xff]
      %v491 = vld [vmem:[%s452 + $0xc0] sm:$0xff]
      %v492 = vld [vmem:[%s452 + $0xc8] sm:$0xff]
      %v493 = vld [vmem:[%s452 + $0xd0] sm:$0xff]
      %v494 = vld [vmem:[%s452 + $0xd8] sm:$0xff]
      %v495 = vld [vmem:[%s452 + $0xe0] sm:$0xff]
      %v496 = vld [vmem:[%s452 + $0xe8] sm:$0xff]
      %v497 = vld [vmem:[%s452 + $0xf0] sm:$0xff]
      %v498 = vld [vmem:[%s452 + $0xf8] sm:$0xff]
      %v499 = vld [vmem:[%s458] sm:$0xff]
      %v500 = vld [vmem:[%s458 + $0x8] sm:$0xff]
      %v501 = vld [vmem:[%s458 + $0x10] sm:$0xff]
      %v502 = vld [vmem:[%s458 + $0x18] sm:$0xff]
      %v503 = vld [vmem:[%s458 + $0x20] sm:$0xff]
      %v504 = vld [vmem:[%s458 + $0x28] sm:$0xff]
      %v505 = vld [vmem:[%s458 + $0x30] sm:$0xff]
      %v506 = vld [vmem:[%s458 + $0x38] sm:$0xff]
      %v507 = vld [vmem:[%s458 + $0x40] sm:$0xff]
      %v508 = vld [vmem:[%s458 + $0x48] sm:$0xff]
      %v509 = vld [vmem:[%s458 + $0x50] sm:$0xff]
      %v510 = vld [vmem:[%s458 + $0x58] sm:$0xff]
      %v511 = vld [vmem:[%s458 + $0x60] sm:$0xff]
      %v512 = vld [vmem:[%s458 + $0x68] sm:$0xff]
      %v513 = vld [vmem:[%s458 + $0x70] sm:$0xff]
      %v514 = vld [vmem:[%s458 + $0x78] sm:$0xff]
      %v515 = vld [vmem:[%s458 + $0x80] sm:$0xff]
      %v516 = vld [vmem:[%s458 + $0x88] sm:$0xff]
      %v517 = vld [vmem:[%s458 + $0x90] sm:$0xff]
      %v518 = vld [vmem:[%s458 + $0x98] sm:$0xff]
      %v519 = vld [vmem:[%s458 + $0xa0] sm:$0xff]
      %v520 = vld [vmem:[%s458 + $0xa8] sm:$0xff]
      %v521 = vld [vmem:[%s458 + $0xb0] sm:$0xff]
      %v522 = vld [vmem:[%s458 + $0xb8] sm:$0xff]
      %v523 = vld [vmem:[%s458 + $0xc0] sm:$0xff]
      %v524 = vld [vmem:[%s458 + $0xc8] sm:$0xff]
      %v525 = vld [vmem:[%s458 + $0xd0] sm:$0xff]
      %v526 = vld [vmem:[%s458 + $0xd8] sm:$0xff]
      %v527 = vld [vmem:[%s458 + $0xe0] sm:$0xff]
      %v528 = vld [vmem:[%s458 + $0xe8] sm:$0xff]
      %v529 = vld [vmem:[%s458 + $0xf0] sm:$0xff]
      %v530 = vld [vmem:[%s458 + $0xf8] sm:$0xff]
      %v531 = vpack.c.bf16 %v500, %v499
      %v532 = vpack.c.bf16 %v502, %v501
      %v533 = vpack.c.bf16 %v504, %v503
      %v534 = vpack.c.bf16 %v506, %v505
      %v535 = vpack.c.bf16 %v508, %v507
      %v536 = vpack.c.bf16 %v510, %v509
      %v537 = vpack.c.bf16 %v512, %v511
      %v538 = vpack.c.bf16 %v514, %v513
      %v539 = vpack.c.bf16 %v516, %v515
      %v540 = vpack.c.bf16 %v518, %v517
      %v541 = vpack.c.bf16 %v520, %v519
      %v542 = vpack.c.bf16 %v522, %v521
      %v543 = vpack.c.bf16 %v524, %v523
      %v544 = vpack.c.bf16 %v526, %v525
      %v545 = vpack.c.bf16 %v528, %v527
      %v546 = vpack.c.bf16 %v530, %v529
      %v547 = vld [vmem:[%s5] sm:$0x7]
      %v548 = vld [vmem:[%s6] sm:$0x1]
      %v550 = vlaneseq
      %v551 = vshrl.u32 %v550, 7
      %v552 = vsub.s32 0, %v551
      %v553 = vrot.slane %v548, %v552
      %vm555 = vcmask 39936
      %v557 = vsel %vm555, %v531, 0
      %v560 = vsel %vm555, %v532, 0
      %v563 = vsel %vm555, %v533, 0
      %v566 = vsel %vm555, %v534, 0
      %v569 = vsel %vm555, %v535, 0
      %v572 = vsel %vm555, %v536, 0
      %v575 = vsel %vm555, %v537, 0
      %v578 = vsel %vm555, %v538, 0
      %v581 = vsel %vm555, %v539, 0
      %v584 = vsel %vm555, %v540, 0
      %v587 = vsel %vm555, %v541, 0
      %v590 = vsel %vm555, %v542, 0
      %v593 = vsel %vm555, %v543, 0
      %v596 = vsel %vm555, %v544, 0
      %v599 = vsel %vm555, %v545, 0
      %v602 = vsel %vm555, %v546, 0
      %vm604 = vcmask 1041408
      %vm605 = vcmask 1042432
      %v606 = vsel %vm604, 4294967295, 65535
      %v607 = vsel %vm605, %v606, 0
      %v609 = vand.u32 %v547, %v607
      %611 = vmatprep.subr.bf16.mxu0 0
      %612 = vmatpush1.bf16.msra.mxu0 0
      %613 = vmatprep.subr.bf16.mxu0 0
      %614 = vmatpush1.bf16.msra.mxu0 0
      %615 = vmatprep.subr.bf16.mxu0 0
      %616 = vmatpush1.bf16.msra.mxu0 0
      %617 = vmatprep.subr.bf16.mxu0 0
      %618 = vmatpush1.bf16.msra.mxu0 0
      %619 = vmatprep.subr.bf16.mxu0 0
      %620 = vmatpush1.bf16.msra.mxu0 0
      %621 = vmatprep.subr.bf16.mxu0 0
      %622 = vmatpush1.bf16.msra.mxu0 0
      %623 = vmatprep.subr.bf16.mxu0 0
      %624 = vmatpush1.bf16.msra.mxu0 0
      %625 = vmatprep.subr.bf16.mxu0 0
      %626 = vmatpush1.bf16.msra.mxu0 %v609
      %627 = vmatprep.subr.bf16.mxu0 0
      %628 = vmatpush2.bf16.msra.mxu0 0
      %629 = vmatprep.subr.bf16.mxu0 0
      %630 = vmatpush2.bf16.msra.mxu0 0
      %631 = vmatprep.subr.bf16.mxu0 0
      %632 = vmatpush2.bf16.msra.mxu0 0
      %633 = vmatprep.subr.bf16.mxu0 0
      %634 = vmatpush2.bf16.msra.mxu0 0
      %635 = vmatprep.subr.bf16.mxu0 0
      %636 = vmatpush2.bf16.msra.mxu0 0
      %637 = vmatprep.subr.bf16.mxu0 0
      %638 = vmatpush2.bf16.msra.mxu0 0
      %639 = vmatprep.subr.bf16.mxu0 0
      %640 = vmatpush2.bf16.msra.mxu0 0
      %641 = vmatprep.subr.bf16.mxu0 0
      %642 = vmatpush2.bf16.msra.mxu0 0
      %643 = vmatprep.mubr.bf16.mxu0 0
      %644 = vmatmul.mubr.bf16.gmra.mxu0 %v557
      %v645 = vpop.f32.mrf.mxu0
      %v646 = vadd.f32 %v553, %v645
      %v647 = vpop.f32.mrf.mxu0
      %v648 = vpop.f32.mrf.mxu0
      %v649 = vadd.f32 %v553, %v648
      %v650 = vpop.f32.mrf.mxu0
      %651 = vmatprep.mubr.bf16.mxu0 0
      %652 = vmatmul.mubr.bf16.gmra.mxu0 %v560
      %v653 = vpop.f32.mrf.mxu0
      %v654 = vadd.f32 %v553, %v653
      %v655 = vpop.f32.mrf.mxu0
      %v656 = vpop.f32.mrf.mxu0
      %v657 = vadd.f32 %v553, %v656
      %v658 = vpop.f32.mrf.mxu0
      %659 = vmatprep.mubr.bf16.mxu0 0
      %660 = vmatmul.mubr.bf16.gmra.mxu0 %v563
      %v661 = vpop.f32.mrf.mxu0
      %v662 = vadd.f32 %v553, %v661
      %v663 = vpop.f32.mrf.mxu0
      %v664 = vpop.f32.mrf.mxu0
      %v665 = vadd.f32 %v553, %v664
      %v666 = vpop.f32.mrf.mxu0
      %667 = vmatprep.mubr.bf16.mxu0 0
      %668 = vmatmul.mubr.bf16.gmra.mxu0 %v566
      %v669 = vpop.f32.mrf.mxu0
      %v670 = vadd.f32 %v553, %v669
      %v671 = vpop.f32.mrf.mxu0
      %v672 = vpop.f32.mrf.mxu0
      %v673 = vadd.f32 %v553, %v672
      %v674 = vpop.f32.mrf.mxu0
      %675 = vmatprep.mubr.bf16.mxu0 0
      %676 = vmatmul.mubr.bf16.gmra.mxu0 %v569
      %v677 = vpop.f32.mrf.mxu0
      %v678 = vadd.f32 %v553, %v677
      %v679 = vpop.f32.mrf.mxu0
      %v680 = vpop.f32.mrf.mxu0
      %v681 = vadd.f32 %v553, %v680
      %v682 = vpop.f32.mrf.mxu0
      %683 = vmatprep.mubr.bf16.mxu0 0
      %684 = vmatmul.mubr.bf16.gmra.mxu0 %v572
      %v685 = vpop.f32.mrf.mxu0
      %v686 = vadd.f32 %v553, %v685
      %v687 = vpop.f32.mrf.mxu0
      %v688 = vpop.f32.mrf.mxu0
      %v689 = vadd.f32 %v553, %v688
      %v690 = vpop.f32.mrf.mxu0
      %691 = vmatprep.mubr.bf16.mxu0 0
      %692 = vmatmul.mubr.bf16.gmra.mxu0 %v575
      %v693 = vpop.f32.mrf.mxu0
      %v694 = vadd.f32 %v553, %v693
      %v695 = vpop.f32.mrf.mxu0
      %v696 = vpop.f32.mrf.mxu0
      %v697 = vadd.f32 %v553, %v696
      %v698 = vpop.f32.mrf.mxu0
      %699 = vmatprep.mubr.bf16.mxu0 0
      %700 = vmatmul.mubr.bf16.gmra.mxu0 %v578
      %v701 = vpop.f32.mrf.mxu0
      %v702 = vadd.f32 %v553, %v701
      %v703 = vpop.f32.mrf.mxu0
      %v704 = vpop.f32.mrf.mxu0
      %v705 = vadd.f32 %v553, %v704
      %v706 = vpop.f32.mrf.mxu0
      %707 = vmatprep.mubr.bf16.mxu0 0
      %708 = vmatmul.mubr.bf16.gmra.mxu0 %v581
      %v709 = vpop.f32.mrf.mxu0
      %v710 = vadd.f32 %v553, %v709
      %v711 = vpop.f32.mrf.mxu0
      %v712 = vpop.f32.mrf.mxu0
      %v713 = vadd.f32 %v553, %v712
      %v714 = vpop.f32.mrf.mxu0
      %715 = vmatprep.mubr.bf16.mxu0 0
      %716 = vmatmul.mubr.bf16.gmra.mxu0 %v584
      %v717 = vpop.f32.mrf.mxu0
      %v718 = vadd.f32 %v553, %v717
      %v719 = vpop.f32.mrf.mxu0
      %v720 = vpop.f32.mrf.mxu0
      %v721 = vadd.f32 %v553, %v720
      %v722 = vpop.f32.mrf.mxu0
      %723 = vmatprep.mubr.bf16.mxu0 0
      %724 = vmatmul.mubr.bf16.gmra.mxu0 %v587
      %v725 = vpop.f32.mrf.mxu0
      %v726 = vadd.f32 %v553, %v725
      %v727 = vpop.f32.mrf.mxu0
      %v728 = vpop.f32.mrf.mxu0
      %v729 = vadd.f32 %v553, %v728
      %v730 = vpop.f32.mrf.mxu0
      %731 = vmatprep.mubr.bf16.mxu0 0
      %732 = vmatmul.mubr.bf16.gmra.mxu0 %v590
      %v733 = vpop.f32.mrf.mxu0
      %v734 = vadd.f32 %v553, %v733
      %v735 = vpop.f32.mrf.mxu0
      %v736 = vpop.f32.mrf.mxu0
      %v737 = vadd.f32 %v553, %v736
      %v738 = vpop.f32.mrf.mxu0
      %739 = vmatprep.mubr.bf16.mxu0 0
      %740 = vmatmul.mubr.bf16.gmra.mxu0 %v593
      %v741 = vpop.f32.mrf.mxu0
      %v742 = vadd.f32 %v553, %v741
      %v743 = vpop.f32.mrf.mxu0
      %v744 = vpop.f32.mrf.mxu0
      %v745 = vadd.f32 %v553, %v744
      %v746 = vpop.f32.mrf.mxu0
      %747 = vmatprep.mubr.bf16.mxu0 0
      %748 = vmatmul.mubr.bf16.gmra.mxu0 %v596
      %v749 = vpop.f32.mrf.mxu0
      %v750 = vadd.f32 %v553, %v749
      %v751 = vpop.f32.mrf.mxu0
      %v752 = vpop.f32.mrf.mxu0
      %v753 = vadd.f32 %v553, %v752
      %v754 = vpop.f32.mrf.mxu0
      %755 = vmatprep.mubr.bf16.mxu0 0
      %756 = vmatmul.mubr.bf16.gmra.mxu0 %v599
      %v757 = vpop.f32.mrf.mxu0
      %v758 = vadd.f32 %v553, %v757
      %v759 = vpop.f32.mrf.mxu0
      %v760 = vpop.f32.mrf.mxu0
      %v761 = vadd.f32 %v553, %v760
      %v762 = vpop.f32.mrf.mxu0
      %763 = vmatprep.mubr.bf16.mxu0 0
      %764 = vmatmul.mubr.bf16.gmra.mxu0 %v602
      %v765 = vpop.f32.mrf.mxu0
      %v766 = vadd.f32 %v553, %v765
      %v767 = vpop.f32.mrf.mxu0
      %v768 = vpop.f32.mrf.mxu0
      %v769 = vadd.f32 %v553, %v768
      %v770 = vpop.f32.mrf.mxu0
      %771 = vdwg.mxu0
      %v772 = vlaneseq
      %v773 = vand.u32 %v772, 127
      %774 = vset.pattern.permute.xlu0 0
      %775 = vperm.xlu0 %774, %v467
      %v776 = vpop.permute.xlu0 %775
      %777 = vset.pattern.permute.xlu0 0
      %778 = vperm.xlu0 %777, %v468
      %v779 = vpop.permute.xlu0 %778
      %780 = vset.pattern.permute.xlu0 0
      %781 = vperm.xlu0 %780, %v469
      %v782 = vpop.permute.xlu0 %781
      %783 = vset.pattern.permute.xlu0 0
      %784 = vperm.xlu0 %783, %v470
      %v785 = vpop.permute.xlu0 %784
      %786 = vset.pattern.permute.xlu0 0
      %787 = vperm.xlu0 %786, %v471
      %v788 = vpop.permute.xlu0 %787
      %789 = vset.pattern.permute.xlu0 0
      %790 = vperm.xlu0 %789, %v472
      %v791 = vpop.permute.xlu0 %790
      %792 = vset.pattern.permute.xlu0 0
      %793 = vperm.xlu0 %792, %v473
      %v794 = vpop.permute.xlu0 %793
      %795 = vset.pattern.permute.xlu0 0
      %796 = vperm.xlu0 %795, %v474
      %v797 = vpop.permute.xlu0 %796
      %798 = vset.pattern.permute.xlu0 0
      %799 = vperm.xlu0 %798, %v475
      %v800 = vpop.permute.xlu0 %799
      %801 = vset.pattern.permute.xlu0 0
      %802 = vperm.xlu0 %801, %v476
      %v803 = vpop.permute.xlu0 %802
      %804 = vset.pattern.permute.xlu0 0
      %805 = vperm.xlu0 %804, %v477
      %v806 = vpop.permute.xlu0 %805
      %807 = vset.pattern.permute.xlu0 0
      %808 = vperm.xlu0 %807, %v478
      %v809 = vpop.permute.xlu0 %808
      %810 = vset.pattern.permute.xlu0 0
      %811 = vperm.xlu0 %810, %v479
      %v812 = vpop.permute.xlu0 %811
      %813 = vset.pattern.permute.xlu0 0
      %814 = vperm.xlu0 %813, %v480
      %v815 = vpop.permute.xlu0 %814
      %816 = vset.pattern.permute.xlu0 0
      %817 = vperm.xlu0 %816, %v481
      %v818 = vpop.permute.xlu0 %817
      %819 = vset.pattern.permute.xlu0 0
      %820 = vperm.xlu0 %819, %v482
      %v821 = vpop.permute.xlu0 %820
      %822 = vset.pattern.permute.xlu0 0
      %823 = vperm.xlu0 %822, %v483
      %v824 = vpop.permute.xlu0 %823
      %825 = vset.pattern.permute.xlu0 0
      %826 = vperm.xlu0 %825, %v484
      %v827 = vpop.permute.xlu0 %826
      %828 = vset.pattern.permute.xlu0 0
      %829 = vperm.xlu0 %828, %v485
      %v830 = vpop.permute.xlu0 %829
      %831 = vset.pattern.permute.xlu0 0
      %832 = vperm.xlu0 %831, %v486
      %v833 = vpop.permute.xlu0 %832
      %834 = vset.pattern.permute.xlu0 0
      %835 = vperm.xlu0 %834, %v487
      %v836 = vpop.permute.xlu0 %835
      %837 = vset.pattern.permute.xlu0 0
      %838 = vperm.xlu0 %837, %v488
      %v839 = vpop.permute.xlu0 %838
      %840 = vset.pattern.permute.xlu0 0
      %841 = vperm.xlu0 %840, %v489
      %v842 = vpop.permute.xlu0 %841
      %843 = vset.pattern.permute.xlu0 0
      %844 = vperm.xlu0 %843, %v490
      %v845 = vpop.permute.xlu0 %844
      %846 = vset.pattern.permute.xlu0 0
      %847 = vperm.xlu0 %846, %v491
      %v848 = vpop.permute.xlu0 %847
      %849 = vset.pattern.permute.xlu0 0
      %850 = vperm.xlu0 %849, %v492
      %v851 = vpop.permute.xlu0 %850
      %852 = vset.pattern.permute.xlu0 0
      %853 = vperm.xlu0 %852, %v493
      %v854 = vpop.permute.xlu0 %853
      %855 = vset.pattern.permute.xlu0 0
      %856 = vperm.xlu0 %855, %v494
      %v857 = vpop.permute.xlu0 %856
      %858 = vset.pattern.permute.xlu0 0
      %859 = vperm.xlu0 %858, %v495
      %v860 = vpop.permute.xlu0 %859
      %861 = vset.pattern.permute.xlu0 0
      %862 = vperm.xlu0 %861, %v496
      %v863 = vpop.permute.xlu0 %862
      %864 = vset.pattern.permute.xlu0 0
      %865 = vperm.xlu0 %864, %v497
      %v866 = vpop.permute.xlu0 %865
      %867 = vset.pattern.permute.xlu0 0
      %868 = vperm.xlu0 %867, %v498
      %v869 = vpop.permute.xlu0 %868
      %vm870 = vcmp.eq.s32.totalorder %v776, %v773
      %vm871 = vcmp.eq.s32.totalorder %v779, %v773
      %vm872 = vcmp.eq.s32.totalorder %v782, %v773
      %vm873 = vcmp.eq.s32.totalorder %v785, %v773
      %vm874 = vcmp.eq.s32.totalorder %v788, %v773
      %vm875 = vcmp.eq.s32.totalorder %v791, %v773
      %vm876 = vcmp.eq.s32.totalorder %v794, %v773
      %vm877 = vcmp.eq.s32.totalorder %v797, %v773
      %vm878 = vcmp.eq.s32.totalorder %v800, %v773
      %vm879 = vcmp.eq.s32.totalorder %v803, %v773
      %vm880 = vcmp.eq.s32.totalorder %v806, %v773
      %vm881 = vcmp.eq.s32.totalorder %v809, %v773
      %vm882 = vcmp.eq.s32.totalorder %v812, %v773
      %vm883 = vcmp.eq.s32.totalorder %v815, %v773
      %vm884 = vcmp.eq.s32.totalorder %v818, %v773
      %vm885 = vcmp.eq.s32.totalorder %v821, %v773
      %vm886 = vcmp.eq.s32.totalorder %v824, %v773
      %vm887 = vcmp.eq.s32.totalorder %v827, %v773
      %vm888 = vcmp.eq.s32.totalorder %v830, %v773
      %vm889 = vcmp.eq.s32.totalorder %v833, %v773
      %vm890 = vcmp.eq.s32.totalorder %v836, %v773
      %vm891 = vcmp.eq.s32.totalorder %v839, %v773
      %vm892 = vcmp.eq.s32.totalorder %v842, %v773
      %vm893 = vcmp.eq.s32.totalorder %v845, %v773
      %vm894 = vcmp.eq.s32.totalorder %v848, %v773
      %vm895 = vcmp.eq.s32.totalorder %v851, %v773
      %vm896 = vcmp.eq.s32.totalorder %v854, %v773
      %vm897 = vcmp.eq.s32.totalorder %v857, %v773
      %vm898 = vcmp.eq.s32.totalorder %v860, %v773
      %vm899 = vcmp.eq.s32.totalorder %v863, %v773
      %vm900 = vcmp.eq.s32.totalorder %v866, %v773
      %vm901 = vcmp.eq.s32.totalorder %v869, %v773
      %v902 = vsel %vm870, 1, 0
      %v903 = vsel %vm871, 1, 0
      %v904 = vsel %vm872, 1, 0
      %v905 = vsel %vm873, 1, 0
      %v906 = vsel %vm874, 1, 0
      %v907 = vsel %vm875, 1, 0
      %v908 = vsel %vm876, 1, 0
      %v909 = vsel %vm877, 1, 0
      %v910 = vsel %vm878, 1, 0
      %v911 = vsel %vm879, 1, 0
      %v912 = vsel %vm880, 1, 0
      %v913 = vsel %vm881, 1, 0
      %v914 = vsel %vm882, 1, 0
      %v915 = vsel %vm883, 1, 0
      %v916 = vsel %vm884, 1, 0
      %v917 = vsel %vm885, 1, 0
      %v918 = vsel %vm886, 1, 0
      %v919 = vsel %vm887, 1, 0
      %v920 = vsel %vm888, 1, 0
      %v921 = vsel %vm889, 1, 0
      %v922 = vsel %vm890, 1, 0
      %v923 = vsel %vm891, 1, 0
      %v924 = vsel %vm892, 1, 0
      %v925 = vsel %vm893, 1, 0
      %v926 = vsel %vm894, 1, 0
      %v927 = vsel %vm895, 1, 0
      %v928 = vsel %vm896, 1, 0
      %v929 = vsel %vm897, 1, 0
      %v930 = vsel %vm898, 1, 0
      %v931 = vsel %vm899, 1, 0
      %v932 = vsel %vm900, 1, 0
      %v933 = vsel %vm901, 1, 0
      %v934 = vcvt.s32.f32 %v902
      %v935 = vcvt.s32.f32 %v903
      %v936 = vcvt.s32.f32 %v904
      %v937 = vcvt.s32.f32 %v905
      %v938 = vcvt.s32.f32 %v906
      %v939 = vcvt.s32.f32 %v907
      %v940 = vcvt.s32.f32 %v908
      %v941 = vcvt.s32.f32 %v909
      %v942 = vcvt.s32.f32 %v910
      %v943 = vcvt.s32.f32 %v911
      %v944 = vcvt.s32.f32 %v912
      %v945 = vcvt.s32.f32 %v913
      %v946 = vcvt.s32.f32 %v914
      %v947 = vcvt.s32.f32 %v915
      %v948 = vcvt.s32.f32 %v916
      %v949 = vcvt.s32.f32 %v917
      %v950 = vcvt.s32.f32 %v918
      %v951 = vcvt.s32.f32 %v919
      %v952 = vcvt.s32.f32 %v920
      %v953 = vcvt.s32.f32 %v921
      %v954 = vcvt.s32.f32 %v922
      %v955 = vcvt.s32.f32 %v923
      %v956 = vcvt.s32.f32 %v924
      %v957 = vcvt.s32.f32 %v925
      %v958 = vcvt.s32.f32 %v926
      %v959 = vcvt.s32.f32 %v927
      %v960 = vcvt.s32.f32 %v928
      %v961 = vcvt.s32.f32 %v929
      %v962 = vcvt.s32.f32 %v930
      %v963 = vcvt.s32.f32 %v931
      %v964 = vcvt.s32.f32 %v932
      %v965 = vcvt.s32.f32 %v933
      %v966 = vpack.c.bf16 %v935, %v934
      %v967 = vpack.c.bf16 %v937, %v936
      %v968 = vpack.c.bf16 %v939, %v938
      %v969 = vpack.c.bf16 %v941, %v940
      %v970 = vpack.c.bf16 %v943, %v942
      %v971 = vpack.c.bf16 %v945, %v944
      %v972 = vpack.c.bf16 %v947, %v946
      %v973 = vpack.c.bf16 %v949, %v948
      %v974 = vpack.c.bf16 %v951, %v950
      %v975 = vpack.c.bf16 %v953, %v952
      %v976 = vpack.c.bf16 %v955, %v954
      %v977 = vpack.c.bf16 %v957, %v956
      %v978 = vpack.c.bf16 %v959, %v958
      %v979 = vpack.c.bf16 %v961, %v960
      %v980 = vpack.c.bf16 %v963, %v962
      %v981 = vpack.c.bf16 %v965, %v964
      %v982 = vld [vmem:[%s2] sm:$0xf]
      %v983 = vld [vmem:[%s2 + $0x4] sm:$0xf]
      %v984 = vld [vmem:[%s2 + $0x8] sm:$0xf]
      %v985 = vld [vmem:[%s2 + $0xc] sm:$0xf]
      %v986 = vld [vmem:[%s2 + $0x10] sm:$0xf]
      %v992 = vunpack.c.l.b16 %v982
      %v993 = vunpack.c.l.b16 %v983
      %v994 = vunpack.c.l.b16 %v984
      %v995 = vunpack.c.l.b16 %v985
      %v996 = vunpack.c.l.b16 %v986
      %v997 = vpack.c.b16 %v993, %v992
      %v998 = vpack.c.b16 %v995, %v994
      %v999 = vpack.c.b16 %v996, %v996
      %vm1002 = vcmask 326656
      %v1004 = vsel %vm1002, %v966, 0
      %v1007 = vsel %vm1002, %v967, 0
      %v1010 = vsel %vm1002, %v968, 0
      %v1013 = vsel %vm1002, %v969, 0
      %v1016 = vsel %vm1002, %v970, 0
      %v1019 = vsel %vm1002, %v971, 0
      %v1022 = vsel %vm1002, %v972, 0
      %v1025 = vsel %vm1002, %v973, 0
      %v1028 = vsel %vm1002, %v974, 0
      %v1031 = vsel %vm1002, %v975, 0
      %v1034 = vsel %vm1002, %v976, 0
      %v1037 = vsel %vm1002, %v977, 0
      %v1040 = vsel %vm1002, %v978, 0
      %v1043 = vsel %vm1002, %v979, 0
      %v1046 = vsel %vm1002, %v980, 0
      %v1049 = vsel %vm1002, %v981, 0
      %vm1051 = vcmask 1043456
      %v1053 = vsel %vm1051, %v999, 0
      %1055 = vmatprep.subr.bf16.mxu0 0
      %1056 = vmatpush1.bf16.msra.mxu0 0
      %1057 = vmatprep.subr.bf16.mxu0 0
      %1058 = vmatpush1.bf16.msra.mxu0 0
      %1059 = vmatprep.subr.bf16.mxu0 0
      %1060 = vmatpush1.bf16.msra.mxu0 0
      %1061 = vmatprep.subr.bf16.mxu0 0
      %1062 = vmatpush1.bf16.msra.mxu0 0
      %1063 = vmatprep.subr.bf16.mxu0 0
      %1064 = vmatpush1.bf16.msra.mxu0 0
      %1065 = vmatprep.subr.bf16.mxu0 0
      %1066 = vmatpush1.bf16.msra.mxu0 %v1053
      %1067 = vmatprep.subr.bf16.mxu0 0
      %1068 = vmatpush1.bf16.msra.mxu0 %v998
      %1069 = vmatprep.subr.bf16.mxu0 0
      %1070 = vmatpush1.bf16.msra.mxu0 %v997
      %1071 = vmatprep.subr.bf16.mxu0 0
      %1072 = vmatpush2.bf16.msra.mxu0 0
      %1073 = vmatprep.subr.bf16.mxu0 0
      %1074 = vmatpush2.bf16.msra.mxu0 0
      %1075 = vmatprep.subr.bf16.mxu0 0
      %1076 = vmatpush2.bf16.msra.mxu0 0
      %1077 = vmatprep.subr.bf16.mxu0 0
      %1078 = vmatpush2.bf16.msra.mxu0 0
      %1079 = vmatprep.subr.bf16.mxu0 0
      %1080 = vmatpush2.bf16.msra.mxu0 0
      %1081 = vmatprep.subr.bf16.mxu0 0
      %1082 = vmatpush2.bf16.msra.mxu0 0
      %1083 = vmatprep.subr.bf16.mxu0 0
      %1084 = vmatpush2.bf16.msra.mxu0 0
      %1085 = vmatprep.subr.bf16.mxu0 0
      %1086 = vmatpush2.bf16.msra.mxu0 0
      %1087 = vmatprep.mubr.bf16.mxu0 0
      %1088 = vmatmul.mubr.bf16.gmra.mxu0 %v1004
      %v1089 = vpop.f32.mrf.mxu0
      %v1090 = vadd.f32 0.0, %v1089
      %v1091 = vpop.f32.mrf.mxu0
      %v1092 = vpop.f32.mrf.mxu0
      %v1093 = vadd.f32 0.0, %v1092
      %v1094 = vpop.f32.mrf.mxu0
      %1095 = vmatprep.mubr.bf16.mxu0 0
      %1096 = vmatmul.mubr.bf16.gmra.mxu0 %v1007
      %v1097 = vpop.f32.mrf.mxu0
      %v1098 = vadd.f32 0.0, %v1097
      %v1099 = vpop.f32.mrf.mxu0
      %v1100 = vpop.f32.mrf.mxu0
      %v1101 = vadd.f32 0.0, %v1100
      %v1102 = vpop.f32.mrf.mxu0
      %1103 = vmatprep.mubr.bf16.mxu0 0
      %1104 = vmatmul.mubr.bf16.gmra.mxu0 %v1010
      %v1105 = vpop.f32.mrf.mxu0
      %v1106 = vadd.f32 0.0, %v1105
      %v1107 = vpop.f32.mrf.mxu0
      %v1108 = vpop.f32.mrf.mxu0
      %v1109 = vadd.f32 0.0, %v1108
      %v1110 = vpop.f32.mrf.mxu0
      %1111 = vmatprep.mubr.bf16.mxu0 0
      %1112 = vmatmul.mubr.bf16.gmra.mxu0 %v1013
      %v1113 = vpop.f32.mrf.mxu0
      %v1114 = vadd.f32 0.0, %v1113
      %v1115 = vpop.f32.mrf.mxu0
      %v1116 = vpop.f32.mrf.mxu0
      %v1117 = vadd.f32 0.0, %v1116
      %v1118 = vpop.f32.mrf.mxu0
      %1119 = vmatprep.mubr.bf16.mxu0 0
      %1120 = vmatmul.mubr.bf16.gmra.mxu0 %v1016
      %v1121 = vpop.f32.mrf.mxu0
      %v1122 = vadd.f32 0.0, %v1121
      %v1123 = vpop.f32.mrf.mxu0
      %v1124 = vpop.f32.mrf.mxu0
      %v1125 = vadd.f32 0.0, %v1124
      %v1126 = vpop.f32.mrf.mxu0
      %1127 = vmatprep.mubr.bf16.mxu0 0
      %1128 = vmatmul.mubr.bf16.gmra.mxu0 %v1019
      %v1129 = vpop.f32.mrf.mxu0
      %v1130 = vadd.f32 0.0, %v1129
      %v1131 = vpop.f32.mrf.mxu0
      %v1132 = vpop.f32.mrf.mxu0
      %v1133 = vadd.f32 0.0, %v1132
      %v1134 = vpop.f32.mrf.mxu0
      %1135 = vmatprep.mubr.bf16.mxu0 0
      %1136 = vmatmul.mubr.bf16.gmra.mxu0 %v1022
      %v1137 = vpop.f32.mrf.mxu0
      %v1138 = vadd.f32 0.0, %v1137
      %v1139 = vpop.f32.mrf.mxu0
      %v1140 = vpop.f32.mrf.mxu0
      %v1141 = vadd.f32 0.0, %v1140
      %v1142 = vpop.f32.mrf.mxu0
      %1143 = vmatprep.mubr.bf16.mxu0 0
      %1144 = vmatmul.mubr.bf16.gmra.mxu0 %v1025
      %v1145 = vpop.f32.mrf.mxu0
      %v1146 = vadd.f32 0.0, %v1145
      %v1147 = vpop.f32.mrf.mxu0
      %v1148 = vpop.f32.mrf.mxu0
      %v1149 = vadd.f32 0.0, %v1148
      %v1150 = vpop.f32.mrf.mxu0
      %1151 = vmatprep.mubr.bf16.mxu0 0
      %1152 = vmatmul.mubr.bf16.gmra.mxu0 %v1028
      %v1153 = vpop.f32.mrf.mxu0
      %v1154 = vadd.f32 0.0, %v1153
      %v1155 = vpop.f32.mrf.mxu0
      %v1156 = vpop.f32.mrf.mxu0
      %v1157 = vadd.f32 0.0, %v1156
      %v1158 = vpop.f32.mrf.mxu0
      %1159 = vmatprep.mubr.bf16.mxu0 0
      %1160 = vmatmul.mubr.bf16.gmra.mxu0 %v1031
      %v1161 = vpop.f32.mrf.mxu0
      %v1162 = vadd.f32 0.0, %v1161
      %v1163 = vpop.f32.mrf.mxu0
      %v1164 = vpop.f32.mrf.mxu0
      %v1165 = vadd.f32 0.0, %v1164
      %v1166 = vpop.f32.mrf.mxu0
      %1167 = vmatprep.mubr.bf16.mxu0 0
      %1168 = vmatmul.mubr.bf16.gmra.mxu0 %v1034
      %v1169 = vpop.f32.mrf.mxu0
      %v1170 = vadd.f32 0.0, %v1169
      %v1171 = vpop.f32.mrf.mxu0
      %v1172 = vpop.f32.mrf.mxu0
      %v1173 = vadd.f32 0.0, %v1172
      %v1174 = vpop.f32.mrf.mxu0
      %1175 = vmatprep.mubr.bf16.mxu0 0
      %1176 = vmatmul.mubr.bf16.gmra.mxu0 %v1037
      %v1177 = vpop.f32.mrf.mxu0
      %v1178 = vadd.f32 0.0, %v1177
      %v1179 = vpop.f32.mrf.mxu0
      %v1180 = vpop.f32.mrf.mxu0
      %v1181 = vadd.f32 0.0, %v1180
      %v1182 = vpop.f32.mrf.mxu0
      %1183 = vmatprep.mubr.bf16.mxu0 0
      %1184 = vmatmul.mubr.bf16.gmra.mxu0 %v1040
      %v1185 = vpop.f32.mrf.mxu0
      %v1186 = vadd.f32 0.0, %v1185
      %v1187 = vpop.f32.mrf.mxu0
      %v1188 = vpop.f32.mrf.mxu0
      %v1189 = vadd.f32 0.0, %v1188
      %v1190 = vpop.f32.mrf.mxu0
      %1191 = vmatprep.mubr.bf16.mxu0 0
      %1192 = vmatmul.mubr.bf16.gmra.mxu0 %v1043
      %v1193 = vpop.f32.mrf.mxu0
      %v1194 = vadd.f32 0.0, %v1193
      %v1195 = vpop.f32.mrf.mxu0
      %v1196 = vpop.f32.mrf.mxu0
      %v1197 = vadd.f32 0.0, %v1196
      %v1198 = vpop.f32.mrf.mxu0
      %1199 = vmatprep.mubr.bf16.mxu0 0
      %1200 = vmatmul.mubr.bf16.gmra.mxu0 %v1046
      %v1201 = vpop.f32.mrf.mxu0
      %v1202 = vadd.f32 0.0, %v1201
      %v1203 = vpop.f32.mrf.mxu0
      %v1204 = vpop.f32.mrf.mxu0
      %v1205 = vadd.f32 0.0, %v1204
      %v1206 = vpop.f32.mrf.mxu0
      %1207 = vmatprep.mubr.bf16.mxu0 0
      %1208 = vmatmul.mubr.bf16.gmra.mxu0 %v1049
      %v1209 = vpop.f32.mrf.mxu0
      %v1210 = vadd.f32 0.0, %v1209
      %v1211 = vpop.f32.mrf.mxu0
      %v1212 = vpop.f32.mrf.mxu0
      %v1213 = vadd.f32 0.0, %v1212
      %v1214 = vpop.f32.mrf.mxu0
      %1215 = vdwg.mxu0
      %v1216 = vadd.f32 %v646, %v1090
      %v1217 = vadd.f32 %v649, %v1093
      %v1218 = vadd.f32 %v654, %v1098
      %v1219 = vadd.f32 %v657, %v1101
      %v1220 = vadd.f32 %v662, %v1106
      %v1221 = vadd.f32 %v665, %v1109
      %v1222 = vadd.f32 %v670, %v1114
      %v1223 = vadd.f32 %v673, %v1117
      %v1224 = vadd.f32 %v678, %v1122
      %v1225 = vadd.f32 %v681, %v1125
      %v1226 = vadd.f32 %v686, %v1130
      %v1227 = vadd.f32 %v689, %v1133
      %v1228 = vadd.f32 %v694, %v1138
      %v1229 = vadd.f32 %v697, %v1141
      %v1230 = vadd.f32 %v702, %v1146
      %v1231 = vadd.f32 %v705, %v1149
      %v1232 = vadd.f32 %v710, %v1154
      %v1233 = vadd.f32 %v713, %v1157
      %v1234 = vadd.f32 %v718, %v1162
      %v1235 = vadd.f32 %v721, %v1165
      %v1236 = vadd.f32 %v726, %v1170
      %v1237 = vadd.f32 %v729, %v1173
      %v1238 = vadd.f32 %v734, %v1178
      %v1239 = vadd.f32 %v737, %v1181
      %v1240 = vadd.f32 %v742, %v1186
      %v1241 = vadd.f32 %v745, %v1189
      %v1242 = vadd.f32 %v750, %v1194
      %v1243 = vadd.f32 %v753, %v1197
      %v1244 = vadd.f32 %v758, %v1202
      %v1245 = vadd.f32 %v761, %v1205
      %v1246 = vadd.f32 %v766, %v1210
      %v1247 = vadd.f32 %v769, %v1213
      %1248 = vset.pattern.permute.xlu0 1
      %1249 = vperm.xlu0 %1248, %v467
      %v1250 = vpop.permute.xlu0 %1249
      %1251 = vset.pattern.permute.xlu0 1
      %1252 = vperm.xlu0 %1251, %v468
      %v1253 = vpop.permute.xlu0 %1252
      %1254 = vset.pattern.permute.xlu0 1
      %1255 = vperm.xlu0 %1254, %v469
      %v1256 = vpop.permute.xlu0 %1255
      %1257 = vset.pattern.permute.xlu0 1
      %1258 = vperm.xlu0 %1257, %v470
      %v1259 = vpop.permute.xlu0 %1258
      %1260 = vset.pattern.permute.xlu0 1
      %1261 = vperm.xlu0 %1260, %v471
      %v1262 = vpop.permute.xlu0 %1261
      %1263 = vset.pattern.permute.xlu0 1
      %1264 = vperm.xlu0 %1263, %v472
      %v1265 = vpop.permute.xlu0 %1264
      %1266 = vset.pattern.permute.xlu0 1
      %1267 = vperm.xlu0 %1266, %v473
      %v1268 = vpop.permute.xlu0 %1267
      %1269 = vset.pattern.permute.xlu0 1
      %1270 = vperm.xlu0 %1269, %v474
      %v1271 = vpop.permute.xlu0 %1270
      %1272 = vset.pattern.permute.xlu0 1
      %1273 = vperm.xlu0 %1272, %v475
      %v1274 = vpop.permute.xlu0 %1273
      %1275 = vset.pattern.permute.xlu0 1
      %1276 = vperm.xlu0 %1275, %v476
      %v1277 = vpop.permute.xlu0 %1276
      %1278 = vset.pattern.permute.xlu0 1
      %1279 = vperm.xlu0 %1278, %v477
      %v1280 = vpop.permute.xlu0 %1279
      %1281 = vset.pattern.permute.xlu0 1
      %1282 = vperm.xlu0 %1281, %v478
      %v1283 = vpop.permute.xlu0 %1282
      %1284 = vset.pattern.permute.xlu0 1
      %1285 = vperm.xlu0 %1284, %v479
      %v1286 = vpop.permute.xlu0 %1285
      %1287 = vset.pattern.permute.xlu0 1
      %1288 = vperm.xlu0 %1287, %v480
      %v1289 = vpop.permute.xlu0 %1288
      %1290 = vset.pattern.permute.xlu0 1
      %1291 = vperm.xlu0 %1290, %v481
      %v1292 = vpop.permute.xlu0 %1291
      %1293 = vset.pattern.permute.xlu0 1
      %1294 = vperm.xlu0 %1293, %v482
      %v1295 = vpop.permute.xlu0 %1294
      %1296 = vset.pattern.permute.xlu0 1
      %1297 = vperm.xlu0 %1296, %v483
      %v1298 = vpop.permute.xlu0 %1297
      %1299 = vset.pattern.permute.xlu0 1
      %1300 = vperm.xlu0 %1299, %v484
      %v1301 = vpop.permute.xlu0 %1300
      %1302 = vset.pattern.permute.xlu0 1
      %1303 = vperm.xlu0 %1302, %v485
      %v1304 = vpop.permute.xlu0 %1303
      %1305 = vset.pattern.permute.xlu0 1
      %1306 = vperm.xlu0 %1305, %v486
      %v1307 = vpop.permute.xlu0 %1306
      %1308 = vset.pattern.permute.xlu0 1
      %1309 = vperm.xlu0 %1308, %v487
      %v1310 = vpop.permute.xlu0 %1309
      %1311 = vset.pattern.permute.xlu0 1
      %1312 = vperm.xlu0 %1311, %v488
      %v1313 = vpop.permute.xlu0 %1312
      %1314 = vset.pattern.permute.xlu0 1
      %1315 = vperm.xlu0 %1314, %v489
      %v1316 = vpop.permute.xlu0 %1315
      %1317 = vset.pattern.permute.xlu0 1
      %1318 = vperm.xlu0 %1317, %v490
      %v1319 = vpop.permute.xlu0 %1318
      %1320 = vset.pattern.permute.xlu0 1
      %1321 = vperm.xlu0 %1320, %v491
      %v1322 = vpop.permute.xlu0 %1321
      %1323 = vset.pattern.permute.xlu0 1
      %1324 = vperm.xlu0 %1323, %v492
      %v1325 = vpop.permute.xlu0 %1324
      %1326 = vset.pattern.permute.xlu0 1
      %1327 = vperm.xlu0 %1326, %v493
      %v1328 = vpop.permute.xlu0 %1327
      %1329 = vset.pattern.permute.xlu0 1
      %1330 = vperm.xlu0 %1329, %v494
      %v1331 = vpop.permute.xlu0 %1330
      %1332 = vset.pattern.permute.xlu0 1
      %1333 = vperm.xlu0 %1332, %v495
      %v1334 = vpop.permute.xlu0 %1333
      %1335 = vset.pattern.permute.xlu0 1
      %1336 = vperm.xlu0 %1335, %v496
      %v1337 = vpop.permute.xlu0 %1336
      %1338 = vset.pattern.permute.xlu0 1
      %1339 = vperm.xlu0 %1338, %v497
      %v1340 = vpop.permute.xlu0 %1339
      %1341 = vset.pattern.permute.xlu0 1
      %1342 = vperm.xlu0 %1341, %v498
      %v1343 = vpop.permute.xlu0 %1342
      %vm1344 = vcmp.eq.s32.totalorder %v1250, %v773
      %vm1345 = vcmp.eq.s32.totalorder %v1253, %v773
      %vm1346 = vcmp.eq.s32.totalorder %v1256, %v773
      %vm1347 = vcmp.eq.s32.totalorder %v1259, %v773
      %vm1348 = vcmp.eq.s32.totalorder %v1262, %v773
      %vm1349 = vcmp.eq.s32.totalorder %v1265, %v773
      %vm1350 = vcmp.eq.s32.totalorder %v1268, %v773
      %vm1351 = vcmp.eq.s32.totalorder %v1271, %v773
      %vm1352 = vcmp.eq.s32.totalorder %v1274, %v773
      %vm1353 = vcmp.eq.s32.totalorder %v1277, %v773
      %vm1354 = vcmp.eq.s32.totalorder %v1280, %v773
      %vm1355 = vcmp.eq.s32.totalorder %v1283, %v773
      %vm1356 = vcmp.eq.s32.totalorder %v1286, %v773
      %vm1357 = vcmp.eq.s32.totalorder %v1289, %v773
      %vm1358 = vcmp.eq.s32.totalorder %v1292, %v773
      %vm1359 = vcmp.eq.s32.totalorder %v1295, %v773
      %vm1360 = vcmp.eq.s32.totalorder %v1298, %v773
      %vm1361 = vcmp.eq.s32.totalorder %v1301, %v773
      %vm1362 = vcmp.eq.s32.totalorder %v1304, %v773
      %vm1363 = vcmp.eq.s32.totalorder %v1307, %v773
      %vm1364 = vcmp.eq.s32.totalorder %v1310, %v773
      %vm1365 = vcmp.eq.s32.totalorder %v1313, %v773
      %vm1366 = vcmp.eq.s32.totalorder %v1316, %v773
      %vm1367 = vcmp.eq.s32.totalorder %v1319, %v773
      %vm1368 = vcmp.eq.s32.totalorder %v1322, %v773
      %vm1369 = vcmp.eq.s32.totalorder %v1325, %v773
      %vm1370 = vcmp.eq.s32.totalorder %v1328, %v773
      %vm1371 = vcmp.eq.s32.totalorder %v1331, %v773
      %vm1372 = vcmp.eq.s32.totalorder %v1334, %v773
      %vm1373 = vcmp.eq.s32.totalorder %v1337, %v773
      %vm1374 = vcmp.eq.s32.totalorder %v1340, %v773
      %vm1375 = vcmp.eq.s32.totalorder %v1343, %v773
      %v1376 = vsel %vm1344, 1, 0
      %v1377 = vsel %vm1345, 1, 0
      %v1378 = vsel %vm1346, 1, 0
      %v1379 = vsel %vm1347, 1, 0
      %v1380 = vsel %vm1348, 1, 0
      %v1381 = vsel %vm1349, 1, 0
      %v1382 = vsel %vm1350, 1, 0
      %v1383 = vsel %vm1351, 1, 0
      %v1384 = vsel %vm1352, 1, 0
      %v1385 = vsel %vm1353, 1, 0
      %v1386 = vsel %vm1354, 1, 0
      %v1387 = vsel %vm1355, 1, 0
      %v1388 = vsel %vm1356, 1, 0
      %v1389 = vsel %vm1357, 1, 0
      %v1390 = vsel %vm1358, 1, 0
      %v1391 = vsel %vm1359, 1, 0
      %v1392 = vsel %vm1360, 1, 0
      %v1393 = vsel %vm1361, 1, 0
      %v1394 = vsel %vm1362, 1, 0
      %v1395 = vsel %vm1363, 1, 0
      %v1396 = vsel %vm1364, 1, 0
      %v1397 = vsel %vm1365, 1, 0
      %v1398 = vsel %vm1366, 1, 0
      %v1399 = vsel %vm1367, 1, 0
      %v1400 = vsel %vm1368, 1, 0
      %v1401 = vsel %vm1369, 1, 0
      %v1402 = vsel %vm1370, 1, 0
      %v1403 = vsel %vm1371, 1, 0
      %v1404 = vsel %vm1372, 1, 0
      %v1405 = vsel %vm1373, 1, 0
      %v1406 = vsel %vm1374, 1, 0
      %v1407 = vsel %vm1375, 1, 0
      %v1408 = vcvt.s32.f32 %v1376
      %v1409 = vcvt.s32.f32 %v1377
      %v1410 = vcvt.s32.f32 %v1378
      %v1411 = vcvt.s32.f32 %v1379
      %v1412 = vcvt.s32.f32 %v1380
      %v1413 = vcvt.s32.f32 %v1381
      %v1414 = vcvt.s32.f32 %v1382
      %v1415 = vcvt.s32.f32 %v1383
      %v1416 = vcvt.s32.f32 %v1384
      %v1417 = vcvt.s32.f32 %v1385
      %v1418 = vcvt.s32.f32 %v1386
      %v1419 = vcvt.s32.f32 %v1387
      %v1420 = vcvt.s32.f32 %v1388
      %v1421 = vcvt.s32.f32 %v1389
      %v1422 = vcvt.s32.f32 %v1390
      %v1423 = vcvt.s32.f32 %v1391
      %v1424 = vcvt.s32.f32 %v1392
      %v1425 = vcvt.s32.f32 %v1393
      %v1426 = vcvt.s32.f32 %v1394
      %v1427 = vcvt.s32.f32 %v1395
      %v1428 = vcvt.s32.f32 %v1396
      %v1429 = vcvt.s32.f32 %v1397
      %v1430 = vcvt.s32.f32 %v1398
      %v1431 = vcvt.s32.f32 %v1399
      %v1432 = vcvt.s32.f32 %v1400
      %v1433 = vcvt.s32.f32 %v1401
      %v1434 = vcvt.s32.f32 %v1402
      %v1435 = vcvt.s32.f32 %v1403
      %v1436 = vcvt.s32.f32 %v1404
      %v1437 = vcvt.s32.f32 %v1405
      %v1438 = vcvt.s32.f32 %v1406
      %v1439 = vcvt.s32.f32 %v1407
      %v1440 = vpack.c.bf16 %v1409, %v1408
      %v1441 = vpack.c.bf16 %v1411, %v1410
      %v1442 = vpack.c.bf16 %v1413, %v1412
      %v1443 = vpack.c.bf16 %v1415, %v1414
      %v1444 = vpack.c.bf16 %v1417, %v1416
      %v1445 = vpack.c.bf16 %v1419, %v1418
      %v1446 = vpack.c.bf16 %v1421, %v1420
      %v1447 = vpack.c.bf16 %v1423, %v1422
      %v1448 = vpack.c.bf16 %v1425, %v1424
      %v1449 = vpack.c.bf16 %v1427, %v1426
      %v1450 = vpack.c.bf16 %v1429, %v1428
      %v1451 = vpack.c.bf16 %v1431, %v1430
      %v1452 = vpack.c.bf16 %v1433, %v1432
      %v1453 = vpack.c.bf16 %v1435, %v1434
      %v1454 = vpack.c.bf16 %v1437, %v1436
      %v1455 = vpack.c.bf16 %v1439, %v1438
      %v1456 = vld [vmem:[%s3] sm:$0xf]
      %v1457 = vld [vmem:[%s3 + $0x4] sm:$0xf]
      %v1460 = vunpack.c.l.b16 %v1456
      %v1461 = vunpack.c.l.b16 %v1457
      %v1462 = vpack.c.b16 %v1461, %v1460
      %vm1464 = vcmask 130048
      %v1466 = vsel %vm1464, %v1440, 0
      %v1469 = vsel %vm1464, %v1441, 0
      %v1472 = vsel %vm1464, %v1442, 0
      %v1475 = vsel %vm1464, %v1443, 0
      %v1478 = vsel %vm1464, %v1444, 0
      %v1481 = vsel %vm1464, %v1445, 0
      %v1484 = vsel %vm1464, %v1446, 0
      %v1487 = vsel %vm1464, %v1447, 0
      %v1490 = vsel %vm1464, %v1448, 0
      %v1493 = vsel %vm1464, %v1449, 0
      %v1496 = vsel %vm1464, %v1450, 0
      %v1499 = vsel %vm1464, %v1451, 0
      %v1502 = vsel %vm1464, %v1452, 0
      %v1505 = vsel %vm1464, %v1453, 0
      %v1508 = vsel %vm1464, %v1454, 0
      %v1511 = vsel %vm1464, %v1455, 0
      %1513 = vmatprep.subr.bf16.mxu0 0
      %1514 = vmatpush1.bf16.msra.mxu0 0
      %1515 = vmatprep.subr.bf16.mxu0 0
      %1516 = vmatpush1.bf16.msra.mxu0 0
      %1517 = vmatprep.subr.bf16.mxu0 0
      %1518 = vmatpush1.bf16.msra.mxu0 0
      %1519 = vmatprep.subr.bf16.mxu0 0
      %1520 = vmatpush1.bf16.msra.mxu0 0
      %1521 = vmatprep.subr.bf16.mxu0 0
      %1522 = vmatpush1.bf16.msra.mxu0 0
      %1523 = vmatprep.subr.bf16.mxu0 0
      %1524 = vmatpush1.bf16.msra.mxu0 0
      %1525 = vmatprep.subr.bf16.mxu0 0
      %1526 = vmatpush1.bf16.msra.mxu0 0
      %1527 = vmatprep.subr.bf16.mxu0 0
      %1528 = vmatpush1.bf16.msra.mxu0 %v1462
      %1529 = vmatprep.subr.bf16.mxu0 0
      %1530 = vmatpush2.bf16.msra.mxu0 0
      %1531 = vmatprep.subr.bf16.mxu0 0
      %1532 = vmatpush2.bf16.msra.mxu0 0
      %1533 = vmatprep.subr.bf16.mxu0 0
      %1534 = vmatpush2.bf16.msra.mxu0 0
      %1535 = vmatprep.subr.bf16.mxu0 0
      %1536 = vmatpush2.bf16.msra.mxu0 0
      %1537 = vmatprep.subr.bf16.mxu0 0
      %1538 = vmatpush2.bf16.msra.mxu0 0
      %1539 = vmatprep.subr.bf16.mxu0 0
      %1540 = vmatpush2.bf16.msra.mxu0 0
      %1541 = vmatprep.subr.bf16.mxu0 0
      %1542 = vmatpush2.bf16.msra.mxu0 0
      %1543 = vmatprep.subr.bf16.mxu0 0
      %1544 = vmatpush2.bf16.msra.mxu0 0
      %1545 = vmatprep.mubr.bf16.mxu0 0
      %1546 = vmatmul.mubr.bf16.gmra.mxu0 %v1466
      %v1547 = vpop.f32.mrf.mxu0
      %v1548 = vadd.f32 0.0, %v1547
      %v1549 = vpop.f32.mrf.mxu0
      %v1550 = vpop.f32.mrf.mxu0
      %v1551 = vadd.f32 0.0, %v1550
      %v1552 = vpop.f32.mrf.mxu0
      %1553 = vmatprep.mubr.bf16.mxu0 0
      %1554 = vmatmul.mubr.bf16.gmra.mxu0 %v1469
      %v1555 = vpop.f32.mrf.mxu0
      %v1556 = vadd.f32 0.0, %v1555
      %v1557 = vpop.f32.mrf.mxu0
      %v1558 = vpop.f32.mrf.mxu0
      %v1559 = vadd.f32 0.0, %v1558
      %v1560 = vpop.f32.mrf.mxu0
      %1561 = vmatprep.mubr.bf16.mxu0 0
      %1562 = vmatmul.mubr.bf16.gmra.mxu0 %v1472
      %v1563 = vpop.f32.mrf.mxu0
      %v1564 = vadd.f32 0.0, %v1563
      %v1565 = vpop.f32.mrf.mxu0
      %v1566 = vpop.f32.mrf.mxu0
      %v1567 = vadd.f32 0.0, %v1566
      %v1568 = vpop.f32.mrf.mxu0
      %1569 = vmatprep.mubr.bf16.mxu0 0
      %1570 = vmatmul.mubr.bf16.gmra.mxu0 %v1475
      %v1571 = vpop.f32.mrf.mxu0
      %v1572 = vadd.f32 0.0, %v1571
      %v1573 = vpop.f32.mrf.mxu0
      %v1574 = vpop.f32.mrf.mxu0
      %v1575 = vadd.f32 0.0, %v1574
      %v1576 = vpop.f32.mrf.mxu0
      %1577 = vmatprep.mubr.bf16.mxu0 0
      %1578 = vmatmul.mubr.bf16.gmra.mxu0 %v1478
      %v1579 = vpop.f32.mrf.mxu0
      %v1580 = vadd.f32 0.0, %v1579
      %v1581 = vpop.f32.mrf.mxu0
      %v1582 = vpop.f32.mrf.mxu0
      %v1583 = vadd.f32 0.0, %v1582
      %v1584 = vpop.f32.mrf.mxu0
      %1585 = vmatprep.mubr.bf16.mxu0 0
      %1586 = vmatmul.mubr.bf16.gmra.mxu0 %v1481
      %v1587 = vpop.f32.mrf.mxu0
      %v1588 = vadd.f32 0.0, %v1587
      %v1589 = vpop.f32.mrf.mxu0
      %v1590 = vpop.f32.mrf.mxu0
      %v1591 = vadd.f32 0.0, %v1590
      %v1592 = vpop.f32.mrf.mxu0
      %1593 = vmatprep.mubr.bf16.mxu0 0
      %1594 = vmatmul.mubr.bf16.gmra.mxu0 %v1484
      %v1595 = vpop.f32.mrf.mxu0
      %v1596 = vadd.f32 0.0, %v1595
      %v1597 = vpop.f32.mrf.mxu0
      %v1598 = vpop.f32.mrf.mxu0
      %v1599 = vadd.f32 0.0, %v1598
      %v1600 = vpop.f32.mrf.mxu0
      %1601 = vmatprep.mubr.bf16.mxu0 0
      %1602 = vmatmul.mubr.bf16.gmra.mxu0 %v1487
      %v1603 = vpop.f32.mrf.mxu0
      %v1604 = vadd.f32 0.0, %v1603
      %v1605 = vpop.f32.mrf.mxu0
      %v1606 = vpop.f32.mrf.mxu0
      %v1607 = vadd.f32 0.0, %v1606
      %v1608 = vpop.f32.mrf.mxu0
      %1609 = vmatprep.mubr.bf16.mxu0 0
      %1610 = vmatmul.mubr.bf16.gmra.mxu0 %v1490
      %v1611 = vpop.f32.mrf.mxu0
      %v1612 = vadd.f32 0.0, %v1611
      %v1613 = vpop.f32.mrf.mxu0
      %v1614 = vpop.f32.mrf.mxu0
      %v1615 = vadd.f32 0.0, %v1614
      %v1616 = vpop.f32.mrf.mxu0
      %1617 = vmatprep.mubr.bf16.mxu0 0
      %1618 = vmatmul.mubr.bf16.gmra.mxu0 %v1493
      %v1619 = vpop.f32.mrf.mxu0
      %v1620 = vadd.f32 0.0, %v1619
      %v1621 = vpop.f32.mrf.mxu0
      %v1622 = vpop.f32.mrf.mxu0
      %v1623 = vadd.f32 0.0, %v1622
      %v1624 = vpop.f32.mrf.mxu0
      %1625 = vmatprep.mubr.bf16.mxu0 0
      %1626 = vmatmul.mubr.bf16.gmra.mxu0 %v1496
      %v1627 = vpop.f32.mrf.mxu0
      %v1628 = vadd.f32 0.0, %v1627
      %v1629 = vpop.f32.mrf.mxu0
      %v1630 = vpop.f32.mrf.mxu0
      %v1631 = vadd.f32 0.0, %v1630
      %v1632 = vpop.f32.mrf.mxu0
      %1633 = vmatprep.mubr.bf16.mxu0 0
      %1634 = vmatmul.mubr.bf16.gmra.mxu0 %v1499
      %v1635 = vpop.f32.mrf.mxu0
      %v1636 = vadd.f32 0.0, %v1635
      %v1637 = vpop.f32.mrf.mxu0
      %v1638 = vpop.f32.mrf.mxu0
      %v1639 = vadd.f32 0.0, %v1638
      %v1640 = vpop.f32.mrf.mxu0
      %1641 = vmatprep.mubr.bf16.mxu0 0
      %1642 = vmatmul.mubr.bf16.gmra.mxu0 %v1502
      %v1643 = vpop.f32.mrf.mxu0
      %v1644 = vadd.f32 0.0, %v1643
      %v1645 = vpop.f32.mrf.mxu0
      %v1646 = vpop.f32.mrf.mxu0
      %v1647 = vadd.f32 0.0, %v1646
      %v1648 = vpop.f32.mrf.mxu0
      %1649 = vmatprep.mubr.bf16.mxu0 0
      %1650 = vmatmul.mubr.bf16.gmra.mxu0 %v1505
      %v1651 = vpop.f32.mrf.mxu0
      %v1652 = vadd.f32 0.0, %v1651
      %v1653 = vpop.f32.mrf.mxu0
      %v1654 = vpop.f32.mrf.mxu0
      %v1655 = vadd.f32 0.0, %v1654
      %v1656 = vpop.f32.mrf.mxu0
      %1657 = vmatprep.mubr.bf16.mxu0 0
      %1658 = vmatmul.mubr.bf16.gmra.mxu0 %v1508
      %v1659 = vpop.f32.mrf.mxu0
      %v1660 = vadd.f32 0.0, %v1659
      %v1661 = vpop.f32.mrf.mxu0
      %v1662 = vpop.f32.mrf.mxu0
      %v1663 = vadd.f32 0.0, %v1662
      %v1664 = vpop.f32.mrf.mxu0
      %1665 = vmatprep.mubr.bf16.mxu0 0
      %1666 = vmatmul.mubr.bf16.gmra.mxu0 %v1511
      %v1667 = vpop.f32.mrf.mxu0
      %v1668 = vadd.f32 0.0, %v1667
      %v1669 = vpop.f32.mrf.mxu0
      %v1670 = vpop.f32.mrf.mxu0
      %v1671 = vadd.f32 0.0, %v1670
      %v1672 = vpop.f32.mrf.mxu0
      %1673 = vdwg.mxu0
      %v1674 = vadd.f32 %v1216, %v1548
      %v1675 = vadd.f32 %v1217, %v1551
      %v1676 = vadd.f32 %v1218, %v1556
      %v1677 = vadd.f32 %v1219, %v1559
      %v1678 = vadd.f32 %v1220, %v1564
      %v1679 = vadd.f32 %v1221, %v1567
      %v1680 = vadd.f32 %v1222, %v1572
      %v1681 = vadd.f32 %v1223, %v1575
      %v1682 = vadd.f32 %v1224, %v1580
      %v1683 = vadd.f32 %v1225, %v1583
      %v1684 = vadd.f32 %v1226, %v1588
      %v1685 = vadd.f32 %v1227, %v1591
      %v1686 = vadd.f32 %v1228, %v1596
      %v1687 = vadd.f32 %v1229, %v1599
      %v1688 = vadd.f32 %v1230, %v1604
      %v1689 = vadd.f32 %v1231, %v1607
      %v1690 = vadd.f32 %v1232, %v1612
      %v1691 = vadd.f32 %v1233, %v1615
      %v1692 = vadd.f32 %v1234, %v1620
      %v1693 = vadd.f32 %v1235, %v1623
      %v1694 = vadd.f32 %v1236, %v1628
      %v1695 = vadd.f32 %v1237, %v1631
      %v1696 = vadd.f32 %v1238, %v1636
      %v1697 = vadd.f32 %v1239, %v1639
      %v1698 = vadd.f32 %v1240, %v1644
      %v1699 = vadd.f32 %v1241, %v1647
      %v1700 = vadd.f32 %v1242, %v1652
      %v1701 = vadd.f32 %v1243, %v1655
      %v1702 = vadd.f32 %v1244, %v1660
      %v1703 = vadd.f32 %v1245, %v1663
      %v1704 = vadd.f32 %v1246, %v1668
      %v1705 = vadd.f32 %v1247, %v1671
      %1706 = vset.pattern.permute.xlu0 2
      %1707 = vperm.xlu0 %1706, %v467
      %v1708 = vpop.permute.xlu0 %1707
      %1709 = vset.pattern.permute.xlu0 2
      %1710 = vperm.xlu0 %1709, %v468
      %v1711 = vpop.permute.xlu0 %1710
      %1712 = vset.pattern.permute.xlu0 2
      %1713 = vperm.xlu0 %1712, %v469
      %v1714 = vpop.permute.xlu0 %1713
      %1715 = vset.pattern.permute.xlu0 2
      %1716 = vperm.xlu0 %1715, %v470
      %v1717 = vpop.permute.xlu0 %1716
      %1718 = vset.pattern.permute.xlu0 2
      %1719 = vperm.xlu0 %1718, %v471
      %v1720 = vpop.permute.xlu0 %1719
      %1721 = vset.pattern.permute.xlu0 2
      %1722 = vperm.xlu0 %1721, %v472
      %v1723 = vpop.permute.xlu0 %1722
      %1724 = vset.pattern.permute.xlu0 2
      %1725 = vperm.xlu0 %1724, %v473
      %v1726 = vpop.permute.xlu0 %1725
      %1727 = vset.pattern.permute.xlu0 2
      %1728 = vperm.xlu0 %1727, %v474
      %v1729 = vpop.permute.xlu0 %1728
      %1730 = vset.pattern.permute.xlu0 2
      %1731 = vperm.xlu0 %1730, %v475
      %v1732 = vpop.permute.xlu0 %1731
      %1733 = vset.pattern.permute.xlu0 2
      %1734 = vperm.xlu0 %1733, %v476
      %v1735 = vpop.permute.xlu0 %1734
      %1736 = vset.pattern.permute.xlu0 2
      %1737 = vperm.xlu0 %1736, %v477
      %v1738 = vpop.permute.xlu0 %1737
      %1739 = vset.pattern.permute.xlu0 2
      %1740 = vperm.xlu0 %1739, %v478
      %v1741 = vpop.permute.xlu0 %1740
      %1742 = vset.pattern.permute.xlu0 2
      %1743 = vperm.xlu0 %1742, %v479
      %v1744 = vpop.permute.xlu0 %1743
      %1745 = vset.pattern.permute.xlu0 2
      %1746 = vperm.xlu0 %1745, %v480
      %v1747 = vpop.permute.xlu0 %1746
      %1748 = vset.pattern.permute.xlu0 2
      %1749 = vperm.xlu0 %1748, %v481
      %v1750 = vpop.permute.xlu0 %1749
      %1751 = vset.pattern.permute.xlu0 2
      %1752 = vperm.xlu0 %1751, %v482
      %v1753 = vpop.permute.xlu0 %1752
      %1754 = vset.pattern.permute.xlu0 2
      %1755 = vperm.xlu0 %1754, %v483
      %v1756 = vpop.permute.xlu0 %1755
      %1757 = vset.pattern.permute.xlu0 2
      %1758 = vperm.xlu0 %1757, %v484
      %v1759 = vpop.permute.xlu0 %1758
      %1760 = vset.pattern.permute.xlu0 2
      %1761 = vperm.xlu0 %1760, %v485
      %v1762 = vpop.permute.xlu0 %1761
      %1763 = vset.pattern.permute.xlu0 2
      %1764 = vperm.xlu0 %1763, %v486
      %v1765 = vpop.permute.xlu0 %1764
      %1766 = vset.pattern.permute.xlu0 2
      %1767 = vperm.xlu0 %1766, %v487
      %v1768 = vpop.permute.xlu0 %1767
      %1769 = vset.pattern.permute.xlu0 2
      %1770 = vperm.xlu0 %1769, %v488
      %v1771 = vpop.permute.xlu0 %1770
      %1772 = vset.pattern.permute.xlu0 2
      %1773 = vperm.xlu0 %1772, %v489
      %v1774 = vpop.permute.xlu0 %1773
      %1775 = vset.pattern.permute.xlu0 2
      %1776 = vperm.xlu0 %1775, %v490
      %v1777 = vpop.permute.xlu0 %1776
      %1778 = vset.pattern.permute.xlu0 2
      %1779 = vperm.xlu0 %1778, %v491
      %v1780 = vpop.permute.xlu0 %1779
      %1781 = vset.pattern.permute.xlu0 2
      %1782 = vperm.xlu0 %1781, %v492
      %v1783 = vpop.permute.xlu0 %1782
      %1784 = vset.pattern.permute.xlu0 2
      %1785 = vperm.xlu0 %1784, %v493
      %v1786 = vpop.permute.xlu0 %1785
      %1787 = vset.pattern.permute.xlu0 2
      %1788 = vperm.xlu0 %1787, %v494
      %v1789 = vpop.permute.xlu0 %1788
      %1790 = vset.pattern.permute.xlu0 2
      %1791 = vperm.xlu0 %1790, %v495
      %v1792 = vpop.permute.xlu0 %1791
      %1793 = vset.pattern.permute.xlu0 2
      %1794 = vperm.xlu0 %1793, %v496
      %v1795 = vpop.permute.xlu0 %1794
      %1796 = vset.pattern.permute.xlu0 2
      %1797 = vperm.xlu0 %1796, %v497
      %v1798 = vpop.permute.xlu0 %1797
      %1799 = vset.pattern.permute.xlu0 2
      %1800 = vperm.xlu0 %1799, %v498
      %v1801 = vpop.permute.xlu0 %1800
      %vm1802 = vcmp.eq.s32.totalorder %v1708, %v773
      %vm1803 = vcmp.eq.s32.totalorder %v1711, %v773
      %vm1804 = vcmp.eq.s32.totalorder %v1714, %v773
      %vm1805 = vcmp.eq.s32.totalorder %v1717, %v773
      %vm1806 = vcmp.eq.s32.totalorder %v1720, %v773
      %vm1807 = vcmp.eq.s32.totalorder %v1723, %v773
      %vm1808 = vcmp.eq.s32.totalorder %v1726, %v773
      %vm1809 = vcmp.eq.s32.totalorder %v1729, %v773
      %vm1810 = vcmp.eq.s32.totalorder %v1732, %v773
      %vm1811 = vcmp.eq.s32.totalorder %v1735, %v773
      %vm1812 = vcmp.eq.s32.totalorder %v1738, %v773
      %vm1813 = vcmp.eq.s32.totalorder %v1741, %v773
      %vm1814 = vcmp.eq.s32.totalorder %v1744, %v773
      %vm1815 = vcmp.eq.s32.totalorder %v1747, %v773
      %vm1816 = vcmp.eq.s32.totalorder %v1750, %v773
      %vm1817 = vcmp.eq.s32.totalorder %v1753, %v773
      %vm1818 = vcmp.eq.s32.totalorder %v1756, %v773
      %vm1819 = vcmp.eq.s32.totalorder %v1759, %v773
      %vm1820 = vcmp.eq.s32.totalorder %v1762, %v773
      %vm1821 = vcmp.eq.s32.totalorder %v1765, %v773
      %vm1822 = vcmp.eq.s32.totalorder %v1768, %v773
      %vm1823 = vcmp.eq.s32.totalorder %v1771, %v773
      %vm1824 = vcmp.eq.s32.totalorder %v1774, %v773
      %vm1825 = vcmp.eq.s32.totalorder %v1777, %v773
      %vm1826 = vcmp.eq.s32.totalorder %v1780, %v773
      %vm1827 = vcmp.eq.s32.totalorder %v1783, %v773
      %vm1828 = vcmp.eq.s32.totalorder %v1786, %v773
      %vm1829 = vcmp.eq.s32.totalorder %v1789, %v773
      %vm1830 = vcmp.eq.s32.totalorder %v1792, %v773
      %vm1831 = vcmp.eq.s32.totalorder %v1795, %v773
      %vm1832 = vcmp.eq.s32.totalorder %v1798, %v773
      %vm1833 = vcmp.eq.s32.totalorder %v1801, %v773
      %v1834 = vsel %vm1802, 1, 0
      %v1835 = vsel %vm1803, 1, 0
      %v1836 = vsel %vm1804, 1, 0
      %v1837 = vsel %vm1805, 1, 0
      %v1838 = vsel %vm1806, 1, 0
      %v1839 = vsel %vm1807, 1, 0
      %v1840 = vsel %vm1808, 1, 0
      %v1841 = vsel %vm1809, 1, 0
      %v1842 = vsel %vm1810, 1, 0
      %v1843 = vsel %vm1811, 1, 0
      %v1844 = vsel %vm1812, 1, 0
      %v1845 = vsel %vm1813, 1, 0
      %v1846 = vsel %vm1814, 1, 0
      %v1847 = vsel %vm1815, 1, 0
      %v1848 = vsel %vm1816, 1, 0
      %v1849 = vsel %vm1817, 1, 0
      %v1850 = vsel %vm1818, 1, 0
      %v1851 = vsel %vm1819, 1, 0
      %v1852 = vsel %vm1820, 1, 0
      %v1853 = vsel %vm1821, 1, 0
      %v1854 = vsel %vm1822, 1, 0
      %v1855 = vsel %vm1823, 1, 0
      %v1856 = vsel %vm1824, 1, 0
      %v1857 = vsel %vm1825, 1, 0
      %v1858 = vsel %vm1826, 1, 0
      %v1859 = vsel %vm1827, 1, 0
      %v1860 = vsel %vm1828, 1, 0
      %v1861 = vsel %vm1829, 1, 0
      %v1862 = vsel %vm1830, 1, 0
      %v1863 = vsel %vm1831, 1, 0
      %v1864 = vsel %vm1832, 1, 0
      %v1865 = vsel %vm1833, 1, 0
      %v1866 = vcvt.s32.f32 %v1834
      %v1867 = vcvt.s32.f32 %v1835
      %v1868 = vcvt.s32.f32 %v1836
      %v1869 = vcvt.s32.f32 %v1837
      %v1870 = vcvt.s32.f32 %v1838
      %v1871 = vcvt.s32.f32 %v1839
      %v1872 = vcvt.s32.f32 %v1840
      %v1873 = vcvt.s32.f32 %v1841
      %v1874 = vcvt.s32.f32 %v1842
      %v1875 = vcvt.s32.f32 %v1843
      %v1876 = vcvt.s32.f32 %v1844
      %v1877 = vcvt.s32.f32 %v1845
      %v1878 = vcvt.s32.f32 %v1846
      %v1879 = vcvt.s32.f32 %v1847
      %v1880 = vcvt.s32.f32 %v1848
      %v1881 = vcvt.s32.f32 %v1849
      %v1882 = vcvt.s32.f32 %v1850
      %v1883 = vcvt.s32.f32 %v1851
      %v1884 = vcvt.s32.f32 %v1852
      %v1885 = vcvt.s32.f32 %v1853
      %v1886 = vcvt.s32.f32 %v1854
      %v1887 = vcvt.s32.f32 %v1855
      %v1888 = vcvt.s32.f32 %v1856
      %v1889 = vcvt.s32.f32 %v1857
      %v1890 = vcvt.s32.f32 %v1858
      %v1891 = vcvt.s32.f32 %v1859
      %v1892 = vcvt.s32.f32 %v1860
      %v1893 = vcvt.s32.f32 %v1861
      %v1894 = vcvt.s32.f32 %v1862
      %v1895 = vcvt.s32.f32 %v1863
      %v1896 = vcvt.s32.f32 %v1864
      %v1897 = vcvt.s32.f32 %v1865
      %v1898 = vpack.c.bf16 %v1867, %v1866
      %v1899 = vpack.c.bf16 %v1869, %v1868
      %v1900 = vpack.c.bf16 %v1871, %v1870
      %v1901 = vpack.c.bf16 %v1873, %v1872
      %v1902 = vpack.c.bf16 %v1875, %v1874
      %v1903 = vpack.c.bf16 %v1877, %v1876
      %v1904 = vpack.c.bf16 %v1879, %v1878
      %v1905 = vpack.c.bf16 %v1881, %v1880
      %v1906 = vpack.c.bf16 %v1883, %v1882
      %v1907 = vpack.c.bf16 %v1885, %v1884
      %v1908 = vpack.c.bf16 %v1887, %v1886
      %v1909 = vpack.c.bf16 %v1889, %v1888
      %v1910 = vpack.c.bf16 %v1891, %v1890
      %v1911 = vpack.c.bf16 %v1893, %v1892
      %v1912 = vpack.c.bf16 %v1895, %v1894
      %v1913 = vpack.c.bf16 %v1897, %v1896
      %v1914 = vld [vmem:[%s4] sm:$0xf]
      %v1915 = vld [vmem:[%s4 + $0x4] sm:$0xf]
      %v1916 = vld [vmem:[%s4 + $0x8] sm:$0xf]
      %v1917 = vld [vmem:[%s4 + $0xc] sm:$0xf]
      %v1918 = vld [vmem:[%s4 + $0x10] sm:$0xf]
      %v1919 = vld [vmem:[%s4 + $0x14] sm:$0xf]
      %v1920 = vld [vmem:[%s4 + $0x18] sm:$0xf]
      %v1921 = vld [vmem:[%s4 + $0x1c] sm:$0xf]
      %v1922 = vld [vmem:[%s4 + $0x20] sm:$0xf]
      %v1923 = vld [vmem:[%s4 + $0x24] sm:$0xf]
      %v1924 = vld [vmem:[%s4 + $0x28] sm:$0xf]
      %v1925 = vld [vmem:[%s4 + $0x2c] sm:$0xf]
      %v1926 = vld [vmem:[%s4 + $0x30] sm:$0x3]
      %v1940 = vunpack.c.l.b16 %v1914
      %v1941 = vunpack.c.l.b16 %v1915
      %v1942 = vunpack.c.l.b16 %v1916
      %v1943 = vunpack.c.l.b16 %v1917
      %v1944 = vunpack.c.l.b16 %v1918
      %v1945 = vunpack.c.l.b16 %v1919
      %v1946 = vunpack.c.l.b16 %v1920
      %v1947 = vunpack.c.l.b16 %v1921
      %v1948 = vunpack.c.l.b16 %v1922
      %v1949 = vunpack.c.l.b16 %v1923
      %v1950 = vunpack.c.l.b16 %v1924
      %v1951 = vunpack.c.l.b16 %v1925
      %v1952 = vunpack.c.l.b16 %v1926
      %v1953 = vpack.c.b16 %v1941, %v1940
      %v1954 = vpack.c.b16 %v1943, %v1942
      %v1955 = vpack.c.b16 %v1945, %v1944
      %v1956 = vpack.c.b16 %v1947, %v1946
      %v1957 = vpack.c.b16 %v1949, %v1948
      %v1958 = vpack.c.b16 %v1951, %v1950
      %v1959 = vpack.c.b16 %v1952, %v1952
      %vm1966 = vcmask 818176
      %v1968 = vsel %vm1966, %v1898, 0
      %v1971 = vsel %vm1966, %v1899, 0
      %v1974 = vsel %vm1966, %v1900, 0
      %v1977 = vsel %vm1966, %v1901, 0
      %v1980 = vsel %vm1966, %v1902, 0
      %v1983 = vsel %vm1966, %v1903, 0
      %v1986 = vsel %vm1966, %v1904, 0
      %v1989 = vsel %vm1966, %v1905, 0
      %v1992 = vsel %vm1966, %v1906, 0
      %v1995 = vsel %vm1966, %v1907, 0
      %v1998 = vsel %vm1966, %v1908, 0
      %v2001 = vsel %vm1966, %v1909, 0
      %v2004 = vsel %vm1966, %v1910, 0
      %v2007 = vsel %vm1966, %v1911, 0
      %v2010 = vsel %vm1966, %v1912, 0
      %v2013 = vsel %vm1966, %v1913, 0
      %v2016 = vsel %vm604, %v1959, 0
      %2018 = vmatprep.subr.bf16.mxu0 0
      %2019 = vmatpush1.bf16.msra.mxu0 0
      %2020 = vmatprep.subr.bf16.mxu0 0
      %2021 = vmatpush1.bf16.msra.mxu0 %v2016
      %2022 = vmatprep.subr.bf16.mxu0 0
      %2023 = vmatpush1.bf16.msra.mxu0 %v1958
      %2024 = vmatprep.subr.bf16.mxu0 0
      %2025 = vmatpush1.bf16.msra.mxu0 %v1957
      %2026 = vmatprep.subr.bf16.mxu0 0
      %2027 = vmatpush1.bf16.msra.mxu0 %v1956
      %2028 = vmatprep.subr.bf16.mxu0 0
      %2029 = vmatpush1.bf16.msra.mxu0 %v1955
      %2030 = vmatprep.subr.bf16.mxu0 0
      %2031 = vmatpush1.bf16.msra.mxu0 %v1954
      %2032 = vmatprep.subr.bf16.mxu0 0
      %2033 = vmatpush1.bf16.msra.mxu0 %v1953
      %2034 = vmatprep.subr.bf16.mxu0 0
      %2035 = vmatpush2.bf16.msra.mxu0 0
      %2036 = vmatprep.subr.bf16.mxu0 0
      %2037 = vmatpush2.bf16.msra.mxu0 0
      %2038 = vmatprep.subr.bf16.mxu0 0
      %2039 = vmatpush2.bf16.msra.mxu0 0
      %2040 = vmatprep.subr.bf16.mxu0 0
      %2041 = vmatpush2.bf16.msra.mxu0 0
      %2042 = vmatprep.subr.bf16.mxu0 0
      %2043 = vmatpush2.bf16.msra.mxu0 0
      %2044 = vmatprep.subr.bf16.mxu0 0
      %2045 = vmatpush2.bf16.msra.mxu0 0
      %2046 = vmatprep.subr.bf16.mxu0 0
      %2047 = vmatpush2.bf16.msra.mxu0 0
      %2048 = vmatprep.subr.bf16.mxu0 0
      %2049 = vmatpush2.bf16.msra.mxu0 0
      %2050 = vmatprep.mubr.bf16.mxu0 0
      %2051 = vmatmul.mubr.bf16.gmra.mxu0 %v1968
      %v2052 = vpop.f32.mrf.mxu0
      %v2053 = vadd.f32 0.0, %v2052
      %v2054 = vpop.f32.mrf.mxu0
      %v2055 = vpop.f32.mrf.mxu0
      %v2056 = vadd.f32 0.0, %v2055
      %v2057 = vpop.f32.mrf.mxu0
      %2058 = vmatprep.mubr.bf16.mxu0 0
      %2059 = vmatmul.mubr.bf16.gmra.mxu0 %v1971
      %v2060 = vpop.f32.mrf.mxu0
      %v2061 = vadd.f32 0.0, %v2060
      %v2062 = vpop.f32.mrf.mxu0
      %v2063 = vpop.f32.mrf.mxu0
      %v2064 = vadd.f32 0.0, %v2063
      %v2065 = vpop.f32.mrf.mxu0
      %2066 = vmatprep.mubr.bf16.mxu0 0
      %2067 = vmatmul.mubr.bf16.gmra.mxu0 %v1974
      %v2068 = vpop.f32.mrf.mxu0
      %v2069 = vadd.f32 0.0, %v2068
      %v2070 = vpop.f32.mrf.mxu0
      %v2071 = vpop.f32.mrf.mxu0
      %v2072 = vadd.f32 0.0, %v2071
      %v2073 = vpop.f32.mrf.mxu0
      %2074 = vmatprep.mubr.bf16.mxu0 0
      %2075 = vmatmul.mubr.bf16.gmra.mxu0 %v1977
      %v2076 = vpop.f32.mrf.mxu0
      %v2077 = vadd.f32 0.0, %v2076
      %v2078 = vpop.f32.mrf.mxu0
      %v2079 = vpop.f32.mrf.mxu0
      %v2080 = vadd.f32 0.0, %v2079
      %v2081 = vpop.f32.mrf.mxu0
      %2082 = vmatprep.mubr.bf16.mxu0 0
      %2083 = vmatmul.mubr.bf16.gmra.mxu0 %v1980
      %v2084 = vpop.f32.mrf.mxu0
      %v2085 = vadd.f32 0.0, %v2084
      %v2086 = vpop.f32.mrf.mxu0
      %v2087 = vpop.f32.mrf.mxu0
      %v2088 = vadd.f32 0.0, %v2087
      %v2089 = vpop.f32.mrf.mxu0
      %2090 = vmatprep.mubr.bf16.mxu0 0
      %2091 = vmatmul.mubr.bf16.gmra.mxu0 %v1983
      %v2092 = vpop.f32.mrf.mxu0
      %v2093 = vadd.f32 0.0, %v2092
      %v2094 = vpop.f32.mrf.mxu0
      %v2095 = vpop.f32.mrf.mxu0
      %v2096 = vadd.f32 0.0, %v2095
      %v2097 = vpop.f32.mrf.mxu0
      %2098 = vmatprep.mubr.bf16.mxu0 0
      %2099 = vmatmul.mubr.bf16.gmra.mxu0 %v1986
      %v2100 = vpop.f32.mrf.mxu0
      %v2101 = vadd.f32 0.0, %v2100
      %v2102 = vpop.f32.mrf.mxu0
      %v2103 = vpop.f32.mrf.mxu0
      %v2104 = vadd.f32 0.0, %v2103
      %v2105 = vpop.f32.mrf.mxu0
      %2106 = vmatprep.mubr.bf16.mxu0 0
      %2107 = vmatmul.mubr.bf16.gmra.mxu0 %v1989
      %v2108 = vpop.f32.mrf.mxu0
      %v2109 = vadd.f32 0.0, %v2108
      %v2110 = vpop.f32.mrf.mxu0
      %v2111 = vpop.f32.mrf.mxu0
      %v2112 = vadd.f32 0.0, %v2111
      %v2113 = vpop.f32.mrf.mxu0
      %2114 = vmatprep.mubr.bf16.mxu0 0
      %2115 = vmatmul.mubr.bf16.gmra.mxu0 %v1992
      %v2116 = vpop.f32.mrf.mxu0
      %v2117 = vadd.f32 0.0, %v2116
      %v2118 = vpop.f32.mrf.mxu0
      %v2119 = vpop.f32.mrf.mxu0
      %v2120 = vadd.f32 0.0, %v2119
      %v2121 = vpop.f32.mrf.mxu0
      %2122 = vmatprep.mubr.bf16.mxu0 0
      %2123 = vmatmul.mubr.bf16.gmra.mxu0 %v1995
      %v2124 = vpop.f32.mrf.mxu0
      %v2125 = vadd.f32 0.0, %v2124
      %v2126 = vpop.f32.mrf.mxu0
      %v2127 = vpop.f32.mrf.mxu0
      %v2128 = vadd.f32 0.0, %v2127
      %v2129 = vpop.f32.mrf.mxu0
      %2130 = vmatprep.mubr.bf16.mxu0 0
      %2131 = vmatmul.mubr.bf16.gmra.mxu0 %v1998
      %v2132 = vpop.f32.mrf.mxu0
      %v2133 = vadd.f32 0.0, %v2132
      %v2134 = vpop.f32.mrf.mxu0
      %v2135 = vpop.f32.mrf.mxu0
      %v2136 = vadd.f32 0.0, %v2135
      %v2137 = vpop.f32.mrf.mxu0
      %2138 = vmatprep.mubr.bf16.mxu0 0
      %2139 = vmatmul.mubr.bf16.gmra.mxu0 %v2001
      %v2140 = vpop.f32.mrf.mxu0
      %v2141 = vadd.f32 0.0, %v2140
      %v2142 = vpop.f32.mrf.mxu0
      %v2143 = vpop.f32.mrf.mxu0
      %v2144 = vadd.f32 0.0, %v2143
      %v2145 = vpop.f32.mrf.mxu0
      %2146 = vmatprep.mubr.bf16.mxu0 0
      %2147 = vmatmul.mubr.bf16.gmra.mxu0 %v2004
      %v2148 = vpop.f32.mrf.mxu0
      %v2149 = vadd.f32 0.0, %v2148
      %v2150 = vpop.f32.mrf.mxu0
      %v2151 = vpop.f32.mrf.mxu0
      %v2152 = vadd.f32 0.0, %v2151
      %v2153 = vpop.f32.mrf.mxu0
      %2154 = vmatprep.mubr.bf16.mxu0 0
      %2155 = vmatmul.mubr.bf16.gmra.mxu0 %v2007
      %v2156 = vpop.f32.mrf.mxu0
      %v2157 = vadd.f32 0.0, %v2156
      %v2158 = vpop.f32.mrf.mxu0
      %v2159 = vpop.f32.mrf.mxu0
      %v2160 = vadd.f32 0.0, %v2159
      %v2161 = vpop.f32.mrf.mxu0
      %2162 = vmatprep.mubr.bf16.mxu0 0
      %2163 = vmatmul.mubr.bf16.gmra.mxu0 %v2010
      %v2164 = vpop.f32.mrf.mxu0
      %v2165 = vadd.f32 0.0, %v2164
      %v2166 = vpop.f32.mrf.mxu0
      %v2167 = vpop.f32.mrf.mxu0
      %v2168 = vadd.f32 0.0, %v2167
      %v2169 = vpop.f32.mrf.mxu0
      %2170 = vmatprep.mubr.bf16.mxu0 0
      %2171 = vmatmul.mubr.bf16.gmra.mxu0 %v2013
      %v2172 = vpop.f32.mrf.mxu0
      %v2173 = vadd.f32 0.0, %v2172
      %v2174 = vpop.f32.mrf.mxu0
      %v2175 = vpop.f32.mrf.mxu0
      %v2176 = vadd.f32 0.0, %v2175
      %v2177 = vpop.f32.mrf.mxu0
      %2178 = vdwg.mxu0
      %v2179 = vadd.f32 %v1674, %v2053
      %v2180 = vadd.f32 %v1675, %v2056
      %v2181 = vadd.f32 %v1676, %v2061
      %v2182 = vadd.f32 %v1677, %v2064
      %v2183 = vadd.f32 %v1678, %v2069
      %v2184 = vadd.f32 %v1679, %v2072
      %v2185 = vadd.f32 %v1680, %v2077
      %v2186 = vadd.f32 %v1681, %v2080
      %v2187 = vadd.f32 %v1682, %v2085
      %v2188 = vadd.f32 %v1683, %v2088
      %v2189 = vadd.f32 %v1684, %v2093
      %v2190 = vadd.f32 %v1685, %v2096
      %v2191 = vadd.f32 %v1686, %v2101
      %v2192 = vadd.f32 %v1687, %v2104
      %v2193 = vadd.f32 %v1688, %v2109
      %v2194 = vadd.f32 %v1689, %v2112
      %v2195 = vadd.f32 %v1690, %v2117
      %v2196 = vadd.f32 %v1691, %v2120
      %v2197 = vadd.f32 %v1692, %v2125
      %v2198 = vadd.f32 %v1693, %v2128
      %v2199 = vadd.f32 %v1694, %v2133
      %v2200 = vadd.f32 %v1695, %v2136
      %v2201 = vadd.f32 %v1696, %v2141
      %v2202 = vadd.f32 %v1697, %v2144
      %v2203 = vadd.f32 %v1698, %v2149
      %v2204 = vadd.f32 %v1699, %v2152
      %v2205 = vadd.f32 %v1700, %v2157
      %v2206 = vadd.f32 %v1701, %v2160
      %v2207 = vadd.f32 %v1702, %v2165
      %v2208 = vadd.f32 %v1703, %v2168
      %v2209 = vadd.f32 %v1704, %v2173
      %v2210 = vadd.f32 %v1705, %v2176
      %v2211 = vmax.f32 %v2179, 0.0
      %v2212 = vmax.f32 %v2180, 0.0
      %v2213 = vmax.f32 %v2181, 0.0
      %v2214 = vmax.f32 %v2182, 0.0
      %v2215 = vmax.f32 %v2183, 0.0
      %v2216 = vmax.f32 %v2184, 0.0
      %v2217 = vmax.f32 %v2185, 0.0
      %v2218 = vmax.f32 %v2186, 0.0
      %v2219 = vmax.f32 %v2187, 0.0
      %v2220 = vmax.f32 %v2188, 0.0
      %v2221 = vmax.f32 %v2189, 0.0
      %v2222 = vmax.f32 %v2190, 0.0
      %v2223 = vmax.f32 %v2191, 0.0
      %v2224 = vmax.f32 %v2192, 0.0
      %v2225 = vmax.f32 %v2193, 0.0
      %v2226 = vmax.f32 %v2194, 0.0
      %v2227 = vmax.f32 %v2195, 0.0
      %v2228 = vmax.f32 %v2196, 0.0
      %v2229 = vmax.f32 %v2197, 0.0
      %v2230 = vmax.f32 %v2198, 0.0
      %v2231 = vmax.f32 %v2199, 0.0
      %v2232 = vmax.f32 %v2200, 0.0
      %v2233 = vmax.f32 %v2201, 0.0
      %v2234 = vmax.f32 %v2202, 0.0
      %v2235 = vmax.f32 %v2203, 0.0
      %v2236 = vmax.f32 %v2204, 0.0
      %v2237 = vmax.f32 %v2205, 0.0
      %v2238 = vmax.f32 %v2206, 0.0
      %v2239 = vmax.f32 %v2207, 0.0
      %v2240 = vmax.f32 %v2208, 0.0
      %v2241 = vmax.f32 %v2209, 0.0
      %v2242 = vmax.f32 %v2210, 0.0
      %v2243 = vpack.c.bf16 %v2212, %v2211
      %v2244 = vpack.c.bf16 %v2214, %v2213
      %v2245 = vpack.c.bf16 %v2216, %v2215
      %v2246 = vpack.c.bf16 %v2218, %v2217
      %v2247 = vpack.c.bf16 %v2220, %v2219
      %v2248 = vpack.c.bf16 %v2222, %v2221
      %v2249 = vpack.c.bf16 %v2224, %v2223
      %v2250 = vpack.c.bf16 %v2226, %v2225
      %v2251 = vpack.c.bf16 %v2228, %v2227
      %v2252 = vpack.c.bf16 %v2230, %v2229
      %v2253 = vpack.c.bf16 %v2232, %v2231
      %v2254 = vpack.c.bf16 %v2234, %v2233
      %v2255 = vpack.c.bf16 %v2236, %v2235
      %v2256 = vpack.c.bf16 %v2238, %v2237
      %v2257 = vpack.c.bf16 %v2240, %v2239
      %v2258 = vpack.c.bf16 %v2242, %v2241
      %v2259 = vld [vmem:[%s7] sm:$0xff]
      %v2260 = vld [vmem:[%s7 + $0x8] sm:$0xff]
      %v2261 = vld [vmem:[%s7 + $0x10] sm:$0xff]
      %v2262 = vld [vmem:[%s7 + $0x18] sm:$0xff]
      %v2263 = vld [vmem:[%s7 + $0x20] sm:$0xff]
      %v2264 = vld [vmem:[%s7 + $0x28] sm:$0xff]
      %v2265 = vld [vmem:[%s7 + $0x30] sm:$0xff]
      %v2266 = vld [vmem:[%s7 + $0x38] sm:$0xff]
      %v2267 = vld [vmem:[%s7 + $0x40] sm:$0xff]
      %v2268 = vld [vmem:[%s7 + $0x48] sm:$0xff]
      %v2269 = vld [vmem:[%s7 + $0x50] sm:$0xff]
      %v2270 = vld [vmem:[%s7 + $0x58] sm:$0xff]
      %v2271 = vld [vmem:[%s7 + $0x60] sm:$0xff]
      %v2272 = vld [vmem:[%s7 + $0x68] sm:$0xff]
      %v2273 = vld [vmem:[%s7 + $0x70] sm:$0xff]
      %v2274 = vld [vmem:[%s7 + $0x78] sm:$0xff]
      %v2275 = vld [vmem:[%s8] sm:$0x3]
      %v2277 = vlaneseq
      %v2278 = vshrl.u32 %v2277, 7
      %v2279 = vsub.s32 0, %v2278
      %v2280 = vrot.slane %v2275, %v2279
      %v2281 = vlaneseq
      %v2282 = vshrl.u32 %v2281, 7
      %v2283 = vsub.s32 1, %v2282
      %v2284 = vrot.slane %v2275, %v2283
      %v2303 = vunpack.c.l.b16 %v2259
      %v2304 = vunpack.c.h.b16 %v2259
      %v2305 = vunpack.c.l.b16 %v2260
      %v2306 = vunpack.c.h.b16 %v2260
      %v2307 = vunpack.c.l.b16 %v2261
      %v2308 = vunpack.c.h.b16 %v2261
      %v2309 = vunpack.c.l.b16 %v2262
      %v2310 = vunpack.c.h.b16 %v2262
      %v2311 = vunpack.c.l.b16 %v2263
      %v2312 = vunpack.c.h.b16 %v2263
      %v2313 = vunpack.c.l.b16 %v2264
      %v2314 = vunpack.c.h.b16 %v2264
      %v2315 = vunpack.c.l.b16 %v2265
      %v2316 = vunpack.c.h.b16 %v2265
      %v2317 = vunpack.c.l.b16 %v2266
      %v2318 = vunpack.c.h.b16 %v2266
      %v2319 = vunpack.c.l.b16 %v2267
      %v2320 = vunpack.c.h.b16 %v2267
      %v2321 = vunpack.c.l.b16 %v2268
      %v2322 = vunpack.c.h.b16 %v2268
      %v2323 = vunpack.c.l.b16 %v2269
      %v2324 = vunpack.c.h.b16 %v2269
      %v2325 = vunpack.c.l.b16 %v2270
      %v2326 = vunpack.c.h.b16 %v2270
      %v2327 = vunpack.c.l.b16 %v2271
      %v2328 = vunpack.c.h.b16 %v2271
      %v2329 = vunpack.c.l.b16 %v2272
      %v2330 = vunpack.c.h.b16 %v2272
      %v2331 = vunpack.c.l.b16 %v2273
      %v2332 = vunpack.c.h.b16 %v2273
      %v2333 = vunpack.c.l.b16 %v2274
      %v2334 = vunpack.c.h.b16 %v2274
      %v2335 = vpack.c.b16 %v2305, %v2303
      %v2336 = vpack.c.b16 %v2306, %v2304
      %v2337 = vpack.c.b16 %v2309, %v2307
      %v2338 = vpack.c.b16 %v2310, %v2308
      %v2339 = vpack.c.b16 %v2313, %v2311
      %v2340 = vpack.c.b16 %v2314, %v2312
      %v2341 = vpack.c.b16 %v2317, %v2315
      %v2342 = vpack.c.b16 %v2318, %v2316
      %v2343 = vpack.c.b16 %v2321, %v2319
      %v2344 = vpack.c.b16 %v2322, %v2320
      %v2345 = vpack.c.b16 %v2325, %v2323
      %v2346 = vpack.c.b16 %v2326, %v2324
      %v2347 = vpack.c.b16 %v2329, %v2327
      %v2348 = vpack.c.b16 %v2330, %v2328
      %v2349 = vpack.c.b16 %v2333, %v2331
      %v2350 = vpack.c.b16 %v2334, %v2332
      %2367 = vmatprep.subr.bf16.mxu0 %v2350
      %2368 = vmatpush1.bf16.msra.mxu0 %v2349
      %2369 = vmatprep.subr.bf16.mxu0 %v2348
      %2370 = vmatpush1.bf16.msra.mxu0 %v2347
      %2371 = vmatprep.subr.bf16.mxu0 %v2346
      %2372 = vmatpush1.bf16.msra.mxu0 %v2345
      %2373 = vmatprep.subr.bf16.mxu0 %v2344
      %2374 = vmatpush1.bf16.msra.mxu0 %v2343
      %2375 = vmatprep.subr.bf16.mxu0 %v2342
      %2376 = vmatpush1.bf16.msra.mxu0 %v2341
      %2377 = vmatprep.subr.bf16.mxu0 %v2340
      %2378 = vmatpush1.bf16.msra.mxu0 %v2339
      %2379 = vmatprep.subr.bf16.mxu0 %v2338
      %2380 = vmatpush1.bf16.msra.mxu0 %v2337
      %2381 = vmatprep.subr.bf16.mxu0 %v2336
      %2382 = vmatpush1.bf16.msra.mxu0 %v2335
      %2383 = vmatprep.subr.bf16.mxu0 0
      %2384 = vmatpush2.bf16.msra.mxu0 0
      %2385 = vmatprep.subr.bf16.mxu0 0
      %2386 = vmatpush2.bf16.msra.mxu0 0
      %2387 = vmatprep.subr.bf16.mxu0 0
      %2388 = vmatpush2.bf16.msra.mxu0 0
      %2389 = vmatprep.subr.bf16.mxu0 0
      %2390 = vmatpush2.bf16.msra.mxu0 0
      %2391 = vmatprep.subr.bf16.mxu0 0
      %2392 = vmatpush2.bf16.msra.mxu0 0
      %2393 = vmatprep.subr.bf16.mxu0 0
      %2394 = vmatpush2.bf16.msra.mxu0 0
      %2395 = vmatprep.subr.bf16.mxu0 0
      %2396 = vmatpush2.bf16.msra.mxu0 0
      %2397 = vmatprep.subr.bf16.mxu0 0
      %2398 = vmatpush2.bf16.msra.mxu0 0
      %2399 = vmatprep.mubr.bf16.mxu0 0
      %2400 = vmatmul.mubr.bf16.gmra.mxu0 %v2243
      %v2401 = vpop.f32.mrf.mxu0
      %v2402 = vadd.f32 %v2280, %v2401
      %v2403 = vpop.f32.mrf.mxu0
      %v2404 = vadd.f32 %v2284, %v2403
      %v2405 = vpop.f32.mrf.mxu0
      %v2406 = vadd.f32 %v2280, %v2405
      %v2407 = vpop.f32.mrf.mxu0
      %v2408 = vadd.f32 %v2284, %v2407
      %2409 = vmatprep.mubr.bf16.mxu0 0
      %2410 = vmatmul.mubr.bf16.gmra.mxu0 %v2244
      %v2411 = vpop.f32.mrf.mxu0
      %v2412 = vadd.f32 %v2280, %v2411
      %v2413 = vpop.f32.mrf.mxu0
      %v2414 = vadd.f32 %v2284, %v2413
      %v2415 = vpop.f32.mrf.mxu0
      %v2416 = vadd.f32 %v2280, %v2415
      %v2417 = vpop.f32.mrf.mxu0
      %v2418 = vadd.f32 %v2284, %v2417
      %2419 = vmatprep.mubr.bf16.mxu0 0
      %2420 = vmatmul.mubr.bf16.gmra.mxu0 %v2245
      %v2421 = vpop.f32.mrf.mxu0
      %v2422 = vadd.f32 %v2280, %v2421
      %v2423 = vpop.f32.mrf.mxu0
      %v2424 = vadd.f32 %v2284, %v2423
      %v2425 = vpop.f32.mrf.mxu0
      %v2426 = vadd.f32 %v2280, %v2425
      %v2427 = vpop.f32.mrf.mxu0
      %v2428 = vadd.f32 %v2284, %v2427
      %2429 = vmatprep.mubr.bf16.mxu0 0
      %2430 = vmatmul.mubr.bf16.gmra.mxu0 %v2246
      %v2431 = vpop.f32.mrf.mxu0
      %v2432 = vadd.f32 %v2280, %v2431
      %v2433 = vpop.f32.mrf.mxu0
      %v2434 = vadd.f32 %v2284, %v2433
      %v2435 = vpop.f32.mrf.mxu0
      %v2436 = vadd.f32 %v2280, %v2435
      %v2437 = vpop.f32.mrf.mxu0
      %v2438 = vadd.f32 %v2284, %v2437
      %2439 = vmatprep.mubr.bf16.mxu0 0
      %2440 = vmatmul.mubr.bf16.gmra.mxu0 %v2247
      %v2441 = vpop.f32.mrf.mxu0
      %v2442 = vadd.f32 %v2280, %v2441
      %v2443 = vpop.f32.mrf.mxu0
      %v2444 = vadd.f32 %v2284, %v2443
      %v2445 = vpop.f32.mrf.mxu0
      %v2446 = vadd.f32 %v2280, %v2445
      %v2447 = vpop.f32.mrf.mxu0
      %v2448 = vadd.f32 %v2284, %v2447
      %2449 = vmatprep.mubr.bf16.mxu0 0
      %2450 = vmatmul.mubr.bf16.gmra.mxu0 %v2248
      %v2451 = vpop.f32.mrf.mxu0
      %v2452 = vadd.f32 %v2280, %v2451
      %v2453 = vpop.f32.mrf.mxu0
      %v2454 = vadd.f32 %v2284, %v2453
      %v2455 = vpop.f32.mrf.mxu0
      %v2456 = vadd.f32 %v2280, %v2455
      %v2457 = vpop.f32.mrf.mxu0
      %v2458 = vadd.f32 %v2284, %v2457
      %2459 = vmatprep.mubr.bf16.mxu0 0
      %2460 = vmatmul.mubr.bf16.gmra.mxu0 %v2249
      %v2461 = vpop.f32.mrf.mxu0
      %v2462 = vadd.f32 %v2280, %v2461
      %v2463 = vpop.f32.mrf.mxu0
      %v2464 = vadd.f32 %v2284, %v2463
      %v2465 = vpop.f32.mrf.mxu0
      %v2466 = vadd.f32 %v2280, %v2465
      %v2467 = vpop.f32.mrf.mxu0
      %v2468 = vadd.f32 %v2284, %v2467
      %2469 = vmatprep.mubr.bf16.mxu0 0
      %2470 = vmatmul.mubr.bf16.gmra.mxu0 %v2250
      %v2471 = vpop.f32.mrf.mxu0
      %v2472 = vadd.f32 %v2280, %v2471
      %v2473 = vpop.f32.mrf.mxu0
      %v2474 = vadd.f32 %v2284, %v2473
      %v2475 = vpop.f32.mrf.mxu0
      %v2476 = vadd.f32 %v2280, %v2475
      %v2477 = vpop.f32.mrf.mxu0
      %v2478 = vadd.f32 %v2284, %v2477
      %2479 = vmatprep.mubr.bf16.mxu0 0
      %2480 = vmatmul.mubr.bf16.gmra.mxu0 %v2251
      %v2481 = vpop.f32.mrf.mxu0
      %v2482 = vadd.f32 %v2280, %v2481
      %v2483 = vpop.f32.mrf.mxu0
      %v2484 = vadd.f32 %v2284, %v2483
      %v2485 = vpop.f32.mrf.mxu0
      %v2486 = vadd.f32 %v2280, %v2485
      %v2487 = vpop.f32.mrf.mxu0
      %v2488 = vadd.f32 %v2284, %v2487
      %2489 = vmatprep.mubr.bf16.mxu0 0
      %2490 = vmatmul.mubr.bf16.gmra.mxu0 %v2252
      %v2491 = vpop.f32.mrf.mxu0
      %v2492 = vadd.f32 %v2280, %v2491
      %v2493 = vpop.f32.mrf.mxu0
      %v2494 = vadd.f32 %v2284, %v2493
      %v2495 = vpop.f32.mrf.mxu0
      %v2496 = vadd.f32 %v2280, %v2495
      %v2497 = vpop.f32.mrf.mxu0
      %v2498 = vadd.f32 %v2284, %v2497
      %2499 = vmatprep.mubr.bf16.mxu0 0
      %2500 = vmatmul.mubr.bf16.gmra.mxu0 %v2253
      %v2501 = vpop.f32.mrf.mxu0
      %v2502 = vadd.f32 %v2280, %v2501
      %v2503 = vpop.f32.mrf.mxu0
      %v2504 = vadd.f32 %v2284, %v2503
      %v2505 = vpop.f32.mrf.mxu0
      %v2506 = vadd.f32 %v2280, %v2505
      %v2507 = vpop.f32.mrf.mxu0
      %v2508 = vadd.f32 %v2284, %v2507
      %2509 = vmatprep.mubr.bf16.mxu0 0
      %2510 = vmatmul.mubr.bf16.gmra.mxu0 %v2254
      %v2511 = vpop.f32.mrf.mxu0
      %v2512 = vadd.f32 %v2280, %v2511
      %v2513 = vpop.f32.mrf.mxu0
      %v2514 = vadd.f32 %v2284, %v2513
      %v2515 = vpop.f32.mrf.mxu0
      %v2516 = vadd.f32 %v2280, %v2515
      %v2517 = vpop.f32.mrf.mxu0
      %v2518 = vadd.f32 %v2284, %v2517
      %2519 = vmatprep.mubr.bf16.mxu0 0
      %2520 = vmatmul.mubr.bf16.gmra.mxu0 %v2255
      %v2521 = vpop.f32.mrf.mxu0
      %v2522 = vadd.f32 %v2280, %v2521
      %v2523 = vpop.f32.mrf.mxu0
      %v2524 = vadd.f32 %v2284, %v2523
      %v2525 = vpop.f32.mrf.mxu0
      %v2526 = vadd.f32 %v2280, %v2525
      %v2527 = vpop.f32.mrf.mxu0
      %v2528 = vadd.f32 %v2284, %v2527
      %2529 = vmatprep.mubr.bf16.mxu0 0
      %2530 = vmatmul.mubr.bf16.gmra.mxu0 %v2256
      %v2531 = vpop.f32.mrf.mxu0
      %v2532 = vadd.f32 %v2280, %v2531
      %v2533 = vpop.f32.mrf.mxu0
      %v2534 = vadd.f32 %v2284, %v2533
      %v2535 = vpop.f32.mrf.mxu0
      %v2536 = vadd.f32 %v2280, %v2535
      %v2537 = vpop.f32.mrf.mxu0
      %v2538 = vadd.f32 %v2284, %v2537
      %2539 = vmatprep.mubr.bf16.mxu0 0
      %2540 = vmatmul.mubr.bf16.gmra.mxu0 %v2257
      %v2541 = vpop.f32.mrf.mxu0
      %v2542 = vadd.f32 %v2280, %v2541
      %v2543 = vpop.f32.mrf.mxu0
      %v2544 = vadd.f32 %v2284, %v2543
      %v2545 = vpop.f32.mrf.mxu0
      %v2546 = vadd.f32 %v2280, %v2545
      %v2547 = vpop.f32.mrf.mxu0
      %v2548 = vadd.f32 %v2284, %v2547
      %2549 = vmatprep.mubr.bf16.mxu0 0
      %2550 = vmatmul.mubr.bf16.gmra.mxu0 %v2258
      %v2551 = vpop.f32.mrf.mxu0
      %v2552 = vadd.f32 %v2280, %v2551
      %v2553 = vpop.f32.mrf.mxu0
      %v2554 = vadd.f32 %v2284, %v2553
      %v2555 = vpop.f32.mrf.mxu0
      %v2556 = vadd.f32 %v2280, %v2555
      %v2557 = vpop.f32.mrf.mxu0
      %v2558 = vadd.f32 %v2284, %v2557
      %2559 = vdwg.mxu0
      %v2560 = vmax.f32 %v2402, 0.0
      %v2561 = vmax.f32 %v2404, 0.0
      %v2562 = vmax.f32 %v2406, 0.0
      %v2563 = vmax.f32 %v2408, 0.0
      %v2564 = vmax.f32 %v2412, 0.0
      %v2565 = vmax.f32 %v2414, 0.0
      %v2566 = vmax.f32 %v2416, 0.0
      %v2567 = vmax.f32 %v2418, 0.0
      %v2568 = vmax.f32 %v2422, 0.0
      %v2569 = vmax.f32 %v2424, 0.0
      %v2570 = vmax.f32 %v2426, 0.0
      %v2571 = vmax.f32 %v2428, 0.0
      %v2572 = vmax.f32 %v2432, 0.0
      %v2573 = vmax.f32 %v2434, 0.0
      %v2574 = vmax.f32 %v2436, 0.0
      %v2575 = vmax.f32 %v2438, 0.0
      %v2576 = vmax.f32 %v2442, 0.0
      %v2577 = vmax.f32 %v2444, 0.0
      %v2578 = vmax.f32 %v2446, 0.0
      %v2579 = vmax.f32 %v2448, 0.0
      %v2580 = vmax.f32 %v2452, 0.0
      %v2581 = vmax.f32 %v2454, 0.0
      %v2582 = vmax.f32 %v2456, 0.0
      %v2583 = vmax.f32 %v2458, 0.0
      %v2584 = vmax.f32 %v2462, 0.0
      %v2585 = vmax.f32 %v2464, 0.0
      %v2586 = vmax.f32 %v2466, 0.0
      %v2587 = vmax.f32 %v2468, 0.0
      %v2588 = vmax.f32 %v2472, 0.0
      %v2589 = vmax.f32 %v2474, 0.0
      %v2590 = vmax.f32 %v2476, 0.0
      %v2591 = vmax.f32 %v2478, 0.0
      %v2592 = vmax.f32 %v2482, 0.0
      %v2593 = vmax.f32 %v2484, 0.0
      %v2594 = vmax.f32 %v2486, 0.0
      %v2595 = vmax.f32 %v2488, 0.0
      %v2596 = vmax.f32 %v2492, 0.0
      %v2597 = vmax.f32 %v2494, 0.0
      %v2598 = vmax.f32 %v2496, 0.0
      %v2599 = vmax.f32 %v2498, 0.0
      %v2600 = vmax.f32 %v2502, 0.0
      %v2601 = vmax.f32 %v2504, 0.0
      %v2602 = vmax.f32 %v2506, 0.0
      %v2603 = vmax.f32 %v2508, 0.0
      %v2604 = vmax.f32 %v2512, 0.0
      %v2605 = vmax.f32 %v2514, 0.0
      %v2606 = vmax.f32 %v2516, 0.0
      %v2607 = vmax.f32 %v2518, 0.0
      %v2608 = vmax.f32 %v2522, 0.0
      %v2609 = vmax.f32 %v2524, 0.0
      %v2610 = vmax.f32 %v2526, 0.0
      %v2611 = vmax.f32 %v2528, 0.0
      %v2612 = vmax.f32 %v2532, 0.0
      %v2613 = vmax.f32 %v2534, 0.0
      %v2614 = vmax.f32 %v2536, 0.0
      %v2615 = vmax.f32 %v2538, 0.0
      %v2616 = vmax.f32 %v2542, 0.0
      %v2617 = vmax.f32 %v2544, 0.0
      %v2618 = vmax.f32 %v2546, 0.0
      %v2619 = vmax.f32 %v2548, 0.0
      %v2620 = vmax.f32 %v2552, 0.0
      %v2621 = vmax.f32 %v2554, 0.0
      %v2622 = vmax.f32 %v2556, 0.0
      %v2623 = vmax.f32 %v2558, 0.0
      %v2624 = vpack.c.bf16 %v2562, %v2560
      %v2625 = vpack.c.bf16 %v2563, %v2561
      %v2626 = vpack.c.bf16 %v2566, %v2564
      %v2627 = vpack.c.bf16 %v2567, %v2565
      %v2628 = vpack.c.bf16 %v2570, %v2568
      %v2629 = vpack.c.bf16 %v2571, %v2569
      %v2630 = vpack.c.bf16 %v2574, %v2572
      %v2631 = vpack.c.bf16 %v2575, %v2573
      %v2632 = vpack.c.bf16 %v2578, %v2576
      %v2633 = vpack.c.bf16 %v2579, %v2577
      %v2634 = vpack.c.bf16 %v2582, %v2580
      %v2635 = vpack.c.bf16 %v2583, %v2581
      %v2636 = vpack.c.bf16 %v2586, %v2584
      %v2637 = vpack.c.bf16 %v2587, %v2585
      %v2638 = vpack.c.bf16 %v2590, %v2588
      %v2639 = vpack.c.bf16 %v2591, %v2589
      %v2640 = vpack.c.bf16 %v2594, %v2592
      %v2641 = vpack.c.bf16 %v2595, %v2593
      %v2642 = vpack.c.bf16 %v2598, %v2596
      %v2643 = vpack.c.bf16 %v2599, %v2597
      %v2644 = vpack.c.bf16 %v2602, %v2600
      %v2645 = vpack.c.bf16 %v2603, %v2601
      %v2646 = vpack.c.bf16 %v2606, %v2604
      %v2647 = vpack.c.bf16 %v2607, %v2605
      %v2648 = vpack.c.bf16 %v2610, %v2608
      %v2649 = vpack.c.bf16 %v2611, %v2609
      %v2650 = vpack.c.bf16 %v2614, %v2612
      %v2651 = vpack.c.bf16 %v2615, %v2613
      %v2652 = vpack.c.bf16 %v2618, %v2616
      %v2653 = vpack.c.bf16 %v2619, %v2617
      %v2654 = vpack.c.bf16 %v2622, %v2620
      %v2655 = vpack.c.bf16 %v2623, %v2621
      %v2656 = vld [vmem:[%s9] sm:$0xf]
      %v2657 = vld [vmem:[%s9 + $0x4] sm:$0xf]
      %v2658 = vld [vmem:[%s9 + $0x8] sm:$0xf]
      %v2659 = vld [vmem:[%s9 + $0xc] sm:$0xf]
      %v2660 = vld [vmem:[%s9 + $0x10] sm:$0xf]
      %v2661 = vld [vmem:[%s9 + $0x14] sm:$0xf]
      %v2662 = vld [vmem:[%s9 + $0x18] sm:$0xf]
      %v2663 = vld [vmem:[%s9 + $0x1c] sm:$0xf]
      %v2664 = vld [vmem:[%s9 + $0x20] sm:$0xf]
      %v2665 = vld [vmem:[%s9 + $0x24] sm:$0xf]
      %v2666 = vld [vmem:[%s9 + $0x28] sm:$0xf]
      %v2667 = vld [vmem:[%s9 + $0x2c] sm:$0xf]
      %v2668 = vld [vmem:[%s9 + $0x30] sm:$0xf]
      %v2669 = vld [vmem:[%s9 + $0x34] sm:$0xf]
      %v2670 = vld [vmem:[%s9 + $0x38] sm:$0xf]
      %v2671 = vld [vmem:[%s9 + $0x3c] sm:$0xf]
      %v2672 = vld [vmem:[%s9 + $0x40] sm:$0xf]
      %v2673 = vld [vmem:[%s9 + $0x44] sm:$0xf]
      %v2674 = vld [vmem:[%s9 + $0x48] sm:$0xf]
      %v2675 = vld [vmem:[%s9 + $0x4c] sm:$0xf]
      %v2676 = vld [vmem:[%s9 + $0x50] sm:$0xf]
      %v2677 = vld [vmem:[%s9 + $0x54] sm:$0xf]
      %v2678 = vld [vmem:[%s9 + $0x58] sm:$0xf]
      %v2679 = vld [vmem:[%s9 + $0x5c] sm:$0xf]
      %v2680 = vld [vmem:[%s9 + $0x60] sm:$0xf]
      %v2681 = vld [vmem:[%s9 + $0x64] sm:$0xf]
      %v2682 = vld [vmem:[%s9 + $0x68] sm:$0xf]
      %v2683 = vld [vmem:[%s9 + $0x6c] sm:$0xf]
      %v2684 = vld [vmem:[%s9 + $0x70] sm:$0xf]
      %v2685 = vld [vmem:[%s9 + $0x74] sm:$0xf]
      %v2686 = vld [vmem:[%s9 + $0x78] sm:$0xf]
      %v2687 = vld [vmem:[%s9 + $0x7c] sm:$0xf]
      %v2688 = vld [vmem:[%s10] sm:$0x1]
      %v2690 = vlaneseq
      %v2691 = vshrl.u32 %v2690, 7
      %v2692 = vsub.s32 0, %v2691
      %v2693 = vrot.slane %v2688, %v2692
      %v2727 = vunpack.c.l.b16 %v2656
      %v2728 = vunpack.c.l.b16 %v2657
      %v2729 = vunpack.c.l.b16 %v2658
      %v2730 = vunpack.c.l.b16 %v2659
      %v2731 = vunpack.c.l.b16 %v2660
      %v2732 = vunpack.c.l.b16 %v2661
      %v2733 = vunpack.c.l.b16 %v2662
      %v2734 = vunpack.c.l.b16 %v2663
      %v2735 = vunpack.c.l.b16 %v2664
      %v2736 = vunpack.c.l.b16 %v2665
      %v2737 = vunpack.c.l.b16 %v2666
      %v2738 = vunpack.c.l.b16 %v2667
      %v2739 = vunpack.c.l.b16 %v2668
      %v2740 = vunpack.c.l.b16 %v2669
      %v2741 = vunpack.c.l.b16 %v2670
      %v2742 = vunpack.c.l.b16 %v2671
      %v2743 = vunpack.c.l.b16 %v2672
      %v2744 = vunpack.c.l.b16 %v2673
      %v2745 = vunpack.c.l.b16 %v2674
      %v2746 = vunpack.c.l.b16 %v2675
      %v2747 = vunpack.c.l.b16 %v2676
      %v2748 = vunpack.c.l.b16 %v2677
      %v2749 = vunpack.c.l.b16 %v2678
      %v2750 = vunpack.c.l.b16 %v2679
      %v2751 = vunpack.c.l.b16 %v2680
      %v2752 = vunpack.c.l.b16 %v2681
      %v2753 = vunpack.c.l.b16 %v2682
      %v2754 = vunpack.c.l.b16 %v2683
      %v2755 = vunpack.c.l.b16 %v2684
      %v2756 = vunpack.c.l.b16 %v2685
      %v2757 = vunpack.c.l.b16 %v2686
      %v2758 = vunpack.c.l.b16 %v2687
      %v2759 = vpack.c.b16 %v2728, %v2727
      %v2760 = vpack.c.b16 %v2730, %v2729
      %v2761 = vpack.c.b16 %v2732, %v2731
      %v2762 = vpack.c.b16 %v2734, %v2733
      %v2763 = vpack.c.b16 %v2736, %v2735
      %v2764 = vpack.c.b16 %v2738, %v2737
      %v2765 = vpack.c.b16 %v2740, %v2739
      %v2766 = vpack.c.b16 %v2742, %v2741
      %v2767 = vpack.c.b16 %v2744, %v2743
      %v2768 = vpack.c.b16 %v2746, %v2745
      %v2769 = vpack.c.b16 %v2748, %v2747
      %v2770 = vpack.c.b16 %v2750, %v2749
      %v2771 = vpack.c.b16 %v2752, %v2751
      %v2772 = vpack.c.b16 %v2754, %v2753
      %v2773 = vpack.c.b16 %v2756, %v2755
      %v2774 = vpack.c.b16 %v2758, %v2757
      %2791 = vmatprep.subr.bf16.mxu0 0
      %2792 = vmatpush1.bf16.msra.mxu0 %v2766
      %2793 = vmatprep.subr.bf16.mxu0 0
      %2794 = vmatpush1.bf16.msra.mxu0 %v2765
      %2795 = vmatprep.subr.bf16.mxu0 0
      %2796 = vmatpush1.bf16.msra.mxu0 %v2764
      %2797 = vmatprep.subr.bf16.mxu0 0
      %2798 = vmatpush1.bf16.msra.mxu0 %v2763
      %2799 = vmatprep.subr.bf16.mxu0 0
      %2800 = vmatpush1.bf16.msra.mxu0 %v2762
      %2801 = vmatprep.subr.bf16.mxu0 0
      %2802 = vmatpush1.bf16.msra.mxu0 %v2761
      %2803 = vmatprep.subr.bf16.mxu0 0
      %2804 = vmatpush1.bf16.msra.mxu0 %v2760
      %2805 = vmatprep.subr.bf16.mxu0 0
      %2806 = vmatpush1.bf16.msra.mxu0 %v2759
      %2807 = vmatprep.subr.bf16.mxu0 0
      %2808 = vmatpush2.bf16.msra.mxu0 %v2774
      %2809 = vmatprep.subr.bf16.mxu0 0
      %2810 = vmatpush2.bf16.msra.mxu0 %v2773
      %2811 = vmatprep.subr.bf16.mxu0 0
      %2812 = vmatpush2.bf16.msra.mxu0 %v2772
      %2813 = vmatprep.subr.bf16.mxu0 0
      %2814 = vmatpush2.bf16.msra.mxu0 %v2771
      %2815 = vmatprep.subr.bf16.mxu0 0
      %2816 = vmatpush2.bf16.msra.mxu0 %v2770
      %2817 = vmatprep.subr.bf16.mxu0 0
      %2818 = vmatpush2.bf16.msra.mxu0 %v2769
      %2819 = vmatprep.subr.bf16.mxu0 0
      %2820 = vmatpush2.bf16.msra.mxu0 %v2768
      %2821 = vmatprep.subr.bf16.mxu0 0
      %2822 = vmatpush2.bf16.msra.mxu0 %v2767
      %2823 = vmatprep.mubr.bf16.mxu0 %v2625
      %2824 = vmatmul.mubr.bf16.gmra.mxu0 %v2624
      %v2825 = vpop.f32.mrf.mxu0
      %v2826 = vadd.f32 %v2693, %v2825
      %v2827 = vpop.f32.mrf.mxu0
      %v2828 = vpop.f32.mrf.mxu0
      %v2829 = vadd.f32 %v2693, %v2828
      %v2830 = vpop.f32.mrf.mxu0
      %2831 = vmatprep.mubr.bf16.mxu0 %v2627
      %2832 = vmatmul.mubr.bf16.gmra.mxu0 %v2626
      %v2833 = vpop.f32.mrf.mxu0
      %v2834 = vadd.f32 %v2693, %v2833
      %v2835 = vpop.f32.mrf.mxu0
      %v2836 = vpop.f32.mrf.mxu0
      %v2837 = vadd.f32 %v2693, %v2836
      %v2838 = vpop.f32.mrf.mxu0
      %2839 = vmatprep.mubr.bf16.mxu0 %v2629
      %2840 = vmatmul.mubr.bf16.gmra.mxu0 %v2628
      %v2841 = vpop.f32.mrf.mxu0
      %v2842 = vadd.f32 %v2693, %v2841
      %v2843 = vpop.f32.mrf.mxu0
      %v2844 = vpop.f32.mrf.mxu0
      %v2845 = vadd.f32 %v2693, %v2844
      %v2846 = vpop.f32.mrf.mxu0
      %2847 = vmatprep.mubr.bf16.mxu0 %v2631
      %2848 = vmatmul.mubr.bf16.gmra.mxu0 %v2630
      %v2849 = vpop.f32.mrf.mxu0
      %v2850 = vadd.f32 %v2693, %v2849
      %v2851 = vpop.f32.mrf.mxu0
      %v2852 = vpop.f32.mrf.mxu0
      %v2853 = vadd.f32 %v2693, %v2852
      %v2854 = vpop.f32.mrf.mxu0
      %2855 = vmatprep.mubr.bf16.mxu0 %v2633
      %2856 = vmatmul.mubr.bf16.gmra.mxu0 %v2632
      %v2857 = vpop.f32.mrf.mxu0
      %v2858 = vadd.f32 %v2693, %v2857
      %v2859 = vpop.f32.mrf.mxu0
      %v2860 = vpop.f32.mrf.mxu0
      %v2861 = vadd.f32 %v2693, %v2860
      %v2862 = vpop.f32.mrf.mxu0
      %2863 = vmatprep.mubr.bf16.mxu0 %v2635
      %2864 = vmatmul.mubr.bf16.gmra.mxu0 %v2634
      %v2865 = vpop.f32.mrf.mxu0
      %v2866 = vadd.f32 %v2693, %v2865
      %v2867 = vpop.f32.mrf.mxu0
      %v2868 = vpop.f32.mrf.mxu0
      %v2869 = vadd.f32 %v2693, %v2868
      %v2870 = vpop.f32.mrf.mxu0
      %2871 = vmatprep.mubr.bf16.mxu0 %v2637
      %2872 = vmatmul.mubr.bf16.gmra.mxu0 %v2636
      %v2873 = vpop.f32.mrf.mxu0
      %v2874 = vadd.f32 %v2693, %v2873
      %v2875 = vpop.f32.mrf.mxu0
      %v2876 = vpop.f32.mrf.mxu0
      %v2877 = vadd.f32 %v2693, %v2876
      %v2878 = vpop.f32.mrf.mxu0
      %2879 = vmatprep.mubr.bf16.mxu0 %v2639
      %2880 = vmatmul.mubr.bf16.gmra.mxu0 %v2638
      %v2881 = vpop.f32.mrf.mxu0
      %v2882 = vadd.f32 %v2693, %v2881
      %v2883 = vpop.f32.mrf.mxu0
      %v2884 = vpop.f32.mrf.mxu0
      %v2885 = vadd.f32 %v2693, %v2884
      %v2886 = vpop.f32.mrf.mxu0
      %2887 = vmatprep.mubr.bf16.mxu0 %v2641
      %2888 = vmatmul.mubr.bf16.gmra.mxu0 %v2640
      %v2889 = vpop.f32.mrf.mxu0
      %v2890 = vadd.f32 %v2693, %v2889
      %v2891 = vpop.f32.mrf.mxu0
      %v2892 = vpop.f32.mrf.mxu0
      %v2893 = vadd.f32 %v2693, %v2892
      %v2894 = vpop.f32.mrf.mxu0
      %2895 = vmatprep.mubr.bf16.mxu0 %v2643
      %2896 = vmatmul.mubr.bf16.gmra.mxu0 %v2642
      %v2897 = vpop.f32.mrf.mxu0
      %v2898 = vadd.f32 %v2693, %v2897
      %v2899 = vpop.f32.mrf.mxu0
      %v2900 = vpop.f32.mrf.mxu0
      %v2901 = vadd.f32 %v2693, %v2900
      %v2902 = vpop.f32.mrf.mxu0
      %2903 = vmatprep.mubr.bf16.mxu0 %v2645
      %2904 = vmatmul.mubr.bf16.gmra.mxu0 %v2644
      %v2905 = vpop.f32.mrf.mxu0
      %v2906 = vadd.f32 %v2693, %v2905
      %v2907 = vpop.f32.mrf.mxu0
      %v2908 = vpop.f32.mrf.mxu0
      %v2909 = vadd.f32 %v2693, %v2908
      %v2910 = vpop.f32.mrf.mxu0
      %2911 = vmatprep.mubr.bf16.mxu0 %v2647
      %2912 = vmatmul.mubr.bf16.gmra.mxu0 %v2646
      %v2913 = vpop.f32.mrf.mxu0
      %v2914 = vadd.f32 %v2693, %v2913
      %v2915 = vpop.f32.mrf.mxu0
      %v2916 = vpop.f32.mrf.mxu0
      %v2917 = vadd.f32 %v2693, %v2916
      %v2918 = vpop.f32.mrf.mxu0
      %2919 = vmatprep.mubr.bf16.mxu0 %v2649
      %2920 = vmatmul.mubr.bf16.gmra.mxu0 %v2648
      %v2921 = vpop.f32.mrf.mxu0
      %v2922 = vadd.f32 %v2693, %v2921
      %v2923 = vpop.f32.mrf.mxu0
      %v2924 = vpop.f32.mrf.mxu0
      %v2925 = vadd.f32 %v2693, %v2924
      %v2926 = vpop.f32.mrf.mxu0
      %2927 = vmatprep.mubr.bf16.mxu0 %v2651
      %2928 = vmatmul.mubr.bf16.gmra.mxu0 %v2650
      %v2929 = vpop.f32.mrf.mxu0
      %v2930 = vadd.f32 %v2693, %v2929
      %v2931 = vpop.f32.mrf.mxu0
      %v2932 = vpop.f32.mrf.mxu0
      %v2933 = vadd.f32 %v2693, %v2932
      %v2934 = vpop.f32.mrf.mxu0
      %2935 = vmatprep.mubr.bf16.mxu0 %v2653
      %2936 = vmatmul.mubr.bf16.gmra.mxu0 %v2652
      %v2937 = vpop.f32.mrf.mxu0
      %v2938 = vadd.f32 %v2693, %v2937
      %v2939 = vpop.f32.mrf.mxu0
      %v2940 = vpop.f32.mrf.mxu0
      %v2941 = vadd.f32 %v2693, %v2940
      %v2942 = vpop.f32.mrf.mxu0
      %2943 = vmatprep.mubr.bf16.mxu0 %v2655
      %2944 = vmatmul.mubr.bf16.gmra.mxu0 %v2654
      %v2945 = vpop.f32.mrf.mxu0
      %v2946 = vadd.f32 %v2693, %v2945
      %v2947 = vpop.f32.mrf.mxu0
      %v2948 = vpop.f32.mrf.mxu0
      %v2949 = vadd.f32 %v2693, %v2948
      %v2950 = vpop.f32.mrf.mxu0
      %2951 = vdwg.mxu0
      %v2952 = vmax.f32 %v2826, 0.0
      %v2953 = vmax.f32 %v2829, 0.0
      %v2954 = vmax.f32 %v2834, 0.0
      %v2955 = vmax.f32 %v2837, 0.0
      %v2956 = vmax.f32 %v2842, 0.0
      %v2957 = vmax.f32 %v2845, 0.0
      %v2958 = vmax.f32 %v2850, 0.0
      %v2959 = vmax.f32 %v2853, 0.0
      %v2960 = vmax.f32 %v2858, 0.0
      %v2961 = vmax.f32 %v2861, 0.0
      %v2962 = vmax.f32 %v2866, 0.0
      %v2963 = vmax.f32 %v2869, 0.0
      %v2964 = vmax.f32 %v2874, 0.0
      %v2965 = vmax.f32 %v2877, 0.0
      %v2966 = vmax.f32 %v2882, 0.0
      %v2967 = vmax.f32 %v2885, 0.0
      %v2968 = vmax.f32 %v2890, 0.0
      %v2969 = vmax.f32 %v2893, 0.0
      %v2970 = vmax.f32 %v2898, 0.0
      %v2971 = vmax.f32 %v2901, 0.0
      %v2972 = vmax.f32 %v2906, 0.0
      %v2973 = vmax.f32 %v2909, 0.0
      %v2974 = vmax.f32 %v2914, 0.0
      %v2975 = vmax.f32 %v2917, 0.0
      %v2976 = vmax.f32 %v2922, 0.0
      %v2977 = vmax.f32 %v2925, 0.0
      %v2978 = vmax.f32 %v2930, 0.0
      %v2979 = vmax.f32 %v2933, 0.0
      %v2980 = vmax.f32 %v2938, 0.0
      %v2981 = vmax.f32 %v2941, 0.0
      %v2982 = vmax.f32 %v2946, 0.0
      %v2983 = vmax.f32 %v2949, 0.0
      %v2984 = vpack.c.bf16 %v2953, %v2952
      %v2985 = vpack.c.bf16 %v2955, %v2954
      %v2986 = vpack.c.bf16 %v2957, %v2956
      %v2987 = vpack.c.bf16 %v2959, %v2958
      %v2988 = vpack.c.bf16 %v2961, %v2960
      %v2989 = vpack.c.bf16 %v2963, %v2962
      %v2990 = vpack.c.bf16 %v2965, %v2964
      %v2991 = vpack.c.bf16 %v2967, %v2966
      %v2992 = vpack.c.bf16 %v2969, %v2968
      %v2993 = vpack.c.bf16 %v2971, %v2970
      %v2994 = vpack.c.bf16 %v2973, %v2972
      %v2995 = vpack.c.bf16 %v2975, %v2974
      %v2996 = vpack.c.bf16 %v2977, %v2976
      %v2997 = vpack.c.bf16 %v2979, %v2978
      %v2998 = vpack.c.bf16 %v2981, %v2980
      %v2999 = vpack.c.bf16 %v2983, %v2982
      %v3000 = vld [vmem:[%s11] sm:$0xf]
      %v3001 = vld [vmem:[%s11 + $0x4] sm:$0xf]
      %v3002 = vld [vmem:[%s11 + $0x8] sm:$0xf]
      %v3003 = vld [vmem:[%s11 + $0xc] sm:$0xf]
      %v3004 = vld [vmem:[%s11 + $0x10] sm:$0xf]
      %v3005 = vld [vmem:[%s11 + $0x14] sm:$0xf]
      %v3006 = vld [vmem:[%s11 + $0x18] sm:$0xf]
      %v3007 = vld [vmem:[%s11 + $0x1c] sm:$0xf]
      %v3008 = vld [vmem:[%s11 + $0x20] sm:$0xf]
      %v3009 = vld [vmem:[%s11 + $0x24] sm:$0xf]
      %v3010 = vld [vmem:[%s11 + $0x28] sm:$0xf]
      %v3011 = vld [vmem:[%s11 + $0x2c] sm:$0xf]
      %v3012 = vld [vmem:[%s11 + $0x30] sm:$0xf]
      %v3013 = vld [vmem:[%s11 + $0x34] sm:$0xf]
      %v3014 = vld [vmem:[%s11 + $0x38] sm:$0xf]
      %v3015 = vld [vmem:[%s11 + $0x3c] sm:$0xf]
      %v3016 = vld [vmem:[%s12] sm:$0x1]
      %v3018 = vlaneseq
      %v3019 = vshrl.u32 %v3018, 7
      %v3020 = vsub.s32 0, %v3019
      %v3021 = vrot.slane %v3016, %v3020
      %v3039 = vunpack.c.l.b16 %v3000
      %v3040 = vunpack.c.l.b16 %v3001
      %v3041 = vunpack.c.l.b16 %v3002
      %v3042 = vunpack.c.l.b16 %v3003
      %v3043 = vunpack.c.l.b16 %v3004
      %v3044 = vunpack.c.l.b16 %v3005
      %v3045 = vunpack.c.l.b16 %v3006
      %v3046 = vunpack.c.l.b16 %v3007
      %v3047 = vunpack.c.l.b16 %v3008
      %v3048 = vunpack.c.l.b16 %v3009
      %v3049 = vunpack.c.l.b16 %v3010
      %v3050 = vunpack.c.l.b16 %v3011
      %v3051 = vunpack.c.l.b16 %v3012
      %v3052 = vunpack.c.l.b16 %v3013
      %v3053 = vunpack.c.l.b16 %v3014
      %v3054 = vunpack.c.l.b16 %v3015
      %v3055 = vpack.c.b16 %v3040, %v3039
      %v3056 = vpack.c.b16 %v3042, %v3041
      %v3057 = vpack.c.b16 %v3044, %v3043
      %v3058 = vpack.c.b16 %v3046, %v3045
      %v3059 = vpack.c.b16 %v3048, %v3047
      %v3060 = vpack.c.b16 %v3050, %v3049
      %v3061 = vpack.c.b16 %v3052, %v3051
      %v3062 = vpack.c.b16 %v3054, %v3053
      %3071 = vmatprep.subr.bf16.mxu0 0
      %3072 = vmatpush1.bf16.msra.mxu0 %v3062
      %3073 = vmatprep.subr.bf16.mxu0 0
      %3074 = vmatpush1.bf16.msra.mxu0 %v3061
      %3075 = vmatprep.subr.bf16.mxu0 0
      %3076 = vmatpush1.bf16.msra.mxu0 %v3060
      %3077 = vmatprep.subr.bf16.mxu0 0
      %3078 = vmatpush1.bf16.msra.mxu0 %v3059
      %3079 = vmatprep.subr.bf16.mxu0 0
      %3080 = vmatpush1.bf16.msra.mxu0 %v3058
      %3081 = vmatprep.subr.bf16.mxu0 0
      %3082 = vmatpush1.bf16.msra.mxu0 %v3057
      %3083 = vmatprep.subr.bf16.mxu0 0
      %3084 = vmatpush1.bf16.msra.mxu0 %v3056
      %3085 = vmatprep.subr.bf16.mxu0 0
      %3086 = vmatpush1.bf16.msra.mxu0 %v3055
      %3087 = vmatprep.subr.bf16.mxu0 0
      %3088 = vmatpush2.bf16.msra.mxu0 0
      %3089 = vmatprep.subr.bf16.mxu0 0
      %3090 = vmatpush2.bf16.msra.mxu0 0
      %3091 = vmatprep.subr.bf16.mxu0 0
      %3092 = vmatpush2.bf16.msra.mxu0 0
      %3093 = vmatprep.subr.bf16.mxu0 0
      %3094 = vmatpush2.bf16.msra.mxu0 0
      %3095 = vmatprep.subr.bf16.mxu0 0
      %3096 = vmatpush2.bf16.msra.mxu0 0
      %3097 = vmatprep.subr.bf16.mxu0 0
      %3098 = vmatpush2.bf16.msra.mxu0 0
      %3099 = vmatprep.subr.bf16.mxu0 0
      %3100 = vmatpush2.bf16.msra.mxu0 0
      %3101 = vmatprep.subr.bf16.mxu0 0
      %3102 = vmatpush2.bf16.msra.mxu0 0
      %3103 = vmatprep.mubr.bf16.mxu0 0
      %3104 = vmatmul.mubr.bf16.gmra.mxu0 %v2984
      %v3105 = vpop.f32.mrf.mxu0
      %v3106 = vadd.f32 %v3021, %v3105
      %v3107 = vpop.f32.mrf.mxu0
      %v3108 = vpop.f32.mrf.mxu0
      %v3109 = vadd.f32 %v3021, %v3108
      %v3110 = vpop.f32.mrf.mxu0
      %3111 = vmatprep.mubr.bf16.mxu0 0
      %3112 = vmatmul.mubr.bf16.gmra.mxu0 %v2985
      %v3113 = vpop.f32.mrf.mxu0
      %v3114 = vadd.f32 %v3021, %v3113
      %v3115 = vpop.f32.mrf.mxu0
      %v3116 = vpop.f32.mrf.mxu0
      %v3117 = vadd.f32 %v3021, %v3116
      %v3118 = vpop.f32.mrf.mxu0
      %3119 = vmatprep.mubr.bf16.mxu0 0
      %3120 = vmatmul.mubr.bf16.gmra.mxu0 %v2986
      %v3121 = vpop.f32.mrf.mxu0
      %v3122 = vadd.f32 %v3021, %v3121
      %v3123 = vpop.f32.mrf.mxu0
      %v3124 = vpop.f32.mrf.mxu0
      %v3125 = vadd.f32 %v3021, %v3124
      %v3126 = vpop.f32.mrf.mxu0
      %3127 = vmatprep.mubr.bf16.mxu0 0
      %3128 = vmatmul.mubr.bf16.gmra.mxu0 %v2987
      %v3129 = vpop.f32.mrf.mxu0
      %v3130 = vadd.f32 %v3021, %v3129
      %v3131 = vpop.f32.mrf.mxu0
      %v3132 = vpop.f32.mrf.mxu0
      %v3133 = vadd.f32 %v3021, %v3132
      %v3134 = vpop.f32.mrf.mxu0
      %3135 = vmatprep.mubr.bf16.mxu0 0
      %3136 = vmatmul.mubr.bf16.gmra.mxu0 %v2988
      %v3137 = vpop.f32.mrf.mxu0
      %v3138 = vadd.f32 %v3021, %v3137
      %v3139 = vpop.f32.mrf.mxu0
      %v3140 = vpop.f32.mrf.mxu0
      %v3141 = vadd.f32 %v3021, %v3140
      %v3142 = vpop.f32.mrf.mxu0
      %3143 = vmatprep.mubr.bf16.mxu0 0
      %3144 = vmatmul.mubr.bf16.gmra.mxu0 %v2989
      %v3145 = vpop.f32.mrf.mxu0
      %v3146 = vadd.f32 %v3021, %v3145
      %v3147 = vpop.f32.mrf.mxu0
      %v3148 = vpop.f32.mrf.mxu0
      %v3149 = vadd.f32 %v3021, %v3148
      %v3150 = vpop.f32.mrf.mxu0
      %3151 = vmatprep.mubr.bf16.mxu0 0
      %3152 = vmatmul.mubr.bf16.gmra.mxu0 %v2990
      %v3153 = vpop.f32.mrf.mxu0
      %v3154 = vadd.f32 %v3021, %v3153
      %v3155 = vpop.f32.mrf.mxu0
      %v3156 = vpop.f32.mrf.mxu0
      %v3157 = vadd.f32 %v3021, %v3156
      %v3158 = vpop.f32.mrf.mxu0
      %3159 = vmatprep.mubr.bf16.mxu0 0
      %3160 = vmatmul.mubr.bf16.gmra.mxu0 %v2991
      %v3161 = vpop.f32.mrf.mxu0
      %v3162 = vadd.f32 %v3021, %v3161
      %v3163 = vpop.f32.mrf.mxu0
      %v3164 = vpop.f32.mrf.mxu0
      %v3165 = vadd.f32 %v3021, %v3164
      %v3166 = vpop.f32.mrf.mxu0
      %3167 = vmatprep.mubr.bf16.mxu0 0
      %3168 = vmatmul.mubr.bf16.gmra.mxu0 %v2992
      %v3169 = vpop.f32.mrf.mxu0
      %v3170 = vadd.f32 %v3021, %v3169
      %v3171 = vpop.f32.mrf.mxu0
      %v3172 = vpop.f32.mrf.mxu0
      %v3173 = vadd.f32 %v3021, %v3172
      %v3174 = vpop.f32.mrf.mxu0
      %3175 = vmatprep.mubr.bf16.mxu0 0
      %3176 = vmatmul.mubr.bf16.gmra.mxu0 %v2993
      %v3177 = vpop.f32.mrf.mxu0
      %v3178 = vadd.f32 %v3021, %v3177
      %v3179 = vpop.f32.mrf.mxu0
      %v3180 = vpop.f32.mrf.mxu0
      %v3181 = vadd.f32 %v3021, %v3180
      %v3182 = vpop.f32.mrf.mxu0
      %3183 = vmatprep.mubr.bf16.mxu0 0
      %3184 = vmatmul.mubr.bf16.gmra.mxu0 %v2994
      %v3185 = vpop.f32.mrf.mxu0
      %v3186 = vadd.f32 %v3021, %v3185
      %v3187 = vpop.f32.mrf.mxu0
      %v3188 = vpop.f32.mrf.mxu0
      %v3189 = vadd.f32 %v3021, %v3188
      %v3190 = vpop.f32.mrf.mxu0
      %3191 = vmatprep.mubr.bf16.mxu0 0
      %3192 = vmatmul.mubr.bf16.gmra.mxu0 %v2995
      %v3193 = vpop.f32.mrf.mxu0
      %v3194 = vadd.f32 %v3021, %v3193
      %v3195 = vpop.f32.mrf.mxu0
      %v3196 = vpop.f32.mrf.mxu0
      %v3197 = vadd.f32 %v3021, %v3196
      %v3198 = vpop.f32.mrf.mxu0
      %3199 = vmatprep.mubr.bf16.mxu0 0
      %3200 = vmatmul.mubr.bf16.gmra.mxu0 %v2996
      %v3201 = vpop.f32.mrf.mxu0
      %v3202 = vadd.f32 %v3021, %v3201
      %v3203 = vpop.f32.mrf.mxu0
      %v3204 = vpop.f32.mrf.mxu0
      %v3205 = vadd.f32 %v3021, %v3204
      %v3206 = vpop.f32.mrf.mxu0
      %3207 = vmatprep.mubr.bf16.mxu0 0
      %3208 = vmatmul.mubr.bf16.gmra.mxu0 %v2997
      %v3209 = vpop.f32.mrf.mxu0
      %v3210 = vadd.f32 %v3021, %v3209
      %v3211 = vpop.f32.mrf.mxu0
      %v3212 = vpop.f32.mrf.mxu0
      %v3213 = vadd.f32 %v3021, %v3212
      %v3214 = vpop.f32.mrf.mxu0
      %3215 = vmatprep.mubr.bf16.mxu0 0
      %3216 = vmatmul.mubr.bf16.gmra.mxu0 %v2998
      %v3217 = vpop.f32.mrf.mxu0
      %v3218 = vadd.f32 %v3021, %v3217
      %v3219 = vpop.f32.mrf.mxu0
      %v3220 = vpop.f32.mrf.mxu0
      %v3221 = vadd.f32 %v3021, %v3220
      %v3222 = vpop.f32.mrf.mxu0
      %3223 = vmatprep.mubr.bf16.mxu0 0
      %3224 = vmatmul.mubr.bf16.gmra.mxu0 %v2999
      %v3225 = vpop.f32.mrf.mxu0
      %v3226 = vadd.f32 %v3021, %v3225
      %v3227 = vpop.f32.mrf.mxu0
      %v3228 = vpop.f32.mrf.mxu0
      %v3229 = vadd.f32 %v3021, %v3228
      %v3230 = vpop.f32.mrf.mxu0
      %3231 = vdwg.mxu0
      %v3232 = vmul.f32 %v3106, %v3106
      %v3233 = vmul.f32 %v3109, %v3109
      %v3234 = vmul.f32 %v3114, %v3114
      %v3235 = vmul.f32 %v3117, %v3117
      %v3236 = vmul.f32 %v3122, %v3122
      %v3237 = vmul.f32 %v3125, %v3125
      %v3238 = vmul.f32 %v3130, %v3130
      %v3239 = vmul.f32 %v3133, %v3133
      %v3240 = vmul.f32 %v3138, %v3138
      %v3241 = vmul.f32 %v3141, %v3141
      %v3242 = vmul.f32 %v3146, %v3146
      %v3243 = vmul.f32 %v3149, %v3149
      %v3244 = vmul.f32 %v3154, %v3154
      %v3245 = vmul.f32 %v3157, %v3157
      %v3246 = vmul.f32 %v3162, %v3162
      %v3247 = vmul.f32 %v3165, %v3165
      %v3248 = vmul.f32 %v3170, %v3170
      %v3249 = vmul.f32 %v3173, %v3173
      %v3250 = vmul.f32 %v3178, %v3178
      %v3251 = vmul.f32 %v3181, %v3181
      %v3252 = vmul.f32 %v3186, %v3186
      %v3253 = vmul.f32 %v3189, %v3189
      %v3254 = vmul.f32 %v3194, %v3194
      %v3255 = vmul.f32 %v3197, %v3197
      %v3256 = vmul.f32 %v3202, %v3202
      %v3257 = vmul.f32 %v3205, %v3205
      %v3258 = vmul.f32 %v3210, %v3210
      %v3259 = vmul.f32 %v3213, %v3213
      %v3260 = vmul.f32 %v3218, %v3218
      %v3261 = vmul.f32 %v3221, %v3221
      %v3262 = vmul.f32 %v3226, %v3226
      %v3263 = vmul.f32 %v3229, %v3229
      %vm3264 = vcmask 523264
      %v3265 = vsel %vm3264, %v3232, 0.0
      %3266 = vadd.xlane.f32.xlu0 %v3265
      %v3267 = vpop.xlane.xlu0 %3266
      %v3268 = vsel %vm3264, %v3233, 0.0
      %3269 = vadd.xlane.f32.xlu0 %v3268
      %v3270 = vpop.xlane.xlu0 %3269
      %v3271 = vsel %vm3264, %v3234, 0.0
      %3272 = vadd.xlane.f32.xlu0 %v3271
      %v3273 = vpop.xlane.xlu0 %3272
      %v3274 = vsel %vm3264, %v3235, 0.0
      %3275 = vadd.xlane.f32.xlu0 %v3274
      %v3276 = vpop.xlane.xlu0 %3275
      %v3277 = vsel %vm3264, %v3236, 0.0
      %3278 = vadd.xlane.f32.xlu0 %v3277
      %v3279 = vpop.xlane.xlu0 %3278
      %v3280 = vsel %vm3264, %v3237, 0.0
      %3281 = vadd.xlane.f32.xlu0 %v3280
      %v3282 = vpop.xlane.xlu0 %3281
      %v3283 = vsel %vm3264, %v3238, 0.0
      %3284 = vadd.xlane.f32.xlu0 %v3283
      %v3285 = vpop.xlane.xlu0 %3284
      %v3286 = vsel %vm3264, %v3239, 0.0
      %3287 = vadd.xlane.f32.xlu0 %v3286
      %v3288 = vpop.xlane.xlu0 %3287
      %v3289 = vsel %vm3264, %v3240, 0.0
      %3290 = vadd.xlane.f32.xlu0 %v3289
      %v3291 = vpop.xlane.xlu0 %3290
      %v3292 = vsel %vm3264, %v3241, 0.0
      %3293 = vadd.xlane.f32.xlu0 %v3292
      %v3294 = vpop.xlane.xlu0 %3293
      %v3295 = vsel %vm3264, %v3242, 0.0
      %3296 = vadd.xlane.f32.xlu0 %v3295
      %v3297 = vpop.xlane.xlu0 %3296
      %v3298 = vsel %vm3264, %v3243, 0.0
      %3299 = vadd.xlane.f32.xlu0 %v3298
      %v3300 = vpop.xlane.xlu0 %3299
      %v3301 = vsel %vm3264, %v3244, 0.0
      %3302 = vadd.xlane.f32.xlu0 %v3301
      %v3303 = vpop.xlane.xlu0 %3302
      %v3304 = vsel %vm3264, %v3245, 0.0
      %3305 = vadd.xlane.f32.xlu0 %v3304
      %v3306 = vpop.xlane.xlu0 %3305
      %v3307 = vsel %vm3264, %v3246, 0.0
      %3308 = vadd.xlane.f32.xlu0 %v3307
      %v3309 = vpop.xlane.xlu0 %3308
      %v3310 = vsel %vm3264, %v3247, 0.0
      %3311 = vadd.xlane.f32.xlu0 %v3310
      %v3312 = vpop.xlane.xlu0 %3311
      %v3313 = vsel %vm3264, %v3248, 0.0
      %3314 = vadd.xlane.f32.xlu0 %v3313
      %v3315 = vpop.xlane.xlu0 %3314
      %v3316 = vsel %vm3264, %v3249, 0.0
      %3317 = vadd.xlane.f32.xlu0 %v3316
      %v3318 = vpop.xlane.xlu0 %3317
      %v3319 = vsel %vm3264, %v3250, 0.0
      %3320 = vadd.xlane.f32.xlu0 %v3319
      %v3321 = vpop.xlane.xlu0 %3320
      %v3322 = vsel %vm3264, %v3251, 0.0
      %3323 = vadd.xlane.f32.xlu0 %v3322
      %v3324 = vpop.xlane.xlu0 %3323
      %v3325 = vsel %vm3264, %v3252, 0.0
      %3326 = vadd.xlane.f32.xlu0 %v3325
      %v3327 = vpop.xlane.xlu0 %3326
      %v3328 = vsel %vm3264, %v3253, 0.0
      %3329 = vadd.xlane.f32.xlu0 %v3328
      %v3330 = vpop.xlane.xlu0 %3329
      %v3331 = vsel %vm3264, %v3254, 0.0
      %3332 = vadd.xlane.f32.xlu0 %v3331
      %v3333 = vpop.xlane.xlu0 %3332
      %v3334 = vsel %vm3264, %v3255, 0.0
      %3335 = vadd.xlane.f32.xlu0 %v3334
      %v3336 = vpop.xlane.xlu0 %3335
      %v3337 = vsel %vm3264, %v3256, 0.0
      %3338 = vadd.xlane.f32.xlu0 %v3337
      %v3339 = vpop.xlane.xlu0 %3338
      %v3340 = vsel %vm3264, %v3257, 0.0
      %3341 = vadd.xlane.f32.xlu0 %v3340
      %v3342 = vpop.xlane.xlu0 %3341
      %v3343 = vsel %vm3264, %v3258, 0.0
      %3344 = vadd.xlane.f32.xlu0 %v3343
      %v3345 = vpop.xlane.xlu0 %3344
      %v3346 = vsel %vm3264, %v3259, 0.0
      %3347 = vadd.xlane.f32.xlu0 %v3346
      %v3348 = vpop.xlane.xlu0 %3347
      %v3349 = vsel %vm3264, %v3260, 0.0
      %3350 = vadd.xlane.f32.xlu0 %v3349
      %v3351 = vpop.xlane.xlu0 %3350
      %v3352 = vsel %vm3264, %v3261, 0.0
      %3353 = vadd.xlane.f32.xlu0 %v3352
      %v3354 = vpop.xlane.xlu0 %3353
      %v3355 = vsel %vm3264, %v3262, 0.0
      %3356 = vadd.xlane.f32.xlu0 %v3355
      %v3357 = vpop.xlane.xlu0 %3356
      %v3358 = vsel %vm3264, %v3263, 0.0
      %3359 = vadd.xlane.f32.xlu0 %v3358
      %v3360 = vpop.xlane.xlu0 %3359
      %v3361 = vmax.f32 %v3267, 1e-24
      %v3362 = vmax.f32 %v3270, 1e-24
      %v3363 = vmax.f32 %v3273, 1e-24
      %v3364 = vmax.f32 %v3276, 1e-24
      %v3365 = vmax.f32 %v3279, 1e-24
      %v3366 = vmax.f32 %v3282, 1e-24
      %v3367 = vmax.f32 %v3285, 1e-24
      %v3368 = vmax.f32 %v3288, 1e-24
      %v3369 = vmax.f32 %v3291, 1e-24
      %v3370 = vmax.f32 %v3294, 1e-24
      %v3371 = vmax.f32 %v3297, 1e-24
      %v3372 = vmax.f32 %v3300, 1e-24
      %v3373 = vmax.f32 %v3303, 1e-24
      %v3374 = vmax.f32 %v3306, 1e-24
      %v3375 = vmax.f32 %v3309, 1e-24
      %v3376 = vmax.f32 %v3312, 1e-24
      %v3377 = vmax.f32 %v3315, 1e-24
      %v3378 = vmax.f32 %v3318, 1e-24
      %v3379 = vmax.f32 %v3321, 1e-24
      %v3380 = vmax.f32 %v3324, 1e-24
      %v3381 = vmax.f32 %v3327, 1e-24
      %v3382 = vmax.f32 %v3330, 1e-24
      %v3383 = vmax.f32 %v3333, 1e-24
      %v3384 = vmax.f32 %v3336, 1e-24
      %v3385 = vmax.f32 %v3339, 1e-24
      %v3386 = vmax.f32 %v3342, 1e-24
      %v3387 = vmax.f32 %v3345, 1e-24
      %v3388 = vmax.f32 %v3348, 1e-24
      %v3389 = vmax.f32 %v3351, 1e-24
      %v3390 = vmax.f32 %v3354, 1e-24
      %v3391 = vmax.f32 %v3357, 1e-24
      %v3392 = vmax.f32 %v3360, 1e-24
      %v3393 = vrsqrt.pop %v3361
      %v3394 = vrsqrt.pop %v3362
      %v3395 = vrsqrt.pop %v3363
      %v3396 = vrsqrt.pop %v3364
      %v3397 = vrsqrt.pop %v3365
      %v3398 = vrsqrt.pop %v3366
      %v3399 = vrsqrt.pop %v3367
      %v3400 = vrsqrt.pop %v3368
      %v3401 = vrsqrt.pop %v3369
      %v3402 = vrsqrt.pop %v3370
      %v3403 = vrsqrt.pop %v3371
      %v3404 = vrsqrt.pop %v3372
      %v3405 = vrsqrt.pop %v3373
      %v3406 = vrsqrt.pop %v3374
      %v3407 = vrsqrt.pop %v3375
      %v3408 = vrsqrt.pop %v3376
      %v3409 = vrsqrt.pop %v3377
      %v3410 = vrsqrt.pop %v3378
      %v3411 = vrsqrt.pop %v3379
      %v3412 = vrsqrt.pop %v3380
      %v3413 = vrsqrt.pop %v3381
      %v3414 = vrsqrt.pop %v3382
      %v3415 = vrsqrt.pop %v3383
      %v3416 = vrsqrt.pop %v3384
      %v3417 = vrsqrt.pop %v3385
      %v3418 = vrsqrt.pop %v3386
      %v3419 = vrsqrt.pop %v3387
      %v3420 = vrsqrt.pop %v3388
      %v3421 = vrsqrt.pop %v3389
      %v3422 = vrsqrt.pop %v3390
      %v3423 = vrsqrt.pop %v3391
      %v3424 = vrsqrt.pop %v3392
      %v3425 = vmul.f32 %v3106, %v3393
      %v3426 = vmul.f32 %v3109, %v3394
      %v3427 = vmul.f32 %v3114, %v3395
      %v3428 = vmul.f32 %v3117, %v3396
      %v3429 = vmul.f32 %v3122, %v3397
      %v3430 = vmul.f32 %v3125, %v3398
      %v3431 = vmul.f32 %v3130, %v3399
      %v3432 = vmul.f32 %v3133, %v3400
      %v3433 = vmul.f32 %v3138, %v3401
      %v3434 = vmul.f32 %v3141, %v3402
      %v3435 = vmul.f32 %v3146, %v3403
      %v3436 = vmul.f32 %v3149, %v3404
      %v3437 = vmul.f32 %v3154, %v3405
      %v3438 = vmul.f32 %v3157, %v3406
      %v3439 = vmul.f32 %v3162, %v3407
      %v3440 = vmul.f32 %v3165, %v3408
      %v3441 = vmul.f32 %v3170, %v3409
      %v3442 = vmul.f32 %v3173, %v3410
      %v3443 = vmul.f32 %v3178, %v3411
      %v3444 = vmul.f32 %v3181, %v3412
      %v3445 = vmul.f32 %v3186, %v3413
      %v3446 = vmul.f32 %v3189, %v3414
      %v3447 = vmul.f32 %v3194, %v3415
      %v3448 = vmul.f32 %v3197, %v3416
      %v3449 = vmul.f32 %v3202, %v3417
      %v3450 = vmul.f32 %v3205, %v3418
      %v3451 = vmul.f32 %v3210, %v3419
      %v3452 = vmul.f32 %v3213, %v3420
      %v3453 = vmul.f32 %v3218, %v3421
      %v3454 = vmul.f32 %v3221, %v3422
      %v3455 = vmul.f32 %v3226, %v3423
      %v3456 = vmul.f32 %v3229, %v3424
      %v3457 = vpack.c.bf16 %v3426, %v3425
      %v3458 = vpack.c.bf16 %v3428, %v3427
      %v3459 = vpack.c.bf16 %v3430, %v3429
      %v3460 = vpack.c.bf16 %v3432, %v3431
      %v3461 = vpack.c.bf16 %v3434, %v3433
      %v3462 = vpack.c.bf16 %v3436, %v3435
      %v3463 = vpack.c.bf16 %v3438, %v3437
      %v3464 = vpack.c.bf16 %v3440, %v3439
      %v3465 = vpack.c.bf16 %v3442, %v3441
      %v3466 = vpack.c.bf16 %v3444, %v3443
      %v3467 = vpack.c.bf16 %v3446, %v3445
      %v3468 = vpack.c.bf16 %v3448, %v3447
      %v3469 = vpack.c.bf16 %v3450, %v3449
      %v3470 = vpack.c.bf16 %v3452, %v3451
      %v3471 = vpack.c.bf16 %v3454, %v3453
      %v3472 = vpack.c.bf16 %v3456, %v3455
      %v3489 = vunpack.c.l.b16 %v3457
      %v3490 = vunpack.c.h.b16 %v3457
      %v3491 = vunpack.c.l.b16 %v3458
      %v3492 = vunpack.c.h.b16 %v3458
      %v3493 = vunpack.c.l.b16 %v3459
      %v3494 = vunpack.c.h.b16 %v3459
      %v3495 = vunpack.c.l.b16 %v3460
      %v3496 = vunpack.c.h.b16 %v3460
      %v3497 = vunpack.c.l.b16 %v3461
      %v3498 = vunpack.c.h.b16 %v3461
      %v3499 = vunpack.c.l.b16 %v3462
      %v3500 = vunpack.c.h.b16 %v3462
      %v3501 = vunpack.c.l.b16 %v3463
      %v3502 = vunpack.c.h.b16 %v3463
      %v3503 = vunpack.c.l.b16 %v3464
      %v3504 = vunpack.c.h.b16 %v3464
      %v3505 = vunpack.c.l.b16 %v3465
      %v3506 = vunpack.c.h.b16 %v3465
      %v3507 = vunpack.c.l.b16 %v3466
      %v3508 = vunpack.c.h.b16 %v3466
      %v3509 = vunpack.c.l.b16 %v3467
      %v3510 = vunpack.c.h.b16 %v3467
      %v3511 = vunpack.c.l.b16 %v3468
      %v3512 = vunpack.c.h.b16 %v3468
      %v3513 = vunpack.c.l.b16 %v3469
      %v3514 = vunpack.c.h.b16 %v3469
      %v3515 = vunpack.c.l.b16 %v3470
      %v3516 = vunpack.c.h.b16 %v3470
      %v3517 = vunpack.c.l.b16 %v3471
      %v3518 = vunpack.c.h.b16 %v3471
      %v3519 = vunpack.c.l.b16 %v3472
      %v3520 = vunpack.c.h.b16 %v3472
      %v3521 = vpack.c.b16 %v3489, %v3489
      %v3522 = vpack.c.b16 %v3490, %v3490
      %v3523 = vpack.c.b16 %v3491, %v3491
      %v3524 = vpack.c.b16 %v3492, %v3492
      %v3525 = vpack.c.b16 %v3493, %v3493
      %v3526 = vpack.c.b16 %v3494, %v3494
      %v3527 = vpack.c.b16 %v3495, %v3495
      %v3528 = vpack.c.b16 %v3496, %v3496
      %v3529 = vpack.c.b16 %v3497, %v3497
      %v3530 = vpack.c.b16 %v3498, %v3498
      %v3531 = vpack.c.b16 %v3499, %v3499
      %v3532 = vpack.c.b16 %v3500, %v3500
      %v3533 = vpack.c.b16 %v3501, %v3501
      %v3534 = vpack.c.b16 %v3502, %v3502
      %v3535 = vpack.c.b16 %v3503, %v3503
      %v3536 = vpack.c.b16 %v3504, %v3504
      %v3537 = vpack.c.b16 %v3505, %v3505
      %v3538 = vpack.c.b16 %v3506, %v3506
      %v3539 = vpack.c.b16 %v3507, %v3507
      %v3540 = vpack.c.b16 %v3508, %v3508
      %v3541 = vpack.c.b16 %v3509, %v3509
      %v3542 = vpack.c.b16 %v3510, %v3510
      %v3543 = vpack.c.b16 %v3511, %v3511
      %v3544 = vpack.c.b16 %v3512, %v3512
      %v3545 = vpack.c.b16 %v3513, %v3513
      %v3546 = vpack.c.b16 %v3514, %v3514
      %v3547 = vpack.c.b16 %v3515, %v3515
      %v3548 = vpack.c.b16 %v3516, %v3516
      %v3549 = vpack.c.b16 %v3517, %v3517
      %v3550 = vpack.c.b16 %v3518, %v3518
      %v3551 = vpack.c.b16 %v3519, %v3519
      %v3552 = vpack.c.b16 %v3520, %v3520
      %vm3585 = vcmask 519168
      %3586 = vst.msk [vmem:[%s464] sm:$0xf] %vm3585, %v3521
      %3587 = vst.msk [vmem:[%s464 + $0x4] sm:$0xf] %vm3585, %v3522
      %3588 = vst.msk [vmem:[%s464 + $0x8] sm:$0xf] %vm3585, %v3523
      %3589 = vst.msk [vmem:[%s464 + $0xc] sm:$0xf] %vm3585, %v3524
      %3590 = vst.msk [vmem:[%s464 + $0x10] sm:$0xf] %vm3585, %v3525
      %3591 = vst.msk [vmem:[%s464 + $0x14] sm:$0xf] %vm3585, %v3526
      %3592 = vst.msk [vmem:[%s464 + $0x18] sm:$0xf] %vm3585, %v3527
      %3593 = vst.msk [vmem:[%s464 + $0x1c] sm:$0xf] %vm3585, %v3528
      %3594 = vst.msk [vmem:[%s464 + $0x20] sm:$0xf] %vm3585, %v3529
      %3595 = vst.msk [vmem:[%s464 + $0x24] sm:$0xf] %vm3585, %v3530
      %3596 = vst.msk [vmem:[%s464 + $0x28] sm:$0xf] %vm3585, %v3531
      %3597 = vst.msk [vmem:[%s464 + $0x2c] sm:$0xf] %vm3585, %v3532
      %3598 = vst.msk [vmem:[%s464 + $0x30] sm:$0xf] %vm3585, %v3533
      %3599 = vst.msk [vmem:[%s464 + $0x34] sm:$0xf] %vm3585, %v3534
      %3600 = vst.msk [vmem:[%s464 + $0x38] sm:$0xf] %vm3585, %v3535
      %3601 = vst.msk [vmem:[%s464 + $0x3c] sm:$0xf] %vm3585, %v3536
      %3602 = vst.msk [vmem:[%s464 + $0x40] sm:$0xf] %vm3585, %v3537
      %3603 = vst.msk [vmem:[%s464 + $0x44] sm:$0xf] %vm3585, %v3538
      %3604 = vst.msk [vmem:[%s464 + $0x48] sm:$0xf] %vm3585, %v3539
      %3605 = vst.msk [vmem:[%s464 + $0x4c] sm:$0xf] %vm3585, %v3540
      %3606 = vst.msk [vmem:[%s464 + $0x50] sm:$0xf] %vm3585, %v3541
      %3607 = vst.msk [vmem:[%s464 + $0x54] sm:$0xf] %vm3585, %v3542
      %3608 = vst.msk [vmem:[%s464 + $0x58] sm:$0xf] %vm3585, %v3543
      %3609 = vst.msk [vmem:[%s464 + $0x5c] sm:$0xf] %vm3585, %v3544
      %3610 = vst.msk [vmem:[%s464 + $0x60] sm:$0xf] %vm3585, %v3545
      %3611 = vst.msk [vmem:[%s464 + $0x64] sm:$0xf] %vm3585, %v3546
      %3612 = vst.msk [vmem:[%s464 + $0x68] sm:$0xf] %vm3585, %v3547
      %3613 = vst.msk [vmem:[%s464 + $0x6c] sm:$0xf] %vm3585, %v3548
      %3614 = vst.msk [vmem:[%s464 + $0x70] sm:$0xf] %vm3585, %v3549
      %3615 = vst.msk [vmem:[%s464 + $0x74] sm:$0xf] %vm3585, %v3550
      %3616 = vst.msk [vmem:[%s464 + $0x78] sm:$0xf] %vm3585, %v3551
      %3617 = vst.msk [vmem:[%s464 + $0x7c] sm:$0xf] %vm3585, %v3552
      %s3618 = smul.u32 32, %s24
      %p3619 = scmp.lt.s32.totalorder %s3618, 63
      %s3620 = scalar_select %p3619, %s3618, 63
      %s3621 = smul.addr %s3620, 4
      %s3622 = scalar_lea.vmem %s13, %s3621
      // Predicated region
      $region73: #{tpu_custom_call.1} parent=71 // pred_check
        %p3623 = pneg %p325
      $region74: #{tpu_custom_call.1} parent=71 // pred_check_branch
        %3625 = sbr.rel (%p3623) target = $region76
      $region75: #{tpu_custom_call.1} parent=71 // pred_region
        %s3626 = smul.u32 32, %s24
      $region76: #{tpu_custom_call.1} parent=71 // pred_fallthru
        _
    $region72: #{tpu_custom_call.1} parent=5 // pred_fallthru
      _
    %p3627 = scmp.le.s32.totalorder 2, %s19
    // Predicated region
    $region77: #{tpu_custom_call.1} parent=5 // pred_check
      %p3628 = pneg %p3627
    $region78: #{tpu_custom_call.1} parent=5 // pred_check_branch
      %3630 = sbr.rel (%p3628) target = $region80
    $region79: #{tpu_custom_call.1} parent=5 // pred_region
      %s3631 = ssub.s32 %s19, 2
      // Predicated region
      $region81: #{tpu_custom_call.1} parent=79 // pred_check
        %p3632 = pneg %p331
      $region82: #{tpu_custom_call.1} parent=79 // pred_check_branch
        %3634 = sbr.rel (%p3632) target = $region84
      $region83: #{tpu_custom_call.1} parent=79 // pred_region
        %s3635 = smul.u32 32, %s25
        %p3636 = scmp.lt.s32.totalorder %s3635, 63
        %s3637 = scalar_select %p3636, %s3635, 63
        %s3638 = smul.addr %s3637, 4
        %s3639 = scalar_lea.vmem %s13, %s3638
      $region84: #{tpu_custom_call.1} parent=79 // pred_fallthru
        _
    $region80: #{tpu_custom_call.1} parent=5 // pred_fallthru
      _
  $region6: #{tpu_custom_call.1} parent=0 // loop_footer
    %s23 = sadd.s32 1, %s19
  $region7: #{tpu_custom_call.1} parent=0 // loop_footer_branch
    %18 = sbr.rel target = $region3
  $region8: #{tpu_custom_call.1} parent=0 // loop_exit
    _

// kernel: tpu_custom_call.1
$region0: #{tpu_custom_call.1}
  #allocation0 [shape = 'u32[]', space=smem, size = 0x4, offset = 0x4, fixed_abs, tag = 'smem constant byte address 0x4 - core index']
  #allocation1 [shape = 'u32[144,128]{1,0:T(1,128)}', space=vmem, size = 0x12000, scoped, tag = 'internal scratch']
  %s0 = inlined_call_operand.vmem [shape: s32[512,3], index: 0, kind: input, shape index: {}]
  %s1 = inlined_call_operand.vmem [shape: f32[512,5], index: 1, kind: input, shape index: {}]
  %s2 = inlined_call_operand.vmem [shape: bf16[40,128], index: 2, kind: input, shape index: {}]
  %s3 = inlined_call_operand.vmem [shape: bf16[16,128], index: 3, kind: input, shape index: {}]
  %s4 = inlined_call_operand.vmem [shape: bf16[100,128], index: 4, kind: input, shape index: {}]
  %s5 = inlined_call_operand.vmem [shape: bf16[5,128], index: 5, kind: input, shape index: {}]
  %s6 = inlined_call_operand.vmem [shape: f32[1,128], index: 6, kind: input, shape index: {}]
  %s7 = inlined_call_operand.vmem [shape: bf16[128,256], index: 7, kind: input, shape index: {}]
  %s8 = inlined_call_operand.vmem [shape: f32[1,256], index: 8, kind: input, shape index: {}]
  %s9 = inlined_call_operand.vmem [shape: bf16[256,128], index: 9, kind: input, shape index: {}]
  %s10 = inlined_call_operand.vmem [shape: f32[1,128], index: 10, kind: input, shape index: {}]
  %s11 = inlined_call_operand.vmem [shape: bf16[128,64], index: 11, kind: input, shape index: {}]
  %s12 = inlined_call_operand.vmem [shape: f32[1,64], index: 12, kind: input, shape index: {}]
  %s13 = inlined_call_operand.vmem [shape: bf16[512,64], index: 13, kind: output, shape index: {}]
  %s14 = sld [smem:[#allocation0]]
  $region85: #{tpu_custom_call.1} parent=0
    _
  %s16 = ssub.s32 1, %s14
  %s17 = scalar_select 0, %s16, %s14
  loop: start=0, step=1, limit=4
  $region2: #{tpu_custom_call.1} parent=0 // loop_pre_header
    _
  $region3: #{tpu_custom_call.1} parent=0 // loop_header
    %s19 = sphi 0, %s23
    %p20 = scmp.ge.s32.totalorder %s19, 4
    %s29 = sphi 0, %s31
    %s32 = sphi 0, %s29
    %s33 = sphi 0, %s32
    %s49 = sphi 0, %s33
    %s55 = sphi 0, %s57
    %s58 = sphi 0, %s55
    %s59 = sphi 0, %s58
    %s75 = sphi 0, %s59
    %s79 = sphi 0, %s79
    %s81 = sphi 0, %s79
    %s82 = sphi 0, %s81
    %s96 = sphi 0, %s82
    %s100 = sphi 0, %s100
    %s102 = sphi 0, %s100
    %s103 = sphi 0, %s102
    %s117 = sphi 0, %s103
    %s121 = sphi 0, %s121
    %s123 = sphi 0, %s121
    %s124 = sphi 0, %s123
    %s138 = sphi 0, %s124
    %s142 = sphi 0, %s142
    %s144 = sphi 0, %s142
    %s145 = sphi 0, %s144
    %s159 = sphi 0, %s145
    %s163 = sphi 0, %s163
    %s165 = sphi 0, %s163
    %s166 = sphi 0, %s165
    %s180 = sphi 0, %s166
    %s184 = sphi 0, %s184
    %s186 = sphi 0, %s184
    %s187 = sphi 0, %s186
    %s201 = sphi 0, %s187
    %s205 = sphi 0, %s205
    %s207 = sphi 0, %s205
    %s208 = sphi 0, %s207
    %s222 = sphi 0, %s208
    %s226 = sphi 0, %s226
    %s228 = sphi 0, %s226
    %s229 = sphi 0, %s228
    %s243 = sphi 0, %s229
    %s247 = sphi 0, %s247
    %s249 = sphi 0, %s247
    %s250 = sphi 0, %s249
    %s264 = sphi 0, %s250
    %s268 = sphi 0, %s268
    %s270 = sphi 0, %s268
    %s271 = sphi 0, %s270
    %s285 = sphi 0, %s271
    %s289 = sphi 0, %s289
    %s291 = sphi 0, %s289
    %s292 = sphi 0, %s291
    %s306 = sphi 0, %s292
    %s312 = sphi 0, %s314
    %s315 = sphi 0, %s312
    %s316 = sphi 0, %s315
    %s332 = sphi 0, %s316
  $region4: #{tpu_custom_call.1} parent=0 // loop_header_branch
    %22 = sbr.rel (%p20) target = $region8
  $region5: #{tpu_custom_call.1} parent=0 // loop_body
    %s24 = ssub.s32 %s19, 1
    %s25 = ssub.s32 %s19, 2
    %s26 = sadd.s32 %s19, 1
    %s27 = ssub.s32 %s19, %s26
    %p28 = scmp.eq.s32.totalorder %s27, 0
    %s30 = sadd.s32 %s29, 1
    %s31 = scalar_select %p28, %s29, %s30
    %p34 = pneg %p28
    %p35 = scmp.eq.s32.totalorder %s19, 1
    %p36 = por %p34, %p35
    %p37 = scmp.ne.s32.totalorder %s29, %s32
    %p38 = scmp.eq.s32.totalorder %s19, 0
    %p39 = por %p37, %p38
    %p40 = scmp.ne.s32.totalorder %s29, %s32
    %p41 = scmp.eq.s32.totalorder %s24, 1
    %p42 = por %p40, %p41
    %p43 = scmp.ne.s32.totalorder %s32, %s33
    %p44 = scmp.eq.s32.totalorder %s24, 0
    %p45 = por %p43, %p44
    %p46 = scmp.ne.s32.totalorder %s32, %s33
    %p47 = scmp.eq.s32.totalorder %s25, 1
    %p48 = por %p46, %p47
    %p50 = scmp.ne.s32.totalorder %s33, %s49
    %p51 = scmp.eq.s32.totalorder %s25, 0
    %p52 = por %p50, %p51
    %s53 = ssub.s32 %s19, %s26
    %p54 = scmp.eq.s32.totalorder %s53, 0
    %s56 = sadd.s32 %s55, 1
    %s57 = scalar_select %p54, %s55, %s56
    %p60 = pneg %p54
    %p61 = scmp.eq.s32.totalorder %s19, 1
    %p62 = por %p60, %p61
    %p63 = scmp.ne.s32.totalorder %s55, %s58
    %p64 = scmp.eq.s32.totalorder %s19, 0
    %p65 = por %p63, %p64
    %p66 = scmp.ne.s32.totalorder %s55, %s58
    %p67 = scmp.eq.s32.totalorder %s24, 1
    %p68 = por %p66, %p67
    %p69 = scmp.ne.s32.totalorder %s58, %s59
    %p70 = scmp.eq.s32.totalorder %s24, 0
    %p71 = por %p69, %p70
    %p72 = scmp.ne.s32.totalorder %s58, %s59
    %p73 = scmp.eq.s32.totalorder %s25, 1
    %p74 = por %p72, %p73
    %p76 = scmp.ne.s32.totalorder %s59, %s75
    %p77 = scmp.eq.s32.totalorder %s25, 0
    %p78 = por %p76, %p77
    %s80 = sadd.s32 %s79, 1
    %p83 = scmp.eq.s32.totalorder %s19, 1
    %p84 = scmp.ne.s32.totalorder %s79, %s81
    %p85 = scmp.eq.s32.totalorder %s19, 0
    %p86 = por %p84, %p85
    %p87 = scmp.ne.s32.totalorder %s79, %s81
    %p88 = scmp.eq.s32.totalorder %s24, 1
    %p89 = por %p87, %p88
    %p90 = scmp.ne.s32.totalorder %s81, %s82
    %p91 = scmp.eq.s32.totalorder %s24, 0
    %p92 = por %p90, %p91
    %p93 = scmp.ne.s32.totalorder %s81, %s82
    %p94 = scmp.eq.s32.totalorder %s25, 1
    %p95 = por %p93, %p94
    %p97 = scmp.ne.s32.totalorder %s82, %s96
    %p98 = scmp.eq.s32.totalorder %s25, 0
    %p99 = por %p97, %p98
    %s101 = sadd.s32 %s100, 1
    %p104 = scmp.eq.s32.totalorder %s19, 1
    %p105 = scmp.ne.s32.totalorder %s100, %s102
    %p106 = scmp.eq.s32.totalorder %s19, 0
    %p107 = por %p105, %p106
    %p108 = scmp.ne.s32.totalorder %s100, %s102
    %p109 = scmp.eq.s32.totalorder %s24, 1
    %p110 = por %p108, %p109
    %p111 = scmp.ne.s32.totalorder %s102, %s103
    %p112 = scmp.eq.s32.totalorder %s24, 0
    %p113 = por %p111, %p112
    %p114 = scmp.ne.s32.totalorder %s102, %s103
    %p115 = scmp.eq.s32.totalorder %s25, 1
    %p116 = por %p114, %p115
    %p118 = scmp.ne.s32.totalorder %s103, %s117
    %p119 = scmp.eq.s32.totalorder %s25, 0
    %p120 = por %p118, %p119
    %s122 = sadd.s32 %s121, 1
    %p125 = scmp.eq.s32.totalorder %s19, 1
    %p126 = scmp.ne.s32.totalorder %s121, %s123
    %p127 = scmp.eq.s32.totalorder %s19, 0
    %p128 = por %p126, %p127
    %p129 = scmp.ne.s32.totalorder %s121, %s123
    %p130 = scmp.eq.s32.totalorder %s24, 1
    %p131 = por %p129, %p130
    %p132 = scmp.ne.s32.totalorder %s123, %s124
    %p133 = scmp.eq.s32.totalorder %s24, 0
    %p134 = por %p132, %p133
    %p135 = scmp.ne.s32.totalorder %s123, %s124
    %p136 = scmp.eq.s32.totalorder %s25, 1
    %p137 = por %p135, %p136
    %p139 = scmp.ne.s32.totalorder %s124, %s138
    %p140 = scmp.eq.s32.totalorder %s25, 0
    %p141 = por %p139, %p140
    %s143 = sadd.s32 %s142, 1
    %p146 = scmp.eq.s32.totalorder %s19, 1
    %p147 = scmp.ne.s32.totalorder %s142, %s144
    %p148 = scmp.eq.s32.totalorder %s19, 0
    %p149 = por %p147, %p148
    %p150 = scmp.ne.s32.totalorder %s142, %s144
    %p151 = scmp.eq.s32.totalorder %s24, 1
    %p152 = por %p150, %p151
    %p153 = scmp.ne.s32.totalorder %s144, %s145
    %p154 = scmp.eq.s32.totalorder %s24, 0
    %p155 = por %p153, %p154
    %p156 = scmp.ne.s32.totalorder %s144, %s145
    %p157 = scmp.eq.s32.totalorder %s25, 1
    %p158 = por %p156, %p157
    %p160 = scmp.ne.s32.totalorder %s145, %s159
    %p161 = scmp.eq.s32.totalorder %s25, 0
    %p162 = por %p160, %p161
    %s164 = sadd.s32 %s163, 1
    %p167 = scmp.eq.s32.totalorder %s19, 1
    %p168 = scmp.ne.s32.totalorder %s163, %s165
    %p169 = scmp.eq.s32.totalorder %s19, 0
    %p170 = por %p168, %p169
    %p171 = scmp.ne.s32.totalorder %s163, %s165
    %p172 = scmp.eq.s32.totalorder %s24, 1
    %p173 = por %p171, %p172
    %p174 = scmp.ne.s32.totalorder %s165, %s166
    %p175 = scmp.eq.s32.totalorder %s24, 0
    %p176 = por %p174, %p175
    %p177 = scmp.ne.s32.totalorder %s165, %s166
    %p178 = scmp.eq.s32.totalorder %s25, 1
    %p179 = por %p177, %p178
    %p181 = scmp.ne.s32.totalorder %s166, %s180
    %p182 = scmp.eq.s32.totalorder %s25, 0
    %p183 = por %p181, %p182
    %s185 = sadd.s32 %s184, 1
    %p188 = scmp.eq.s32.totalorder %s19, 1
    %p189 = scmp.ne.s32.totalorder %s184, %s186
    %p190 = scmp.eq.s32.totalorder %s19, 0
    %p191 = por %p189, %p190
    %p192 = scmp.ne.s32.totalorder %s184, %s186
    %p193 = scmp.eq.s32.totalorder %s24, 1
    %p194 = por %p192, %p193
    %p195 = scmp.ne.s32.totalorder %s186, %s187
    %p196 = scmp.eq.s32.totalorder %s24, 0
    %p197 = por %p195, %p196
    %p198 = scmp.ne.s32.totalorder %s186, %s187
    %p199 = scmp.eq.s32.totalorder %s25, 1
    %p200 = por %p198, %p199
    %p202 = scmp.ne.s32.totalorder %s187, %s201
    %p203 = scmp.eq.s32.totalorder %s25, 0
    %p204 = por %p202, %p203
    %s206 = sadd.s32 %s205, 1
    %p209 = scmp.eq.s32.totalorder %s19, 1
    %p210 = scmp.ne.s32.totalorder %s205, %s207
    %p211 = scmp.eq.s32.totalorder %s19, 0
    %p212 = por %p210, %p211
    %p213 = scmp.ne.s32.totalorder %s205, %s207
    %p214 = scmp.eq.s32.totalorder %s24, 1
    %p215 = por %p213, %p214
    %p216 = scmp.ne.s32.totalorder %s207, %s208
    %p217 = scmp.eq.s32.totalorder %s24, 0
    %p218 = por %p216, %p217
    %p219 = scmp.ne.s32.totalorder %s207, %s208
    %p220 = scmp.eq.s32.totalorder %s25, 1
    %p221 = por %p219, %p220
    %p223 = scmp.ne.s32.totalorder %s208, %s222
    %p224 = scmp.eq.s32.totalorder %s25, 0
    %p225 = por %p223, %p224
    %s227 = sadd.s32 %s226, 1
    %p230 = scmp.eq.s32.totalorder %s19, 1
    %p231 = scmp.ne.s32.totalorder %s226, %s228
    %p232 = scmp.eq.s32.totalorder %s19, 0
    %p233 = por %p231, %p232
    %p234 = scmp.ne.s32.totalorder %s226, %s228
    %p235 = scmp.eq.s32.totalorder %s24, 1
    %p236 = por %p234, %p235
    %p237 = scmp.ne.s32.totalorder %s228, %s229
    %p238 = scmp.eq.s32.totalorder %s24, 0
    %p239 = por %p237, %p238
    %p240 = scmp.ne.s32.totalorder %s228, %s229
    %p241 = scmp.eq.s32.totalorder %s25, 1
    %p242 = por %p240, %p241
    %p244 = scmp.ne.s32.totalorder %s229, %s243
    %p245 = scmp.eq.s32.totalorder %s25, 0
    %p246 = por %p244, %p245
    %s248 = sadd.s32 %s247, 1
    %p251 = scmp.eq.s32.totalorder %s19, 1
    %p252 = scmp.ne.s32.totalorder %s247, %s249
    %p253 = scmp.eq.s32.totalorder %s19, 0
    %p254 = por %p252, %p253
    %p255 = scmp.ne.s32.totalorder %s247, %s249
    %p256 = scmp.eq.s32.totalorder %s24, 1
    %p257 = por %p255, %p256
    %p258 = scmp.ne.s32.totalorder %s249, %s250
    %p259 = scmp.eq.s32.totalorder %s24, 0
    %p260 = por %p258, %p259
    %p261 = scmp.ne.s32.totalorder %s249, %s250
    %p262 = scmp.eq.s32.totalorder %s25, 1
    %p263 = por %p261, %p262
    %p265 = scmp.ne.s32.totalorder %s250, %s264
    %p266 = scmp.eq.s32.totalorder %s25, 0
    %p267 = por %p265, %p266
    %s269 = sadd.s32 %s268, 1
    %p272 = scmp.eq.s32.totalorder %s19, 1
    %p273 = scmp.ne.s32.totalorder %s268, %s270
    %p274 = scmp.eq.s32.totalorder %s19, 0
    %p275 = por %p273, %p274
    %p276 = scmp.ne.s32.totalorder %s268, %s270
    %p277 = scmp.eq.s32.totalorder %s24, 1
    %p278 = por %p276, %p277
    %p279 = scmp.ne.s32.totalorder %s270, %s271
    %p280 = scmp.eq.s32.totalorder %s24, 0
    %p281 = por %p279, %p280
    %p282 = scmp.ne.s32.totalorder %s270, %s271
    %p283 = scmp.eq.s32.totalorder %s25, 1
    %p284 = por %p282, %p283
    %p286 = scmp.ne.s32.totalorder %s271, %s285
    %p287 = scmp.eq.s32.totalorder %s25, 0
    %p288 = por %p286, %p287
    %s290 = sadd.s32 %s289, 1
    %p293 = scmp.eq.s32.totalorder %s19, 1
    %p294 = scmp.ne.s32.totalorder %s289, %s291
    %p295 = scmp.eq.s32.totalorder %s19, 0
    %p296 = por %p294, %p295
    %p297 = scmp.ne.s32.totalorder %s289, %s291
    %p298 = scmp.eq.s32.totalorder %s24, 1
    %p299 = por %p297, %p298
    %p300 = scmp.ne.s32.totalorder %s291, %s292
    %p301 = scmp.eq.s32.totalorder %s24, 0
    %p302 = por %p300, %p301
    %p303 = scmp.ne.s32.totalorder %s291, %s292
    %p304 = scmp.eq.s32.totalorder %s25, 1
    %p305 = por %p303, %p304
    %p307 = scmp.ne.s32.totalorder %s292, %s306
    %p308 = scmp.eq.s32.totalorder %s25, 0
    %p309 = por %p307, %p308
    %s310 = ssub.s32 %s19, %s26
    %p311 = scmp.eq.s32.totalorder %s310, 0
    %s313 = sadd.s32 %s312, 1
    %s314 = scalar_select %p311, %s312, %s313
    %p317 = pneg %p311
    %p318 = scmp.eq.s32.totalorder %s19, 1
    %p319 = por %p317, %p318
    %p320 = scmp.ne.s32.totalorder %s312, %s315
    %p321 = scmp.eq.s32.totalorder %s19, 0
    %p322 = por %p320, %p321
    %p323 = scmp.ne.s32.totalorder %s312, %s315
    %p324 = scmp.eq.s32.totalorder %s24, 1
    %p325 = por %p323, %p324
    %p326 = scmp.ne.s32.totalorder %s315, %s316
    %p327 = scmp.eq.s32.totalorder %s24, 0
    %p328 = por %p326, %p327
    %p329 = scmp.ne.s32.totalorder %s315, %s316
    %p330 = scmp.eq.s32.totalorder %s25, 1
    %p331 = por %p329, %p330
    %p333 = scmp.ne.s32.totalorder %s316, %s332
    %p334 = scmp.eq.s32.totalorder %s25, 0
    %p335 = por %p333, %p334
    %p336 = scmp.le.s32.totalorder 1, %s19
    %p337 = scmp.lt.s32.totalorder %s19, 3
    %p338 = pnand %p336, %p337
    %p339 = pneg %p338
    // Predicated region
    $region9: #{tpu_custom_call.1} parent=5 // pred_check
      _
    $region10: #{tpu_custom_call.1} parent=5 // pred_check_branch
      %341 = sbr.rel (%p338) target = $region12
    $region11: #{tpu_custom_call.1} parent=5 // pred_region
      %s342 = ssub.s32 %s19, 1
      // Predicated region
      $region13: #{tpu_custom_call.1} parent=11 // pred_check
        %p343 = pneg %p92
      $region14: #{tpu_custom_call.1} parent=11 // pred_check_branch
        %345 = sbr.rel (%p343) target = $region16
      $region15: #{tpu_custom_call.1} parent=11 // pred_region
        _
      $region16: #{tpu_custom_call.1} parent=11 // pred_fallthru
        _
      // Predicated region
      $region17: #{tpu_custom_call.1} parent=11 // pred_check
        %p346 = pneg %p113
      $region18: #{tpu_custom_call.1} parent=11 // pred_check_branch
        %348 = sbr.rel (%p346) target = $region20
      $region19: #{tpu_custom_call.1} parent=11 // pred_region
        _
      $region20: #{tpu_custom_call.1} parent=11 // pred_fallthru
        _
      // Predicated region
      $region21: #{tpu_custom_call.1} parent=11 // pred_check
        %p349 = pneg %p134
      $region22: #{tpu_custom_call.1} parent=11 // pred_check_branch
        %351 = sbr.rel (%p349) target = $region24
      $region23: #{tpu_custom_call.1} parent=11 // pred_region
        _
      $region24: #{tpu_custom_call.1} parent=11 // pred_fallthru
        _
      // Predicated region
      $region25: #{tpu_custom_call.1} parent=11 // pred_check
        %p352 = pneg %p155
      $region26: #{tpu_custom_call.1} parent=11 // pred_check_branch
        %354 = sbr.rel (%p352) target = $region28
      $region27: #{tpu_custom_call.1} parent=11 // pred_region
        _
      $region28: #{tpu_custom_call.1} parent=11 // pred_fallthru
        _
      // Predicated region
      $region29: #{tpu_custom_call.1} parent=11 // pred_check
        %p355 = pneg %p176
      $region30: #{tpu_custom_call.1} parent=11 // pred_check_branch
        %357 = sbr.rel (%p355) target = $region32
      $region31: #{tpu_custom_call.1} parent=11 // pred_region
        _
      $region32: #{tpu_custom_call.1} parent=11 // pred_fallthru
        _
      // Predicated region
      $region33: #{tpu_custom_call.1} parent=11 // pred_check
        %p358 = pneg %p197
      $region34: #{tpu_custom_call.1} parent=11 // pred_check_branch
        %360 = sbr.rel (%p358) target = $region36
      $region35: #{tpu_custom_call.1} parent=11 // pred_region
        _
      $region36: #{tpu_custom_call.1} parent=11 // pred_fallthru
        _
      // Predicated region
      $region37: #{tpu_custom_call.1} parent=11 // pred_check
        %p361 = pneg %p218
      $region38: #{tpu_custom_call.1} parent=11 // pred_check_branch
        %363 = sbr.rel (%p361) target = $region40
      $region39: #{tpu_custom_call.1} parent=11 // pred_region
        _
      $region40: #{tpu_custom_call.1} parent=11 // pred_fallthru
        _
      // Predicated region
      $region41: #{tpu_custom_call.1} parent=11 // pred_check
        %p364 = pneg %p239
      $region42: #{tpu_custom_call.1} parent=11 // pred_check_branch
        %366 = sbr.rel (%p364) target = $region44
      $region43: #{tpu_custom_call.1} parent=11 // pred_region
        _
      $region44: #{tpu_custom_call.1} parent=11 // pred_fallthru
        _
      // Predicated region
      $region45: #{tpu_custom_call.1} parent=11 // pred_check
        %p367 = pneg %p260
      $region46: #{tpu_custom_call.1} parent=11 // pred_check_branch
        %369 = sbr.rel (%p367) target = $region48
      $region47: #{tpu_custom_call.1} parent=11 // pred_region
        _
      $region48: #{tpu_custom_call.1} parent=11 // pred_fallthru
        _
      // Predicated region
      $region49: #{tpu_custom_call.1} parent=11 // pred_check
        %p370 = pneg %p281
      $region50: #{tpu_custom_call.1} parent=11 // pred_check_branch
        %372 = sbr.rel (%p370) target = $region52
      $region51: #{tpu_custom_call.1} parent=11 // pred_region
        _
      $region52: #{tpu_custom_call.1} parent=11 // pred_fallthru
        _
      // Predicated region
      $region53: #{tpu_custom_call.1} parent=11 // pred_check
        %p373 = pneg %p302
      $region54: #{tpu_custom_call.1} parent=11 // pred_check_branch
        %375 = sbr.rel (%p373) target = $region56
      $region55: #{tpu_custom_call.1} parent=11 // pred_region
        _
      $region56: #{tpu_custom_call.1} parent=11 // pred_fallthru
        _
    $region12: #{tpu_custom_call.1} parent=5 // pred_fallthru
      _
    %p376 = scmp.lt.s32.totalorder %s19, 2
    // Predicated region
    $region57: #{tpu_custom_call.1} parent=5 // pred_check
      %p377 = pneg %p376
    $region58: #{tpu_custom_call.1} parent=5 // pred_check_branch
      %379 = sbr.rel (%p377) target = $region60
    $region59: #{tpu_custom_call.1} parent=5 // pred_region
      // Predicated region
      $region61: #{tpu_custom_call.1} parent=59 // pred_check
        %p380 = pneg %p39
      $region62: #{tpu_custom_call.1} parent=59 // pred_check_branch
        %382 = sbr.rel (%p380) target = $region64
      $region63: #{tpu_custom_call.1} parent=59 // pred_region
        %s383 = smul.u32 32, %s19
        %p384 = scmp.lt.s32.totalorder %s383, 63
        %s385 = scalar_select %p384, %s383, 63
        %s386 = smul.addr %s385, 8
        %s387 = scalar_lea.vmem %s0, %s386
        %s388 = smul.u32 32, %s19
      $region64: #{tpu_custom_call.1} parent=59 // pred_fallthru
        _
      // Predicated region
      $region65: #{tpu_custom_call.1} parent=59 // pred_check
        %p389 = pneg %p65
      $region66: #{tpu_custom_call.1} parent=59 // pred_check_branch
        %391 = sbr.rel (%p389) target = $region68
      $region67: #{tpu_custom_call.1} parent=59 // pred_region
        %s392 = smul.u32 32, %s19
        %p393 = scmp.lt.s32.totalorder %s392, 63
        %s394 = scalar_select %p393, %s392, 63
        %s395 = smul.addr %s394, 8
        %s396 = scalar_lea.vmem %s1, %s395
        %s397 = smul.u32 32, %s19
      $region68: #{tpu_custom_call.1} parent=59 // pred_fallthru
        _
    $region60: #{tpu_custom_call.1} parent=5 // pred_fallthru
      _
    %p398 = scmp.le.s32.totalorder 1, %s19
    %p399 = scmp.lt.s32.totalorder %s19, 3
    %p400 = pnand %p398, %p399
    %p401 = pneg %p400
    // Predicated region
    $region69: #{tpu_custom_call.1} parent=5 // pred_check
      _
    $region70: #{tpu_custom_call.1} parent=5 // pred_check_branch
      %403 = sbr.rel (%p400) target = $region72
    $region71: #{tpu_custom_call.1} parent=5 // pred_region
      %s404 = ssub.s32 %s19, 1
      %s405 = smul.u32 32, %s24
      %p406 = scmp.lt.s32.totalorder %s405, 63
      %s407 = scalar_select %p406, %s405, 63
      %s408 = smul.addr %s407, 8
      %s409 = scalar_lea.vmem %s0, %s408
      %p410 = pneg %p45
      %p411 = pneg %p42
      %s412 = smul.u32 32, %s24
      %p413 = scmp.lt.s32.totalorder %s412, 63
      %s414 = scalar_select %p413, %s412, 63
      %s415 = smul.addr %s414, 8
      %s416 = scalar_lea.vmem %s1, %s415
      %p417 = pneg %p71
      %p418 = pneg %p68
      %p419 = pneg %p92
      %p420 = pneg %p89
      %p421 = pneg %p113
      %p422 = pneg %p110
      %p423 = pneg %p134
      %p424 = pneg %p131
      %p425 = pneg %p155
      %p426 = pneg %p152
      %p427 = pneg %p176
      %p428 = pneg %p173
      %p429 = pneg %p197
      %p430 = pneg %p194
      %p431 = pneg %p218
      %p432 = pneg %p215
      %p433 = pneg %p239
      %p434 = pneg %p236
      %p435 = pneg %p260
      %p436 = pneg %p257
      %p437 = pneg %p281
      %p438 = pneg %p278
      %p439 = pneg %p302
      %p440 = pneg %p299
      %p441 = pneg %p328
      %p442 = pneg %p325
      %s443 = smul.u32 32, %s24
      %p444 = scmp.lt.s32.totalorder %s443, 63
      %s445 = scalar_select %p444, %s443, 63
      %s446 = smul.addr %s445, 4
      %s447 = scalar_lea.vmem %s13, %s446
      %s448 = smul.u32 32, %s24
      %p449 = scmp.lt.s32.totalorder %s448, 63
      %s450 = scalar_select %p449, %s448, 63
      %s451 = smul.addr %s450, 8
      %s452 = scalar_lea.vmem %s0, %s451
      %s453 = smul.u32 32, %s24
      %s454 = smul.u32 32, %s24
      %p455 = scmp.lt.s32.totalorder %s454, 63
      %s456 = scalar_select %p455, %s454, 63
      %s457 = smul.addr %s456, 8
      %s458 = scalar_lea.vmem %s1, %s457
      %s459 = smul.u32 32, %s24
      %s460 = smul.u32 32, %s24
      %p461 = scmp.lt.s32.totalorder %s460, 63
      %s462 = scalar_select %p461, %s460, 63
      %s463 = smul.addr %s462, 4
      %s464 = scalar_lea.vmem %s13, %s463
      %s465 = smul.u32 32, %s24
      %v467 = vld [vmem:[%s452] sm:$0xff]
      %v468 = vld [vmem:[%s452 + $0x8] sm:$0xff]
      %v469 = vld [vmem:[%s452 + $0x10] sm:$0xff]
      %v470 = vld [vmem:[%s452 + $0x18] sm:$0xff]
      %v471 = vld [vmem:[%s452 + $0x20] sm:$0xff]
      %v472 = vld [vmem:[%s452 + $0x28] sm:$0xff]
      %v473 = vld [vmem:[%s452 + $0x30] sm:$0xff]
      %v474 = vld [vmem:[%s452 + $0x38] sm:$0xff]
      %v475 = vld [vmem:[%s452 + $0x40] sm:$0xff]
      %v476 = vld [vmem:[%s452 + $0x48] sm:$0xff]
      %v477 = vld [vmem:[%s452 + $0x50] sm:$0xff]
      %v478 = vld [vmem:[%s452 + $0x58] sm:$0xff]
      %v479 = vld [vmem:[%s452 + $0x60] sm:$0xff]
      %v480 = vld [vmem:[%s452 + $0x68] sm:$0xff]
      %v481 = vld [vmem:[%s452 + $0x70] sm:$0xff]
      %v482 = vld [vmem:[%s452 + $0x78] sm:$0xff]
      %v483 = vld [vmem:[%s452 + $0x80] sm:$0xff]
      %v484 = vld [vmem:[%s452 + $0x88] sm:$0xff]
      %v485 = vld [vmem:[%s452 + $0x90] sm:$0xff]
      %v486 = vld [vmem:[%s452 + $0x98] sm:$0xff]
      %v487 = vld [vmem:[%s452 + $0xa0] sm:$0xff]
      %v488 = vld [vmem:[%s452 + $0xa8] sm:$0xff]
      %v489 = vld [vmem:[%s452 + $0xb0] sm:$0xff]
      %v490 = vld [vmem:[%s452 + $0xb8] sm:$0xff]
      %v491 = vld [vmem:[%s452 + $0xc0] sm:$0xff]
      %v492 = vld [vmem:[%s452 + $0xc8] sm:$0xff]
      %v493 = vld [vmem:[%s452 + $0xd0] sm:$0xff]
      %v494 = vld [vmem:[%s452 + $0xd8] sm:$0xff]
      %v495 = vld [vmem:[%s452 + $0xe0] sm:$0xff]
      %v496 = vld [vmem:[%s452 + $0xe8] sm:$0xff]
      %v497 = vld [vmem:[%s452 + $0xf0] sm:$0xff]
      %v498 = vld [vmem:[%s452 + $0xf8] sm:$0xff]
      %v499 = vld [vmem:[%s458] sm:$0xff]
      %v500 = vld [vmem:[%s458 + $0x8] sm:$0xff]
      %v501 = vld [vmem:[%s458 + $0x10] sm:$0xff]
      %v502 = vld [vmem:[%s458 + $0x18] sm:$0xff]
      %v503 = vld [vmem:[%s458 + $0x20] sm:$0xff]
      %v504 = vld [vmem:[%s458 + $0x28] sm:$0xff]
      %v505 = vld [vmem:[%s458 + $0x30] sm:$0xff]
      %v506 = vld [vmem:[%s458 + $0x38] sm:$0xff]
      %v507 = vld [vmem:[%s458 + $0x40] sm:$0xff]
      %v508 = vld [vmem:[%s458 + $0x48] sm:$0xff]
      %v509 = vld [vmem:[%s458 + $0x50] sm:$0xff]
      %v510 = vld [vmem:[%s458 + $0x58] sm:$0xff]
      %v511 = vld [vmem:[%s458 + $0x60] sm:$0xff]
      %v512 = vld [vmem:[%s458 + $0x68] sm:$0xff]
      %v513 = vld [vmem:[%s458 + $0x70] sm:$0xff]
      %v514 = vld [vmem:[%s458 + $0x78] sm:$0xff]
      %v515 = vld [vmem:[%s458 + $0x80] sm:$0xff]
      %v516 = vld [vmem:[%s458 + $0x88] sm:$0xff]
      %v517 = vld [vmem:[%s458 + $0x90] sm:$0xff]
      %v518 = vld [vmem:[%s458 + $0x98] sm:$0xff]
      %v519 = vld [vmem:[%s458 + $0xa0] sm:$0xff]
      %v520 = vld [vmem:[%s458 + $0xa8] sm:$0xff]
      %v521 = vld [vmem:[%s458 + $0xb0] sm:$0xff]
      %v522 = vld [vmem:[%s458 + $0xb8] sm:$0xff]
      %v523 = vld [vmem:[%s458 + $0xc0] sm:$0xff]
      %v524 = vld [vmem:[%s458 + $0xc8] sm:$0xff]
      %v525 = vld [vmem:[%s458 + $0xd0] sm:$0xff]
      %v526 = vld [vmem:[%s458 + $0xd8] sm:$0xff]
      %v527 = vld [vmem:[%s458 + $0xe0] sm:$0xff]
      %v528 = vld [vmem:[%s458 + $0xe8] sm:$0xff]
      %v529 = vld [vmem:[%s458 + $0xf0] sm:$0xff]
      %v530 = vld [vmem:[%s458 + $0xf8] sm:$0xff]
      %v531 = vpack.c.bf16 %v500, %v499
      %v532 = vpack.c.bf16 %v502, %v501
      %v533 = vpack.c.bf16 %v504, %v503
      %v534 = vpack.c.bf16 %v506, %v505
      %v535 = vpack.c.bf16 %v508, %v507
      %v536 = vpack.c.bf16 %v510, %v509
      %v537 = vpack.c.bf16 %v512, %v511
      %v538 = vpack.c.bf16 %v514, %v513
      %v539 = vpack.c.bf16 %v516, %v515
      %v540 = vpack.c.bf16 %v518, %v517
      %v541 = vpack.c.bf16 %v520, %v519
      %v542 = vpack.c.bf16 %v522, %v521
      %v543 = vpack.c.bf16 %v524, %v523
      %v544 = vpack.c.bf16 %v526, %v525
      %v545 = vpack.c.bf16 %v528, %v527
      %v546 = vpack.c.bf16 %v530, %v529
      %v547 = vld [vmem:[%s5] sm:$0x7]
      %v548 = vld [vmem:[%s6] sm:$0x1]
      %v550 = vlaneseq
      %v551 = vshrl.u32 %v550, 7
      %v552 = vsub.s32 0, %v551
      %v553 = vrot.slane %v548, %v552
      %vm555 = vcmask 39936
      %v557 = vsel %vm555, %v531, 0
      %v560 = vsel %vm555, %v532, 0
      %v563 = vsel %vm555, %v533, 0
      %v566 = vsel %vm555, %v534, 0
      %v569 = vsel %vm555, %v535, 0
      %v572 = vsel %vm555, %v536, 0
      %v575 = vsel %vm555, %v537, 0
      %v578 = vsel %vm555, %v538, 0
      %v581 = vsel %vm555, %v539, 0
      %v584 = vsel %vm555, %v540, 0
      %v587 = vsel %vm555, %v541, 0
      %v590 = vsel %vm555, %v542, 0
      %v593 = vsel %vm555, %v543, 0
      %v596 = vsel %vm555, %v544, 0
      %v599 = vsel %vm555, %v545, 0
      %v602 = vsel %vm555, %v546, 0
      %vm604 = vcmask 1041408
      %vm605 = vcmask 1042432
      %v606 = vsel %vm604, 4294967295, 65535
      %v607 = vsel %vm605, %v606, 0
      %v609 = vand.u32 %v547, %v607
      %611 = vmatprep.subr.bf16.mxu0 0
      %612 = vmatpush1.bf16.msra.mxu0 0
      %613 = vmatprep.subr.bf16.mxu0 0
      %614 = vmatpush1.bf16.msra.mxu0 0
      %615 = vmatprep.subr.bf16.mxu0 0
      %616 = vmatpush1.bf16.msra.mxu0 0
      %617 = vmatprep.subr.bf16.mxu0 0
      %618 = vmatpush1.bf16.msra.mxu0 0
      %619 = vmatprep.subr.bf16.mxu0 0
      %620 = vmatpush1.bf16.msra.mxu0 0
      %621 = vmatprep.subr.bf16.mxu0 0
      %622 = vmatpush1.bf16.msra.mxu0 0
      %623 = vmatprep.subr.bf16.mxu0 0
      %624 = vmatpush1.bf16.msra.mxu0 0
      %625 = vmatprep.subr.bf16.mxu0 0
      %626 = vmatpush1.bf16.msra.mxu0 %v609
      %627 = vmatprep.subr.bf16.mxu0 0
      %628 = vmatpush2.bf16.msra.mxu0 0
      %629 = vmatprep.subr.bf16.mxu0 0
      %630 = vmatpush2.bf16.msra.mxu0 0
      %631 = vmatprep.subr.bf16.mxu0 0
      %632 = vmatpush2.bf16.msra.mxu0 0
      %633 = vmatprep.subr.bf16.mxu0 0
      %634 = vmatpush2.bf16.msra.mxu0 0
      %635 = vmatprep.subr.bf16.mxu0 0
      %636 = vmatpush2.bf16.msra.mxu0 0
      %637 = vmatprep.subr.bf16.mxu0 0
      %638 = vmatpush2.bf16.msra.mxu0 0
      %639 = vmatprep.subr.bf16.mxu0 0
      %640 = vmatpush2.bf16.msra.mxu0 0
      %641 = vmatprep.subr.bf16.mxu0 0
      %642 = vmatpush2.bf16.msra.mxu0 0
      %643 = vmatprep.mubr.bf16.mxu0 0
      %644 = vmatmul.mubr.bf16.gmra.mxu0 %v557
      %v645 = vpop.f32.mrf.mxu0
      %v646 = vadd.f32 %v553, %v645
      %v647 = vpop.f32.mrf.mxu0
      %v648 = vpop.f32.mrf.mxu0
      %v649 = vadd.f32 %v553, %v648
      %v650 = vpop.f32.mrf.mxu0
      %651 = vmatprep.mubr.bf16.mxu0 0
      %652 = vmatmul.mubr.bf16.gmra.mxu0 %v560
      %v653 = vpop.f32.mrf.mxu0
      %v654 = vadd.f32 %v553, %v653
      %v655 = vpop.f32.mrf.mxu0
      %v656 = vpop.f32.mrf.mxu0
      %v657 = vadd.f32 %v553, %v656
      %v658 = vpop.f32.mrf.mxu0
      %659 = vmatprep.mubr.bf16.mxu0 0
      %660 = vmatmul.mubr.bf16.gmra.mxu0 %v563
      %v661 = vpop.f32.mrf.mxu0
      %v662 = vadd.f32 %v553, %v661
      %v663 = vpop.f32.mrf.mxu0
      %v664 = vpop.f32.mrf.mxu0
      %v665 = vadd.f32 %v553, %v664
      %v666 = vpop.f32.mrf.mxu0
      %667 = vmatprep.mubr.bf16.mxu0 0
      %668 = vmatmul.mubr.bf16.gmra.mxu0 %v566
      %v669 = vpop.f32.mrf.mxu0
      %v670 = vadd.f32 %v553, %v669
      %v671 = vpop.f32.mrf.mxu0
      %v672 = vpop.f32.mrf.mxu0
      %v673 = vadd.f32 %v553, %v672
      %v674 = vpop.f32.mrf.mxu0
      %675 = vmatprep.mubr.bf16.mxu0 0
      %676 = vmatmul.mubr.bf16.gmra.mxu0 %v569
      %v677 = vpop.f32.mrf.mxu0
      %v678 = vadd.f32 %v553, %v677
      %v679 = vpop.f32.mrf.mxu0
      %v680 = vpop.f32.mrf.mxu0
      %v681 = vadd.f32 %v553, %v680
      %v682 = vpop.f32.mrf.mxu0
      %683 = vmatprep.mubr.bf16.mxu0 0
      %684 = vmatmul.mubr.bf16.gmra.mxu0 %v572
      %v685 = vpop.f32.mrf.mxu0
      %v686 = vadd.f32 %v553, %v685
      %v687 = vpop.f32.mrf.mxu0
      %v688 = vpop.f32.mrf.mxu0
      %v689 = vadd.f32 %v553, %v688
      %v690 = vpop.f32.mrf.mxu0
      %691 = vmatprep.mubr.bf16.mxu0 0
      %692 = vmatmul.mubr.bf16.gmra.mxu0 %v575
      %v693 = vpop.f32.mrf.mxu0
      %v694 = vadd.f32 %v553, %v693
      %v695 = vpop.f32.mrf.mxu0
      %v696 = vpop.f32.mrf.mxu0
      %v697 = vadd.f32 %v553, %v696
      %v698 = vpop.f32.mrf.mxu0
      %699 = vmatprep.mubr.bf16.mxu0 0
      %700 = vmatmul.mubr.bf16.gmra.mxu0 %v578
      %v701 = vpop.f32.mrf.mxu0
      %v702 = vadd.f32 %v553, %v701
      %v703 = vpop.f32.mrf.mxu0
      %v704 = vpop.f32.mrf.mxu0
      %v705 = vadd.f32 %v553, %v704
      %v706 = vpop.f32.mrf.mxu0
      %707 = vmatprep.mubr.bf16.mxu0 0
      %708 = vmatmul.mubr.bf16.gmra.mxu0 %v581
      %v709 = vpop.f32.mrf.mxu0
      %v710 = vadd.f32 %v553, %v709
      %v711 = vpop.f32.mrf.mxu0
      %v712 = vpop.f32.mrf.mxu0
      %v713 = vadd.f32 %v553, %v712
      %v714 = vpop.f32.mrf.mxu0
      %715 = vmatprep.mubr.bf16.mxu0 0
      %716 = vmatmul.mubr.bf16.gmra.mxu0 %v584
      %v717 = vpop.f32.mrf.mxu0
      %v718 = vadd.f32 %v553, %v717
      %v719 = vpop.f32.mrf.mxu0
      %v720 = vpop.f32.mrf.mxu0
      %v721 = vadd.f32 %v553, %v720
      %v722 = vpop.f32.mrf.mxu0
      %723 = vmatprep.mubr.bf16.mxu0 0
      %724 = vmatmul.mubr.bf16.gmra.mxu0 %v587
      %v725 = vpop.f32.mrf.mxu0
      %v726 = vadd.f32 %v553, %v725
      %v727 = vpop.f32.mrf.mxu0
      %v728 = vpop.f32.mrf.mxu0
      %v729 = vadd.f32 %v553, %v728
      %v730 = vpop.f32.mrf.mxu0
      %731 = vmatprep.mubr.bf16.mxu0 0
      %732 = vmatmul.mubr.bf16.gmra.mxu0 %v590
      %v733 = vpop.f32.mrf.mxu0
      %v734 = vadd.f32 %v553, %v733
      %v735 = vpop.f32.mrf.mxu0
      %v736 = vpop.f32.mrf.mxu0
      %v737 = vadd.f32 %v553, %v736
      %v738 = vpop.f32.mrf.mxu0
      %739 = vmatprep.mubr.bf16.mxu0 0
      %740 = vmatmul.mubr.bf16.gmra.mxu0 %v593
      %v741 = vpop.f32.mrf.mxu0
      %v742 = vadd.f32 %v553, %v741
      %v743 = vpop.f32.mrf.mxu0
      %v744 = vpop.f32.mrf.mxu0
      %v745 = vadd.f32 %v553, %v744
      %v746 = vpop.f32.mrf.mxu0
      %747 = vmatprep.mubr.bf16.mxu0 0
      %748 = vmatmul.mubr.bf16.gmra.mxu0 %v596
      %v749 = vpop.f32.mrf.mxu0
      %v750 = vadd.f32 %v553, %v749
      %v751 = vpop.f32.mrf.mxu0
      %v752 = vpop.f32.mrf.mxu0
      %v753 = vadd.f32 %v553, %v752
      %v754 = vpop.f32.mrf.mxu0
      %755 = vmatprep.mubr.bf16.mxu0 0
      %756 = vmatmul.mubr.bf16.gmra.mxu0 %v599
      %v757 = vpop.f32.mrf.mxu0
      %v758 = vadd.f32 %v553, %v757
      %v759 = vpop.f32.mrf.mxu0
      %v760 = vpop.f32.mrf.mxu0
      %v761 = vadd.f32 %v553, %v760
      %v762 = vpop.f32.mrf.mxu0
      %763 = vmatprep.mubr.bf16.mxu0 0
      %764 = vmatmul.mubr.bf16.gmra.mxu0 %v602
      %v765 = vpop.f32.mrf.mxu0
      %v766 = vadd.f32 %v553, %v765
      %v767 = vpop.f32.mrf.mxu0
      %v768 = vpop.f32.mrf.mxu0
      %v769 = vadd.f32 %v553, %v768
      %v770 = vpop.f32.mrf.mxu0
      %771 = vdwg.mxu0
      %v772 = vlaneseq
      %v773 = vand.u32 %v772, 127
      %774 = vset.pattern.permute.xlu0 0
      %775 = vperm.xlu0 %774, %v467
      %v776 = vpop.permute.xlu0 %775
      %777 = vset.pattern.permute.xlu0 0
      %778 = vperm.xlu0 %777, %v468
      %v779 = vpop.permute.xlu0 %778
      %780 = vset.pattern.permute.xlu0 0
      %781 = vperm.xlu0 %780, %v469
      %v782 = vpop.permute.xlu0 %781
      %783 = vset.pattern.permute.xlu0 0
      %784 = vperm.xlu0 %783, %v470
      %v785 = vpop.permute.xlu0 %784
      %786 = vset.pattern.permute.xlu0 0
      %787 = vperm.xlu0 %786, %v471
      %v788 = vpop.permute.xlu0 %787
      %789 = vset.pattern.permute.xlu0 0
      %790 = vperm.xlu0 %789, %v472
      %v791 = vpop.permute.xlu0 %790
      %792 = vset.pattern.permute.xlu0 0
      %793 = vperm.xlu0 %792, %v473
      %v794 = vpop.permute.xlu0 %793
      %795 = vset.pattern.permute.xlu0 0
      %796 = vperm.xlu0 %795, %v474
      %v797 = vpop.permute.xlu0 %796
      %798 = vset.pattern.permute.xlu0 0
      %799 = vperm.xlu0 %798, %v475
      %v800 = vpop.permute.xlu0 %799
      %801 = vset.pattern.permute.xlu0 0
      %802 = vperm.xlu0 %801, %v476
      %v803 = vpop.permute.xlu0 %802
      %804 = vset.pattern.permute.xlu0 0
      %805 = vperm.xlu0 %804, %v477
      %v806 = vpop.permute.xlu0 %805
      %807 = vset.pattern.permute.xlu0 0
      %808 = vperm.xlu0 %807, %v478
      %v809 = vpop.permute.xlu0 %808
      %810 = vset.pattern.permute.xlu0 0
      %811 = vperm.xlu0 %810, %v479
      %v812 = vpop.permute.xlu0 %811
      %813 = vset.pattern.permute.xlu0 0
      %814 = vperm.xlu0 %813, %v480
      %v815 = vpop.permute.xlu0 %814
      %816 = vset.pattern.permute.xlu0 0
      %817 = vperm.xlu0 %816, %v481
      %v818 = vpop.permute.xlu0 %817
      %819 = vset.pattern.permute.xlu0 0
      %820 = vperm.xlu0 %819, %v482
      %v821 = vpop.permute.xlu0 %820
      %822 = vset.pattern.permute.xlu0 0
      %823 = vperm.xlu0 %822, %v483
      %v824 = vpop.permute.xlu0 %823
      %825 = vset.pattern.permute.xlu0 0
      %826 = vperm.xlu0 %825, %v484
      %v827 = vpop.permute.xlu0 %826
      %828 = vset.pattern.permute.xlu0 0
      %829 = vperm.xlu0 %828, %v485
      %v830 = vpop.permute.xlu0 %829
      %831 = vset.pattern.permute.xlu0 0
      %832 = vperm.xlu0 %831, %v486
      %v833 = vpop.permute.xlu0 %832
      %834 = vset.pattern.permute.xlu0 0
      %835 = vperm.xlu0 %834, %v487
      %v836 = vpop.permute.xlu0 %835
      %837 = vset.pattern.permute.xlu0 0
      %838 = vperm.xlu0 %837, %v488
      %v839 = vpop.permute.xlu0 %838
      %840 = vset.pattern.permute.xlu0 0
      %841 = vperm.xlu0 %840, %v489
      %v842 = vpop.permute.xlu0 %841
      %843 = vset.pattern.permute.xlu0 0
      %844 = vperm.xlu0 %843, %v490
      %v845 = vpop.permute.xlu0 %844
      %846 = vset.pattern.permute.xlu0 0
      %847 = vperm.xlu0 %846, %v491
      %v848 = vpop.permute.xlu0 %847
      %849 = vset.pattern.permute.xlu0 0
      %850 = vperm.xlu0 %849, %v492
      %v851 = vpop.permute.xlu0 %850
      %852 = vset.pattern.permute.xlu0 0
      %853 = vperm.xlu0 %852, %v493
      %v854 = vpop.permute.xlu0 %853
      %855 = vset.pattern.permute.xlu0 0
      %856 = vperm.xlu0 %855, %v494
      %v857 = vpop.permute.xlu0 %856
      %858 = vset.pattern.permute.xlu0 0
      %859 = vperm.xlu0 %858, %v495
      %v860 = vpop.permute.xlu0 %859
      %861 = vset.pattern.permute.xlu0 0
      %862 = vperm.xlu0 %861, %v496
      %v863 = vpop.permute.xlu0 %862
      %864 = vset.pattern.permute.xlu0 0
      %865 = vperm.xlu0 %864, %v497
      %v866 = vpop.permute.xlu0 %865
      %867 = vset.pattern.permute.xlu0 0
      %868 = vperm.xlu0 %867, %v498
      %v869 = vpop.permute.xlu0 %868
      %vm870 = vcmp.eq.s32.totalorder %v776, %v773
      %vm871 = vcmp.eq.s32.totalorder %v779, %v773
      %vm872 = vcmp.eq.s32.totalorder %v782, %v773
      %vm873 = vcmp.eq.s32.totalorder %v785, %v773
      %vm874 = vcmp.eq.s32.totalorder %v788, %v773
      %vm875 = vcmp.eq.s32.totalorder %v791, %v773
      %vm876 = vcmp.eq.s32.totalorder %v794, %v773
      %vm877 = vcmp.eq.s32.totalorder %v797, %v773
      %vm878 = vcmp.eq.s32.totalorder %v800, %v773
      %vm879 = vcmp.eq.s32.totalorder %v803, %v773
      %vm880 = vcmp.eq.s32.totalorder %v806, %v773
      %vm881 = vcmp.eq.s32.totalorder %v809, %v773
      %vm882 = vcmp.eq.s32.totalorder %v812, %v773
      %vm883 = vcmp.eq.s32.totalorder %v815, %v773
      %vm884 = vcmp.eq.s32.totalorder %v818, %v773
      %vm885 = vcmp.eq.s32.totalorder %v821, %v773
      %vm886 = vcmp.eq.s32.totalorder %v824, %v773
      %vm887 = vcmp.eq.s32.totalorder %v827, %v773
      %vm888 = vcmp.eq.s32.totalorder %v830, %v773
      %vm889 = vcmp.eq.s32.totalorder %v833, %v773
      %vm890 = vcmp.eq.s32.totalorder %v836, %v773
      %vm891 = vcmp.eq.s32.totalorder %v839, %v773
      %vm892 = vcmp.eq.s32.totalorder %v842, %v773
      %vm893 = vcmp.eq.s32.totalorder %v845, %v773
      %vm894 = vcmp.eq.s32.totalorder %v848, %v773
      %vm895 = vcmp.eq.s32.totalorder %v851, %v773
      %vm896 = vcmp.eq.s32.totalorder %v854, %v773
      %vm897 = vcmp.eq.s32.totalorder %v857, %v773
      %vm898 = vcmp.eq.s32.totalorder %v860, %v773
      %vm899 = vcmp.eq.s32.totalorder %v863, %v773
      %vm900 = vcmp.eq.s32.totalorder %v866, %v773
      %vm901 = vcmp.eq.s32.totalorder %v869, %v773
      %v902 = vsel %vm870, 1, 0
      %v903 = vsel %vm871, 1, 0
      %v904 = vsel %vm872, 1, 0
      %v905 = vsel %vm873, 1, 0
      %v906 = vsel %vm874, 1, 0
      %v907 = vsel %vm875, 1, 0
      %v908 = vsel %vm876, 1, 0
      %v909 = vsel %vm877, 1, 0
      %v910 = vsel %vm878, 1, 0
      %v911 = vsel %vm879, 1, 0
      %v912 = vsel %vm880, 1, 0
      %v913 = vsel %vm881, 1, 0
      %v914 = vsel %vm882, 1, 0
      %v915 = vsel %vm883, 1, 0
      %v916 = vsel %vm884, 1, 0
      %v917 = vsel %vm885, 1, 0
      %v918 = vsel %vm886, 1, 0
      %v919 = vsel %vm887, 1, 0
      %v920 = vsel %vm888, 1, 0
      %v921 = vsel %vm889, 1, 0
      %v922 = vsel %vm890, 1, 0
      %v923 = vsel %vm891, 1, 0
      %v924 = vsel %vm892, 1, 0
      %v925 = vsel %vm893, 1, 0
      %v926 = vsel %vm894, 1, 0
      %v927 = vsel %vm895, 1, 0
      %v928 = vsel %vm896, 1, 0
      %v929 = vsel %vm897, 1, 0
      %v930 = vsel %vm898, 1, 0
      %v931 = vsel %vm899, 1, 0
      %v932 = vsel %vm900, 1, 0
      %v933 = vsel %vm901, 1, 0
      %v934 = vcvt.s32.f32 %v902
      %v935 = vcvt.s32.f32 %v903
      %v936 = vcvt.s32.f32 %v904
      %v937 = vcvt.s32.f32 %v905
      %v938 = vcvt.s32.f32 %v906
      %v939 = vcvt.s32.f32 %v907
      %v940 = vcvt.s32.f32 %v908
      %v941 = vcvt.s32.f32 %v909
      %v942 = vcvt.s32.f32 %v910
      %v943 = vcvt.s32.f32 %v911
      %v944 = vcvt.s32.f32 %v912
      %v945 = vcvt.s32.f32 %v913
      %v946 = vcvt.s32.f32 %v914
      %v947 = vcvt.s32.f32 %v915
      %v948 = vcvt.s32.f32 %v916
      %v949 = vcvt.s32.f32 %v917
      %v950 = vcvt.s32.f32 %v918
      %v951 = vcvt.s32.f32 %v919
      %v952 = vcvt.s32.f32 %v920
      %v953 = vcvt.s32.f32 %v921
      %v954 = vcvt.s32.f32 %v922
      %v955 = vcvt.s32.f32 %v923
      %v956 = vcvt.s32.f32 %v924
      %v957 = vcvt.s32.f32 %v925
      %v958 = vcvt.s32.f32 %v926
      %v959 = vcvt.s32.f32 %v927
      %v960 = vcvt.s32.f32 %v928
      %v961 = vcvt.s32.f32 %v929
      %v962 = vcvt.s32.f32 %v930
      %v963 = vcvt.s32.f32 %v931
      %v964 = vcvt.s32.f32 %v932
      %v965 = vcvt.s32.f32 %v933
      %v966 = vpack.c.bf16 %v935, %v934
      %v967 = vpack.c.bf16 %v937, %v936
      %v968 = vpack.c.bf16 %v939, %v938
      %v969 = vpack.c.bf16 %v941, %v940
      %v970 = vpack.c.bf16 %v943, %v942
      %v971 = vpack.c.bf16 %v945, %v944
      %v972 = vpack.c.bf16 %v947, %v946
      %v973 = vpack.c.bf16 %v949, %v948
      %v974 = vpack.c.bf16 %v951, %v950
      %v975 = vpack.c.bf16 %v953, %v952
      %v976 = vpack.c.bf16 %v955, %v954
      %v977 = vpack.c.bf16 %v957, %v956
      %v978 = vpack.c.bf16 %v959, %v958
      %v979 = vpack.c.bf16 %v961, %v960
      %v980 = vpack.c.bf16 %v963, %v962
      %v981 = vpack.c.bf16 %v965, %v964
      %v982 = vld [vmem:[%s2] sm:$0xf]
      %v983 = vld [vmem:[%s2 + $0x4] sm:$0xf]
      %v984 = vld [vmem:[%s2 + $0x8] sm:$0xf]
      %v985 = vld [vmem:[%s2 + $0xc] sm:$0xf]
      %v986 = vld [vmem:[%s2 + $0x10] sm:$0xf]
      %v992 = vunpack.c.l.b16 %v982
      %v993 = vunpack.c.l.b16 %v983
      %v994 = vunpack.c.l.b16 %v984
      %v995 = vunpack.c.l.b16 %v985
      %v996 = vunpack.c.l.b16 %v986
      %v997 = vpack.c.b16 %v993, %v992
      %v998 = vpack.c.b16 %v995, %v994
      %v999 = vpack.c.b16 %v996, %v996
      %vm1002 = vcmask 326656
      %v1004 = vsel %vm1002, %v966, 0
      %v1007 = vsel %vm1002, %v967, 0
      %v1010 = vsel %vm1002, %v968, 0
      %v1013 = vsel %vm1002, %v969, 0
      %v1016 = vsel %vm1002, %v970, 0
      %v1019 = vsel %vm1002, %v971, 0
      %v1022 = vsel %vm1002, %v972, 0
      %v1025 = vsel %vm1002, %v973, 0
      %v1028 = vsel %vm1002, %v974, 0
      %v1031 = vsel %vm1002, %v975, 0
      %v1034 = vsel %vm1002, %v976, 0
      %v1037 = vsel %vm1002, %v977, 0
      %v1040 = vsel %vm1002, %v978, 0
      %v1043 = vsel %vm1002, %v979, 0
      %v1046 = vsel %vm1002, %v980, 0
      %v1049 = vsel %vm1002, %v981, 0
      %vm1051 = vcmask 1043456
      %v1053 = vsel %vm1051, %v999, 0
      %1055 = vmatprep.subr.bf16.mxu0 0
      %1056 = vmatpush1.bf16.msra.mxu0 0
      %1057 = vmatprep.subr.bf16.mxu0 0
      %1058 = vmatpush1.bf16.msra.mxu0 0
      %1059 = vmatprep.subr.bf16.mxu0 0
      %1060 = vmatpush1.bf16.msra.mxu0 0
      %1061 = vmatprep.subr.bf16.mxu0 0
      %1062 = vmatpush1.bf16.msra.mxu0 0
      %1063 = vmatprep.subr.bf16.mxu0 0
      %1064 = vmatpush1.bf16.msra.mxu0 0
      %1065 = vmatprep.subr.bf16.mxu0 0
      %1066 = vmatpush1.bf16.msra.mxu0 %v1053
      %1067 = vmatprep.subr.bf16.mxu0 0
      %1068 = vmatpush1.bf16.msra.mxu0 %v998
      %1069 = vmatprep.subr.bf16.mxu0 0
      %1070 = vmatpush1.bf16.msra.mxu0 %v997
      %1071 = vmatprep.subr.bf16.mxu0 0
      %1072 = vmatpush2.bf16.msra.mxu0 0
      %1073 = vmatprep.subr.bf16.mxu0 0
      %1074 = vmatpush2.bf16.msra.mxu0 0
      %1075 = vmatprep.subr.bf16.mxu0 0
      %1076 = vmatpush2.bf16.msra.mxu0 0
      %1077 = vmatprep.subr.bf16.mxu0 0
      %1078 = vmatpush2.bf16.msra.mxu0 0
      %1079 = vmatprep.subr.bf16.mxu0 0
      %1080 = vmatpush2.bf16.msra.mxu0 0
      %1081 = vmatprep.subr.bf16.mxu0 0
      %1082 = vmatpush2.bf16.msra.mxu0 0
      %1083 = vmatprep.subr.bf16.mxu0 0
      %1084 = vmatpush2.bf16.msra.mxu0 0
      %1085 = vmatprep.subr.bf16.mxu0 0
      %1086 = vmatpush2.bf16.msra.mxu0 0
      %1087 = vmatprep.mubr.bf16.mxu0 0
      %1088 = vmatmul.mubr.bf16.gmra.mxu0 %v1004
      %v1089 = vpop.f32.mrf.mxu0
      %v1090 = vadd.f32 0.0, %v1089
      %v1091 = vpop.f32.mrf.mxu0
      %v1092 = vpop.f32.mrf.mxu0
      %v1093 = vadd.f32 0.0, %v1092
      %v1094 = vpop.f32.mrf.mxu0
      %1095 = vmatprep.mubr.bf16.mxu0 0
      %1096 = vmatmul.mubr.bf16.gmra.mxu0 %v1007
      %v1097 = vpop.f32.mrf.mxu0
      %v1098 = vadd.f32 0.0, %v1097
      %v1099 = vpop.f32.mrf.mxu0
      %v1100 = vpop.f32.mrf.mxu0
      %v1101 = vadd.f32 0.0, %v1100
      %v1102 = vpop.f32.mrf.mxu0
      %1103 = vmatprep.mubr.bf16.mxu0 0
      %1104 = vmatmul.mubr.bf16.gmra.mxu0 %v1010
      %v1105 = vpop.f32.mrf.mxu0
      %v1106 = vadd.f32 0.0, %v1105
      %v1107 = vpop.f32.mrf.mxu0
      %v1108 = vpop.f32.mrf.mxu0
      %v1109 = vadd.f32 0.0, %v1108
      %v1110 = vpop.f32.mrf.mxu0
      %1111 = vmatprep.mubr.bf16.mxu0 0
      %1112 = vmatmul.mubr.bf16.gmra.mxu0 %v1013
      %v1113 = vpop.f32.mrf.mxu0
      %v1114 = vadd.f32 0.0, %v1113
      %v1115 = vpop.f32.mrf.mxu0
      %v1116 = vpop.f32.mrf.mxu0
      %v1117 = vadd.f32 0.0, %v1116
      %v1118 = vpop.f32.mrf.mxu0
      %1119 = vmatprep.mubr.bf16.mxu0 0
      %1120 = vmatmul.mubr.bf16.gmra.mxu0 %v1016
      %v1121 = vpop.f32.mrf.mxu0
      %v1122 = vadd.f32 0.0, %v1121
      %v1123 = vpop.f32.mrf.mxu0
      %v1124 = vpop.f32.mrf.mxu0
      %v1125 = vadd.f32 0.0, %v1124
      %v1126 = vpop.f32.mrf.mxu0
      %1127 = vmatprep.mubr.bf16.mxu0 0
      %1128 = vmatmul.mubr.bf16.gmra.mxu0 %v1019
      %v1129 = vpop.f32.mrf.mxu0
      %v1130 = vadd.f32 0.0, %v1129
      %v1131 = vpop.f32.mrf.mxu0
      %v1132 = vpop.f32.mrf.mxu0
      %v1133 = vadd.f32 0.0, %v1132
      %v1134 = vpop.f32.mrf.mxu0
      %1135 = vmatprep.mubr.bf16.mxu0 0
      %1136 = vmatmul.mubr.bf16.gmra.mxu0 %v1022
      %v1137 = vpop.f32.mrf.mxu0
      %v1138 = vadd.f32 0.0, %v1137
      %v1139 = vpop.f32.mrf.mxu0
      %v1140 = vpop.f32.mrf.mxu0
      %v1141 = vadd.f32 0.0, %v1140
      %v1142 = vpop.f32.mrf.mxu0
      %1143 = vmatprep.mubr.bf16.mxu0 0
      %1144 = vmatmul.mubr.bf16.gmra.mxu0 %v1025
      %v1145 = vpop.f32.mrf.mxu0
      %v1146 = vadd.f32 0.0, %v1145
      %v1147 = vpop.f32.mrf.mxu0
      %v1148 = vpop.f32.mrf.mxu0
      %v1149 = vadd.f32 0.0, %v1148
      %v1150 = vpop.f32.mrf.mxu0
      %1151 = vmatprep.mubr.bf16.mxu0 0
      %1152 = vmatmul.mubr.bf16.gmra.mxu0 %v1028
      %v1153 = vpop.f32.mrf.mxu0
      %v1154 = vadd.f32 0.0, %v1153
      %v1155 = vpop.f32.mrf.mxu0
      %v1156 = vpop.f32.mrf.mxu0
      %v1157 = vadd.f32 0.0, %v1156
      %v1158 = vpop.f32.mrf.mxu0
      %1159 = vmatprep.mubr.bf16.mxu0 0
      %1160 = vmatmul.mubr.bf16.gmra.mxu0 %v1031
      %v1161 = vpop.f32.mrf.mxu0
      %v1162 = vadd.f32 0.0, %v1161
      %v1163 = vpop.f32.mrf.mxu0
      %v1164 = vpop.f32.mrf.mxu0
      %v1165 = vadd.f32 0.0, %v1164
      %v1166 = vpop.f32.mrf.mxu0
      %1167 = vmatprep.mubr.bf16.mxu0 0
      %1168 = vmatmul.mubr.bf16.gmra.mxu0 %v1034
      %v1169 = vpop.f32.mrf.mxu0
      %v1170 = vadd.f32 0.0, %v1169
      %v1171 = vpop.f32.mrf.mxu0
      %v1172 = vpop.f32.mrf.mxu0
      %v1173 = vadd.f32 0.0, %v1172
      %v1174 = vpop.f32.mrf.mxu0
      %1175 = vmatprep.mubr.bf16.mxu0 0
      %1176 = vmatmul.mubr.bf16.gmra.mxu0 %v1037
      %v1177 = vpop.f32.mrf.mxu0
      %v1178 = vadd.f32 0.0, %v1177
      %v1179 = vpop.f32.mrf.mxu0
      %v1180 = vpop.f32.mrf.mxu0
      %v1181 = vadd.f32 0.0, %v1180
      %v1182 = vpop.f32.mrf.mxu0
      %1183 = vmatprep.mubr.bf16.mxu0 0
      %1184 = vmatmul.mubr.bf16.gmra.mxu0 %v1040
      %v1185 = vpop.f32.mrf.mxu0
      %v1186 = vadd.f32 0.0, %v1185
      %v1187 = vpop.f32.mrf.mxu0
      %v1188 = vpop.f32.mrf.mxu0
      %v1189 = vadd.f32 0.0, %v1188
      %v1190 = vpop.f32.mrf.mxu0
      %1191 = vmatprep.mubr.bf16.mxu0 0
      %1192 = vmatmul.mubr.bf16.gmra.mxu0 %v1043
      %v1193 = vpop.f32.mrf.mxu0
      %v1194 = vadd.f32 0.0, %v1193
      %v1195 = vpop.f32.mrf.mxu0
      %v1196 = vpop.f32.mrf.mxu0
      %v1197 = vadd.f32 0.0, %v1196
      %v1198 = vpop.f32.mrf.mxu0
      %1199 = vmatprep.mubr.bf16.mxu0 0
      %1200 = vmatmul.mubr.bf16.gmra.mxu0 %v1046
      %v1201 = vpop.f32.mrf.mxu0
      %v1202 = vadd.f32 0.0, %v1201
      %v1203 = vpop.f32.mrf.mxu0
      %v1204 = vpop.f32.mrf.mxu0
      %v1205 = vadd.f32 0.0, %v1204
      %v1206 = vpop.f32.mrf.mxu0
      %1207 = vmatprep.mubr.bf16.mxu0 0
      %1208 = vmatmul.mubr.bf16.gmra.mxu0 %v1049
      %v1209 = vpop.f32.mrf.mxu0
      %v1210 = vadd.f32 0.0, %v1209
      %v1211 = vpop.f32.mrf.mxu0
      %v1212 = vpop.f32.mrf.mxu0
      %v1213 = vadd.f32 0.0, %v1212
      %v1214 = vpop.f32.mrf.mxu0
      %1215 = vdwg.mxu0
      %v1216 = vadd.f32 %v646, %v1090
      %v1217 = vadd.f32 %v649, %v1093
      %v1218 = vadd.f32 %v654, %v1098
      %v1219 = vadd.f32 %v657, %v1101
      %v1220 = vadd.f32 %v662, %v1106
      %v1221 = vadd.f32 %v665, %v1109
      %v1222 = vadd.f32 %v670, %v1114
      %v1223 = vadd.f32 %v673, %v1117
      %v1224 = vadd.f32 %v678, %v1122
      %v1225 = vadd.f32 %v681, %v1125
      %v1226 = vadd.f32 %v686, %v1130
      %v1227 = vadd.f32 %v689, %v1133
      %v1228 = vadd.f32 %v694, %v1138
      %v1229 = vadd.f32 %v697, %v1141
      %v1230 = vadd.f32 %v702, %v1146
      %v1231 = vadd.f32 %v705, %v1149
      %v1232 = vadd.f32 %v710, %v1154
      %v1233 = vadd.f32 %v713, %v1157
      %v1234 = vadd.f32 %v718, %v1162
      %v1235 = vadd.f32 %v721, %v1165
      %v1236 = vadd.f32 %v726, %v1170
      %v1237 = vadd.f32 %v729, %v1173
      %v1238 = vadd.f32 %v734, %v1178
      %v1239 = vadd.f32 %v737, %v1181
      %v1240 = vadd.f32 %v742, %v1186
      %v1241 = vadd.f32 %v745, %v1189
      %v1242 = vadd.f32 %v750, %v1194
      %v1243 = vadd.f32 %v753, %v1197
      %v1244 = vadd.f32 %v758, %v1202
      %v1245 = vadd.f32 %v761, %v1205
      %v1246 = vadd.f32 %v766, %v1210
      %v1247 = vadd.f32 %v769, %v1213
      %1248 = vset.pattern.permute.xlu0 1
      %1249 = vperm.xlu0 %1248, %v467
      %v1250 = vpop.permute.xlu0 %1249
      %1251 = vset.pattern.permute.xlu0 1
      %1252 = vperm.xlu0 %1251, %v468
      %v1253 = vpop.permute.xlu0 %1252
      %1254 = vset.pattern.permute.xlu0 1
      %1255 = vperm.xlu0 %1254, %v469
      %v1256 = vpop.permute.xlu0 %1255
      %1257 = vset.pattern.permute.xlu0 1
      %1258 = vperm.xlu0 %1257, %v470
      %v1259 = vpop.permute.xlu0 %1258
      %1260 = vset.pattern.permute.xlu0 1
      %1261 = vperm.xlu0 %1260, %v471
      %v1262 = vpop.permute.xlu0 %1261
      %1263 = vset.pattern.permute.xlu0 1
      %1264 = vperm.xlu0 %1263, %v472
      %v1265 = vpop.permute.xlu0 %1264
      %1266 = vset.pattern.permute.xlu0 1
      %1267 = vperm.xlu0 %1266, %v473
      %v1268 = vpop.permute.xlu0 %1267
      %1269 = vset.pattern.permute.xlu0 1
      %1270 = vperm.xlu0 %1269, %v474
      %v1271 = vpop.permute.xlu0 %1270
      %1272 = vset.pattern.permute.xlu0 1
      %1273 = vperm.xlu0 %1272, %v475
      %v1274 = vpop.permute.xlu0 %1273
      %1275 = vset.pattern.permute.xlu0 1
      %1276 = vperm.xlu0 %1275, %v476
      %v1277 = vpop.permute.xlu0 %1276
      %1278 = vset.pattern.permute.xlu0 1
      %1279 = vperm.xlu0 %1278, %v477
      %v1280 = vpop.permute.xlu0 %1279
      %1281 = vset.pattern.permute.xlu0 1
      %1282 = vperm.xlu0 %1281, %v478
      %v1283 = vpop.permute.xlu0 %1282
      %1284 = vset.pattern.permute.xlu0 1
      %1285 = vperm.xlu0 %1284, %v479
      %v1286 = vpop.permute.xlu0 %1285
      %1287 = vset.pattern.permute.xlu0 1
      %1288 = vperm.xlu0 %1287, %v480
      %v1289 = vpop.permute.xlu0 %1288
      %1290 = vset.pattern.permute.xlu0 1
      %1291 = vperm.xlu0 %1290, %v481
      %v1292 = vpop.permute.xlu0 %1291
      %1293 = vset.pattern.permute.xlu0 1
      %1294 = vperm.xlu0 %1293, %v482
      %v1295 = vpop.permute.xlu0 %1294
      %1296 = vset.pattern.permute.xlu0 1
      %1297 = vperm.xlu0 %1296, %v483
      %v1298 = vpop.permute.xlu0 %1297
      %1299 = vset.pattern.permute.xlu0 1
      %1300 = vperm.xlu0 %1299, %v484
      %v1301 = vpop.permute.xlu0 %1300
      %1302 = vset.pattern.permute.xlu0 1
      %1303 = vperm.xlu0 %1302, %v485
      %v1304 = vpop.permute.xlu0 %1303
      %1305 = vset.pattern.permute.xlu0 1
      %1306 = vperm.xlu0 %1305, %v486
      %v1307 = vpop.permute.xlu0 %1306
      %1308 = vset.pattern.permute.xlu0 1
      %1309 = vperm.xlu0 %1308, %v487
      %v1310 = vpop.permute.xlu0 %1309
      %1311 = vset.pattern.permute.xlu0 1
      %1312 = vperm.xlu0 %1311, %v488
      %v1313 = vpop.permute.xlu0 %1312
      %1314 = vset.pattern.permute.xlu0 1
      %1315 = vperm.xlu0 %1314, %v489
      %v1316 = vpop.permute.xlu0 %1315
      %1317 = vset.pattern.permute.xlu0 1
      %1318 = vperm.xlu0 %1317, %v490
      %v1319 = vpop.permute.xlu0 %1318
      %1320 = vset.pattern.permute.xlu0 1
      %1321 = vperm.xlu0 %1320, %v491
      %v1322 = vpop.permute.xlu0 %1321
      %1323 = vset.pattern.permute.xlu0 1
      %1324 = vperm.xlu0 %1323, %v492
      %v1325 = vpop.permute.xlu0 %1324
      %1326 = vset.pattern.permute.xlu0 1
      %1327 = vperm.xlu0 %1326, %v493
      %v1328 = vpop.permute.xlu0 %1327
      %1329 = vset.pattern.permute.xlu0 1
      %1330 = vperm.xlu0 %1329, %v494
      %v1331 = vpop.permute.xlu0 %1330
      %1332 = vset.pattern.permute.xlu0 1
      %1333 = vperm.xlu0 %1332, %v495
      %v1334 = vpop.permute.xlu0 %1333
      %1335 = vset.pattern.permute.xlu0 1
      %1336 = vperm.xlu0 %1335, %v496
      %v1337 = vpop.permute.xlu0 %1336
      %1338 = vset.pattern.permute.xlu0 1
      %1339 = vperm.xlu0 %1338, %v497
      %v1340 = vpop.permute.xlu0 %1339
      %1341 = vset.pattern.permute.xlu0 1
      %1342 = vperm.xlu0 %1341, %v498
      %v1343 = vpop.permute.xlu0 %1342
      %vm1344 = vcmp.eq.s32.totalorder %v1250, %v773
      %vm1345 = vcmp.eq.s32.totalorder %v1253, %v773
      %vm1346 = vcmp.eq.s32.totalorder %v1256, %v773
      %vm1347 = vcmp.eq.s32.totalorder %v1259, %v773
      %vm1348 = vcmp.eq.s32.totalorder %v1262, %v773
      %vm1349 = vcmp.eq.s32.totalorder %v1265, %v773
      %vm1350 = vcmp.eq.s32.totalorder %v1268, %v773
      %vm1351 = vcmp.eq.s32.totalorder %v1271, %v773
      %vm1352 = vcmp.eq.s32.totalorder %v1274, %v773
      %vm1353 = vcmp.eq.s32.totalorder %v1277, %v773
      %vm1354 = vcmp.eq.s32.totalorder %v1280, %v773
      %vm1355 = vcmp.eq.s32.totalorder %v1283, %v773
      %vm1356 = vcmp.eq.s32.totalorder %v1286, %v773
      %vm1357 = vcmp.eq.s32.totalorder %v1289, %v773
      %vm1358 = vcmp.eq.s32.totalorder %v1292, %v773
      %vm1359 = vcmp.eq.s32.totalorder %v1295, %v773
      %vm1360 = vcmp.eq.s32.totalorder %v1298, %v773
      %vm1361 = vcmp.eq.s32.totalorder %v1301, %v773
      %vm1362 = vcmp.eq.s32.totalorder %v1304, %v773
      %vm1363 = vcmp.eq.s32.totalorder %v1307, %v773
      %vm1364 = vcmp.eq.s32.totalorder %v1310, %v773
      %vm1365 = vcmp.eq.s32.totalorder %v1313, %v773
      %vm1366 = vcmp.eq.s32.totalorder %v1316, %v773
      %vm1367 = vcmp.eq.s32.totalorder %v1319, %v773
      %vm1368 = vcmp.eq.s32.totalorder %v1322, %v773
      %vm1369 = vcmp.eq.s32.totalorder %v1325, %v773
      %vm1370 = vcmp.eq.s32.totalorder %v1328, %v773
      %vm1371 = vcmp.eq.s32.totalorder %v1331, %v773
      %vm1372 = vcmp.eq.s32.totalorder %v1334, %v773
      %vm1373 = vcmp.eq.s32.totalorder %v1337, %v773
      %vm1374 = vcmp.eq.s32.totalorder %v1340, %v773
      %vm1375 = vcmp.eq.s32.totalorder %v1343, %v773
      %v1376 = vsel %vm1344, 1, 0
      %v1377 = vsel %vm1345, 1, 0
      %v1378 = vsel %vm1346, 1, 0
      %v1379 = vsel %vm1347, 1, 0
      %v1380 = vsel %vm1348, 1, 0
      %v1381 = vsel %vm1349, 1, 0
      %v1382 = vsel %vm1350, 1, 0
      %v1383 = vsel %vm1351, 1, 0
      %v1384 = vsel %vm1352, 1, 0
      %v1385 = vsel %vm1353, 1, 0
      %v1386 = vsel %vm1354, 1, 0
      %v1387 = vsel %vm1355, 1, 0
      %v1388 = vsel %vm1356, 1, 0
      %v1389 = vsel %vm1357, 1, 0
      %v1390 = vsel %vm1358, 1, 0
      %v1391 = vsel %vm1359, 1, 0
      %v1392 = vsel %vm1360, 1, 0
      %v1393 = vsel %vm1361, 1, 0
      %v1394 = vsel %vm1362, 1, 0
      %v1395 = vsel %vm1363, 1, 0
      %v1396 = vsel %vm1364, 1, 0
      %v1397 = vsel %vm1365, 1, 0
      %v1398 = vsel %vm1366, 1, 0
      %v1399 = vsel %vm1367, 1, 0
      %v1400 = vsel %vm1368, 1, 0
      %v1401 = vsel %vm1369, 1, 0
      %v1402 = vsel %vm1370, 1, 0
      %v1403 = vsel %vm1371, 1, 0
      %v1404 = vsel %vm1372, 1, 0
      %v1405 = vsel %vm1373, 1, 0
      %v1406 = vsel %vm1374, 1, 0
      %v1407 = vsel %vm1375, 1, 0
      %v1408 = vcvt.s32.f32 %v1376
      %v1409 = vcvt.s32.f32 %v1377
      %v1410 = vcvt.s32.f32 %v1378
      %v1411 = vcvt.s32.f32 %v1379
      %v1412 = vcvt.s32.f32 %v1380
      %v1413 = vcvt.s32.f32 %v1381
      %v1414 = vcvt.s32.f32 %v1382
      %v1415 = vcvt.s32.f32 %v1383
      %v1416 = vcvt.s32.f32 %v1384
      %v1417 = vcvt.s32.f32 %v1385
      %v1418 = vcvt.s32.f32 %v1386
      %v1419 = vcvt.s32.f32 %v1387
      %v1420 = vcvt.s32.f32 %v1388
      %v1421 = vcvt.s32.f32 %v1389
      %v1422 = vcvt.s32.f32 %v1390
      %v1423 = vcvt.s32.f32 %v1391
      %v1424 = vcvt.s32.f32 %v1392
      %v1425 = vcvt.s32.f32 %v1393
      %v1426 = vcvt.s32.f32 %v1394
      %v1427 = vcvt.s32.f32 %v1395
      %v1428 = vcvt.s32.f32 %v1396
      %v1429 = vcvt.s32.f32 %v1397
      %v1430 = vcvt.s32.f32 %v1398
      %v1431 = vcvt.s32.f32 %v1399
      %v1432 = vcvt.s32.f32 %v1400
      %v1433 = vcvt.s32.f32 %v1401
      %v1434 = vcvt.s32.f32 %v1402
      %v1435 = vcvt.s32.f32 %v1403
      %v1436 = vcvt.s32.f32 %v1404
      %v1437 = vcvt.s32.f32 %v1405
      %v1438 = vcvt.s32.f32 %v1406
      %v1439 = vcvt.s32.f32 %v1407
      %v1440 = vpack.c.bf16 %v1409, %v1408
      %v1441 = vpack.c.bf16 %v1411, %v1410
      %v1442 = vpack.c.bf16 %v1413, %v1412
      %v1443 = vpack.c.bf16 %v1415, %v1414
      %v1444 = vpack.c.bf16 %v1417, %v1416
      %v1445 = vpack.c.bf16 %v1419, %v1418
      %v1446 = vpack.c.bf16 %v1421, %v1420
      %v1447 = vpack.c.bf16 %v1423, %v1422
      %v1448 = vpack.c.bf16 %v1425, %v1424
      %v1449 = vpack.c.bf16 %v1427, %v1426
      %v1450 = vpack.c.bf16 %v1429, %v1428
      %v1451 = vpack.c.bf16 %v1431, %v1430
      %v1452 = vpack.c.bf16 %v1433, %v1432
      %v1453 = vpack.c.bf16 %v1435, %v1434
      %v1454 = vpack.c.bf16 %v1437, %v1436
      %v1455 = vpack.c.bf16 %v1439, %v1438
      %v1456 = vld [vmem:[%s3] sm:$0xf]
      %v1457 = vld [vmem:[%s3 + $0x4] sm:$0xf]
      %v1460 = vunpack.c.l.b16 %v1456
      %v1461 = vunpack.c.l.b16 %v1457
      %v1462 = vpack.c.b16 %v1461, %v1460
      %vm1464 = vcmask 130048
      %v1466 = vsel %vm1464, %v1440, 0
      %v1469 = vsel %vm1464, %v1441, 0
      %v1472 = vsel %vm1464, %v1442, 0
      %v1475 = vsel %vm1464, %v1443, 0
      %v1478 = vsel %vm1464, %v1444, 0
      %v1481 = vsel %vm1464, %v1445, 0
      %v1484 = vsel %vm1464, %v1446, 0
      %v1487 = vsel %vm1464, %v1447, 0
      %v1490 = vsel %vm1464, %v1448, 0
      %v1493 = vsel %vm1464, %v1449, 0
      %v1496 = vsel %vm1464, %v1450, 0
      %v1499 = vsel %vm1464, %v1451, 0
      %v1502 = vsel %vm1464, %v1452, 0
      %v1505 = vsel %vm1464, %v1453, 0
      %v1508 = vsel %vm1464, %v1454, 0
      %v1511 = vsel %vm1464, %v1455, 0
      %1513 = vmatprep.subr.bf16.mxu0 0
      %1514 = vmatpush1.bf16.msra.mxu0 0
      %1515 = vmatprep.subr.bf16.mxu0 0
      %1516 = vmatpush1.bf16.msra.mxu0 0
      %1517 = vmatprep.subr.bf16.mxu0 0
      %1518 = vmatpush1.bf16.msra.mxu0 0
      %1519 = vmatprep.subr.bf16.mxu0 0
      %1520 = vmatpush1.bf16.msra.mxu0 0
      %1521 = vmatprep.subr.bf16.mxu0 0
      %1522 = vmatpush1.bf16.msra.mxu0 0
      %1523 = vmatprep.subr.bf16.mxu0 0
      %1524 = vmatpush1.bf16.msra.mxu0 0
      %1525 = vmatprep.subr.bf16.mxu0 0
      %1526 = vmatpush1.bf16.msra.mxu0 0
      %1527 = vmatprep.subr.bf16.mxu0 0
      %1528 = vmatpush1.bf16.msra.mxu0 %v1462
      %1529 = vmatprep.subr.bf16.mxu0 0
      %1530 = vmatpush2.bf16.msra.mxu0 0
      %1531 = vmatprep.subr.bf16.mxu0 0
      %1532 = vmatpush2.bf16.msra.mxu0 0
      %1533 = vmatprep.subr.bf16.mxu0 0
      %1534 = vmatpush2.bf16.msra.mxu0 0
      %1535 = vmatprep.subr.bf16.mxu0 0
      %1536 = vmatpush2.bf16.msra.mxu0 0
      %1537 = vmatprep.subr.bf16.mxu0 0
      %1538 = vmatpush2.bf16.msra.mxu0 0
      %1539 = vmatprep.subr.bf16.mxu0 0
      %1540 = vmatpush2.bf16.msra.mxu0 0
      %1541 = vmatprep.subr.bf16.mxu0 0
      %1542 = vmatpush2.bf16.msra.mxu0 0
      %1543 = vmatprep.subr.bf16.mxu0 0
      %1544 = vmatpush2.bf16.msra.mxu0 0
      %1545 = vmatprep.mubr.bf16.mxu0 0
      %1546 = vmatmul.mubr.bf16.gmra.mxu0 %v1466
      %v1547 = vpop.f32.mrf.mxu0
      %v1548 = vadd.f32 0.0, %v1547
      %v1549 = vpop.f32.mrf.mxu0
      %v1550 = vpop.f32.mrf.mxu0
      %v1551 = vadd.f32 0.0, %v1550
      %v1552 = vpop.f32.mrf.mxu0
      %1553 = vmatprep.mubr.bf16.mxu0 0
      %1554 = vmatmul.mubr.bf16.gmra.mxu0 %v1469
      %v1555 = vpop.f32.mrf.mxu0
      %v1556 = vadd.f32 0.0, %v1555
      %v1557 = vpop.f32.mrf.mxu0
      %v1558 = vpop.f32.mrf.mxu0
      %v1559 = vadd.f32 0.0, %v1558
      %v1560 = vpop.f32.mrf.mxu0
      %1561 = vmatprep.mubr.bf16.mxu0 0
      %1562 = vmatmul.mubr.bf16.gmra.mxu0 %v1472
      %v1563 = vpop.f32.mrf.mxu0
      %v1564 = vadd.f32 0.0, %v1563
      %v1565 = vpop.f32.mrf.mxu0
      %v1566 = vpop.f32.mrf.mxu0
      %v1567 = vadd.f32 0.0, %v1566
      %v1568 = vpop.f32.mrf.mxu0
      %1569 = vmatprep.mubr.bf16.mxu0 0
      %1570 = vmatmul.mubr.bf16.gmra.mxu0 %v1475
      %v1571 = vpop.f32.mrf.mxu0
      %v1572 = vadd.f32 0.0, %v1571
      %v1573 = vpop.f32.mrf.mxu0
      %v1574 = vpop.f32.mrf.mxu0
      %v1575 = vadd.f32 0.0, %v1574
      %v1576 = vpop.f32.mrf.mxu0
      %1577 = vmatprep.mubr.bf16.mxu0 0
      %1578 = vmatmul.mubr.bf16.gmra.mxu0 %v1478
      %v1579 = vpop.f32.mrf.mxu0
      %v1580 = vadd.f32 0.0, %v1579
      %v1581 = vpop.f32.mrf.mxu0
      %v1582 = vpop.f32.mrf.mxu0
      %v1583 = vadd.f32 0.0, %v1582
      %v1584 = vpop.f32.mrf.mxu0
      %1585 = vmatprep.mubr.bf16.mxu0 0
      %1586 = vmatmul.mubr.bf16.gmra.mxu0 %v1481
      %v1587 = vpop.f32.mrf.mxu0
      %v1588 = vadd.f32 0.0, %v1587
      %v1589 = vpop.f32.mrf.mxu0
      %v1590 = vpop.f32.mrf.mxu0
      %v1591 = vadd.f32 0.0, %v1590
      %v1592 = vpop.f32.mrf.mxu0
      %1593 = vmatprep.mubr.bf16.mxu0 0
      %1594 = vmatmul.mubr.bf16.gmra.mxu0 %v1484
      %v1595 = vpop.f32.mrf.mxu0
      %v1596 = vadd.f32 0.0, %v1595
      %v1597 = vpop.f32.mrf.mxu0
      %v1598 = vpop.f32.mrf.mxu0
      %v1599 = vadd.f32 0.0, %v1598
      %v1600 = vpop.f32.mrf.mxu0
      %1601 = vmatprep.mubr.bf16.mxu0 0
      %1602 = vmatmul.mubr.bf16.gmra.mxu0 %v1487
      %v1603 = vpop.f32.mrf.mxu0
      %v1604 = vadd.f32 0.0, %v1603
      %v1605 = vpop.f32.mrf.mxu0
      %v1606 = vpop.f32.mrf.mxu0
      %v1607 = vadd.f32 0.0, %v1606
      %v1608 = vpop.f32.mrf.mxu0
      %1609 = vmatprep.mubr.bf16.mxu0 0
      %1610 = vmatmul.mubr.bf16.gmra.mxu0 %v1490
      %v1611 = vpop.f32.mrf.mxu0
      %v1612 = vadd.f32 0.0, %v1611
      %v1613 = vpop.f32.mrf.mxu0
      %v1614 = vpop.f32.mrf.mxu0
      %v1615 = vadd.f32 0.0, %v1614
      %v1616 = vpop.f32.mrf.mxu0
      %1617 = vmatprep.mubr.bf16.mxu0 0
      %1618 = vmatmul.mubr.bf16.gmra.mxu0 %v1493
      %v1619 = vpop.f32.mrf.mxu0
      %v1620 = vadd.f32 0.0, %v1619
      %v1621 = vpop.f32.mrf.mxu0
      %v1622 = vpop.f32.mrf.mxu0
      %v1623 = vadd.f32 0.0, %v1622
      %v1624 = vpop.f32.mrf.mxu0
      %1625 = vmatprep.mubr.bf16.mxu0 0
      %1626 = vmatmul.mubr.bf16.gmra.mxu0 %v1496
      %v1627 = vpop.f32.mrf.mxu0
      %v1628 = vadd.f32 0.0, %v1627
      %v1629 = vpop.f32.mrf.mxu0
      %v1630 = vpop.f32.mrf.mxu0
      %v1631 = vadd.f32 0.0, %v1630
      %v1632 = vpop.f32.mrf.mxu0
      %1633 = vmatprep.mubr.bf16.mxu0 0
      %1634 = vmatmul.mubr.bf16.gmra.mxu0 %v1499
      %v1635 = vpop.f32.mrf.mxu0
      %v1636 = vadd.f32 0.0, %v1635
      %v1637 = vpop.f32.mrf.mxu0
      %v1638 = vpop.f32.mrf.mxu0
      %v1639 = vadd.f32 0.0, %v1638
      %v1640 = vpop.f32.mrf.mxu0
      %1641 = vmatprep.mubr.bf16.mxu0 0
      %1642 = vmatmul.mubr.bf16.gmra.mxu0 %v1502
      %v1643 = vpop.f32.mrf.mxu0
      %v1644 = vadd.f32 0.0, %v1643
      %v1645 = vpop.f32.mrf.mxu0
      %v1646 = vpop.f32.mrf.mxu0
      %v1647 = vadd.f32 0.0, %v1646
      %v1648 = vpop.f32.mrf.mxu0
      %1649 = vmatprep.mubr.bf16.mxu0 0
      %1650 = vmatmul.mubr.bf16.gmra.mxu0 %v1505
      %v1651 = vpop.f32.mrf.mxu0
      %v1652 = vadd.f32 0.0, %v1651
      %v1653 = vpop.f32.mrf.mxu0
      %v1654 = vpop.f32.mrf.mxu0
      %v1655 = vadd.f32 0.0, %v1654
      %v1656 = vpop.f32.mrf.mxu0
      %1657 = vmatprep.mubr.bf16.mxu0 0
      %1658 = vmatmul.mubr.bf16.gmra.mxu0 %v1508
      %v1659 = vpop.f32.mrf.mxu0
      %v1660 = vadd.f32 0.0, %v1659
      %v1661 = vpop.f32.mrf.mxu0
      %v1662 = vpop.f32.mrf.mxu0
      %v1663 = vadd.f32 0.0, %v1662
      %v1664 = vpop.f32.mrf.mxu0
      %1665 = vmatprep.mubr.bf16.mxu0 0
      %1666 = vmatmul.mubr.bf16.gmra.mxu0 %v1511
      %v1667 = vpop.f32.mrf.mxu0
      %v1668 = vadd.f32 0.0, %v1667
      %v1669 = vpop.f32.mrf.mxu0
      %v1670 = vpop.f32.mrf.mxu0
      %v1671 = vadd.f32 0.0, %v1670
      %v1672 = vpop.f32.mrf.mxu0
      %1673 = vdwg.mxu0
      %v1674 = vadd.f32 %v1216, %v1548
      %v1675 = vadd.f32 %v1217, %v1551
      %v1676 = vadd.f32 %v1218, %v1556
      %v1677 = vadd.f32 %v1219, %v1559
      %v1678 = vadd.f32 %v1220, %v1564
      %v1679 = vadd.f32 %v1221, %v1567
      %v1680 = vadd.f32 %v1222, %v1572
      %v1681 = vadd.f32 %v1223, %v1575
      %v1682 = vadd.f32 %v1224, %v1580
      %v1683 = vadd.f32 %v1225, %v1583
      %v1684 = vadd.f32 %v1226, %v1588
      %v1685 = vadd.f32 %v1227, %v1591
      %v1686 = vadd.f32 %v1228, %v1596
      %v1687 = vadd.f32 %v1229, %v1599
      %v1688 = vadd.f32 %v1230, %v1604
      %v1689 = vadd.f32 %v1231, %v1607
      %v1690 = vadd.f32 %v1232, %v1612
      %v1691 = vadd.f32 %v1233, %v1615
      %v1692 = vadd.f32 %v1234, %v1620
      %v1693 = vadd.f32 %v1235, %v1623
      %v1694 = vadd.f32 %v1236, %v1628
      %v1695 = vadd.f32 %v1237, %v1631
      %v1696 = vadd.f32 %v1238, %v1636
      %v1697 = vadd.f32 %v1239, %v1639
      %v1698 = vadd.f32 %v1240, %v1644
      %v1699 = vadd.f32 %v1241, %v1647
      %v1700 = vadd.f32 %v1242, %v1652
      %v1701 = vadd.f32 %v1243, %v1655
      %v1702 = vadd.f32 %v1244, %v1660
      %v1703 = vadd.f32 %v1245, %v1663
      %v1704 = vadd.f32 %v1246, %v1668
      %v1705 = vadd.f32 %v1247, %v1671
      %1706 = vset.pattern.permute.xlu0 2
      %1707 = vperm.xlu0 %1706, %v467
      %v1708 = vpop.permute.xlu0 %1707
      %1709 = vset.pattern.permute.xlu0 2
      %1710 = vperm.xlu0 %1709, %v468
      %v1711 = vpop.permute.xlu0 %1710
      %1712 = vset.pattern.permute.xlu0 2
      %1713 = vperm.xlu0 %1712, %v469
      %v1714 = vpop.permute.xlu0 %1713
      %1715 = vset.pattern.permute.xlu0 2
      %1716 = vperm.xlu0 %1715, %v470
      %v1717 = vpop.permute.xlu0 %1716
      %1718 = vset.pattern.permute.xlu0 2
      %1719 = vperm.xlu0 %1718, %v471
      %v1720 = vpop.permute.xlu0 %1719
      %1721 = vset.pattern.permute.xlu0 2
      %1722 = vperm.xlu0 %1721, %v472
      %v1723 = vpop.permute.xlu0 %1722
      %1724 = vset.pattern.permute.xlu0 2
      %1725 = vperm.xlu0 %1724, %v473
      %v1726 = vpop.permute.xlu0 %1725
      %1727 = vset.pattern.permute.xlu0 2
      %1728 = vperm.xlu0 %1727, %v474
      %v1729 = vpop.permute.xlu0 %1728
      %1730 = vset.pattern.permute.xlu0 2
      %1731 = vperm.xlu0 %1730, %v475
      %v1732 = vpop.permute.xlu0 %1731
      %1733 = vset.pattern.permute.xlu0 2
      %1734 = vperm.xlu0 %1733, %v476
      %v1735 = vpop.permute.xlu0 %1734
      %1736 = vset.pattern.permute.xlu0 2
      %1737 = vperm.xlu0 %1736, %v477
      %v1738 = vpop.permute.xlu0 %1737
      %1739 = vset.pattern.permute.xlu0 2
      %1740 = vperm.xlu0 %1739, %v478
      %v1741 = vpop.permute.xlu0 %1740
      %1742 = vset.pattern.permute.xlu0 2
      %1743 = vperm.xlu0 %1742, %v479
      %v1744 = vpop.permute.xlu0 %1743
      %1745 = vset.pattern.permute.xlu0 2
      %1746 = vperm.xlu0 %1745, %v480
      %v1747 = vpop.permute.xlu0 %1746
      %1748 = vset.pattern.permute.xlu0 2
      %1749 = vperm.xlu0 %1748, %v481
      %v1750 = vpop.permute.xlu0 %1749
      %1751 = vset.pattern.permute.xlu0 2
      %1752 = vperm.xlu0 %1751, %v482
      %v1753 = vpop.permute.xlu0 %1752
      %1754 = vset.pattern.permute.xlu0 2
      %1755 = vperm.xlu0 %1754, %v483
      %v1756 = vpop.permute.xlu0 %1755
      %1757 = vset.pattern.permute.xlu0 2
      %1758 = vperm.xlu0 %1757, %v484
      %v1759 = vpop.permute.xlu0 %1758
      %1760 = vset.pattern.permute.xlu0 2
      %1761 = vperm.xlu0 %1760, %v485
      %v1762 = vpop.permute.xlu0 %1761
      %1763 = vset.pattern.permute.xlu0 2
      %1764 = vperm.xlu0 %1763, %v486
      %v1765 = vpop.permute.xlu0 %1764
      %1766 = vset.pattern.permute.xlu0 2
      %1767 = vperm.xlu0 %1766, %v487
      %v1768 = vpop.permute.xlu0 %1767
      %1769 = vset.pattern.permute.xlu0 2
      %1770 = vperm.xlu0 %1769, %v488
      %v1771 = vpop.permute.xlu0 %1770
      %1772 = vset.pattern.permute.xlu0 2
      %1773 = vperm.xlu0 %1772, %v489
      %v1774 = vpop.permute.xlu0 %1773
      %1775 = vset.pattern.permute.xlu0 2
      %1776 = vperm.xlu0 %1775, %v490
      %v1777 = vpop.permute.xlu0 %1776
      %1778 = vset.pattern.permute.xlu0 2
      %1779 = vperm.xlu0 %1778, %v491
      %v1780 = vpop.permute.xlu0 %1779
      %1781 = vset.pattern.permute.xlu0 2
      %1782 = vperm.xlu0 %1781, %v492
      %v1783 = vpop.permute.xlu0 %1782
      %1784 = vset.pattern.permute.xlu0 2
      %1785 = vperm.xlu0 %1784, %v493
      %v1786 = vpop.permute.xlu0 %1785
      %1787 = vset.pattern.permute.xlu0 2
      %1788 = vperm.xlu0 %1787, %v494
      %v1789 = vpop.permute.xlu0 %1788
      %1790 = vset.pattern.permute.xlu0 2
      %1791 = vperm.xlu0 %1790, %v495
      %v1792 = vpop.permute.xlu0 %1791
      %1793 = vset.pattern.permute.xlu0 2
      %1794 = vperm.xlu0 %1793, %v496
      %v1795 = vpop.permute.xlu0 %1794
      %1796 = vset.pattern.permute.xlu0 2
      %1797 = vperm.xlu0 %1796, %v497
      %v1798 = vpop.permute.xlu0 %1797
      %1799 = vset.pattern.permute.xlu0 2
      %1800 = vperm.xlu0 %1799, %v498
      %v1801 = vpop.permute.xlu0 %1800
      %vm1802 = vcmp.eq.s32.totalorder %v1708, %v773
      %vm1803 = vcmp.eq.s32.totalorder %v1711, %v773
      %vm1804 = vcmp.eq.s32.totalorder %v1714, %v773
      %vm1805 = vcmp.eq.s32.totalorder %v1717, %v773
      %vm1806 = vcmp.eq.s32.totalorder %v1720, %v773
      %vm1807 = vcmp.eq.s32.totalorder %v1723, %v773
      %vm1808 = vcmp.eq.s32.totalorder %v1726, %v773
      %vm1809 = vcmp.eq.s32.totalorder %v1729, %v773
      %vm1810 = vcmp.eq.s32.totalorder %v1732, %v773
      %vm1811 = vcmp.eq.s32.totalorder %v1735, %v773
      %vm1812 = vcmp.eq.s32.totalorder %v1738, %v773
      %vm1813 = vcmp.eq.s32.totalorder %v1741, %v773
      %vm1814 = vcmp.eq.s32.totalorder %v1744, %v773
      %vm1815 = vcmp.eq.s32.totalorder %v1747, %v773
      %vm1816 = vcmp.eq.s32.totalorder %v1750, %v773
      %vm1817 = vcmp.eq.s32.totalorder %v1753, %v773
      %vm1818 = vcmp.eq.s32.totalorder %v1756, %v773
      %vm1819 = vcmp.eq.s32.totalorder %v1759, %v773
      %vm1820 = vcmp.eq.s32.totalorder %v1762, %v773
      %vm1821 = vcmp.eq.s32.totalorder %v1765, %v773
      %vm1822 = vcmp.eq.s32.totalorder %v1768, %v773
      %vm1823 = vcmp.eq.s32.totalorder %v1771, %v773
      %vm1824 = vcmp.eq.s32.totalorder %v1774, %v773
      %vm1825 = vcmp.eq.s32.totalorder %v1777, %v773
      %vm1826 = vcmp.eq.s32.totalorder %v1780, %v773
      %vm1827 = vcmp.eq.s32.totalorder %v1783, %v773
      %vm1828 = vcmp.eq.s32.totalorder %v1786, %v773
      %vm1829 = vcmp.eq.s32.totalorder %v1789, %v773
      %vm1830 = vcmp.eq.s32.totalorder %v1792, %v773
      %vm1831 = vcmp.eq.s32.totalorder %v1795, %v773
      %vm1832 = vcmp.eq.s32.totalorder %v1798, %v773
      %vm1833 = vcmp.eq.s32.totalorder %v1801, %v773
      %v1834 = vsel %vm1802, 1, 0
      %v1835 = vsel %vm1803, 1, 0
      %v1836 = vsel %vm1804, 1, 0
      %v1837 = vsel %vm1805, 1, 0
      %v1838 = vsel %vm1806, 1, 0
      %v1839 = vsel %vm1807, 1, 0
      %v1840 = vsel %vm1808, 1, 0
      %v1841 = vsel %vm1809, 1, 0
      %v1842 = vsel %vm1810, 1, 0
      %v1843 = vsel %vm1811, 1, 0
      %v1844 = vsel %vm1812, 1, 0
      %v1845 = vsel %vm1813, 1, 0
      %v1846 = vsel %vm1814, 1, 0
      %v1847 = vsel %vm1815, 1, 0
      %v1848 = vsel %vm1816, 1, 0
      %v1849 = vsel %vm1817, 1, 0
      %v1850 = vsel %vm1818, 1, 0
      %v1851 = vsel %vm1819, 1, 0
      %v1852 = vsel %vm1820, 1, 0
      %v1853 = vsel %vm1821, 1, 0
      %v1854 = vsel %vm1822, 1, 0
      %v1855 = vsel %vm1823, 1, 0
      %v1856 = vsel %vm1824, 1, 0
      %v1857 = vsel %vm1825, 1, 0
      %v1858 = vsel %vm1826, 1, 0
      %v1859 = vsel %vm1827, 1, 0
      %v1860 = vsel %vm1828, 1, 0
      %v1861 = vsel %vm1829, 1, 0
      %v1862 = vsel %vm1830, 1, 0
      %v1863 = vsel %vm1831, 1, 0
      %v1864 = vsel %vm1832, 1, 0
      %v1865 = vsel %vm1833, 1, 0
      %v1866 = vcvt.s32.f32 %v1834
      %v1867 = vcvt.s32.f32 %v1835
      %v1868 = vcvt.s32.f32 %v1836
      %v1869 = vcvt.s32.f32 %v1837
      %v1870 = vcvt.s32.f32 %v1838
      %v1871 = vcvt.s32.f32 %v1839
      %v1872 = vcvt.s32.f32 %v1840
      %v1873 = vcvt.s32.f32 %v1841
      %v1874 = vcvt.s32.f32 %v1842
      %v1875 = vcvt.s32.f32 %v1843
      %v1876 = vcvt.s32.f32 %v1844
      %v1877 = vcvt.s32.f32 %v1845
      %v1878 = vcvt.s32.f32 %v1846
      %v1879 = vcvt.s32.f32 %v1847
      %v1880 = vcvt.s32.f32 %v1848
      %v1881 = vcvt.s32.f32 %v1849
      %v1882 = vcvt.s32.f32 %v1850
      %v1883 = vcvt.s32.f32 %v1851
      %v1884 = vcvt.s32.f32 %v1852
      %v1885 = vcvt.s32.f32 %v1853
      %v1886 = vcvt.s32.f32 %v1854
      %v1887 = vcvt.s32.f32 %v1855
      %v1888 = vcvt.s32.f32 %v1856
      %v1889 = vcvt.s32.f32 %v1857
      %v1890 = vcvt.s32.f32 %v1858
      %v1891 = vcvt.s32.f32 %v1859
      %v1892 = vcvt.s32.f32 %v1860
      %v1893 = vcvt.s32.f32 %v1861
      %v1894 = vcvt.s32.f32 %v1862
      %v1895 = vcvt.s32.f32 %v1863
      %v1896 = vcvt.s32.f32 %v1864
      %v1897 = vcvt.s32.f32 %v1865
      %v1898 = vpack.c.bf16 %v1867, %v1866
      %v1899 = vpack.c.bf16 %v1869, %v1868
      %v1900 = vpack.c.bf16 %v1871, %v1870
      %v1901 = vpack.c.bf16 %v1873, %v1872
      %v1902 = vpack.c.bf16 %v1875, %v1874
      %v1903 = vpack.c.bf16 %v1877, %v1876
      %v1904 = vpack.c.bf16 %v1879, %v1878
      %v1905 = vpack.c.bf16 %v1881, %v1880
      %v1906 = vpack.c.bf16 %v1883, %v1882
      %v1907 = vpack.c.bf16 %v1885, %v1884
      %v1908 = vpack.c.bf16 %v1887, %v1886
      %v1909 = vpack.c.bf16 %v1889, %v1888
      %v1910 = vpack.c.bf16 %v1891, %v1890
      %v1911 = vpack.c.bf16 %v1893, %v1892
      %v1912 = vpack.c.bf16 %v1895, %v1894
      %v1913 = vpack.c.bf16 %v1897, %v1896
      %v1914 = vld [vmem:[%s4] sm:$0xf]
      %v1915 = vld [vmem:[%s4 + $0x4] sm:$0xf]
      %v1916 = vld [vmem:[%s4 + $0x8] sm:$0xf]
      %v1917 = vld [vmem:[%s4 + $0xc] sm:$0xf]
      %v1918 = vld [vmem:[%s4 + $0x10] sm:$0xf]
      %v1919 = vld [vmem:[%s4 + $0x14] sm:$0xf]
      %v1920 = vld [vmem:[%s4 + $0x18] sm:$0xf]
      %v1921 = vld [vmem:[%s4 + $0x1c] sm:$0xf]
      %v1922 = vld [vmem:[%s4 + $0x20] sm:$0xf]
      %v1923 = vld [vmem:[%s4 + $0x24] sm:$0xf]
      %v1924 = vld [vmem:[%s4 + $0x28] sm:$0xf]
      %v1925 = vld [vmem:[%s4 + $0x2c] sm:$0xf]
      %v1926 = vld [vmem:[%s4 + $0x30] sm:$0x3]
      %v1940 = vunpack.c.l.b16 %v1914
      %v1941 = vunpack.c.l.b16 %v1915
      %v1942 = vunpack.c.l.b16 %v1916
      %v1943 = vunpack.c.l.b16 %v1917
      %v1944 = vunpack.c.l.b16 %v1918
      %v1945 = vunpack.c.l.b16 %v1919
      %v1946 = vunpack.c.l.b16 %v1920
      %v1947 = vunpack.c.l.b16 %v1921
      %v1948 = vunpack.c.l.b16 %v1922
      %v1949 = vunpack.c.l.b16 %v1923
      %v1950 = vunpack.c.l.b16 %v1924
      %v1951 = vunpack.c.l.b16 %v1925
      %v1952 = vunpack.c.l.b16 %v1926
      %v1953 = vpack.c.b16 %v1941, %v1940
      %v1954 = vpack.c.b16 %v1943, %v1942
      %v1955 = vpack.c.b16 %v1945, %v1944
      %v1956 = vpack.c.b16 %v1947, %v1946
      %v1957 = vpack.c.b16 %v1949, %v1948
      %v1958 = vpack.c.b16 %v1951, %v1950
      %v1959 = vpack.c.b16 %v1952, %v1952
      %vm1966 = vcmask 818176
      %v1968 = vsel %vm1966, %v1898, 0
      %v1971 = vsel %vm1966, %v1899, 0
      %v1974 = vsel %vm1966, %v1900, 0
      %v1977 = vsel %vm1966, %v1901, 0
      %v1980 = vsel %vm1966, %v1902, 0
      %v1983 = vsel %vm1966, %v1903, 0
      %v1986 = vsel %vm1966, %v1904, 0
      %v1989 = vsel %vm1966, %v1905, 0
      %v1992 = vsel %vm1966, %v1906, 0
      %v1995 = vsel %vm1966, %v1907, 0
      %v1998 = vsel %vm1966, %v1908, 0
      %v2001 = vsel %vm1966, %v1909, 0
      %v2004 = vsel %vm1966, %v1910, 0
      %v2007 = vsel %vm1966, %v1911, 0
      %v2010 = vsel %vm1966, %v1912, 0
      %v2013 = vsel %vm1966, %v1913, 0
      %v2016 = vsel %vm604, %v1959, 0
      %2018 = vmatprep.subr.bf16.mxu0 0
      %2019 = vmatpush1.bf16.msra.mxu0 0
      %2020 = vmatprep.subr.bf16.mxu0 0
      %2021 = vmatpush1.bf16.msra.mxu0 %v2016
      %2022 = vmatprep.subr.bf16.mxu0 0
      %2023 = vmatpush1.bf16.msra.mxu0 %v1958
      %2024 = vmatprep.subr.bf16.mxu0 0
      %2025 = vmatpush1.bf16.msra.mxu0 %v1957
      %2026 = vmatprep.subr.bf16.mxu0 0
      %2027 = vmatpush1.bf16.msra.mxu0 %v1956
      %2028 = vmatprep.subr.bf16.mxu0 0
      %2029 = vmatpush1.bf16.msra.mxu0 %v1955
      %2030 = vmatprep.subr.bf16.mxu0 0
      %2031 = vmatpush1.bf16.msra.mxu0 %v1954
      %2032 = vmatprep.subr.bf16.mxu0 0
      %2033 = vmatpush1.bf16.msra.mxu0 %v1953
      %2034 = vmatprep.subr.bf16.mxu0 0
      %2035 = vmatpush2.bf16.msra.mxu0 0
      %2036 = vmatprep.subr.bf16.mxu0 0
      %2037 = vmatpush2.bf16.msra.mxu0 0
      %2038 = vmatprep.subr.bf16.mxu0 0
      %2039 = vmatpush2.bf16.msra.mxu0 0
      %2040 = vmatprep.subr.bf16.mxu0 0
      %2041 = vmatpush2.bf16.msra.mxu0 0
      %2042 = vmatprep.subr.bf16.mxu0 0
      %2043 = vmatpush2.bf16.msra.mxu0 0
      %2044 = vmatprep.subr.bf16.mxu0 0
      %2045 = vmatpush2.bf16.msra.mxu0 0
      %2046 = vmatprep.subr.bf16.mxu0 0
      %2047 = vmatpush2.bf16.msra.mxu0 0
      %2048 = vmatprep.subr.bf16.mxu0 0
      %2049 = vmatpush2.bf16.msra.mxu0 0
      %2050 = vmatprep.mubr.bf16.mxu0 0
      %2051 = vmatmul.mubr.bf16.gmra.mxu0 %v1968
      %v2052 = vpop.f32.mrf.mxu0
      %v2053 = vadd.f32 0.0, %v2052
      %v2054 = vpop.f32.mrf.mxu0
      %v2055 = vpop.f32.mrf.mxu0
      %v2056 = vadd.f32 0.0, %v2055
      %v2057 = vpop.f32.mrf.mxu0
      %2058 = vmatprep.mubr.bf16.mxu0 0
      %2059 = vmatmul.mubr.bf16.gmra.mxu0 %v1971
      %v2060 = vpop.f32.mrf.mxu0
      %v2061 = vadd.f32 0.0, %v2060
      %v2062 = vpop.f32.mrf.mxu0
      %v2063 = vpop.f32.mrf.mxu0
      %v2064 = vadd.f32 0.0, %v2063
      %v2065 = vpop.f32.mrf.mxu0
      %2066 = vmatprep.mubr.bf16.mxu0 0
      %2067 = vmatmul.mubr.bf16.gmra.mxu0 %v1974
      %v2068 = vpop.f32.mrf.mxu0
      %v2069 = vadd.f32 0.0, %v2068
      %v2070 = vpop.f32.mrf.mxu0
      %v2071 = vpop.f32.mrf.mxu0
      %v2072 = vadd.f32 0.0, %v2071
      %v2073 = vpop.f32.mrf.mxu0
      %2074 = vmatprep.mubr.bf16.mxu0 0
      %2075 = vmatmul.mubr.bf16.gmra.mxu0 %v1977
      %v2076 = vpop.f32.mrf.mxu0
      %v2077 = vadd.f32 0.0, %v2076
      %v2078 = vpop.f32.mrf.mxu0
      %v2079 = vpop.f32.mrf.mxu0
      %v2080 = vadd.f32 0.0, %v2079
      %v2081 = vpop.f32.mrf.mxu0
      %2082 = vmatprep.mubr.bf16.mxu0 0
      %2083 = vmatmul.mubr.bf16.gmra.mxu0 %v1980
      %v2084 = vpop.f32.mrf.mxu0
      %v2085 = vadd.f32 0.0, %v2084
      %v2086 = vpop.f32.mrf.mxu0
      %v2087 = vpop.f32.mrf.mxu0
      %v2088 = vadd.f32 0.0, %v2087
      %v2089 = vpop.f32.mrf.mxu0
      %2090 = vmatprep.mubr.bf16.mxu0 0
      %2091 = vmatmul.mubr.bf16.gmra.mxu0 %v1983
      %v2092 = vpop.f32.mrf.mxu0
      %v2093 = vadd.f32 0.0, %v2092
      %v2094 = vpop.f32.mrf.mxu0
      %v2095 = vpop.f32.mrf.mxu0
      %v2096 = vadd.f32 0.0, %v2095
      %v2097 = vpop.f32.mrf.mxu0
      %2098 = vmatprep.mubr.bf16.mxu0 0
      %2099 = vmatmul.mubr.bf16.gmra.mxu0 %v1986
      %v2100 = vpop.f32.mrf.mxu0
      %v2101 = vadd.f32 0.0, %v2100
      %v2102 = vpop.f32.mrf.mxu0
      %v2103 = vpop.f32.mrf.mxu0
      %v2104 = vadd.f32 0.0, %v2103
      %v2105 = vpop.f32.mrf.mxu0
      %2106 = vmatprep.mubr.bf16.mxu0 0
      %2107 = vmatmul.mubr.bf16.gmra.mxu0 %v1989
      %v2108 = vpop.f32.mrf.mxu0
      %v2109 = vadd.f32 0.0, %v2108
      %v2110 = vpop.f32.mrf.mxu0
      %v2111 = vpop.f32.mrf.mxu0
      %v2112 = vadd.f32 0.0, %v2111
      %v2113 = vpop.f32.mrf.mxu0
      %2114 = vmatprep.mubr.bf16.mxu0 0
      %2115 = vmatmul.mubr.bf16.gmra.mxu0 %v1992
      %v2116 = vpop.f32.mrf.mxu0
      %v2117 = vadd.f32 0.0, %v2116
      %v2118 = vpop.f32.mrf.mxu0
      %v2119 = vpop.f32.mrf.mxu0
      %v2120 = vadd.f32 0.0, %v2119
      %v2121 = vpop.f32.mrf.mxu0
      %2122 = vmatprep.mubr.bf16.mxu0 0
      %2123 = vmatmul.mubr.bf16.gmra.mxu0 %v1995
      %v2124 = vpop.f32.mrf.mxu0
      %v2125 = vadd.f32 0.0, %v2124
      %v2126 = vpop.f32.mrf.mxu0
      %v2127 = vpop.f32.mrf.mxu0
      %v2128 = vadd.f32 0.0, %v2127
      %v2129 = vpop.f32.mrf.mxu0
      %2130 = vmatprep.mubr.bf16.mxu0 0
      %2131 = vmatmul.mubr.bf16.gmra.mxu0 %v1998
      %v2132 = vpop.f32.mrf.mxu0
      %v2133 = vadd.f32 0.0, %v2132
      %v2134 = vpop.f32.mrf.mxu0
      %v2135 = vpop.f32.mrf.mxu0
      %v2136 = vadd.f32 0.0, %v2135
      %v2137 = vpop.f32.mrf.mxu0
      %2138 = vmatprep.mubr.bf16.mxu0 0
      %2139 = vmatmul.mubr.bf16.gmra.mxu0 %v2001
      %v2140 = vpop.f32.mrf.mxu0
      %v2141 = vadd.f32 0.0, %v2140
      %v2142 = vpop.f32.mrf.mxu0
      %v2143 = vpop.f32.mrf.mxu0
      %v2144 = vadd.f32 0.0, %v2143
      %v2145 = vpop.f32.mrf.mxu0
      %2146 = vmatprep.mubr.bf16.mxu0 0
      %2147 = vmatmul.mubr.bf16.gmra.mxu0 %v2004
      %v2148 = vpop.f32.mrf.mxu0
      %v2149 = vadd.f32 0.0, %v2148
      %v2150 = vpop.f32.mrf.mxu0
      %v2151 = vpop.f32.mrf.mxu0
      %v2152 = vadd.f32 0.0, %v2151
      %v2153 = vpop.f32.mrf.mxu0
      %2154 = vmatprep.mubr.bf16.mxu0 0
      %2155 = vmatmul.mubr.bf16.gmra.mxu0 %v2007
      %v2156 = vpop.f32.mrf.mxu0
      %v2157 = vadd.f32 0.0, %v2156
      %v2158 = vpop.f32.mrf.mxu0
      %v2159 = vpop.f32.mrf.mxu0
      %v2160 = vadd.f32 0.0, %v2159
      %v2161 = vpop.f32.mrf.mxu0
      %2162 = vmatprep.mubr.bf16.mxu0 0
      %2163 = vmatmul.mubr.bf16.gmra.mxu0 %v2010
      %v2164 = vpop.f32.mrf.mxu0
      %v2165 = vadd.f32 0.0, %v2164
      %v2166 = vpop.f32.mrf.mxu0
      %v2167 = vpop.f32.mrf.mxu0
      %v2168 = vadd.f32 0.0, %v2167
      %v2169 = vpop.f32.mrf.mxu0
      %2170 = vmatprep.mubr.bf16.mxu0 0
      %2171 = vmatmul.mubr.bf16.gmra.mxu0 %v2013
      %v2172 = vpop.f32.mrf.mxu0
      %v2173 = vadd.f32 0.0, %v2172
      %v2174 = vpop.f32.mrf.mxu0
      %v2175 = vpop.f32.mrf.mxu0
      %v2176 = vadd.f32 0.0, %v2175
      %v2177 = vpop.f32.mrf.mxu0
      %2178 = vdwg.mxu0
      %v2179 = vadd.f32 %v1674, %v2053
      %v2180 = vadd.f32 %v1675, %v2056
      %v2181 = vadd.f32 %v1676, %v2061
      %v2182 = vadd.f32 %v1677, %v2064
      %v2183 = vadd.f32 %v1678, %v2069
      %v2184 = vadd.f32 %v1679, %v2072
      %v2185 = vadd.f32 %v1680, %v2077
      %v2186 = vadd.f32 %v1681, %v2080
      %v2187 = vadd.f32 %v1682, %v2085
      %v2188 = vadd.f32 %v1683, %v2088
      %v2189 = vadd.f32 %v1684, %v2093
      %v2190 = vadd.f32 %v1685, %v2096
      %v2191 = vadd.f32 %v1686, %v2101
      %v2192 = vadd.f32 %v1687, %v2104
      %v2193 = vadd.f32 %v1688, %v2109
      %v2194 = vadd.f32 %v1689, %v2112
      %v2195 = vadd.f32 %v1690, %v2117
      %v2196 = vadd.f32 %v1691, %v2120
      %v2197 = vadd.f32 %v1692, %v2125
      %v2198 = vadd.f32 %v1693, %v2128
      %v2199 = vadd.f32 %v1694, %v2133
      %v2200 = vadd.f32 %v1695, %v2136
      %v2201 = vadd.f32 %v1696, %v2141
      %v2202 = vadd.f32 %v1697, %v2144
      %v2203 = vadd.f32 %v1698, %v2149
      %v2204 = vadd.f32 %v1699, %v2152
      %v2205 = vadd.f32 %v1700, %v2157
      %v2206 = vadd.f32 %v1701, %v2160
      %v2207 = vadd.f32 %v1702, %v2165
      %v2208 = vadd.f32 %v1703, %v2168
      %v2209 = vadd.f32 %v1704, %v2173
      %v2210 = vadd.f32 %v1705, %v2176
      %v2211 = vmax.f32 %v2179, 0.0
      %v2212 = vmax.f32 %v2180, 0.0
      %v2213 = vmax.f32 %v2181, 0.0
      %v2214 = vmax.f32 %v2182, 0.0
      %v2215 = vmax.f32 %v2183, 0.0
      %v2216 = vmax.f32 %v2184, 0.0
      %v2217 = vmax.f32 %v2185, 0.0
      %v2218 = vmax.f32 %v2186, 0.0
      %v2219 = vmax.f32 %v2187, 0.0
      %v2220 = vmax.f32 %v2188, 0.0
      %v2221 = vmax.f32 %v2189, 0.0
      %v2222 = vmax.f32 %v2190, 0.0
      %v2223 = vmax.f32 %v2191, 0.0
      %v2224 = vmax.f32 %v2192, 0.0
      %v2225 = vmax.f32 %v2193, 0.0
      %v2226 = vmax.f32 %v2194, 0.0
      %v2227 = vmax.f32 %v2195, 0.0
      %v2228 = vmax.f32 %v2196, 0.0
      %v2229 = vmax.f32 %v2197, 0.0
      %v2230 = vmax.f32 %v2198, 0.0
      %v2231 = vmax.f32 %v2199, 0.0
      %v2232 = vmax.f32 %v2200, 0.0
      %v2233 = vmax.f32 %v2201, 0.0
      %v2234 = vmax.f32 %v2202, 0.0
      %v2235 = vmax.f32 %v2203, 0.0
      %v2236 = vmax.f32 %v2204, 0.0
      %v2237 = vmax.f32 %v2205, 0.0
      %v2238 = vmax.f32 %v2206, 0.0
      %v2239 = vmax.f32 %v2207, 0.0
      %v2240 = vmax.f32 %v2208, 0.0
      %v2241 = vmax.f32 %v2209, 0.0
      %v2242 = vmax.f32 %v2210, 0.0
      %v2243 = vpack.c.bf16 %v2212, %v2211
      %v2244 = vpack.c.bf16 %v2214, %v2213
      %v2245 = vpack.c.bf16 %v2216, %v2215
      %v2246 = vpack.c.bf16 %v2218, %v2217
      %v2247 = vpack.c.bf16 %v2220, %v2219
      %v2248 = vpack.c.bf16 %v2222, %v2221
      %v2249 = vpack.c.bf16 %v2224, %v2223
      %v2250 = vpack.c.bf16 %v2226, %v2225
      %v2251 = vpack.c.bf16 %v2228, %v2227
      %v2252 = vpack.c.bf16 %v2230, %v2229
      %v2253 = vpack.c.bf16 %v2232, %v2231
      %v2254 = vpack.c.bf16 %v2234, %v2233
      %v2255 = vpack.c.bf16 %v2236, %v2235
      %v2256 = vpack.c.bf16 %v2238, %v2237
      %v2257 = vpack.c.bf16 %v2240, %v2239
      %v2258 = vpack.c.bf16 %v2242, %v2241
      %v2259 = vld [vmem:[%s7] sm:$0xff]
      %v2260 = vld [vmem:[%s7 + $0x8] sm:$0xff]
      %v2261 = vld [vmem:[%s7 + $0x10] sm:$0xff]
      %v2262 = vld [vmem:[%s7 + $0x18] sm:$0xff]
      %v2263 = vld [vmem:[%s7 + $0x20] sm:$0xff]
      %v2264 = vld [vmem:[%s7 + $0x28] sm:$0xff]
      %v2265 = vld [vmem:[%s7 + $0x30] sm:$0xff]
      %v2266 = vld [vmem:[%s7 + $0x38] sm:$0xff]
      %v2267 = vld [vmem:[%s7 + $0x40] sm:$0xff]
      %v2268 = vld [vmem:[%s7 + $0x48] sm:$0xff]
      %v2269 = vld [vmem:[%s7 + $0x50] sm:$0xff]
      %v2270 = vld [vmem:[%s7 + $0x58] sm:$0xff]
      %v2271 = vld [vmem:[%s7 + $0x60] sm:$0xff]
      %v2272 = vld [vmem:[%s7 + $0x68] sm:$0xff]
      %v2273 = vld [vmem:[%s7 + $0x70] sm:$0xff]
      %v2274 = vld [vmem:[%s7 + $0x78] sm:$0xff]
      %v2275 = vld [vmem:[%s8] sm:$0x3]
      %v2277 = vlaneseq
      %v2278 = vshrl.u32 %v2277, 7
      %v2279 = vsub.s32 0, %v2278
      %v2280 = vrot.slane %v2275, %v2279
      %v2281 = vlaneseq
      %v2282 = vshrl.u32 %v2281, 7
      %v2283 = vsub.s32 1, %v2282
      %v2284 = vrot.slane %v2275, %v2283
      %v2303 = vunpack.c.l.b16 %v2259
      %v2304 = vunpack.c.h.b16 %v2259
      %v2305 = vunpack.c.l.b16 %v2260
      %v2306 = vunpack.c.h.b16 %v2260
      %v2307 = vunpack.c.l.b16 %v2261
      %v2308 = vunpack.c.h.b16 %v2261
      %v2309 = vunpack.c.l.b16 %v2262
      %v2310 = vunpack.c.h.b16 %v2262
      %v2311 = vunpack.c.l.b16 %v2263
      %v2312 = vunpack.c.h.b16 %v2263
      %v2313 = vunpack.c.l.b16 %v2264
      %v2314 = vunpack.c.h.b16 %v2264
      %v2315 = vunpack.c.l.b16 %v2265
      %v2316 = vunpack.c.h.b16 %v2265
      %v2317 = vunpack.c.l.b16 %v2266
      %v2318 = vunpack.c.h.b16 %v2266
      %v2319 = vunpack.c.l.b16 %v2267
      %v2320 = vunpack.c.h.b16 %v2267
      %v2321 = vunpack.c.l.b16 %v2268
      %v2322 = vunpack.c.h.b16 %v2268
      %v2323 = vunpack.c.l.b16 %v2269
      %v2324 = vunpack.c.h.b16 %v2269
      %v2325 = vunpack.c.l.b16 %v2270
      %v2326 = vunpack.c.h.b16 %v2270
      %v2327 = vunpack.c.l.b16 %v2271
      %v2328 = vunpack.c.h.b16 %v2271
      %v2329 = vunpack.c.l.b16 %v2272
      %v2330 = vunpack.c.h.b16 %v2272
      %v2331 = vunpack.c.l.b16 %v2273
      %v2332 = vunpack.c.h.b16 %v2273
      %v2333 = vunpack.c.l.b16 %v2274
      %v2334 = vunpack.c.h.b16 %v2274
      %v2335 = vpack.c.b16 %v2305, %v2303
      %v2336 = vpack.c.b16 %v2306, %v2304
      %v2337 = vpack.c.b16 %v2309, %v2307
      %v2338 = vpack.c.b16 %v2310, %v2308
      %v2339 = vpack.c.b16 %v2313, %v2311
      %v2340 = vpack.c.b16 %v2314, %v2312
      %v2341 = vpack.c.b16 %v2317, %v2315
      %v2342 = vpack.c.b16 %v2318, %v2316
      %v2343 = vpack.c.b16 %v2321, %v2319
      %v2344 = vpack.c.b16 %v2322, %v2320
      %v2345 = vpack.c.b16 %v2325, %v2323
      %v2346 = vpack.c.b16 %v2326, %v2324
      %v2347 = vpack.c.b16 %v2329, %v2327
      %v2348 = vpack.c.b16 %v2330, %v2328
      %v2349 = vpack.c.b16 %v2333, %v2331
      %v2350 = vpack.c.b16 %v2334, %v2332
      %2367 = vmatprep.subr.bf16.mxu0 %v2350
      %2368 = vmatpush1.bf16.msra.mxu0 %v2349
      %2369 = vmatprep.subr.bf16.mxu0 %v2348
      %2370 = vmatpush1.bf16.msra.mxu0 %v2347
      %2371 = vmatprep.subr.bf16.mxu0 %v2346
      %2372 = vmatpush1.bf16.msra.mxu0 %v2345
      %2373 = vmatprep.subr.bf16.mxu0 %v2344
      %2374 = vmatpush1.bf16.msra.mxu0 %v2343
      %2375 = vmatprep.subr.bf16.mxu0 %v2342
      %2376 = vmatpush1.bf16.msra.mxu0 %v2341
      %2377 = vmatprep.subr.bf16.mxu0 %v2340
      %2378 = vmatpush1.bf16.msra.mxu0 %v2339
      %2379 = vmatprep.subr.bf16.mxu0 %v2338
      %2380 = vmatpush1.bf16.msra.mxu0 %v2337
      %2381 = vmatprep.subr.bf16.mxu0 %v2336
      %2382 = vmatpush1.bf16.msra.mxu0 %v2335
      %2383 = vmatprep.subr.bf16.mxu0 0
      %2384 = vmatpush2.bf16.msra.mxu0 0
      %2385 = vmatprep.subr.bf16.mxu0 0
      %2386 = vmatpush2.bf16.msra.mxu0 0
      %2387 = vmatprep.subr.bf16.mxu0 0
      %2388 = vmatpush2.bf16.msra.mxu0 0
      %2389 = vmatprep.subr.bf16.mxu0 0
      %2390 = vmatpush2.bf16.msra.mxu0 0
      %2391 = vmatprep.subr.bf16.mxu0 0
      %2392 = vmatpush2.bf16.msra.mxu0 0
      %2393 = vmatprep.subr.bf16.mxu0 0
      %2394 = vmatpush2.bf16.msra.mxu0 0
      %2395 = vmatprep.subr.bf16.mxu0 0
      %2396 = vmatpush2.bf16.msra.mxu0 0
      %2397 = vmatprep.subr.bf16.mxu0 0
      %2398 = vmatpush2.bf16.msra.mxu0 0
      %2399 = vmatprep.mubr.bf16.mxu0 0
      %2400 = vmatmul.mubr.bf16.gmra.mxu0 %v2243
      %v2401 = vpop.f32.mrf.mxu0
      %v2402 = vadd.f32 %v2280, %v2401
      %v2403 = vpop.f32.mrf.mxu0
      %v2404 = vadd.f32 %v2284, %v2403
      %v2405 = vpop.f32.mrf.mxu0
      %v2406 = vadd.f32 %v2280, %v2405
      %v2407 = vpop.f32.mrf.mxu0
      %v2408 = vadd.f32 %v2284, %v2407
      %2409 = vmatprep.mubr.bf16.mxu0 0
      %2410 = vmatmul.mubr.bf16.gmra.mxu0 %v2244
      %v2411 = vpop.f32.mrf.mxu0
      %v2412 = vadd.f32 %v2280, %v2411
      %v2413 = vpop.f32.mrf.mxu0
      %v2414 = vadd.f32 %v2284, %v2413
      %v2415 = vpop.f32.mrf.mxu0
      %v2416 = vadd.f32 %v2280, %v2415
      %v2417 = vpop.f32.mrf.mxu0
      %v2418 = vadd.f32 %v2284, %v2417
      %2419 = vmatprep.mubr.bf16.mxu0 0
      %2420 = vmatmul.mubr.bf16.gmra.mxu0 %v2245
      %v2421 = vpop.f32.mrf.mxu0
      %v2422 = vadd.f32 %v2280, %v2421
      %v2423 = vpop.f32.mrf.mxu0
      %v2424 = vadd.f32 %v2284, %v2423
      %v2425 = vpop.f32.mrf.mxu0
      %v2426 = vadd.f32 %v2280, %v2425
      %v2427 = vpop.f32.mrf.mxu0
      %v2428 = vadd.f32 %v2284, %v2427
      %2429 = vmatprep.mubr.bf16.mxu0 0
      %2430 = vmatmul.mubr.bf16.gmra.mxu0 %v2246
      %v2431 = vpop.f32.mrf.mxu0
      %v2432 = vadd.f32 %v2280, %v2431
      %v2433 = vpop.f32.mrf.mxu0
      %v2434 = vadd.f32 %v2284, %v2433
      %v2435 = vpop.f32.mrf.mxu0
      %v2436 = vadd.f32 %v2280, %v2435
      %v2437 = vpop.f32.mrf.mxu0
      %v2438 = vadd.f32 %v2284, %v2437
      %2439 = vmatprep.mubr.bf16.mxu0 0
      %2440 = vmatmul.mubr.bf16.gmra.mxu0 %v2247
      %v2441 = vpop.f32.mrf.mxu0
      %v2442 = vadd.f32 %v2280, %v2441
      %v2443 = vpop.f32.mrf.mxu0
      %v2444 = vadd.f32 %v2284, %v2443
      %v2445 = vpop.f32.mrf.mxu0
      %v2446 = vadd.f32 %v2280, %v2445
      %v2447 = vpop.f32.mrf.mxu0
      %v2448 = vadd.f32 %v2284, %v2447
      %2449 = vmatprep.mubr.bf16.mxu0 0
      %2450 = vmatmul.mubr.bf16.gmra.mxu0 %v2248
      %v2451 = vpop.f32.mrf.mxu0
      %v2452 = vadd.f32 %v2280, %v2451
      %v2453 = vpop.f32.mrf.mxu0
      %v2454 = vadd.f32 %v2284, %v2453
      %v2455 = vpop.f32.mrf.mxu0
      %v2456 = vadd.f32 %v2280, %v2455
      %v2457 = vpop.f32.mrf.mxu0
      %v2458 = vadd.f32 %v2284, %v2457
      %2459 = vmatprep.mubr.bf16.mxu0 0
      %2460 = vmatmul.mubr.bf16.gmra.mxu0 %v2249
      %v2461 = vpop.f32.mrf.mxu0
      %v2462 = vadd.f32 %v2280, %v2461
      %v2463 = vpop.f32.mrf.mxu0
      %v2464 = vadd.f32 %v2284, %v2463
      %v2465 = vpop.f32.mrf.mxu0
      %v2466 = vadd.f32 %v2280, %v2465
      %v2467 = vpop.f32.mrf.mxu0
      %v2468 = vadd.f32 %v2284, %v2467
      %2469 = vmatprep.mubr.bf16.mxu0 0
      %2470 = vmatmul.mubr.bf16.gmra.mxu0 %v2250
      %v2471 = vpop.f32.mrf.mxu0
      %v2472 = vadd.f32 %v2280, %v2471
      %v2473 = vpop.f32.mrf.mxu0
      %v2474 = vadd.f32 %v2284, %v2473
      %v2475 = vpop.f32.mrf.mxu0
      %v2476 = vadd.f32 %v2280, %v2475
      %v2477 = vpop.f32.mrf.mxu0
      %v2478 = vadd.f32 %v2284, %v2477
      %2479 = vmatprep.mubr.bf16.mxu0 0
      %2480 = vmatmul.mubr.bf16.gmra.mxu0 %v2251
      %v2481 = vpop.f32.mrf.mxu0
      %v2482 = vadd.f32 %v2280, %v2481
      %v2483 = vpop.f32.mrf.mxu0
      %v2484 = vadd.f32 %v2284, %v2483
      %v2485 = vpop.f32.mrf.mxu0
      %v2486 = vadd.f32 %v2280, %v2485
      %v2487 = vpop.f32.mrf.mxu0
      %v2488 = vadd.f32 %v2284, %v2487
      %2489 = vmatprep.mubr.bf16.mxu0 0
      %2490 = vmatmul.mubr.bf16.gmra.mxu0 %v2252
      %v2491 = vpop.f32.mrf.mxu0
      %v2492 = vadd.f32 %v2280, %v2491
      %v2493 = vpop.f32.mrf.mxu0
      %v2494 = vadd.f32 %v2284, %v2493
      %v2495 = vpop.f32.mrf.mxu0
      %v2496 = vadd.f32 %v2280, %v2495
      %v2497 = vpop.f32.mrf.mxu0
      %v2498 = vadd.f32 %v2284, %v2497
      %2499 = vmatprep.mubr.bf16.mxu0 0
      %2500 = vmatmul.mubr.bf16.gmra.mxu0 %v2253
      %v2501 = vpop.f32.mrf.mxu0
      %v2502 = vadd.f32 %v2280, %v2501
      %v2503 = vpop.f32.mrf.mxu0
      %v2504 = vadd.f32 %v2284, %v2503
      %v2505 = vpop.f32.mrf.mxu0
      %v2506 = vadd.f32 %v2280, %v2505
      %v2507 = vpop.f32.mrf.mxu0
      %v2508 = vadd.f32 %v2284, %v2507
      %2509 = vmatprep.mubr.bf16.mxu0 0
      %2510 = vmatmul.mubr.bf16.gmra.mxu0 %v2254
      %v2511 = vpop.f32.mrf.mxu0
      %v2512 = vadd.f32 %v2280, %v2511
      %v2513 = vpop.f32.mrf.mxu0
      %v2514 = vadd.f32 %v2284, %v2513
      %v2515 = vpop.f32.mrf.mxu0
      %v2516 = vadd.f32 %v2280, %v2515
      %v2517 = vpop.f32.mrf.mxu0
      %v2518 = vadd.f32 %v2284, %v2517
      %2519 = vmatprep.mubr.bf16.mxu0 0
      %2520 = vmatmul.mubr.bf16.gmra.mxu0 %v2255
      %v2521 = vpop.f32.mrf.mxu0
      %v2522 = vadd.f32 %v2280, %v2521
      %v2523 = vpop.f32.mrf.mxu0
      %v2524 = vadd.f32 %v2284, %v2523
      %v2525 = vpop.f32.mrf.mxu0
      %v2526 = vadd.f32 %v2280, %v2525
      %v2527 = vpop.f32.mrf.mxu0
      %v2528 = vadd.f32 %v2284, %v2527
      %2529 = vmatprep.mubr.bf16.mxu0 0
      %2530 = vmatmul.mubr.bf16.gmra.mxu0 %v2256
      %v2531 = vpop.f32.mrf.mxu0
      %v2532 = vadd.f32 %v2280, %v2531
      %v2533 = vpop.f32.mrf.mxu0
      %v2534 = vadd.f32 %v2284, %v2533
      %v2535 = vpop.f32.mrf.mxu0
      %v2536 = vadd.f32 %v2280, %v2535
      %v2537 = vpop.f32.mrf.mxu0
      %v2538 = vadd.f32 %v2284, %v2537
      %2539 = vmatprep.mubr.bf16.mxu0 0
      %2540 = vmatmul.mubr.bf16.gmra.mxu0 %v2257
      %v2541 = vpop.f32.mrf.mxu0
      %v2542 = vadd.f32 %v2280, %v2541
      %v2543 = vpop.f32.mrf.mxu0
      %v2544 = vadd.f32 %v2284, %v2543
      %v2545 = vpop.f32.mrf.mxu0
      %v2546 = vadd.f32 %v2280, %v2545
      %v2547 = vpop.f32.mrf.mxu0
      %v2548 = vadd.f32 %v2284, %v2547
      %2549 = vmatprep.mubr.bf16.mxu0 0
      %2550 = vmatmul.mubr.bf16.gmra.mxu0 %v2258
      %v2551 = vpop.f32.mrf.mxu0
      %v2552 = vadd.f32 %v2280, %v2551
      %v2553 = vpop.f32.mrf.mxu0
      %v2554 = vadd.f32 %v2284, %v2553
      %v2555 = vpop.f32.mrf.mxu0
      %v2556 = vadd.f32 %v2280, %v2555
      %v2557 = vpop.f32.mrf.mxu0
      %v2558 = vadd.f32 %v2284, %v2557
      %2559 = vdwg.mxu0
      %v2560 = vmax.f32 %v2402, 0.0
      %v2561 = vmax.f32 %v2404, 0.0
      %v2562 = vmax.f32 %v2406, 0.0
      %v2563 = vmax.f32 %v2408, 0.0
      %v2564 = vmax.f32 %v2412, 0.0
      %v2565 = vmax.f32 %v2414, 0.0
      %v2566 = vmax.f32 %v2416, 0.0
      %v2567 = vmax.f32 %v2418, 0.0
      %v2568 = vmax.f32 %v2422, 0.0
      %v2569 = vmax.f32 %v2424, 0.0
      %v2570 = vmax.f32 %v2426, 0.0
      %v2571 = vmax.f32 %v2428, 0.0
      %v2572 = vmax.f32 %v2432, 0.0
      %v2573 = vmax.f32 %v2434, 0.0
      %v2574 = vmax.f32 %v2436, 0.0
      %v2575 = vmax.f32 %v2438, 0.0
      %v2576 = vmax.f32 %v2442, 0.0
      %v2577 = vmax.f32 %v2444, 0.0
      %v2578 = vmax.f32 %v2446, 0.0
      %v2579 = vmax.f32 %v2448, 0.0
      %v2580 = vmax.f32 %v2452, 0.0
      %v2581 = vmax.f32 %v2454, 0.0
      %v2582 = vmax.f32 %v2456, 0.0
      %v2583 = vmax.f32 %v2458, 0.0
      %v2584 = vmax.f32 %v2462, 0.0
      %v2585 = vmax.f32 %v2464, 0.0
      %v2586 = vmax.f32 %v2466, 0.0
      %v2587 = vmax.f32 %v2468, 0.0
      %v2588 = vmax.f32 %v2472, 0.0
      %v2589 = vmax.f32 %v2474, 0.0
      %v2590 = vmax.f32 %v2476, 0.0
      %v2591 = vmax.f32 %v2478, 0.0
      %v2592 = vmax.f32 %v2482, 0.0
      %v2593 = vmax.f32 %v2484, 0.0
      %v2594 = vmax.f32 %v2486, 0.0
      %v2595 = vmax.f32 %v2488, 0.0
      %v2596 = vmax.f32 %v2492, 0.0
      %v2597 = vmax.f32 %v2494, 0.0
      %v2598 = vmax.f32 %v2496, 0.0
      %v2599 = vmax.f32 %v2498, 0.0
      %v2600 = vmax.f32 %v2502, 0.0
      %v2601 = vmax.f32 %v2504, 0.0
      %v2602 = vmax.f32 %v2506, 0.0
      %v2603 = vmax.f32 %v2508, 0.0
      %v2604 = vmax.f32 %v2512, 0.0
      %v2605 = vmax.f32 %v2514, 0.0
      %v2606 = vmax.f32 %v2516, 0.0
      %v2607 = vmax.f32 %v2518, 0.0
      %v2608 = vmax.f32 %v2522, 0.0
      %v2609 = vmax.f32 %v2524, 0.0
      %v2610 = vmax.f32 %v2526, 0.0
      %v2611 = vmax.f32 %v2528, 0.0
      %v2612 = vmax.f32 %v2532, 0.0
      %v2613 = vmax.f32 %v2534, 0.0
      %v2614 = vmax.f32 %v2536, 0.0
      %v2615 = vmax.f32 %v2538, 0.0
      %v2616 = vmax.f32 %v2542, 0.0
      %v2617 = vmax.f32 %v2544, 0.0
      %v2618 = vmax.f32 %v2546, 0.0
      %v2619 = vmax.f32 %v2548, 0.0
      %v2620 = vmax.f32 %v2552, 0.0
      %v2621 = vmax.f32 %v2554, 0.0
      %v2622 = vmax.f32 %v2556, 0.0
      %v2623 = vmax.f32 %v2558, 0.0
      %v2624 = vpack.c.bf16 %v2562, %v2560
      %v2625 = vpack.c.bf16 %v2563, %v2561
      %v2626 = vpack.c.bf16 %v2566, %v2564
      %v2627 = vpack.c.bf16 %v2567, %v2565
      %v2628 = vpack.c.bf16 %v2570, %v2568
      %v2629 = vpack.c.bf16 %v2571, %v2569
      %v2630 = vpack.c.bf16 %v2574, %v2572
      %v2631 = vpack.c.bf16 %v2575, %v2573
      %v2632 = vpack.c.bf16 %v2578, %v2576
      %v2633 = vpack.c.bf16 %v2579, %v2577
      %v2634 = vpack.c.bf16 %v2582, %v2580
      %v2635 = vpack.c.bf16 %v2583, %v2581
      %v2636 = vpack.c.bf16 %v2586, %v2584
      %v2637 = vpack.c.bf16 %v2587, %v2585
      %v2638 = vpack.c.bf16 %v2590, %v2588
      %v2639 = vpack.c.bf16 %v2591, %v2589
      %v2640 = vpack.c.bf16 %v2594, %v2592
      %v2641 = vpack.c.bf16 %v2595, %v2593
      %v2642 = vpack.c.bf16 %v2598, %v2596
      %v2643 = vpack.c.bf16 %v2599, %v2597
      %v2644 = vpack.c.bf16 %v2602, %v2600
      %v2645 = vpack.c.bf16 %v2603, %v2601
      %v2646 = vpack.c.bf16 %v2606, %v2604
      %v2647 = vpack.c.bf16 %v2607, %v2605
      %v2648 = vpack.c.bf16 %v2610, %v2608
      %v2649 = vpack.c.bf16 %v2611, %v2609
      %v2650 = vpack.c.bf16 %v2614, %v2612
      %v2651 = vpack.c.bf16 %v2615, %v2613
      %v2652 = vpack.c.bf16 %v2618, %v2616
      %v2653 = vpack.c.bf16 %v2619, %v2617
      %v2654 = vpack.c.bf16 %v2622, %v2620
      %v2655 = vpack.c.bf16 %v2623, %v2621
      %v2656 = vld [vmem:[%s9] sm:$0xf]
      %v2657 = vld [vmem:[%s9 + $0x4] sm:$0xf]
      %v2658 = vld [vmem:[%s9 + $0x8] sm:$0xf]
      %v2659 = vld [vmem:[%s9 + $0xc] sm:$0xf]
      %v2660 = vld [vmem:[%s9 + $0x10] sm:$0xf]
      %v2661 = vld [vmem:[%s9 + $0x14] sm:$0xf]
      %v2662 = vld [vmem:[%s9 + $0x18] sm:$0xf]
      %v2663 = vld [vmem:[%s9 + $0x1c] sm:$0xf]
      %v2664 = vld [vmem:[%s9 + $0x20] sm:$0xf]
      %v2665 = vld [vmem:[%s9 + $0x24] sm:$0xf]
      %v2666 = vld [vmem:[%s9 + $0x28] sm:$0xf]
      %v2667 = vld [vmem:[%s9 + $0x2c] sm:$0xf]
      %v2668 = vld [vmem:[%s9 + $0x30] sm:$0xf]
      %v2669 = vld [vmem:[%s9 + $0x34] sm:$0xf]
      %v2670 = vld [vmem:[%s9 + $0x38] sm:$0xf]
      %v2671 = vld [vmem:[%s9 + $0x3c] sm:$0xf]
      %v2672 = vld [vmem:[%s9 + $0x40] sm:$0xf]
      %v2673 = vld [vmem:[%s9 + $0x44] sm:$0xf]
      %v2674 = vld [vmem:[%s9 + $0x48] sm:$0xf]
      %v2675 = vld [vmem:[%s9 + $0x4c] sm:$0xf]
      %v2676 = vld [vmem:[%s9 + $0x50] sm:$0xf]
      %v2677 = vld [vmem:[%s9 + $0x54] sm:$0xf]
      %v2678 = vld [vmem:[%s9 + $0x58] sm:$0xf]
      %v2679 = vld [vmem:[%s9 + $0x5c] sm:$0xf]
      %v2680 = vld [vmem:[%s9 + $0x60] sm:$0xf]
      %v2681 = vld [vmem:[%s9 + $0x64] sm:$0xf]
      %v2682 = vld [vmem:[%s9 + $0x68] sm:$0xf]
      %v2683 = vld [vmem:[%s9 + $0x6c] sm:$0xf]
      %v2684 = vld [vmem:[%s9 + $0x70] sm:$0xf]
      %v2685 = vld [vmem:[%s9 + $0x74] sm:$0xf]
      %v2686 = vld [vmem:[%s9 + $0x78] sm:$0xf]
      %v2687 = vld [vmem:[%s9 + $0x7c] sm:$0xf]
      %v2688 = vld [vmem:[%s10] sm:$0x1]
      %v2690 = vlaneseq
      %v2691 = vshrl.u32 %v2690, 7
      %v2692 = vsub.s32 0, %v2691
      %v2693 = vrot.slane %v2688, %v2692
      %v2727 = vunpack.c.l.b16 %v2656
      %v2728 = vunpack.c.l.b16 %v2657
      %v2729 = vunpack.c.l.b16 %v2658
      %v2730 = vunpack.c.l.b16 %v2659
      %v2731 = vunpack.c.l.b16 %v2660
      %v2732 = vunpack.c.l.b16 %v2661
      %v2733 = vunpack.c.l.b16 %v2662
      %v2734 = vunpack.c.l.b16 %v2663
      %v2735 = vunpack.c.l.b16 %v2664
      %v2736 = vunpack.c.l.b16 %v2665
      %v2737 = vunpack.c.l.b16 %v2666
      %v2738 = vunpack.c.l.b16 %v2667
      %v2739 = vunpack.c.l.b16 %v2668
      %v2740 = vunpack.c.l.b16 %v2669
      %v2741 = vunpack.c.l.b16 %v2670
      %v2742 = vunpack.c.l.b16 %v2671
      %v2743 = vunpack.c.l.b16 %v2672
      %v2744 = vunpack.c.l.b16 %v2673
      %v2745 = vunpack.c.l.b16 %v2674
      %v2746 = vunpack.c.l.b16 %v2675
      %v2747 = vunpack.c.l.b16 %v2676
      %v2748 = vunpack.c.l.b16 %v2677
      %v2749 = vunpack.c.l.b16 %v2678
      %v2750 = vunpack.c.l.b16 %v2679
      %v2751 = vunpack.c.l.b16 %v2680
      %v2752 = vunpack.c.l.b16 %v2681
      %v2753 = vunpack.c.l.b16 %v2682
      %v2754 = vunpack.c.l.b16 %v2683
      %v2755 = vunpack.c.l.b16 %v2684
      %v2756 = vunpack.c.l.b16 %v2685
      %v2757 = vunpack.c.l.b16 %v2686
      %v2758 = vunpack.c.l.b16 %v2687
      %v2759 = vpack.c.b16 %v2728, %v2727
      %v2760 = vpack.c.b16 %v2730, %v2729
      %v2761 = vpack.c.b16 %v2732, %v2731
      %v2762 = vpack.c.b16 %v2734, %v2733
      %v2763 = vpack.c.b16 %v2736, %v2735
      %v2764 = vpack.c.b16 %v2738, %v2737
      %v2765 = vpack.c.b16 %v2740, %v2739
      %v2766 = vpack.c.b16 %v2742, %v2741
      %v2767 = vpack.c.b16 %v2744, %v2743
      %v2768 = vpack.c.b16 %v2746, %v2745
      %v2769 = vpack.c.b16 %v2748, %v2747
      %v2770 = vpack.c.b16 %v2750, %v2749
      %v2771 = vpack.c.b16 %v2752, %v2751
      %v2772 = vpack.c.b16 %v2754, %v2753
      %v2773 = vpack.c.b16 %v2756, %v2755
      %v2774 = vpack.c.b16 %v2758, %v2757
      %2791 = vmatprep.subr.bf16.mxu0 0
      %2792 = vmatpush1.bf16.msra.mxu0 %v2766
      %2793 = vmatprep.subr.bf16.mxu0 0
      %2794 = vmatpush1.bf16.msra.mxu0 %v2765
      %2795 = vmatprep.subr.bf16.mxu0 0
      %2796 = vmatpush1.bf16.msra.mxu0 %v2764
      %2797 = vmatprep.subr.bf16.mxu0 0
      %2798 = vmatpush1.bf16.msra.mxu0 %v2763
      %2799 = vmatprep.subr.bf16.mxu0 0
      %2800 = vmatpush1.bf16.msra.mxu0 %v2762
      %2801 = vmatprep.subr.bf16.mxu0 0
      %2802 = vmatpush1.bf16.msra.mxu0 %v2761
      %2803 = vmatprep.subr.bf16.mxu0 0
      %2804 = vmatpush1.bf16.msra.mxu0 %v2760
      %2805 = vmatprep.subr.bf16.mxu0 0
      %2806 = vmatpush1.bf16.msra.mxu0 %v2759
      %2807 = vmatprep.subr.bf16.mxu0 0
      %2808 = vmatpush2.bf16.msra.mxu0 %v2774
      %2809 = vmatprep.subr.bf16.mxu0 0
      %2810 = vmatpush2.bf16.msra.mxu0 %v2773
      %2811 = vmatprep.subr.bf16.mxu0 0
      %2812 = vmatpush2.bf16.msra.mxu0 %v2772
      %2813 = vmatprep.subr.bf16.mxu0 0
      %2814 = vmatpush2.bf16.msra.mxu0 %v2771
      %2815 = vmatprep.subr.bf16.mxu0 0
      %2816 = vmatpush2.bf16.msra.mxu0 %v2770
      %2817 = vmatprep.subr.bf16.mxu0 0
      %2818 = vmatpush2.bf16.msra.mxu0 %v2769
      %2819 = vmatprep.subr.bf16.mxu0 0
      %2820 = vmatpush2.bf16.msra.mxu0 %v2768
      %2821 = vmatprep.subr.bf16.mxu0 0
      %2822 = vmatpush2.bf16.msra.mxu0 %v2767
      %2823 = vmatprep.mubr.bf16.mxu0 %v2625
      %2824 = vmatmul.mubr.bf16.gmra.mxu0 %v2624
      %v2825 = vpop.f32.mrf.mxu0
      %v2826 = vadd.f32 %v2693, %v2825
      %v2827 = vpop.f32.mrf.mxu0
      %v2828 = vpop.f32.mrf.mxu0
      %v2829 = vadd.f32 %v2693, %v2828
      %v2830 = vpop.f32.mrf.mxu0
      %2831 = vmatprep.mubr.bf16.mxu0 %v2627
      %2832 = vmatmul.mubr.bf16.gmra.mxu0 %v2626
      %v2833 = vpop.f32.mrf.mxu0
      %v2834 = vadd.f32 %v2693, %v2833
      %v2835 = vpop.f32.mrf.mxu0
      %v2836 = vpop.f32.mrf.mxu0
      %v2837 = vadd.f32 %v2693, %v2836
      %v2838 = vpop.f32.mrf.mxu0
      %2839 = vmatprep.mubr.bf16.mxu0 %v2629
      %2840 = vmatmul.mubr.bf16.gmra.mxu0 %v2628
      %v2841 = vpop.f32.mrf.mxu0
      %v2842 = vadd.f32 %v2693, %v2841
      %v2843 = vpop.f32.mrf.mxu0
      %v2844 = vpop.f32.mrf.mxu0
      %v2845 = vadd.f32 %v2693, %v2844
      %v2846 = vpop.f32.mrf.mxu0
      %2847 = vmatprep.mubr.bf16.mxu0 %v2631
      %2848 = vmatmul.mubr.bf16.gmra.mxu0 %v2630
      %v2849 = vpop.f32.mrf.mxu0
      %v2850 = vadd.f32 %v2693, %v2849
      %v2851 = vpop.f32.mrf.mxu0
      %v2852 = vpop.f32.mrf.mxu0
      %v2853 = vadd.f32 %v2693, %v2852
      %v2854 = vpop.f32.mrf.mxu0
      %2855 = vmatprep.mubr.bf16.mxu0 %v2633
      %2856 = vmatmul.mubr.bf16.gmra.mxu0 %v2632
      %v2857 = vpop.f32.mrf.mxu0
      %v2858 = vadd.f32 %v2693, %v2857
      %v2859 = vpop.f32.mrf.mxu0
      %v2860 = vpop.f32.mrf.mxu0
      %v2861 = vadd.f32 %v2693, %v2860
      %v2862 = vpop.f32.mrf.mxu0
      %2863 = vmatprep.mubr.bf16.mxu0 %v2635
      %2864 = vmatmul.mubr.bf16.gmra.mxu0 %v2634
      %v2865 = vpop.f32.mrf.mxu0
      %v2866 = vadd.f32 %v2693, %v2865
      %v2867 = vpop.f32.mrf.mxu0
      %v2868 = vpop.f32.mrf.mxu0
      %v2869 = vadd.f32 %v2693, %v2868
      %v2870 = vpop.f32.mrf.mxu0
      %2871 = vmatprep.mubr.bf16.mxu0 %v2637
      %2872 = vmatmul.mubr.bf16.gmra.mxu0 %v2636
      %v2873 = vpop.f32.mrf.mxu0
      %v2874 = vadd.f32 %v2693, %v2873
      %v2875 = vpop.f32.mrf.mxu0
      %v2876 = vpop.f32.mrf.mxu0
      %v2877 = vadd.f32 %v2693, %v2876
      %v2878 = vpop.f32.mrf.mxu0
      %2879 = vmatprep.mubr.bf16.mxu0 %v2639
      %2880 = vmatmul.mubr.bf16.gmra.mxu0 %v2638
      %v2881 = vpop.f32.mrf.mxu0
      %v2882 = vadd.f32 %v2693, %v2881
      %v2883 = vpop.f32.mrf.mxu0
      %v2884 = vpop.f32.mrf.mxu0
      %v2885 = vadd.f32 %v2693, %v2884
      %v2886 = vpop.f32.mrf.mxu0
      %2887 = vmatprep.mubr.bf16.mxu0 %v2641
      %2888 = vmatmul.mubr.bf16.gmra.mxu0 %v2640
      %v2889 = vpop.f32.mrf.mxu0
      %v2890 = vadd.f32 %v2693, %v2889
      %v2891 = vpop.f32.mrf.mxu0
      %v2892 = vpop.f32.mrf.mxu0
      %v2893 = vadd.f32 %v2693, %v2892
      %v2894 = vpop.f32.mrf.mxu0
      %2895 = vmatprep.mubr.bf16.mxu0 %v2643
      %2896 = vmatmul.mubr.bf16.gmra.mxu0 %v2642
      %v2897 = vpop.f32.mrf.mxu0
      %v2898 = vadd.f32 %v2693, %v2897
      %v2899 = vpop.f32.mrf.mxu0
      %v2900 = vpop.f32.mrf.mxu0
      %v2901 = vadd.f32 %v2693, %v2900
      %v2902 = vpop.f32.mrf.mxu0
      %2903 = vmatprep.mubr.bf16.mxu0 %v2645
      %2904 = vmatmul.mubr.bf16.gmra.mxu0 %v2644
      %v2905 = vpop.f32.mrf.mxu0
      %v2906 = vadd.f32 %v2693, %v2905
      %v2907 = vpop.f32.mrf.mxu0
      %v2908 = vpop.f32.mrf.mxu0
      %v2909 = vadd.f32 %v2693, %v2908
      %v2910 = vpop.f32.mrf.mxu0
      %2911 = vmatprep.mubr.bf16.mxu0 %v2647
      %2912 = vmatmul.mubr.bf16.gmra.mxu0 %v2646
      %v2913 = vpop.f32.mrf.mxu0
      %v2914 = vadd.f32 %v2693, %v2913
      %v2915 = vpop.f32.mrf.mxu0
      %v2916 = vpop.f32.mrf.mxu0
      %v2917 = vadd.f32 %v2693, %v2916
      %v2918 = vpop.f32.mrf.mxu0
      %2919 = vmatprep.mubr.bf16.mxu0 %v2649
      %2920 = vmatmul.mubr.bf16.gmra.mxu0 %v2648
      %v2921 = vpop.f32.mrf.mxu0
      %v2922 = vadd.f32 %v2693, %v2921
      %v2923 = vpop.f32.mrf.mxu0
      %v2924 = vpop.f32.mrf.mxu0
      %v2925 = vadd.f32 %v2693, %v2924
      %v2926 = vpop.f32.mrf.mxu0
      %2927 = vmatprep.mubr.bf16.mxu0 %v2651
      %2928 = vmatmul.mubr.bf16.gmra.mxu0 %v2650
      %v2929 = vpop.f32.mrf.mxu0
      %v2930 = vadd.f32 %v2693, %v2929
      %v2931 = vpop.f32.mrf.mxu0
      %v2932 = vpop.f32.mrf.mxu0
      %v2933 = vadd.f32 %v2693, %v2932
      %v2934 = vpop.f32.mrf.mxu0
      %2935 = vmatprep.mubr.bf16.mxu0 %v2653
      %2936 = vmatmul.mubr.bf16.gmra.mxu0 %v2652
      %v2937 = vpop.f32.mrf.mxu0
      %v2938 = vadd.f32 %v2693, %v2937
      %v2939 = vpop.f32.mrf.mxu0
      %v2940 = vpop.f32.mrf.mxu0
      %v2941 = vadd.f32 %v2693, %v2940
      %v2942 = vpop.f32.mrf.mxu0
      %2943 = vmatprep.mubr.bf16.mxu0 %v2655
      %2944 = vmatmul.mubr.bf16.gmra.mxu0 %v2654
      %v2945 = vpop.f32.mrf.mxu0
      %v2946 = vadd.f32 %v2693, %v2945
      %v2947 = vpop.f32.mrf.mxu0
      %v2948 = vpop.f32.mrf.mxu0
      %v2949 = vadd.f32 %v2693, %v2948
      %v2950 = vpop.f32.mrf.mxu0
      %2951 = vdwg.mxu0
      %v2952 = vmax.f32 %v2826, 0.0
      %v2953 = vmax.f32 %v2829, 0.0
      %v2954 = vmax.f32 %v2834, 0.0
      %v2955 = vmax.f32 %v2837, 0.0
      %v2956 = vmax.f32 %v2842, 0.0
      %v2957 = vmax.f32 %v2845, 0.0
      %v2958 = vmax.f32 %v2850, 0.0
      %v2959 = vmax.f32 %v2853, 0.0
      %v2960 = vmax.f32 %v2858, 0.0
      %v2961 = vmax.f32 %v2861, 0.0
      %v2962 = vmax.f32 %v2866, 0.0
      %v2963 = vmax.f32 %v2869, 0.0
      %v2964 = vmax.f32 %v2874, 0.0
      %v2965 = vmax.f32 %v2877, 0.0
      %v2966 = vmax.f32 %v2882, 0.0
      %v2967 = vmax.f32 %v2885, 0.0
      %v2968 = vmax.f32 %v2890, 0.0
      %v2969 = vmax.f32 %v2893, 0.0
      %v2970 = vmax.f32 %v2898, 0.0
      %v2971 = vmax.f32 %v2901, 0.0
      %v2972 = vmax.f32 %v2906, 0.0
      %v2973 = vmax.f32 %v2909, 0.0
      %v2974 = vmax.f32 %v2914, 0.0
      %v2975 = vmax.f32 %v2917, 0.0
      %v2976 = vmax.f32 %v2922, 0.0
      %v2977 = vmax.f32 %v2925, 0.0
      %v2978 = vmax.f32 %v2930, 0.0
      %v2979 = vmax.f32 %v2933, 0.0
      %v2980 = vmax.f32 %v2938, 0.0
      %v2981 = vmax.f32 %v2941, 0.0
      %v2982 = vmax.f32 %v2946, 0.0
      %v2983 = vmax.f32 %v2949, 0.0
      %v2984 = vpack.c.bf16 %v2953, %v2952
      %v2985 = vpack.c.bf16 %v2955, %v2954
      %v2986 = vpack.c.bf16 %v2957, %v2956
      %v2987 = vpack.c.bf16 %v2959, %v2958
      %v2988 = vpack.c.bf16 %v2961, %v2960
      %v2989 = vpack.c.bf16 %v2963, %v2962
      %v2990 = vpack.c.bf16 %v2965, %v2964
      %v2991 = vpack.c.bf16 %v2967, %v2966
      %v2992 = vpack.c.bf16 %v2969, %v2968
      %v2993 = vpack.c.bf16 %v2971, %v2970
      %v2994 = vpack.c.bf16 %v2973, %v2972
      %v2995 = vpack.c.bf16 %v2975, %v2974
      %v2996 = vpack.c.bf16 %v2977, %v2976
      %v2997 = vpack.c.bf16 %v2979, %v2978
      %v2998 = vpack.c.bf16 %v2981, %v2980
      %v2999 = vpack.c.bf16 %v2983, %v2982
      %v3000 = vld [vmem:[%s11] sm:$0xf]
      %v3001 = vld [vmem:[%s11 + $0x4] sm:$0xf]
      %v3002 = vld [vmem:[%s11 + $0x8] sm:$0xf]
      %v3003 = vld [vmem:[%s11 + $0xc] sm:$0xf]
      %v3004 = vld [vmem:[%s11 + $0x10] sm:$0xf]
      %v3005 = vld [vmem:[%s11 + $0x14] sm:$0xf]
      %v3006 = vld [vmem:[%s11 + $0x18] sm:$0xf]
      %v3007 = vld [vmem:[%s11 + $0x1c] sm:$0xf]
      %v3008 = vld [vmem:[%s11 + $0x20] sm:$0xf]
      %v3009 = vld [vmem:[%s11 + $0x24] sm:$0xf]
      %v3010 = vld [vmem:[%s11 + $0x28] sm:$0xf]
      %v3011 = vld [vmem:[%s11 + $0x2c] sm:$0xf]
      %v3012 = vld [vmem:[%s11 + $0x30] sm:$0xf]
      %v3013 = vld [vmem:[%s11 + $0x34] sm:$0xf]
      %v3014 = vld [vmem:[%s11 + $0x38] sm:$0xf]
      %v3015 = vld [vmem:[%s11 + $0x3c] sm:$0xf]
      %v3016 = vld [vmem:[%s12] sm:$0x1]
      %v3018 = vlaneseq
      %v3019 = vshrl.u32 %v3018, 7
      %v3020 = vsub.s32 0, %v3019
      %v3021 = vrot.slane %v3016, %v3020
      %v3039 = vunpack.c.l.b16 %v3000
      %v3040 = vunpack.c.l.b16 %v3001
      %v3041 = vunpack.c.l.b16 %v3002
      %v3042 = vunpack.c.l.b16 %v3003
      %v3043 = vunpack.c.l.b16 %v3004
      %v3044 = vunpack.c.l.b16 %v3005
      %v3045 = vunpack.c.l.b16 %v3006
      %v3046 = vunpack.c.l.b16 %v3007
      %v3047 = vunpack.c.l.b16 %v3008
      %v3048 = vunpack.c.l.b16 %v3009
      %v3049 = vunpack.c.l.b16 %v3010
      %v3050 = vunpack.c.l.b16 %v3011
      %v3051 = vunpack.c.l.b16 %v3012
      %v3052 = vunpack.c.l.b16 %v3013
      %v3053 = vunpack.c.l.b16 %v3014
      %v3054 = vunpack.c.l.b16 %v3015
      %v3055 = vpack.c.b16 %v3040, %v3039
      %v3056 = vpack.c.b16 %v3042, %v3041
      %v3057 = vpack.c.b16 %v3044, %v3043
      %v3058 = vpack.c.b16 %v3046, %v3045
      %v3059 = vpack.c.b16 %v3048, %v3047
      %v3060 = vpack.c.b16 %v3050, %v3049
      %v3061 = vpack.c.b16 %v3052, %v3051
      %v3062 = vpack.c.b16 %v3054, %v3053
      %3071 = vmatprep.subr.bf16.mxu0 0
      %3072 = vmatpush1.bf16.msra.mxu0 %v3062
      %3073 = vmatprep.subr.bf16.mxu0 0
      %3074 = vmatpush1.bf16.msra.mxu0 %v3061
      %3075 = vmatprep.subr.bf16.mxu0 0
      %3076 = vmatpush1.bf16.msra.mxu0 %v3060
      %3077 = vmatprep.subr.bf16.mxu0 0
      %3078 = vmatpush1.bf16.msra.mxu0 %v3059
      %3079 = vmatprep.subr.bf16.mxu0 0
      %3080 = vmatpush1.bf16.msra.mxu0 %v3058
      %3081 = vmatprep.subr.bf16.mxu0 0
      %3082 = vmatpush1.bf16.msra.mxu0 %v3057
      %3083 = vmatprep.subr.bf16.mxu0 0
      %3084 = vmatpush1.bf16.msra.mxu0 %v3056
      %3085 = vmatprep.subr.bf16.mxu0 0
      %3086 = vmatpush1.bf16.msra.mxu0 %v3055
      %3087 = vmatprep.subr.bf16.mxu0 0
      %3088 = vmatpush2.bf16.msra.mxu0 0
      %3089 = vmatprep.subr.bf16.mxu0 0
      %3090 = vmatpush2.bf16.msra.mxu0 0
      %3091 = vmatprep.subr.bf16.mxu0 0
      %3092 = vmatpush2.bf16.msra.mxu0 0
      %3093 = vmatprep.subr.bf16.mxu0 0
      %3094 = vmatpush2.bf16.msra.mxu0 0
      %3095 = vmatprep.subr.bf16.mxu0 0
      %3096 = vmatpush2.bf16.msra.mxu0 0
      %3097 = vmatprep.subr.bf16.mxu0 0
      %3098 = vmatpush2.bf16.msra.mxu0 0
      %3099 = vmatprep.subr.bf16.mxu0 0
      %3100 = vmatpush2.bf16.msra.mxu0 0
      %3101 = vmatprep.subr.bf16.mxu0 0
      %3102 = vmatpush2.bf16.msra.mxu0 0
      %3103 = vmatprep.mubr.bf16.mxu0 0
      %3104 = vmatmul.mubr.bf16.gmra.mxu0 %v2984
      %v3105 = vpop.f32.mrf.mxu0
      %v3106 = vadd.f32 %v3021, %v3105
      %v3107 = vpop.f32.mrf.mxu0
      %v3108 = vpop.f32.mrf.mxu0
      %v3109 = vadd.f32 %v3021, %v3108
      %v3110 = vpop.f32.mrf.mxu0
      %3111 = vmatprep.mubr.bf16.mxu0 0
      %3112 = vmatmul.mubr.bf16.gmra.mxu0 %v2985
      %v3113 = vpop.f32.mrf.mxu0
      %v3114 = vadd.f32 %v3021, %v3113
      %v3115 = vpop.f32.mrf.mxu0
      %v3116 = vpop.f32.mrf.mxu0
      %v3117 = vadd.f32 %v3021, %v3116
      %v3118 = vpop.f32.mrf.mxu0
      %3119 = vmatprep.mubr.bf16.mxu0 0
      %3120 = vmatmul.mubr.bf16.gmra.mxu0 %v2986
      %v3121 = vpop.f32.mrf.mxu0
      %v3122 = vadd.f32 %v3021, %v3121
      %v3123 = vpop.f32.mrf.mxu0
      %v3124 = vpop.f32.mrf.mxu0
      %v3125 = vadd.f32 %v3021, %v3124
      %v3126 = vpop.f32.mrf.mxu0
      %3127 = vmatprep.mubr.bf16.mxu0 0
      %3128 = vmatmul.mubr.bf16.gmra.mxu0 %v2987
      %v3129 = vpop.f32.mrf.mxu0
      %v3130 = vadd.f32 %v3021, %v3129
      %v3131 = vpop.f32.mrf.mxu0
      %v3132 = vpop.f32.mrf.mxu0
      %v3133 = vadd.f32 %v3021, %v3132
      %v3134 = vpop.f32.mrf.mxu0
      %3135 = vmatprep.mubr.bf16.mxu0 0
      %3136 = vmatmul.mubr.bf16.gmra.mxu0 %v2988
      %v3137 = vpop.f32.mrf.mxu0
      %v3138 = vadd.f32 %v3021, %v3137
      %v3139 = vpop.f32.mrf.mxu0
      %v3140 = vpop.f32.mrf.mxu0
      %v3141 = vadd.f32 %v3021, %v3140
      %v3142 = vpop.f32.mrf.mxu0
      %3143 = vmatprep.mubr.bf16.mxu0 0
      %3144 = vmatmul.mubr.bf16.gmra.mxu0 %v2989
      %v3145 = vpop.f32.mrf.mxu0
      %v3146 = vadd.f32 %v3021, %v3145
      %v3147 = vpop.f32.mrf.mxu0
      %v3148 = vpop.f32.mrf.mxu0
      %v3149 = vadd.f32 %v3021, %v3148
      %v3150 = vpop.f32.mrf.mxu0
      %3151 = vmatprep.mubr.bf16.mxu0 0
      %3152 = vmatmul.mubr.bf16.gmra.mxu0 %v2990
      %v3153 = vpop.f32.mrf.mxu0
      %v3154 = vadd.f32 %v3021, %v3153
      %v3155 = vpop.f32.mrf.mxu0
      %v3156 = vpop.f32.mrf.mxu0
      %v3157 = vadd.f32 %v3021, %v3156
      %v3158 = vpop.f32.mrf.mxu0
      %3159 = vmatprep.mubr.bf16.mxu0 0
      %3160 = vmatmul.mubr.bf16.gmra.mxu0 %v2991
      %v3161 = vpop.f32.mrf.mxu0
      %v3162 = vadd.f32 %v3021, %v3161
      %v3163 = vpop.f32.mrf.mxu0
      %v3164 = vpop.f32.mrf.mxu0
      %v3165 = vadd.f32 %v3021, %v3164
      %v3166 = vpop.f32.mrf.mxu0
      %3167 = vmatprep.mubr.bf16.mxu0 0
      %3168 = vmatmul.mubr.bf16.gmra.mxu0 %v2992
      %v3169 = vpop.f32.mrf.mxu0
      %v3170 = vadd.f32 %v3021, %v3169
      %v3171 = vpop.f32.mrf.mxu0
      %v3172 = vpop.f32.mrf.mxu0
      %v3173 = vadd.f32 %v3021, %v3172
      %v3174 = vpop.f32.mrf.mxu0
      %3175 = vmatprep.mubr.bf16.mxu0 0
      %3176 = vmatmul.mubr.bf16.gmra.mxu0 %v2993
      %v3177 = vpop.f32.mrf.mxu0
      %v3178 = vadd.f32 %v3021, %v3177
      %v3179 = vpop.f32.mrf.mxu0
      %v3180 = vpop.f32.mrf.mxu0
      %v3181 = vadd.f32 %v3021, %v3180
      %v3182 = vpop.f32.mrf.mxu0
      %3183 = vmatprep.mubr.bf16.mxu0 0
      %3184 = vmatmul.mubr.bf16.gmra.mxu0 %v2994
      %v3185 = vpop.f32.mrf.mxu0
      %v3186 = vadd.f32 %v3021, %v3185
      %v3187 = vpop.f32.mrf.mxu0
      %v3188 = vpop.f32.mrf.mxu0
      %v3189 = vadd.f32 %v3021, %v3188
      %v3190 = vpop.f32.mrf.mxu0
      %3191 = vmatprep.mubr.bf16.mxu0 0
      %3192 = vmatmul.mubr.bf16.gmra.mxu0 %v2995
      %v3193 = vpop.f32.mrf.mxu0
      %v3194 = vadd.f32 %v3021, %v3193
      %v3195 = vpop.f32.mrf.mxu0
      %v3196 = vpop.f32.mrf.mxu0
      %v3197 = vadd.f32 %v3021, %v3196
      %v3198 = vpop.f32.mrf.mxu0
      %3199 = vmatprep.mubr.bf16.mxu0 0
      %3200 = vmatmul.mubr.bf16.gmra.mxu0 %v2996
      %v3201 = vpop.f32.mrf.mxu0
      %v3202 = vadd.f32 %v3021, %v3201
      %v3203 = vpop.f32.mrf.mxu0
      %v3204 = vpop.f32.mrf.mxu0
      %v3205 = vadd.f32 %v3021, %v3204
      %v3206 = vpop.f32.mrf.mxu0
      %3207 = vmatprep.mubr.bf16.mxu0 0
      %3208 = vmatmul.mubr.bf16.gmra.mxu0 %v2997
      %v3209 = vpop.f32.mrf.mxu0
      %v3210 = vadd.f32 %v3021, %v3209
      %v3211 = vpop.f32.mrf.mxu0
      %v3212 = vpop.f32.mrf.mxu0
      %v3213 = vadd.f32 %v3021, %v3212
      %v3214 = vpop.f32.mrf.mxu0
      %3215 = vmatprep.mubr.bf16.mxu0 0
      %3216 = vmatmul.mubr.bf16.gmra.mxu0 %v2998
      %v3217 = vpop.f32.mrf.mxu0
      %v3218 = vadd.f32 %v3021, %v3217
      %v3219 = vpop.f32.mrf.mxu0
      %v3220 = vpop.f32.mrf.mxu0
      %v3221 = vadd.f32 %v3021, %v3220
      %v3222 = vpop.f32.mrf.mxu0
      %3223 = vmatprep.mubr.bf16.mxu0 0
      %3224 = vmatmul.mubr.bf16.gmra.mxu0 %v2999
      %v3225 = vpop.f32.mrf.mxu0
      %v3226 = vadd.f32 %v3021, %v3225
      %v3227 = vpop.f32.mrf.mxu0
      %v3228 = vpop.f32.mrf.mxu0
      %v3229 = vadd.f32 %v3021, %v3228
      %v3230 = vpop.f32.mrf.mxu0
      %3231 = vdwg.mxu0
      %v3232 = vmul.f32 %v3106, %v3106
      %v3233 = vmul.f32 %v3109, %v3109
      %v3234 = vmul.f32 %v3114, %v3114
      %v3235 = vmul.f32 %v3117, %v3117
      %v3236 = vmul.f32 %v3122, %v3122
      %v3237 = vmul.f32 %v3125, %v3125
      %v3238 = vmul.f32 %v3130, %v3130
      %v3239 = vmul.f32 %v3133, %v3133
      %v3240 = vmul.f32 %v3138, %v3138
      %v3241 = vmul.f32 %v3141, %v3141
      %v3242 = vmul.f32 %v3146, %v3146
      %v3243 = vmul.f32 %v3149, %v3149
      %v3244 = vmul.f32 %v3154, %v3154
      %v3245 = vmul.f32 %v3157, %v3157
      %v3246 = vmul.f32 %v3162, %v3162
      %v3247 = vmul.f32 %v3165, %v3165
      %v3248 = vmul.f32 %v3170, %v3170
      %v3249 = vmul.f32 %v3173, %v3173
      %v3250 = vmul.f32 %v3178, %v3178
      %v3251 = vmul.f32 %v3181, %v3181
      %v3252 = vmul.f32 %v3186, %v3186
      %v3253 = vmul.f32 %v3189, %v3189
      %v3254 = vmul.f32 %v3194, %v3194
      %v3255 = vmul.f32 %v3197, %v3197
      %v3256 = vmul.f32 %v3202, %v3202
      %v3257 = vmul.f32 %v3205, %v3205
      %v3258 = vmul.f32 %v3210, %v3210
      %v3259 = vmul.f32 %v3213, %v3213
      %v3260 = vmul.f32 %v3218, %v3218
      %v3261 = vmul.f32 %v3221, %v3221
      %v3262 = vmul.f32 %v3226, %v3226
      %v3263 = vmul.f32 %v3229, %v3229
      %vm3264 = vcmask 523264
      %v3265 = vsel %vm3264, %v3232, 0.0
      %3266 = vadd.xlane.f32.xlu0 %v3265
      %v3267 = vpop.xlane.xlu0 %3266
      %v3268 = vsel %vm3264, %v3233, 0.0
      %3269 = vadd.xlane.f32.xlu0 %v3268
      %v3270 = vpop.xlane.xlu0 %3269
      %v3271 = vsel %vm3264, %v3234, 0.0
      %3272 = vadd.xlane.f32.xlu0 %v3271
      %v3273 = vpop.xlane.xlu0 %3272
      %v3274 = vsel %vm3264, %v3235, 0.0
      %3275 = vadd.xlane.f32.xlu0 %v3274
      %v3276 = vpop.xlane.xlu0 %3275
      %v3277 = vsel %vm3264, %v3236, 0.0
      %3278 = vadd.xlane.f32.xlu0 %v3277
      %v3279 = vpop.xlane.xlu0 %3278
      %v3280 = vsel %vm3264, %v3237, 0.0
      %3281 = vadd.xlane.f32.xlu0 %v3280
      %v3282 = vpop.xlane.xlu0 %3281
      %v3283 = vsel %vm3264, %v3238, 0.0
      %3284 = vadd.xlane.f32.xlu0 %v3283
      %v3285 = vpop.xlane.xlu0 %3284
      %v3286 = vsel %vm3264, %v3239, 0.0
      %3287 = vadd.xlane.f32.xlu0 %v3286
      %v3288 = vpop.xlane.xlu0 %3287
      %v3289 = vsel %vm3264, %v3240, 0.0
      %3290 = vadd.xlane.f32.xlu0 %v3289
      %v3291 = vpop.xlane.xlu0 %3290
      %v3292 = vsel %vm3264, %v3241, 0.0
      %3293 = vadd.xlane.f32.xlu0 %v3292
      %v3294 = vpop.xlane.xlu0 %3293
      %v3295 = vsel %vm3264, %v3242, 0.0
      %3296 = vadd.xlane.f32.xlu0 %v3295
      %v3297 = vpop.xlane.xlu0 %3296
      %v3298 = vsel %vm3264, %v3243, 0.0
      %3299 = vadd.xlane.f32.xlu0 %v3298
      %v3300 = vpop.xlane.xlu0 %3299
      %v3301 = vsel %vm3264, %v3244, 0.0
      %3302 = vadd.xlane.f32.xlu0 %v3301
      %v3303 = vpop.xlane.xlu0 %3302
      %v3304 = vsel %vm3264, %v3245, 0.0
      %3305 = vadd.xlane.f32.xlu0 %v3304
      %v3306 = vpop.xlane.xlu0 %3305
      %v3307 = vsel %vm3264, %v3246, 0.0
      %3308 = vadd.xlane.f32.xlu0 %v3307
      %v3309 = vpop.xlane.xlu0 %3308
      %v3310 = vsel %vm3264, %v3247, 0.0
      %3311 = vadd.xlane.f32.xlu0 %v3310
      %v3312 = vpop.xlane.xlu0 %3311
      %v3313 = vsel %vm3264, %v3248, 0.0
      %3314 = vadd.xlane.f32.xlu0 %v3313
      %v3315 = vpop.xlane.xlu0 %3314
      %v3316 = vsel %vm3264, %v3249, 0.0
      %3317 = vadd.xlane.f32.xlu0 %v3316
      %v3318 = vpop.xlane.xlu0 %3317
      %v3319 = vsel %vm3264, %v3250, 0.0
      %3320 = vadd.xlane.f32.xlu0 %v3319
      %v3321 = vpop.xlane.xlu0 %3320
      %v3322 = vsel %vm3264, %v3251, 0.0
      %3323 = vadd.xlane.f32.xlu0 %v3322
      %v3324 = vpop.xlane.xlu0 %3323
      %v3325 = vsel %vm3264, %v3252, 0.0
      %3326 = vadd.xlane.f32.xlu0 %v3325
      %v3327 = vpop.xlane.xlu0 %3326
      %v3328 = vsel %vm3264, %v3253, 0.0
      %3329 = vadd.xlane.f32.xlu0 %v3328
      %v3330 = vpop.xlane.xlu0 %3329
      %v3331 = vsel %vm3264, %v3254, 0.0
      %3332 = vadd.xlane.f32.xlu0 %v3331
      %v3333 = vpop.xlane.xlu0 %3332
      %v3334 = vsel %vm3264, %v3255, 0.0
      %3335 = vadd.xlane.f32.xlu0 %v3334
      %v3336 = vpop.xlane.xlu0 %3335
      %v3337 = vsel %vm3264, %v3256, 0.0
      %3338 = vadd.xlane.f32.xlu0 %v3337
      %v3339 = vpop.xlane.xlu0 %3338
      %v3340 = vsel %vm3264, %v3257, 0.0
      %3341 = vadd.xlane.f32.xlu0 %v3340
      %v3342 = vpop.xlane.xlu0 %3341
      %v3343 = vsel %vm3264, %v3258, 0.0
      %3344 = vadd.xlane.f32.xlu0 %v3343
      %v3345 = vpop.xlane.xlu0 %3344
      %v3346 = vsel %vm3264, %v3259, 0.0
      %3347 = vadd.xlane.f32.xlu0 %v3346
      %v3348 = vpop.xlane.xlu0 %3347
      %v3349 = vsel %vm3264, %v3260, 0.0
      %3350 = vadd.xlane.f32.xlu0 %v3349
      %v3351 = vpop.xlane.xlu0 %3350
      %v3352 = vsel %vm3264, %v3261, 0.0
      %3353 = vadd.xlane.f32.xlu0 %v3352
      %v3354 = vpop.xlane.xlu0 %3353
      %v3355 = vsel %vm3264, %v3262, 0.0
      %3356 = vadd.xlane.f32.xlu0 %v3355
      %v3357 = vpop.xlane.xlu0 %3356
      %v3358 = vsel %vm3264, %v3263, 0.0
      %3359 = vadd.xlane.f32.xlu0 %v3358
      %v3360 = vpop.xlane.xlu0 %3359
      %v3361 = vmax.f32 %v3267, 1e-24
      %v3362 = vmax.f32 %v3270, 1e-24
      %v3363 = vmax.f32 %v3273, 1e-24
      %v3364 = vmax.f32 %v3276, 1e-24
      %v3365 = vmax.f32 %v3279, 1e-24
      %v3366 = vmax.f32 %v3282, 1e-24
      %v3367 = vmax.f32 %v3285, 1e-24
      %v3368 = vmax.f32 %v3288, 1e-24
      %v3369 = vmax.f32 %v3291, 1e-24
      %v3370 = vmax.f32 %v3294, 1e-24
      %v3371 = vmax.f32 %v3297, 1e-24
      %v3372 = vmax.f32 %v3300, 1e-24
      %v3373 = vmax.f32 %v3303, 1e-24
      %v3374 = vmax.f32 %v3306, 1e-24
      %v3375 = vmax.f32 %v3309, 1e-24
      %v3376 = vmax.f32 %v3312, 1e-24
      %v3377 = vmax.f32 %v3315, 1e-24
      %v3378 = vmax.f32 %v3318, 1e-24
      %v3379 = vmax.f32 %v3321, 1e-24
      %v3380 = vmax.f32 %v3324, 1e-24
      %v3381 = vmax.f32 %v3327, 1e-24
      %v3382 = vmax.f32 %v3330, 1e-24
      %v3383 = vmax.f32 %v3333, 1e-24
      %v3384 = vmax.f32 %v3336, 1e-24
      %v3385 = vmax.f32 %v3339, 1e-24
      %v3386 = vmax.f32 %v3342, 1e-24
      %v3387 = vmax.f32 %v3345, 1e-24
      %v3388 = vmax.f32 %v3348, 1e-24
      %v3389 = vmax.f32 %v3351, 1e-24
      %v3390 = vmax.f32 %v3354, 1e-24
      %v3391 = vmax.f32 %v3357, 1e-24
      %v3392 = vmax.f32 %v3360, 1e-24
      %v3393 = vrsqrt.pop %v3361
      %v3394 = vrsqrt.pop %v3362
      %v3395 = vrsqrt.pop %v3363
      %v3396 = vrsqrt.pop %v3364
      %v3397 = vrsqrt.pop %v3365
      %v3398 = vrsqrt.pop %v3366
      %v3399 = vrsqrt.pop %v3367
      %v3400 = vrsqrt.pop %v3368
      %v3401 = vrsqrt.pop %v3369
      %v3402 = vrsqrt.pop %v3370
      %v3403 = vrsqrt.pop %v3371
      %v3404 = vrsqrt.pop %v3372
      %v3405 = vrsqrt.pop %v3373
      %v3406 = vrsqrt.pop %v3374
      %v3407 = vrsqrt.pop %v3375
      %v3408 = vrsqrt.pop %v3376
      %v3409 = vrsqrt.pop %v3377
      %v3410 = vrsqrt.pop %v3378
      %v3411 = vrsqrt.pop %v3379
      %v3412 = vrsqrt.pop %v3380
      %v3413 = vrsqrt.pop %v3381
      %v3414 = vrsqrt.pop %v3382
      %v3415 = vrsqrt.pop %v3383
      %v3416 = vrsqrt.pop %v3384
      %v3417 = vrsqrt.pop %v3385
      %v3418 = vrsqrt.pop %v3386
      %v3419 = vrsqrt.pop %v3387
      %v3420 = vrsqrt.pop %v3388
      %v3421 = vrsqrt.pop %v3389
      %v3422 = vrsqrt.pop %v3390
      %v3423 = vrsqrt.pop %v3391
      %v3424 = vrsqrt.pop %v3392
      %v3425 = vmul.f32 %v3106, %v3393
      %v3426 = vmul.f32 %v3109, %v3394
      %v3427 = vmul.f32 %v3114, %v3395
      %v3428 = vmul.f32 %v3117, %v3396
      %v3429 = vmul.f32 %v3122, %v3397
      %v3430 = vmul.f32 %v3125, %v3398
      %v3431 = vmul.f32 %v3130, %v3399
      %v3432 = vmul.f32 %v3133, %v3400
      %v3433 = vmul.f32 %v3138, %v3401
      %v3434 = vmul.f32 %v3141, %v3402
      %v3435 = vmul.f32 %v3146, %v3403
      %v3436 = vmul.f32 %v3149, %v3404
      %v3437 = vmul.f32 %v3154, %v3405
      %v3438 = vmul.f32 %v3157, %v3406
      %v3439 = vmul.f32 %v3162, %v3407
      %v3440 = vmul.f32 %v3165, %v3408
      %v3441 = vmul.f32 %v3170, %v3409
      %v3442 = vmul.f32 %v3173, %v3410
      %v3443 = vmul.f32 %v3178, %v3411
      %v3444 = vmul.f32 %v3181, %v3412
      %v3445 = vmul.f32 %v3186, %v3413
      %v3446 = vmul.f32 %v3189, %v3414
      %v3447 = vmul.f32 %v3194, %v3415
      %v3448 = vmul.f32 %v3197, %v3416
      %v3449 = vmul.f32 %v3202, %v3417
      %v3450 = vmul.f32 %v3205, %v3418
      %v3451 = vmul.f32 %v3210, %v3419
      %v3452 = vmul.f32 %v3213, %v3420
      %v3453 = vmul.f32 %v3218, %v3421
      %v3454 = vmul.f32 %v3221, %v3422
      %v3455 = vmul.f32 %v3226, %v3423
      %v3456 = vmul.f32 %v3229, %v3424
      %v3457 = vpack.c.bf16 %v3426, %v3425
      %v3458 = vpack.c.bf16 %v3428, %v3427
      %v3459 = vpack.c.bf16 %v3430, %v3429
      %v3460 = vpack.c.bf16 %v3432, %v3431
      %v3461 = vpack.c.bf16 %v3434, %v3433
      %v3462 = vpack.c.bf16 %v3436, %v3435
      %v3463 = vpack.c.bf16 %v3438, %v3437
      %v3464 = vpack.c.bf16 %v3440, %v3439
      %v3465 = vpack.c.bf16 %v3442, %v3441
      %v3466 = vpack.c.bf16 %v3444, %v3443
      %v3467 = vpack.c.bf16 %v3446, %v3445
      %v3468 = vpack.c.bf16 %v3448, %v3447
      %v3469 = vpack.c.bf16 %v3450, %v3449
      %v3470 = vpack.c.bf16 %v3452, %v3451
      %v3471 = vpack.c.bf16 %v3454, %v3453
      %v3472 = vpack.c.bf16 %v3456, %v3455
      %v3489 = vunpack.c.l.b16 %v3457
      %v3490 = vunpack.c.h.b16 %v3457
      %v3491 = vunpack.c.l.b16 %v3458
      %v3492 = vunpack.c.h.b16 %v3458
      %v3493 = vunpack.c.l.b16 %v3459
      %v3494 = vunpack.c.h.b16 %v3459
      %v3495 = vunpack.c.l.b16 %v3460
      %v3496 = vunpack.c.h.b16 %v3460
      %v3497 = vunpack.c.l.b16 %v3461
      %v3498 = vunpack.c.h.b16 %v3461
      %v3499 = vunpack.c.l.b16 %v3462
      %v3500 = vunpack.c.h.b16 %v3462
      %v3501 = vunpack.c.l.b16 %v3463
      %v3502 = vunpack.c.h.b16 %v3463
      %v3503 = vunpack.c.l.b16 %v3464
      %v3504 = vunpack.c.h.b16 %v3464
      %v3505 = vunpack.c.l.b16 %v3465
      %v3506 = vunpack.c.h.b16 %v3465
      %v3507 = vunpack.c.l.b16 %v3466
      %v3508 = vunpack.c.h.b16 %v3466
      %v3509 = vunpack.c.l.b16 %v3467
      %v3510 = vunpack.c.h.b16 %v3467
      %v3511 = vunpack.c.l.b16 %v3468
      %v3512 = vunpack.c.h.b16 %v3468
      %v3513 = vunpack.c.l.b16 %v3469
      %v3514 = vunpack.c.h.b16 %v3469
      %v3515 = vunpack.c.l.b16 %v3470
      %v3516 = vunpack.c.h.b16 %v3470
      %v3517 = vunpack.c.l.b16 %v3471
      %v3518 = vunpack.c.h.b16 %v3471
      %v3519 = vunpack.c.l.b16 %v3472
      %v3520 = vunpack.c.h.b16 %v3472
      %v3521 = vpack.c.b16 %v3489, %v3489
      %v3522 = vpack.c.b16 %v3490, %v3490
      %v3523 = vpack.c.b16 %v3491, %v3491
      %v3524 = vpack.c.b16 %v3492, %v3492
      %v3525 = vpack.c.b16 %v3493, %v3493
      %v3526 = vpack.c.b16 %v3494, %v3494
      %v3527 = vpack.c.b16 %v3495, %v3495
      %v3528 = vpack.c.b16 %v3496, %v3496
      %v3529 = vpack.c.b16 %v3497, %v3497
      %v3530 = vpack.c.b16 %v3498, %v3498
      %v3531 = vpack.c.b16 %v3499, %v3499
      %v3532 = vpack.c.b16 %v3500, %v3500
      %v3533 = vpack.c.b16 %v3501, %v3501
      %v3534 = vpack.c.b16 %v3502, %v3502
      %v3535 = vpack.c.b16 %v3503, %v3503
      %v3536 = vpack.c.b16 %v3504, %v3504
      %v3537 = vpack.c.b16 %v3505, %v3505
      %v3538 = vpack.c.b16 %v3506, %v3506
      %v3539 = vpack.c.b16 %v3507, %v3507
      %v3540 = vpack.c.b16 %v3508, %v3508
      %v3541 = vpack.c.b16 %v3509, %v3509
      %v3542 = vpack.c.b16 %v3510, %v3510
      %v3543 = vpack.c.b16 %v3511, %v3511
      %v3544 = vpack.c.b16 %v3512, %v3512
      %v3545 = vpack.c.b16 %v3513, %v3513
      %v3546 = vpack.c.b16 %v3514, %v3514
      %v3547 = vpack.c.b16 %v3515, %v3515
      %v3548 = vpack.c.b16 %v3516, %v3516
      %v3549 = vpack.c.b16 %v3517, %v3517
      %v3550 = vpack.c.b16 %v3518, %v3518
      %v3551 = vpack.c.b16 %v3519, %v3519
      %v3552 = vpack.c.b16 %v3520, %v3520
      %vm3585 = vcmask 519168
      %3586 = vst.msk [vmem:[%s464] sm:$0xf] %vm3585, %v3521
      %3587 = vst.msk [vmem:[%s464 + $0x4] sm:$0xf] %vm3585, %v3522
      %3588 = vst.msk [vmem:[%s464 + $0x8] sm:$0xf] %vm3585, %v3523
      %3589 = vst.msk [vmem:[%s464 + $0xc] sm:$0xf] %vm3585, %v3524
      %3590 = vst.msk [vmem:[%s464 + $0x10] sm:$0xf] %vm3585, %v3525
      %3591 = vst.msk [vmem:[%s464 + $0x14] sm:$0xf] %vm3585, %v3526
      %3592 = vst.msk [vmem:[%s464 + $0x18] sm:$0xf] %vm3585, %v3527
      %3593 = vst.msk [vmem:[%s464 + $0x1c] sm:$0xf] %vm3585, %v3528
      %3594 = vst.msk [vmem:[%s464 + $0x20] sm:$0xf] %vm3585, %v3529
      %3595 = vst.msk [vmem:[%s464 + $0x24] sm:$0xf] %vm3585, %v3530
      %3596 = vst.msk [vmem:[%s464 + $0x28] sm:$0xf] %vm3585, %v3531
      %3597 = vst.msk [vmem:[%s464 + $0x2c] sm:$0xf] %vm3585, %v3532
      %3598 = vst.msk [vmem:[%s464 + $0x30] sm:$0xf] %vm3585, %v3533
      %3599 = vst.msk [vmem:[%s464 + $0x34] sm:$0xf] %vm3585, %v3534
      %3600 = vst.msk [vmem:[%s464 + $0x38] sm:$0xf] %vm3585, %v3535
      %3601 = vst.msk [vmem:[%s464 + $0x3c] sm:$0xf] %vm3585, %v3536
      %3602 = vst.msk [vmem:[%s464 + $0x40] sm:$0xf] %vm3585, %v3537
      %3603 = vst.msk [vmem:[%s464 + $0x44] sm:$0xf] %vm3585, %v3538
      %3604 = vst.msk [vmem:[%s464 + $0x48] sm:$0xf] %vm3585, %v3539
      %3605 = vst.msk [vmem:[%s464 + $0x4c] sm:$0xf] %vm3585, %v3540
      %3606 = vst.msk [vmem:[%s464 + $0x50] sm:$0xf] %vm3585, %v3541
      %3607 = vst.msk [vmem:[%s464 + $0x54] sm:$0xf] %vm3585, %v3542
      %3608 = vst.msk [vmem:[%s464 + $0x58] sm:$0xf] %vm3585, %v3543
      %3609 = vst.msk [vmem:[%s464 + $0x5c] sm:$0xf] %vm3585, %v3544
      %3610 = vst.msk [vmem:[%s464 + $0x60] sm:$0xf] %vm3585, %v3545
      %3611 = vst.msk [vmem:[%s464 + $0x64] sm:$0xf] %vm3585, %v3546
      %3612 = vst.msk [vmem:[%s464 + $0x68] sm:$0xf] %vm3585, %v3547
      %3613 = vst.msk [vmem:[%s464 + $0x6c] sm:$0xf] %vm3585, %v3548
      %3614 = vst.msk [vmem:[%s464 + $0x70] sm:$0xf] %vm3585, %v3549
      %3615 = vst.msk [vmem:[%s464 + $0x74] sm:$0xf] %vm3585, %v3550
      %3616 = vst.msk [vmem:[%s464 + $0x78] sm:$0xf] %vm3585, %v3551
      %3617 = vst.msk [vmem:[%s464 + $0x7c] sm:$0xf] %vm3585, %v3552
      %s3618 = smul.u32 32, %s24
      %p3619 = scmp.lt.s32.totalorder %s3618, 63
      %s3620 = scalar_select %p3619, %s3618, 63
      %s3621 = smul.addr %s3620, 4
      %s3622 = scalar_lea.vmem %s13, %s3621
      // Predicated region
      $region73: #{tpu_custom_call.1} parent=71 // pred_check
        %p3623 = pneg %p325
      $region74: #{tpu_custom_call.1} parent=71 // pred_check_branch
        %3625 = sbr.rel (%p3623) target = $region76
      $region75: #{tpu_custom_call.1} parent=71 // pred_region
        %s3626 = smul.u32 32, %s24
      $region76: #{tpu_custom_call.1} parent=71 // pred_fallthru
        _
    $region72: #{tpu_custom_call.1} parent=5 // pred_fallthru
      _
    %p3627 = scmp.le.s32.totalorder 2, %s19
    // Predicated region
    $region77: #{tpu_custom_call.1} parent=5 // pred_check
      %p3628 = pneg %p3627
    $region78: #{tpu_custom_call.1} parent=5 // pred_check_branch
      %3630 = sbr.rel (%p3628) target = $region80
    $region79: #{tpu_custom_call.1} parent=5 // pred_region
      %s3631 = ssub.s32 %s19, 2
      // Predicated region
      $region81: #{tpu_custom_call.1} parent=79 // pred_check
        %p3632 = pneg %p331
      $region82: #{tpu_custom_call.1} parent=79 // pred_check_branch
        %3634 = sbr.rel (%p3632) target = $region84
      $region83: #{tpu_custom_call.1} parent=79 // pred_region
        %s3635 = smul.u32 32, %s25
        %p3636 = scmp.lt.s32.totalorder %s3635, 63
        %s3637 = scalar_select %p3636, %s3635, 63
        %s3638 = smul.addr %s3637, 4
        %s3639 = scalar_lea.vmem %s13, %s3638
      $region84: #{tpu_custom_call.1} parent=79 // pred_fallthru
        _
    $region80: #{tpu_custom_call.1} parent=5 // pred_fallthru
      _
  $region6: #{tpu_custom_call.1} parent=0 // loop_footer
    %s23 = sadd.s32 1, %s19
  $region7: #{tpu_custom_call.1} parent=0 // loop_footer_branch
    %18 = sbr.rel target = $region3
  $region8: #{tpu_custom_call.1} parent=0 // loop_exit
    _

</llo_original>
